<compile_context>
chip_gen: v7x
topology: tpu7x:2x2x1
jax: 0.10.0
libtpu: 0.0.40
codegen_flags: <defaults>
</compile_context>

<pallas_src>
import functools

import jax
import jax.numpy as jnp
import numpy as np
from jax import lax
from jax.experimental import pallas as pl
from jax.experimental.pallas import tpu as pltpu


# =============================================================================
# Helpers
# =============================================================================
def _round_up(x, m):
    return ((x + m - 1) // m) * m


def _pick_chunk(total, target):
    """Largest divisor of `total` <= target (prefer even, non-overlapping
    chunks); fall back to clamped/overlapping tail chunking otherwise."""
    target = max(1, min(total, target))
    for c in range(target, max(1, target // 2) - 1, -1):
        if total % c == 0:
            return c, True
    return target, False


def _detect_vmem_limit():
    """Generation-aware VMEM limit (~3/4 of physical): ~96 MiB on v5e/v6e
    (128 MiB VMEM), ~48 MiB on v7x (64 MiB/TC). Safe fallback if unknown."""
    try:
        info_fn = getattr(pltpu, "get_tpu_info", None)
        if info_fn is not None:
            cap = getattr(info_fn(), "vmem_capacity_bytes", None)
            if cap:
                return int(cap) * 3 // 4
    except Exception:
        pass
    return 64 * 1024 * 1024


_VMEM_LIMIT_BYTES = _detect_vmem_limit()
_BUFFERED_SUPPORTED = hasattr(pl, "Buffered")


# =============================================================================
# Fused Bottleneck kernel (one batch image per grid step)
# =============================================================================
def _bottleneck_kernel(H, W, Ho, Wo, Hp, Wp, stride, tr_in, even_in, tr_out,
                       even_out, has_proj, has_xsc, *refs):
    it = iter(refs)
    x_ref = next(it)
    xsc_ref = next(it) if has_xsc else None
    w1_ref = next(it)
    b1_ref = next(it)
    w2_ref = next(it)      # (3, 3*planes, planes): BN-folded, im2col-reshaped
    b2_ref = next(it)
    w3_ref = next(it)
    b3_ref = next(it)
    if has_proj:
        wsc_ref = next(it)
        bsc_ref = next(it)
    o_ref = next(it)
    h1p_ref = next(it)     # bf16 scratch: padded conv1 output (Hp, Wp, planes)

    cin = x_ref.shape[-1]
    planes = w1_ref.shape[-1]
    cout = o_ref.shape[-1]
    bf16 = jnp.bfloat16
    f32 = jnp.float32

    # ---- Halo-only zeroing of the scratch (interior is fully overwritten by
    # Stage 1 every step; redone per step because scratch is per-core when the
    # batch grid is split across TensorCores). All stores are 8-sublane
    # aligned; generously-zeroed interior columns are rewritten by Stage 1.
    h1p_ref[pl.ds(0, 1), :, :] = jnp.zeros((1, Wp, planes), bf16)          # top
    h1p_ref[pl.ds(H + 1, Hp - H - 1), :, :] = jnp.zeros(
        (Hp - H - 1, Wp, planes), bf16)                                    # bottom
    h1p_ref[:, pl.ds(0, 8), :] = jnp.zeros((Hp, 8, planes), bf16)          # left
    wr = ((W + 1) // 8) * 8
    h1p_ref[:, pl.ds(wr, Wp - wr), :] = jnp.zeros((Hp, Wp - wr, planes), bf16)

    # ---- Hoisted bias loads (not re-emitted per chunk) ----------------------
    b1 = b1_ref[...]
    b2 = b2_ref[...]
    b3 = b3_ref[...]
    bsc = bsc_ref[...] if has_proj else None

    # ---- Stage 1: 1x1 conv (BN folded) + bias + ReLU, input-row chunks ------
    n_in = pl.cdiv(H, tr_in)

    def stage1(c, carry):
        r0 = c * tr_in
        if even_in:
            r0 = pl.multiple_of(r0, tr_in)
        else:
            r0 = jnp.minimum(r0, H - tr_in)     # clamped tail (idempotent rewrite)
        xa = x_ref[0, pl.ds(r0, tr_in), :, :]   # (tr_in, W, cin) bf16
        h1 = jnp.dot(xa.reshape(tr_in * W, cin), w1_ref[...],
                     preferred_element_type=f32)
        h1 = jnp.maximum(h1 + b1, 0.0).astype(bf16)   # ReLU + cast once
        h1p_ref[pl.ds(r0 + 1, tr_in), pl.ds(1, W), :] = h1.reshape(
            tr_in, W, planes)
        return carry

    lax.fori_loop(0, n_in, stage1, 0)

    # ---- Stages 2+3 (+shortcut), output-row chunks ---------------------------
    n_out = pl.cdiv(Ho, tr_out)

    def stage23(c, carry):
        r0 = c * tr_out
        if even_out:
            r0 = pl.multiple_of(r0, tr_out)
        else:
            r0 = jnp.minimum(r0, Ho - tr_out)

        m = tr_out * Wo

        # 3x3 conv (pad=1, stride): per kernel-row im2col slab so each MXU
        # matmul runs with K = 3*planes; the 3 partial products form one f32
        # accumulation chain.
        acc = None
        for kh in range(3):
            if stride == 1:
                slab = h1p_ref[pl.ds(r0 + kh, tr_out), :, :]   # (tr_out, Wp, p)
            else:
                # Contiguous row load + value-level subsample (no strided DMA).
                rows = h1p_ref[pl.ds(stride * r0 + kh, stride * tr_out), :, :]
                slab = rows.reshape(tr_out, stride, Wp, planes)[:, 0]
            taps = []
            for kw in range(3):
                if stride == 1:
                    taps.append(slab[:, kw:kw + Wo, :])
                else:
                    t = slab[:, kw:kw + stride * Wo, :]
                    taps.append(t.reshape(tr_out, Wo, stride, planes)[:, :, 0, :])
            cat = jnp.concatenate(taps, axis=-1).reshape(m, 3 * planes)
            d = jnp.dot(cat, w2_ref[kh], preferred_element_type=f32)
            acc = d if acc is None else acc + d
        y2 = jnp.maximum(acc + b2, 0.0).astype(bf16)

        # 1x1 expansion conv + bias (f32 accumulate).
        out = jnp.dot(y2, w3_ref[...], preferred_element_type=f32) + b3

        # Shortcut.
        if has_proj:
            if has_xsc:
                xs = xsc_ref[0, pl.ds(r0, tr_out), :, :]   # wrapper-pre-strided x
            else:
                xs = x_ref[0, pl.ds(r0, tr_out), :, :]
            out = out + (jnp.dot(xs.reshape(m, cin), wsc_ref[...],
                                 preferred_element_type=f32) + bsc)
        else:
            out = out + x_ref[0, pl.ds(r0, tr_out), :, :].reshape(
                m, cout).astype(f32)

        out = jnp.maximum(out, 0.0)
        o_ref[0, pl.ds(r0, tr_out), :, :] = out.reshape(
            tr_out, Wo, cout).astype(o_ref.dtype)
        return carry

    lax.fori_loop(0, n_out, stage23, 0)


# =============================================================================
# Wrapper
# =============================================================================
def _fold_weights(params, has_proj):
    """Fold BN scale into bf16 conv weights; biases stay f32."""
    fw = {
        "w1": (params["w1"] * params["s1"]).astype(jnp.bfloat16),
        "b1": params["b1"],
        "w2": (params["w2"] * params["s2"]).astype(jnp.bfloat16),
        "b2": params["b2"],
        "w3": (params["w3"] * params["s3"]).astype(jnp.bfloat16),
        "b3": params["b3"],
    }
    if has_proj:
        fw["wsc"] = (params["wsc"] * params["ssc"]).astype(jnp.bfloat16)
        fw["bsc"] = params["bsc"]
    return fw


@functools.partial(jax.jit, static_argnums=(2, 3))
def _forward_impl(params, x_nhwc, stride, use_buffered):
    x = x_nhwc.astype(jnp.bfloat16)
    N, H, W, cin = x.shape
    planes = params["w1"].shape[1]
    cout = params["w3"].shape[1]
    Ho = (H - 1) // stride + 1
    Wo = (W - 1) // stride + 1
    has_proj = (stride != 1) or (cin != cout)
    has_xsc = has_proj and (stride != 1)
    fw = _fold_weights(params, has_proj)
    w2k = fw["w2"].reshape(3, 3 * planes, planes)   # im2col-fused K layout

    # Row-chunk sizes (~256 output pixels per chunk keeps per-chunk operands
    # and the f32 accumulator small at real ResNet sizes).
    tr_in, even_in = _pick_chunk(H, max(1, 256 // max(W, 1)))
    tr_out, even_out = _pick_chunk(Ho, max(1, 256 // max(Wo, 1)))

    # Padded conv1-output scratch (bf16): halo built in VMEM (no HBM pad);
    # W axis rounded up to a sublane multiple for aligned slab loads.
    Hp = stride * Ho + 2
    Wp = _round_up(stride * Wo + 2, 8)

    def const_spec(shape):
        nd = len(shape)
        imap = lambda n, _nd=nd: (0,) * _nd
        if use_buffered:
            # Grid-invariant operands: single VMEM buffer, no double-buffering.
            return pl.BlockSpec(shape, imap, pipeline_mode=pl.Buffered(1))
        return pl.BlockSpec(shape, imap)

    in_specs = [pl.BlockSpec((1, H, W, cin), lambda n: (n, 0, 0, 0))]
    args = [x]
    if has_xsc:
        # Pre-strided x for the projection shortcut (avoids strided sublane
        # reads inside the kernel).
        in_specs.append(pl.BlockSpec((1, Ho, Wo, cin), lambda n: (n, 0, 0, 0)))
        args.append(x[:, ::stride, ::stride, :])
    in_specs += [
        const_spec((cin, planes)), const_spec((1, planes)),
        const_spec((3, 3 * planes, planes)), const_spec((1, planes)),
        const_spec((planes, cout)), const_spec((1, cout)),
    ]
    args += [fw["w1"], fw["b1"], w2k, fw["b2"], fw["w3"], fw["b3"]]
    if has_proj:
        in_specs += [const_spec((cin, cout)), const_spec((1, cout))]
        args += [fw["wsc"], fw["bsc"]]

    flops = 2 * N * (H * W * cin * planes
                     + Ho * Wo * 9 * planes * planes
                     + Ho * Wo * planes * cout
                     + (Ho * Wo * cin * cout if has_proj else 0))
    bytes_accessed = (2 * x.size + 2 * N * Ho * Wo * cout
                      + (2 * N * Ho * Wo * cin if has_xsc else 0)
                      + 2 * (cin * planes + 9 * planes * planes
                             + planes * cout
                             + (cin * cout if has_proj else 0))
                      + 4 * (2 * planes + (2 if has_proj else 1) * cout))

    kernel = functools.partial(
        _bottleneck_kernel, H, W, Ho, Wo, Hp, Wp, stride,
        tr_in, even_in, tr_out, even_out, has_proj, has_xsc)

    return pl.pallas_call(
        kernel,
        out_shape=jax.ShapeDtypeStruct((N, Ho, Wo, cout), jnp.bfloat16),
        grid=(N,),
        in_specs=in_specs,
        out_specs=pl.BlockSpec((1, Ho, Wo, cout), lambda n: (n, 0, 0, 0)),
        scratch_shapes=[pltpu.VMEM((Hp, Wp, planes), jnp.bfloat16)],
        compiler_params=pltpu.CompilerParams(
            dimension_semantics=("parallel",),
            vmem_limit_bytes=_VMEM_LIMIT_BYTES),
        cost_estimate=pl.CostEstimate(flops=flops, transcendentals=0,
                                      bytes_accessed=bytes_accessed),
    )(*args)


def bottleneck_forward_nhwc(params, x_nhwc, stride=1):
    """NHWC in / NHWC out (preferred entry point: no layout transposes)."""
    global _BUFFERED_SUPPORTED
    if _BUFFERED_SUPPORTED:
        try:
            return _forward_impl(params, x_nhwc, int(stride), True)
        except Exception:
            # pl.Buffered / pipeline_mode unsupported on this JAX: fall back.
            _BUFFERED_SUPPORTED = False
    return _forward_impl(params, x_nhwc, int(stride), False)


def bottleneck_forward(params, x_nchw, stride=1):
    """NCHW in / NCHW out, matching the PyTorch module contract."""
    x = jnp.transpose(x_nchw, (0, 2, 3, 1))
    out = bottleneck_forward_nhwc(params, x, stride)
    return jnp.transpose(out, (0, 3, 1, 2))


# =============================================================================
# Deterministic parameter init (shapes follow Bottleneck.__init__) + BN folding
# =============================================================================
def _fold_bn(gamma, beta, mean, var, eps=1e-5):
    scale = gamma / jnp.sqrt(var + eps)
    bias = beta - mean * scale
    return scale[None, :], bias[None, :]


def init_params(key, in_planes, planes, stride, expansion=4):
    out_planes = expansion * planes
    ks = jax.random.split(key, 8)

    def bn(k, c):
        k1, k2, k3, k4 = jax.random.split(k, 4)
        gamma = jax.random.uniform(k1, (c,), jnp.float32, 0.5, 1.5)
        beta = jax.random.normal(k2, (c,), jnp.float32) * 0.1
        mean = jax.random.normal(k3, (c,), jnp.float32) * 0.1
        var = jax.random.uniform(k4, (c,), jnp.float32, 0.5, 1.5)
        return _fold_bn(gamma, beta, mean, var)

    p = {}
    p["w1"] = jax.random.normal(ks[0], (in_planes, planes), jnp.float32) * 0.1
    p["s1"], p["b1"] = bn(ks[1], planes)
    p["w2"] = jax.random.normal(ks[2], (3, 3, planes, planes), jnp.float32) * 0.1
    p["s2"], p["b2"] = bn(ks[3], planes)
    p["w3"] = jax.random.normal(ks[4], (planes, out_planes), jnp.float32) * 0.1
    p["s3"], p["b3"] = bn(ks[5], out_planes)
    if stride != 1 or in_planes != out_planes:
        p["wsc"] = jax.random.normal(ks[6], (in_planes, out_planes),
                                     jnp.float32) * 0.1
        p["ssc"], p["bsc"] = bn(ks[7], out_planes)
    return p


# =============================================================================
# Pure-JAX reference with the same precision policy (for verification)
# =============================================================================
def reference_forward(params, x_nchw, stride=1):
    x = jnp.transpose(x_nchw, (0, 2, 3, 1)).astype(jnp.bfloat16)
    cout = params["w3"].shape[1]
    has_proj = (stride != 1) or (x.shape[-1] != cout)
    fw = _fold_weights(params, has_proj)

    def conv(a, w, strides, padding):
        return jax.lax.conv_general_dilated(
            a, w, strides, padding,
            dimension_numbers=("NHWC", "HWIO", "NHWC"),
            preferred_element_type=jnp.float32)

    out = conv(x, fw["w1"][None, None], (1, 1), "VALID") + fw["b1"]
    out = jnp.maximum(out, 0.0).astype(jnp.bfloat16)
    out = conv(out, fw["w2"], (stride, stride), ((1, 1), (1, 1))) + fw["b2"]
    out = jnp.maximum(out, 0.0).astype(jnp.bfloat16)
    out = conv(out, fw["w3"][None, None], (1, 1), "VALID") + fw["b3"]
    if has_proj:
        sc = conv(x, fw["wsc"][None, None], (stride, stride), "VALID") + fw["bsc"]
    else:
        sc = x.astype(jnp.float32)
    out = jnp.maximum(out + sc, 0.0).astype(jnp.bfloat16)
    return jnp.transpose(out, (0, 3, 1, 2))


if __name__ == "__main__":
    configs = [
        # (N, in_planes, planes, H, W, stride)
        (2, 8, 4, 24, 16, 1),   # projection shortcut; exercises multi-chunk path
        (2, 16, 4, 8, 8, 1),    # identity shortcut; single-chunk path
    ]
    key = jax.random.PRNGKey(0)
    for (N, cin, planes, H, W, stride) in configs:
        key, kx, kp = jax.random.split(key, 3)
        x = jax.random.normal(kx, (N, cin, H, W), jnp.float32)  # NCHW (PyTorch)
        params = init_params(kp, cin, planes, stride)

        out = jax.block_until_ready(bottleneck_forward(params, x, stride))
        ref = jax.block_until_ready(reference_forward(params, x, stride))

        Ho = (H - 1) // stride + 1
        Wo = (W - 1) // stride + 1
        assert out.shape == (N, 4 * planes, Ho, Wo), out.shape
        np.testing.assert_allclose(
            np.asarray(jnp.asarray(out, jnp.float32)),
            np.asarray(jnp.asarray(ref, jnp.float32)),
            atol=2e-2, rtol=2e-2)

    print("KERNEL_OK")
</pallas_src>

<mosaic_0001>
module attributes {stable_mosaic.version = 11 : i64} {
  func.func @_bottleneck_kernel(%arg0: i32, %arg1: memref<1x24x16x8xbf16, #tpu.memory_space<vmem>>, %arg2: memref<8x4xbf16, #tpu.memory_space<vmem>>, %arg3: memref<1x4xf32, #tpu.memory_space<vmem>>, %arg4: memref<3x12x4xbf16, #tpu.memory_space<vmem>>, %arg5: memref<1x4xf32, #tpu.memory_space<vmem>>, %arg6: memref<4x16xbf16, #tpu.memory_space<vmem>>, %arg7: memref<1x16xf32, #tpu.memory_space<vmem>>, %arg8: memref<8x16xbf16, #tpu.memory_space<vmem>>, %arg9: memref<1x16xf32, #tpu.memory_space<vmem>>, %arg10: memref<1x24x16x16xbf16, #tpu.memory_space<vmem>>, %arg11: memref<26x24x4xbf16, #tpu.memory_space<vmem>>) attributes {dimension_semantics = [#tpu.dimension_semantics<parallel>], iteration_bounds = array<i64: 2>, scalar_prefetch = 0 : i64, scratch_operands = 1 : i64, tpu.core_type = #tpu.core_type<tc>, window_params = [{transform_indices = @transform_0, window_bounds = array<i64: 1, 24, 16, 8>}, {pipeline_mode = #tpu.pipeline_mode<synchronous>, transform_indices = @transform_1, window_bounds = array<i64: 8, 4>}, {pipeline_mode = #tpu.pipeline_mode<synchronous>, transform_indices = @transform_2, window_bounds = array<i64: 1, 4>}, {pipeline_mode = #tpu.pipeline_mode<synchronous>, transform_indices = @transform_3, window_bounds = array<i64: 3, 12, 4>}, {pipeline_mode = #tpu.pipeline_mode<synchronous>, transform_indices = @transform_4, window_bounds = array<i64: 1, 4>}, {pipeline_mode = #tpu.pipeline_mode<synchronous>, transform_indices = @transform_5, window_bounds = array<i64: 4, 16>}, {pipeline_mode = #tpu.pipeline_mode<synchronous>, transform_indices = @transform_6, window_bounds = array<i64: 1, 16>}, {pipeline_mode = #tpu.pipeline_mode<synchronous>, transform_indices = @transform_7, window_bounds = array<i64: 8, 16>}, {pipeline_mode = #tpu.pipeline_mode<synchronous>, transform_indices = @transform_8, window_bounds = array<i64: 1, 16>}, {transform_indices = @transform_9, window_bounds = array<i64: 1, 24, 16, 16>}]} {
    %cst = arith.constant 0.000000e+00 : bf16
    %0 = vector.broadcast %cst : bf16 to vector<1x24x4xbf16>
    %c0 = arith.constant 0 : index
    %c0_0 = arith.constant 0 : index
    %c0_1 = arith.constant 0 : index
    %1 = vector.load %arg11[%c0, %c0_0, %c0_1] : memref<26x24x4xbf16, #tpu.memory_space<vmem>>, vector<1x24x4xbf16>
    tpu.vector_store %arg11[%c0, %c0_0, %c0_1], %0 {strides = array<i32>} : memref<26x24x4xbf16, #tpu.memory_space<vmem>>, vector<1x24x4xbf16>,
    %cst_2 = arith.constant 0.000000e+00 : bf16
    %2 = vector.broadcast %cst_2 : bf16 to vector<1x24x4xbf16>
    %c25 = arith.constant 25 : index
    %c0_3 = arith.constant 0 : index
    %c0_4 = arith.constant 0 : index
    %3 = vector.load %arg11[%c25, %c0_3, %c0_4] : memref<26x24x4xbf16, #tpu.memory_space<vmem>>, vector<1x24x4xbf16>
    tpu.vector_store %arg11[%c25, %c0_3, %c0_4], %2 {strides = array<i32>} : memref<26x24x4xbf16, #tpu.memory_space<vmem>>, vector<1x24x4xbf16>,
    %cst_5 = arith.constant 0.000000e+00 : bf16
    %4 = vector.broadcast %cst_5 : bf16 to vector<26x8x4xbf16>
    %c0_6 = arith.constant 0 : index
    %c0_7 = arith.constant 0 : index
    %c0_8 = arith.constant 0 : index
    %5 = vector.load %arg11[%c0_6, %c0_7, %c0_8] : memref<26x24x4xbf16, #tpu.memory_space<vmem>>, vector<26x8x4xbf16>
    tpu.vector_store %arg11[%c0_6, %c0_7, %c0_8], %4 {strides = array<i32>} : memref<26x24x4xbf16, #tpu.memory_space<vmem>>, vector<26x8x4xbf16>,
    %cst_9 = arith.constant 0.000000e+00 : bf16
    %6 = vector.broadcast %cst_9 : bf16 to vector<26x8x4xbf16>
    %c0_10 = arith.constant 0 : index
    %c16 = arith.constant 16 : index
    %c0_11 = arith.constant 0 : index
    %7 = vector.load %arg11[%c0_10, %c16, %c0_11] : memref<26x24x4xbf16, #tpu.memory_space<vmem>>, vector<26x8x4xbf16>
    tpu.vector_store %arg11[%c0_10, %c16, %c0_11], %6 {strides = array<i32>} : memref<26x24x4xbf16, #tpu.memory_space<vmem>>, vector<26x8x4xbf16>,
    %c0_12 = arith.constant 0 : index
    %c0_13 = arith.constant 0 : index
    %8 = vector.load %arg3[%c0_12, %c0_13] : memref<1x4xf32, #tpu.memory_space<vmem>>, vector<1x4xf32>
    %c0_14 = arith.constant 0 : index
    %c0_15 = arith.constant 0 : index
    %9 = vector.load %arg5[%c0_14, %c0_15] : memref<1x4xf32, #tpu.memory_space<vmem>>, vector<1x4xf32>
    %c0_16 = arith.constant 0 : index
    %c0_17 = arith.constant 0 : index
    %10 = vector.load %arg7[%c0_16, %c0_17] : memref<1x16xf32, #tpu.memory_space<vmem>>, vector<1x16xf32>
    %c0_18 = arith.constant 0 : index
    %c0_19 = arith.constant 0 : index
    %11 = vector.load %arg9[%c0_18, %c0_19] : memref<1x16xf32, #tpu.memory_space<vmem>>, vector<1x16xf32>
    %c0_i32 = arith.constant 0 : i32
    %c2_i32 = arith.constant 2 : i32
    %12 = arith.addi %c0_i32, %c2_i32 : i32
    %c1_i32 = arith.constant 1 : i32
    scf.for %arg12 = %c0_i32 to %12 step %c1_i32  : i32 {
      %c12_i32 = arith.constant 12 : i32
      %14 = arith.muli %arg12, %c12_i32 : i32
      %15 = tpu.assume_multiple %14, 12 : i32
      %c0_25 = arith.constant 0 : index
      %16 = arith.index_cast %15 : i32 to index
      %c0_26 = arith.constant 0 : index
      %c0_27 = arith.constant 0 : index
      %17 = vector.load %arg1[%c0_25, %16, %c0_26, %c0_27] : memref<1x24x16x8xbf16, #tpu.memory_space<vmem>>, vector<1x12x16x8xbf16>
      %18 = vector.shape_cast %17 : vector<1x12x16x8xbf16> to vector<12x16x8xbf16>
      %19 = vector.shape_cast %18 : vector<12x16x8xbf16> to vector<192x8xbf16>
      %c0_28 = arith.constant 0 : index
      %c0_29 = arith.constant 0 : index
      %20 = vector.load %arg2[%c0_28, %c0_29] : memref<8x4xbf16, #tpu.memory_space<vmem>>, vector<8x4xbf16>
      %cst_30 = arith.constant dense<0.000000e+00> : vector<192x4xf32>
      %21 = tpu.matmul %19, %20, %cst_30 {dimension_numbers = #tpu.dot_dimension_numbers<[1], [0], [0], [1], [0, 0, 1, 1], [], []>} : vector<192x8xbf16>, vector<8x4xbf16>, vector<192x4xf32> -> vector<192x4xf32>
      %22 = vector.broadcast %8 : vector<1x4xf32> to vector<192x4xf32>
      %23 = arith.addf %21, %22 : vector<192x4xf32>
      %cst_31 = arith.constant 0.000000e+00 : f32
      %24 = vector.broadcast %cst_31 : f32 to vector<192x4xf32>
      %25 = arith.maximumf %23, %24 : vector<192x4xf32>
      %26 = arith.truncf %25 : vector<192x4xf32> to vector<192x4xbf16>
      %27 = vector.shape_cast %26 : vector<192x4xbf16> to vector<12x16x4xbf16>
      %c1_i32_32 = arith.constant 1 : i32
      %28 = arith.addi %15, %c1_i32_32 : i32
      %29 = arith.index_cast %28 : i32 to index
      %c1 = arith.constant 1 : index
      %c0_33 = arith.constant 0 : index
      %30 = vector.load %arg11[%29, %c1, %c0_33] : memref<26x24x4xbf16, #tpu.memory_space<vmem>>, vector<12x16x4xbf16>
      tpu.vector_store %arg11[%29, %c1, %c0_33], %27 {strides = array<i32>} : memref<26x24x4xbf16, #tpu.memory_space<vmem>>, vector<12x16x4xbf16>,
    }
    %c2_i32_20 = arith.constant 2 : i32
    %c0_i32_21 = arith.constant 0 : i32
    %c2_i32_22 = arith.constant 2 : i32
    %13 = arith.addi %c0_i32_21, %c2_i32_22 : i32
    %c1_i32_23 = arith.constant 1 : i32
    scf.for %arg12 = %c0_i32_21 to %13 step %c1_i32_23  : i32 {
      %c12_i32 = arith.constant 12 : i32
      %14 = arith.muli %arg12, %c12_i32 : i32
      %15 = tpu.assume_multiple %14, 12 : i32
      %c0_i32_25 = arith.constant 0 : i32
      %16 = arith.addi %15, %c0_i32_25 : i32
      %17 = arith.index_cast %16 : i32 to index
      %c0_26 = arith.constant 0 : index
      %c0_27 = arith.constant 0 : index
      %18 = vector.load %arg11[%17, %c0_26, %c0_27] : memref<26x24x4xbf16, #tpu.memory_space<vmem>>, vector<12x24x4xbf16>
      %19 = vector.extract_strided_slice %18 {offsets = [0, 0, 0], sizes = [12, 16, 4], strides = [1, 1, 1]} : vector<12x24x4xbf16> to vector<12x16x4xbf16>
      %20 = vector.extract_strided_slice %18 {offsets = [0, 1, 0], sizes = [12, 16, 4], strides = [1, 1, 1]} : vector<12x24x4xbf16> to vector<12x16x4xbf16>
      %21 = vector.extract_strided_slice %18 {offsets = [0, 2, 0], sizes = [12, 16, 4], strides = [1, 1, 1]} : vector<12x24x4xbf16> to vector<12x16x4xbf16>
      %22 = tpu.concatenate %19, %20, %21 in 2 : vector<12x16x4xbf16>, vector<12x16x4xbf16>, vector<12x16x4xbf16> -> vector<12x16x12xbf16>
      %23 = vector.shape_cast %22 : vector<12x16x12xbf16> to vector<192x12xbf16>
      %c0_28 = arith.constant 0 : index
      %c0_29 = arith.constant 0 : index
      %c0_30 = arith.constant 0 : index
      %24 = vector.load %arg4[%c0_28, %c0_29, %c0_30] : memref<3x12x4xbf16, #tpu.memory_space<vmem>>, vector<1x12x4xbf16>
      %25 = vector.shape_cast %24 : vector<1x12x4xbf16> to vector<12x4xbf16>
      %cst_31 = arith.constant dense<0.000000e+00> : vector<192x4xf32>
      %26 = tpu.matmul %23, %25, %cst_31 {dimension_numbers = #tpu.dot_dimension_numbers<[1], [0], [0], [1], [0, 0, 1, 1], [], []>} : vector<192x12xbf16>, vector<12x4xbf16>, vector<192x4xf32> -> vector<192x4xf32>
      %c1_i32_32 = arith.constant 1 : i32
      %27 = arith.addi %15, %c1_i32_32 : i32
      %28 = arith.index_cast %27 : i32 to index
      %c0_33 = arith.constant 0 : index
      %c0_34 = arith.constant 0 : index
      %29 = vector.load %arg11[%28, %c0_33, %c0_34] : memref<26x24x4xbf16, #tpu.memory_space<vmem>>, vector<12x24x4xbf16>
      %30 = vector.extract_strided_slice %29 {offsets = [0, 0, 0], sizes = [12, 16, 4], strides = [1, 1, 1]} : vector<12x24x4xbf16> to vector<12x16x4xbf16>
      %31 = vector.extract_strided_slice %29 {offsets = [0, 1, 0], sizes = [12, 16, 4], strides = [1, 1, 1]} : vector<12x24x4xbf16> to vector<12x16x4xbf16>
      %32 = vector.extract_strided_slice %29 {offsets = [0, 2, 0], sizes = [12, 16, 4], strides = [1, 1, 1]} : vector<12x24x4xbf16> to vector<12x16x4xbf16>
      %33 = tpu.concatenate %30, %31, %32 in 2 : vector<12x16x4xbf16>, vector<12x16x4xbf16>, vector<12x16x4xbf16> -> vector<12x16x12xbf16>
      %34 = vector.shape_cast %33 : vector<12x16x12xbf16> to vector<192x12xbf16>
      %c1 = arith.constant 1 : index
      %c0_35 = arith.constant 0 : index
      %c0_36 = arith.constant 0 : index
      %35 = vector.load %arg4[%c1, %c0_35, %c0_36] : memref<3x12x4xbf16, #tpu.memory_space<vmem>>, vector<1x12x4xbf16>
      %36 = vector.shape_cast %35 : vector<1x12x4xbf16> to vector<12x4xbf16>
      %cst_37 = arith.constant dense<0.000000e+00> : vector<192x4xf32>
      %37 = tpu.matmul %34, %36, %cst_37 {dimension_numbers = #tpu.dot_dimension_numbers<[1], [0], [0], [1], [0, 0, 1, 1], [], []>} : vector<192x12xbf16>, vector<12x4xbf16>, vector<192x4xf32> -> vector<192x4xf32>
      %38 = arith.addf %26, %37 : vector<192x4xf32>
      %c2_i32_38 = arith.constant 2 : i32
      %39 = arith.addi %15, %c2_i32_38 : i32
      %40 = arith.index_cast %39 : i32 to index
      %c0_39 = arith.constant 0 : index
      %c0_40 = arith.constant 0 : index
      %41 = vector.load %arg11[%40, %c0_39, %c0_40] : memref<26x24x4xbf16, #tpu.memory_space<vmem>>, vector<12x24x4xbf16>
      %42 = vector.extract_strided_slice %41 {offsets = [0, 0, 0], sizes = [12, 16, 4], strides = [1, 1, 1]} : vector<12x24x4xbf16> to vector<12x16x4xbf16>
      %43 = vector.extract_strided_slice %41 {offsets = [0, 1, 0], sizes = [12, 16, 4], strides = [1, 1, 1]} : vector<12x24x4xbf16> to vector<12x16x4xbf16>
      %44 = vector.extract_strided_slice %41 {offsets = [0, 2, 0], sizes = [12, 16, 4], strides = [1, 1, 1]} : vector<12x24x4xbf16> to vector<12x16x4xbf16>
      %45 = tpu.concatenate %42, %43, %44 in 2 : vector<12x16x4xbf16>, vector<12x16x4xbf16>, vector<12x16x4xbf16> -> vector<12x16x12xbf16>
      %46 = vector.shape_cast %45 : vector<12x16x12xbf16> to vector<192x12xbf16>
      %c2 = arith.constant 2 : index
      %c0_41 = arith.constant 0 : index
      %c0_42 = arith.constant 0 : index
      %47 = vector.load %arg4[%c2, %c0_41, %c0_42] : memref<3x12x4xbf16, #tpu.memory_space<vmem>>, vector<1x12x4xbf16>
      %48 = vector.shape_cast %47 : vector<1x12x4xbf16> to vector<12x4xbf16>
      %cst_43 = arith.constant dense<0.000000e+00> : vector<192x4xf32>
      %49 = tpu.matmul %46, %48, %cst_43 {dimension_numbers = #tpu.dot_dimension_numbers<[1], [0], [0], [1], [0, 0, 1, 1], [], []>} : vector<192x12xbf16>, vector<12x4xbf16>, vector<192x4xf32> -> vector<192x4xf32>
      %50 = arith.addf %38, %49 : vector<192x4xf32>
      %51 = vector.broadcast %9 : vector<1x4xf32> to vector<192x4xf32>
      %52 = arith.addf %50, %51 : vector<192x4xf32>
      %cst_44 = arith.constant 0.000000e+00 : f32
      %53 = vector.broadcast %cst_44 : f32 to vector<192x4xf32>
      %54 = arith.maximumf %52, %53 : vector<192x4xf32>
      %55 = arith.truncf %54 : vector<192x4xf32> to vector<192x4xbf16>
      %c0_45 = arith.constant 0 : index
      %c0_46 = arith.constant 0 : index
      %56 = vector.load %arg6[%c0_45, %c0_46] : memref<4x16xbf16, #tpu.memory_space<vmem>>, vector<4x16xbf16>
      %cst_47 = arith.constant dense<0.000000e+00> : vector<192x16xf32>
      %57 = tpu.matmul %55, %56, %cst_47 {dimension_numbers = #tpu.dot_dimension_numbers<[1], [0], [0], [1], [0, 0, 1, 1], [], []>} : vector<192x4xbf16>, vector<4x16xbf16>, vector<192x16xf32> -> vector<192x16xf32>
      %58 = vector.broadcast %10 : vector<1x16xf32> to vector<192x16xf32>
      %59 = arith.addf %57, %58 : vector<192x16xf32>
      %c0_48 = arith.constant 0 : index
      %60 = arith.index_cast %15 : i32 to index
      %c0_49 = arith.constant 0 : index
      %c0_50 = arith.constant 0 : index
      %61 = vector.load %arg1[%c0_48, %60, %c0_49, %c0_50] : memref<1x24x16x8xbf16, #tpu.memory_space<vmem>>, vector<1x12x16x8xbf16>
      %62 = vector.shape_cast %61 : vector<1x12x16x8xbf16> to vector<12x16x8xbf16>
      %63 = vector.shape_cast %62 : vector<12x16x8xbf16> to vector<192x8xbf16>
      %c0_51 = arith.constant 0 : index
      %c0_52 = arith.constant 0 : index
      %64 = vector.load %arg8[%c0_51, %c0_52] : memref<8x16xbf16, #tpu.memory_space<vmem>>, vector<8x16xbf16>
      %cst_53 = arith.constant dense<0.000000e+00> : vector<192x16xf32>
      %65 = tpu.matmul %63, %64, %cst_53 {dimension_numbers = #tpu.dot_dimension_numbers<[1], [0], [0], [1], [0, 0, 1, 1], [], []>} : vector<192x8xbf16>, vector<8x16xbf16>, vector<192x16xf32> -> vector<192x16xf32>
      %66 = vector.broadcast %11 : vector<1x16xf32> to vector<192x16xf32>
      %67 = arith.addf %65, %66 : vector<192x16xf32>
      %68 = arith.addf %59, %67 : vector<192x16xf32>
      %cst_54 = arith.constant 0.000000e+00 : f32
      %69 = vector.broadcast %cst_54 : f32 to vector<192x16xf32>
      %70 = arith.maximumf %68, %69 : vector<192x16xf32>
      %71 = vector.shape_cast %70 : vector<192x16xf32> to vector<12x16x16xf32>
      %72 = arith.truncf %71 : vector<12x16x16xf32> to vector<12x16x16xbf16>
      %c0_55 = arith.constant 0 : index
      %73 = arith.index_cast %15 : i32 to index
      %c0_56 = arith.constant 0 : index
      %c0_57 = arith.constant 0 : index
      %74 = vector.load %arg10[%c0_55, %73, %c0_56, %c0_57] : memref<1x24x16x16xbf16, #tpu.memory_space<vmem>>, vector<1x12x16x16xbf16>
      %75 = vector.shape_cast %74 : vector<1x12x16x16xbf16> to vector<12x16x16xbf16>
      %76 = vector.shape_cast %72 : vector<12x16x16xbf16> to vector<1x12x16x16xbf16>
      tpu.vector_store %arg10[%c0_55, %73, %c0_56, %c0_57], %76 {strides = array<i32>} : memref<1x24x16x16xbf16, #tpu.memory_space<vmem>>, vector<1x12x16x16xbf16>,
    }
    %c2_i32_24 = arith.constant 2 : i32
    return
  }
  func.func @transform_0(%arg0: i32) -> (i32, i32, i32, i32) {
    %c0_i32 = arith.constant 0 : i32
    %c0_i32_0 = arith.constant 0 : i32
    %c0_i32_1 = arith.constant 0 : i32
    %c0_i32_2 = arith.constant 0 : i32
    return %arg0, %c0_i32, %c0_i32_0, %c0_i32_1 : i32, i32, i32, i32
  }
  func.func @transform_1(%arg0: i32) -> (i32, i32) {
    %c0_i32 = arith.constant 0 : i32
    %c0_i32_0 = arith.constant 0 : i32
    %c0_i32_1 = arith.constant 0 : i32
    return %c0_i32, %c0_i32_0 : i32, i32
  }
  func.func @transform_2(%arg0: i32) -> (i32, i32) {
    %c0_i32 = arith.constant 0 : i32
    %c0_i32_0 = arith.constant 0 : i32
    %c0_i32_1 = arith.constant 0 : i32
    return %c0_i32, %c0_i32_0 : i32, i32
  }
  func.func @transform_3(%arg0: i32) -> (i32, i32, i32) {
    %c0_i32 = arith.constant 0 : i32
    %c0_i32_0 = arith.constant 0 : i32
    %c0_i32_1 = arith.constant 0 : i32
    %c0_i32_2 = arith.constant 0 : i32
    return %c0_i32, %c0_i32_0, %c0_i32_1 : i32, i32, i32
  }
  func.func @transform_4(%arg0: i32) -> (i32, i32) {
    %c0_i32 = arith.constant 0 : i32
    %c0_i32_0 = arith.constant 0 : i32
    %c0_i32_1 = arith.constant 0 : i32
    return %c0_i32, %c0_i32_0 : i32, i32
  }
  func.func @transform_5(%arg0: i32) -> (i32, i32) {
    %c0_i32 = arith.constant 0 : i32
    %c0_i32_0 = arith.constant 0 : i32
    %c0_i32_1 = arith.constant 0 : i32
    return %c0_i32, %c0_i32_0 : i32, i32
  }
  func.func @transform_6(%arg0: i32) -> (i32, i32) {
    %c0_i32 = arith.constant 0 : i32
    %c0_i32_0 = arith.constant 0 : i32
    %c0_i32_1 = arith.constant 0 : i32
    return %c0_i32, %c0_i32_0 : i32, i32
  }
  func.func @transform_7(%arg0: i32) -> (i32, i32) {
    %c0_i32 = arith.constant 0 : i32
    %c0_i32_0 = arith.constant 0 : i32
    %c0_i32_1 = arith.constant 0 : i32
    return %c0_i32, %c0_i32_0 : i32, i32
  }
  func.func @transform_8(%arg0: i32) -> (i32, i32) {
    %c0_i32 = arith.constant 0 : i32
    %c0_i32_0 = arith.constant 0 : i32
    %c0_i32_1 = arith.constant 0 : i32
    return %c0_i32, %c0_i32_0 : i32, i32
  }
  func.func @transform_9(%arg0: i32) -> (i32, i32, i32, i32) {
    %c0_i32 = arith.constant 0 : i32
    %c0_i32_0 = arith.constant 0 : i32
    %c0_i32_1 = arith.constant 0 : i32
    %c0_i32_2 = arith.constant 0 : i32
    return %arg0, %c0_i32, %c0_i32_0, %c0_i32_1 : i32, i32, i32, i32
  }
}

module attributes {stable_mosaic.version = 11 : i64} {
  func.func @_bottleneck_kernel(%arg0: i32, %arg1: memref<1x24x16x8xbf16, #tpu.memory_space<vmem>>, %arg2: memref<8x4xbf16, #tpu.memory_space<vmem>>, %arg3: memref<1x4xf32, #tpu.memory_space<vmem>>, %arg4: memref<3x12x4xbf16, #tpu.memory_space<vmem>>, %arg5: memref<1x4xf32, #tpu.memory_space<vmem>>, %arg6: memref<4x16xbf16, #tpu.memory_space<vmem>>, %arg7: memref<1x16xf32, #tpu.memory_space<vmem>>, %arg8: memref<8x16xbf16, #tpu.memory_space<vmem>>, %arg9: memref<1x16xf32, #tpu.memory_space<vmem>>, %arg10: memref<1x24x16x16xbf16, #tpu.memory_space<vmem>>, %arg11: memref<26x24x4xbf16, #tpu.memory_space<vmem>>) attributes {dimension_semantics = [#tpu.dimension_semantics<parallel>], iteration_bounds = array<i64: 2>, scalar_prefetch = 0 : i64, scratch_operands = 1 : i64, tpu.core_type = #tpu.core_type<tc>, window_params = [{transform_indices = @transform_0, window_bounds = array<i64: 1, 24, 16, 8>}, {pipeline_mode = #tpu.pipeline_mode<synchronous>, transform_indices = @transform_1, window_bounds = array<i64: 8, 4>}, {pipeline_mode = #tpu.pipeline_mode<synchronous>, transform_indices = @transform_2, window_bounds = array<i64: 1, 4>}, {pipeline_mode = #tpu.pipeline_mode<synchronous>, transform_indices = @transform_3, window_bounds = array<i64: 3, 12, 4>}, {pipeline_mode = #tpu.pipeline_mode<synchronous>, transform_indices = @transform_4, window_bounds = array<i64: 1, 4>}, {pipeline_mode = #tpu.pipeline_mode<synchronous>, transform_indices = @transform_5, window_bounds = array<i64: 4, 16>}, {pipeline_mode = #tpu.pipeline_mode<synchronous>, transform_indices = @transform_6, window_bounds = array<i64: 1, 16>}, {pipeline_mode = #tpu.pipeline_mode<synchronous>, transform_indices = @transform_7, window_bounds = array<i64: 8, 16>}, {pipeline_mode = #tpu.pipeline_mode<synchronous>, transform_indices = @transform_8, window_bounds = array<i64: 1, 16>}, {transform_indices = @transform_9, window_bounds = array<i64: 1, 24, 16, 16>}]} {
    %cst = arith.constant 0.000000e+00 : bf16
    %0 = vector.broadcast %cst : bf16 to vector<1x24x4xbf16>
    %c0 = arith.constant 0 : index
    %c0_0 = arith.constant 0 : index
    %c0_1 = arith.constant 0 : index
    %1 = vector.load %arg11[%c0, %c0_0, %c0_1] : memref<26x24x4xbf16, #tpu.memory_space<vmem>>, vector<1x24x4xbf16>
    tpu.vector_store %arg11[%c0, %c0_0, %c0_1], %0 {strides = array<i32>} : memref<26x24x4xbf16, #tpu.memory_space<vmem>>, vector<1x24x4xbf16>,
    %cst_2 = arith.constant 0.000000e+00 : bf16
    %2 = vector.broadcast %cst_2 : bf16 to vector<1x24x4xbf16>
    %c25 = arith.constant 25 : index
    %c0_3 = arith.constant 0 : index
    %c0_4 = arith.constant 0 : index
    %3 = vector.load %arg11[%c25, %c0_3, %c0_4] : memref<26x24x4xbf16, #tpu.memory_space<vmem>>, vector<1x24x4xbf16>
    tpu.vector_store %arg11[%c25, %c0_3, %c0_4], %2 {strides = array<i32>} : memref<26x24x4xbf16, #tpu.memory_space<vmem>>, vector<1x24x4xbf16>,
    %cst_5 = arith.constant 0.000000e+00 : bf16
    %4 = vector.broadcast %cst_5 : bf16 to vector<26x8x4xbf16>
    %c0_6 = arith.constant 0 : index
    %c0_7 = arith.constant 0 : index
    %c0_8 = arith.constant 0 : index
    %5 = vector.load %arg11[%c0_6, %c0_7, %c0_8] : memref<26x24x4xbf16, #tpu.memory_space<vmem>>, vector<26x8x4xbf16>
    tpu.vector_store %arg11[%c0_6, %c0_7, %c0_8], %4 {strides = array<i32>} : memref<26x24x4xbf16, #tpu.memory_space<vmem>>, vector<26x8x4xbf16>,
    %cst_9 = arith.constant 0.000000e+00 : bf16
    %6 = vector.broadcast %cst_9 : bf16 to vector<26x8x4xbf16>
    %c0_10 = arith.constant 0 : index
    %c16 = arith.constant 16 : index
    %c0_11 = arith.constant 0 : index
    %7 = vector.load %arg11[%c0_10, %c16, %c0_11] : memref<26x24x4xbf16, #tpu.memory_space<vmem>>, vector<26x8x4xbf16>
    tpu.vector_store %arg11[%c0_10, %c16, %c0_11], %6 {strides = array<i32>} : memref<26x24x4xbf16, #tpu.memory_space<vmem>>, vector<26x8x4xbf16>,
    %c0_12 = arith.constant 0 : index
    %c0_13 = arith.constant 0 : index
    %8 = vector.load %arg3[%c0_12, %c0_13] : memref<1x4xf32, #tpu.memory_space<vmem>>, vector<1x4xf32>
    %c0_14 = arith.constant 0 : index
    %c0_15 = arith.constant 0 : index
    %9 = vector.load %arg5[%c0_14, %c0_15] : memref<1x4xf32, #tpu.memory_space<vmem>>, vector<1x4xf32>
    %c0_16 = arith.constant 0 : index
    %c0_17 = arith.constant 0 : index
    %10 = vector.load %arg7[%c0_16, %c0_17] : memref<1x16xf32, #tpu.memory_space<vmem>>, vector<1x16xf32>
    %c0_18 = arith.constant 0 : index
    %c0_19 = arith.constant 0 : index
    %11 = vector.load %arg9[%c0_18, %c0_19] : memref<1x16xf32, #tpu.memory_space<vmem>>, vector<1x16xf32>
    %c0_i32 = arith.constant 0 : i32
    %c2_i32 = arith.constant 2 : i32
    %12 = arith.addi %c0_i32, %c2_i32 : i32
    %c1_i32 = arith.constant 1 : i32
    scf.for %arg12 = %c0_i32 to %12 step %c1_i32  : i32 {
      %c12_i32 = arith.constant 12 : i32
      %14 = arith.muli %arg12, %c12_i32 : i32
      %15 = tpu.assume_multiple %14, 12 : i32
      %c0_25 = arith.constant 0 : index
      %16 = arith.index_cast %15 : i32 to index
      %c0_26 = arith.constant 0 : index
      %c0_27 = arith.constant 0 : index
      %17 = vector.load %arg1[%c0_25, %16, %c0_26, %c0_27] : memref<1x24x16x8xbf16, #tpu.memory_space<vmem>>, vector<1x12x16x8xbf16>
      %18 = vector.shape_cast %17 : vector<1x12x16x8xbf16> to vector<12x16x8xbf16>
      %19 = vector.shape_cast %18 : vector<12x16x8xbf16> to vector<192x8xbf16>
      %c0_28 = arith.constant 0 : index
      %c0_29 = arith.constant 0 : index
      %20 = vector.load %arg2[%c0_28, %c0_29] : memref<8x4xbf16, #tpu.memory_space<vmem>>, vector<8x4xbf16>
      %cst_30 = arith.constant dense<0.000000e+00> : vector<192x4xf32>
      %21 = tpu.matmul %19, %20, %cst_30 {dimension_numbers = #tpu.dot_dimension_numbers<[1], [0], [0], [1], [0, 0, 1, 1], [], []>} : vector<192x8xbf16>, vector<8x4xbf16>, vector<192x4xf32> -> vector<192x4xf32>
      %22 = vector.broadcast %8 : vector<1x4xf32> to vector<192x4xf32>
      %23 = arith.addf %21, %22 : vector<192x4xf32>
      %cst_31 = arith.constant 0.000000e+00 : f32
      %24 = vector.broadcast %cst_31 : f32 to vector<192x4xf32>
      %25 = arith.maximumf %23, %24 : vector<192x4xf32>
      %26 = arith.truncf %25 : vector<192x4xf32> to vector<192x4xbf16>
      %27 = vector.shape_cast %26 : vector<192x4xbf16> to vector<12x16x4xbf16>
      %c1_i32_32 = arith.constant 1 : i32
      %28 = arith.addi %15, %c1_i32_32 : i32
      %29 = arith.index_cast %28 : i32 to index
      %c1 = arith.constant 1 : index
      %c0_33 = arith.constant 0 : index
      %30 = vector.load %arg11[%29, %c1, %c0_33] : memref<26x24x4xbf16, #tpu.memory_space<vmem>>, vector<12x16x4xbf16>
      tpu.vector_store %arg11[%29, %c1, %c0_33], %27 {strides = array<i32>} : memref<26x24x4xbf16, #tpu.memory_space<vmem>>, vector<12x16x4xbf16>,
    }
    %c2_i32_20 = arith.constant 2 : i32
    %c0_i32_21 = arith.constant 0 : i32
    %c2_i32_22 = arith.constant 2 : i32
    %13 = arith.addi %c0_i32_21, %c2_i32_22 : i32
    %c1_i32_23 = arith.constant 1 : i32
    scf.for %arg12 = %c0_i32_21 to %13 step %c1_i32_23  : i32 {
      %c12_i32 = arith.constant 12 : i32
      %14 = arith.muli %arg12, %c12_i32 : i32
      %15 = tpu.assume_multiple %14, 12 : i32
      %c0_i32_25 = arith.constant 0 : i32
      %16 = arith.addi %15, %c0_i32_25 : i32
      %17 = arith.index_cast %16 : i32 to index
      %c0_26 = arith.constant 0 : index
      %c0_27 = arith.constant 0 : index
      %18 = vector.load %arg11[%17, %c0_26, %c0_27] : memref<26x24x4xbf16, #tpu.memory_space<vmem>>, vector<12x24x4xbf16>
      %19 = vector.extract_strided_slice %18 {offsets = [0, 0, 0], sizes = [12, 16, 4], strides = [1, 1, 1]} : vector<12x24x4xbf16> to vector<12x16x4xbf16>
      %20 = vector.extract_strided_slice %18 {offsets = [0, 1, 0], sizes = [12, 16, 4], strides = [1, 1, 1]} : vector<12x24x4xbf16> to vector<12x16x4xbf16>
      %21 = vector.extract_strided_slice %18 {offsets = [0, 2, 0], sizes = [12, 16, 4], strides = [1, 1, 1]} : vector<12x24x4xbf16> to vector<12x16x4xbf16>
      %22 = tpu.concatenate %19, %20, %21 in 2 : vector<12x16x4xbf16>, vector<12x16x4xbf16>, vector<12x16x4xbf16> -> vector<12x16x12xbf16>
      %23 = vector.shape_cast %22 : vector<12x16x12xbf16> to vector<192x12xbf16>
      %c0_28 = arith.constant 0 : index
      %c0_29 = arith.constant 0 : index
      %c0_30 = arith.constant 0 : index
      %24 = vector.load %arg4[%c0_28, %c0_29, %c0_30] : memref<3x12x4xbf16, #tpu.memory_space<vmem>>, vector<1x12x4xbf16>
      %25 = vector.shape_cast %24 : vector<1x12x4xbf16> to vector<12x4xbf16>
      %cst_31 = arith.constant dense<0.000000e+00> : vector<192x4xf32>
      %26 = tpu.matmul %23, %25, %cst_31 {dimension_numbers = #tpu.dot_dimension_numbers<[1], [0], [0], [1], [0, 0, 1, 1], [], []>} : vector<192x12xbf16>, vector<12x4xbf16>, vector<192x4xf32> -> vector<192x4xf32>
      %c1_i32_32 = arith.constant 1 : i32
      %27 = arith.addi %15, %c1_i32_32 : i32
      %28 = arith.index_cast %27 : i32 to index
      %c0_33 = arith.constant 0 : index
      %c0_34 = arith.constant 0 : index
      %29 = vector.load %arg11[%28, %c0_33, %c0_34] : memref<26x24x4xbf16, #tpu.memory_space<vmem>>, vector<12x24x4xbf16>
      %30 = vector.extract_strided_slice %29 {offsets = [0, 0, 0], sizes = [12, 16, 4], strides = [1, 1, 1]} : vector<12x24x4xbf16> to vector<12x16x4xbf16>
      %31 = vector.extract_strided_slice %29 {offsets = [0, 1, 0], sizes = [12, 16, 4], strides = [1, 1, 1]} : vector<12x24x4xbf16> to vector<12x16x4xbf16>
      %32 = vector.extract_strided_slice %29 {offsets = [0, 2, 0], sizes = [12, 16, 4], strides = [1, 1, 1]} : vector<12x24x4xbf16> to vector<12x16x4xbf16>
      %33 = tpu.concatenate %30, %31, %32 in 2 : vector<12x16x4xbf16>, vector<12x16x4xbf16>, vector<12x16x4xbf16> -> vector<12x16x12xbf16>
      %34 = vector.shape_cast %33 : vector<12x16x12xbf16> to vector<192x12xbf16>
      %c1 = arith.constant 1 : index
      %c0_35 = arith.constant 0 : index
      %c0_36 = arith.constant 0 : index
      %35 = vector.load %arg4[%c1, %c0_35, %c0_36] : memref<3x12x4xbf16, #tpu.memory_space<vmem>>, vector<1x12x4xbf16>
      %36 = vector.shape_cast %35 : vector<1x12x4xbf16> to vector<12x4xbf16>
      %cst_37 = arith.constant dense<0.000000e+00> : vector<192x4xf32>
      %37 = tpu.matmul %34, %36, %cst_37 {dimension_numbers = #tpu.dot_dimension_numbers<[1], [0], [0], [1], [0, 0, 1, 1], [], []>} : vector<192x12xbf16>, vector<12x4xbf16>, vector<192x4xf32> -> vector<192x4xf32>
      %38 = arith.addf %26, %37 : vector<192x4xf32>
      %c2_i32_38 = arith.constant 2 : i32
      %39 = arith.addi %15, %c2_i32_38 : i32
      %40 = arith.index_cast %39 : i32 to index
      %c0_39 = arith.constant 0 : index
      %c0_40 = arith.constant 0 : index
      %41 = vector.load %arg11[%40, %c0_39, %c0_40] : memref<26x24x4xbf16, #tpu.memory_space<vmem>>, vector<12x24x4xbf16>
      %42 = vector.extract_strided_slice %41 {offsets = [0, 0, 0], sizes = [12, 16, 4], strides = [1, 1, 1]} : vector<12x24x4xbf16> to vector<12x16x4xbf16>
      %43 = vector.extract_strided_slice %41 {offsets = [0, 1, 0], sizes = [12, 16, 4], strides = [1, 1, 1]} : vector<12x24x4xbf16> to vector<12x16x4xbf16>
      %44 = vector.extract_strided_slice %41 {offsets = [0, 2, 0], sizes = [12, 16, 4], strides = [1, 1, 1]} : vector<12x24x4xbf16> to vector<12x16x4xbf16>
      %45 = tpu.concatenate %42, %43, %44 in 2 : vector<12x16x4xbf16>, vector<12x16x4xbf16>, vector<12x16x4xbf16> -> vector<12x16x12xbf16>
      %46 = vector.shape_cast %45 : vector<12x16x12xbf16> to vector<192x12xbf16>
      %c2 = arith.constant 2 : index
      %c0_41 = arith.constant 0 : index
      %c0_42 = arith.constant 0 : index
      %47 = vector.load %arg4[%c2, %c0_41, %c0_42] : memref<3x12x4xbf16, #tpu.memory_space<vmem>>, vector<1x12x4xbf16>
      %48 = vector.shape_cast %47 : vector<1x12x4xbf16> to vector<12x4xbf16>
      %cst_43 = arith.constant dense<0.000000e+00> : vector<192x4xf32>
      %49 = tpu.matmul %46, %48, %cst_43 {dimension_numbers = #tpu.dot_dimension_numbers<[1], [0], [0], [1], [0, 0, 1, 1], [], []>} : vector<192x12xbf16>, vector<12x4xbf16>, vector<192x4xf32> -> vector<192x4xf32>
      %50 = arith.addf %38, %49 : vector<192x4xf32>
      %51 = vector.broadcast %9 : vector<1x4xf32> to vector<192x4xf32>
      %52 = arith.addf %50, %51 : vector<192x4xf32>
      %cst_44 = arith.constant 0.000000e+00 : f32
      %53 = vector.broadcast %cst_44 : f32 to vector<192x4xf32>
      %54 = arith.maximumf %52, %53 : vector<192x4xf32>
      %55 = arith.truncf %54 : vector<192x4xf32> to vector<192x4xbf16>
      %c0_45 = arith.constant 0 : index
      %c0_46 = arith.constant 0 : index
      %56 = vector.load %arg6[%c0_45, %c0_46] : memref<4x16xbf16, #tpu.memory_space<vmem>>, vector<4x16xbf16>
      %cst_47 = arith.constant dense<0.000000e+00> : vector<192x16xf32>
      %57 = tpu.matmul %55, %56, %cst_47 {dimension_numbers = #tpu.dot_dimension_numbers<[1], [0], [0], [1], [0, 0, 1, 1], [], []>} : vector<192x4xbf16>, vector<4x16xbf16>, vector<192x16xf32> -> vector<192x16xf32>
      %58 = vector.broadcast %10 : vector<1x16xf32> to vector<192x16xf32>
      %59 = arith.addf %57, %58 : vector<192x16xf32>
      %c0_48 = arith.constant 0 : index
      %60 = arith.index_cast %15 : i32 to index
      %c0_49 = arith.constant 0 : index
      %c0_50 = arith.constant 0 : index
      %61 = vector.load %arg1[%c0_48, %60, %c0_49, %c0_50] : memref<1x24x16x8xbf16, #tpu.memory_space<vmem>>, vector<1x12x16x8xbf16>
      %62 = vector.shape_cast %61 : vector<1x12x16x8xbf16> to vector<12x16x8xbf16>
      %63 = vector.shape_cast %62 : vector<12x16x8xbf16> to vector<192x8xbf16>
      %c0_51 = arith.constant 0 : index
      %c0_52 = arith.constant 0 : index
      %64 = vector.load %arg8[%c0_51, %c0_52] : memref<8x16xbf16, #tpu.memory_space<vmem>>, vector<8x16xbf16>
      %cst_53 = arith.constant dense<0.000000e+00> : vector<192x16xf32>
      %65 = tpu.matmul %63, %64, %cst_53 {dimension_numbers = #tpu.dot_dimension_numbers<[1], [0], [0], [1], [0, 0, 1, 1], [], []>} : vector<192x8xbf16>, vector<8x16xbf16>, vector<192x16xf32> -> vector<192x16xf32>
      %66 = vector.broadcast %11 : vector<1x16xf32> to vector<192x16xf32>
      %67 = arith.addf %65, %66 : vector<192x16xf32>
      %68 = arith.addf %59, %67 : vector<192x16xf32>
      %cst_54 = arith.constant 0.000000e+00 : f32
      %69 = vector.broadcast %cst_54 : f32 to vector<192x16xf32>
      %70 = arith.maximumf %68, %69 : vector<192x16xf32>
      %71 = vector.shape_cast %70 : vector<192x16xf32> to vector<12x16x16xf32>
      %72 = arith.truncf %71 : vector<12x16x16xf32> to vector<12x16x16xbf16>
      %c0_55 = arith.constant 0 : index
      %73 = arith.index_cast %15 : i32 to index
      %c0_56 = arith.constant 0 : index
      %c0_57 = arith.constant 0 : index
      %74 = vector.load %arg10[%c0_55, %73, %c0_56, %c0_57] : memref<1x24x16x16xbf16, #tpu.memory_space<vmem>>, vector<1x12x16x16xbf16>
      %75 = vector.shape_cast %74 : vector<1x12x16x16xbf16> to vector<12x16x16xbf16>
      %76 = vector.shape_cast %72 : vector<12x16x16xbf16> to vector<1x12x16x16xbf16>
      tpu.vector_store %arg10[%c0_55, %73, %c0_56, %c0_57], %76 {strides = array<i32>} : memref<1x24x16x16xbf16, #tpu.memory_space<vmem>>, vector<1x12x16x16xbf16>,
    }
    %c2_i32_24 = arith.constant 2 : i32
    return
  }
  func.func @transform_0(%arg0: i32) -> (i32, i32, i32, i32) {
    %c0_i32 = arith.constant 0 : i32
    %c0_i32_0 = arith.constant 0 : i32
    %c0_i32_1 = arith.constant 0 : i32
    %c0_i32_2 = arith.constant 0 : i32
    return %arg0, %c0_i32, %c0_i32_0, %c0_i32_1 : i32, i32, i32, i32
  }
  func.func @transform_1(%arg0: i32) -> (i32, i32) {
    %c0_i32 = arith.constant 0 : i32
    %c0_i32_0 = arith.constant 0 : i32
    %c0_i32_1 = arith.constant 0 : i32
    return %c0_i32, %c0_i32_0 : i32, i32
  }
  func.func @transform_2(%arg0: i32) -> (i32, i32) {
    %c0_i32 = arith.constant 0 : i32
    %c0_i32_0 = arith.constant 0 : i32
    %c0_i32_1 = arith.constant 0 : i32
    return %c0_i32, %c0_i32_0 : i32, i32
  }
  func.func @transform_3(%arg0: i32) -> (i32, i32, i32) {
    %c0_i32 = arith.constant 0 : i32
    %c0_i32_0 = arith.constant 0 : i32
    %c0_i32_1 = arith.constant 0 : i32
    %c0_i32_2 = arith.constant 0 : i32
    return %c0_i32, %c0_i32_0, %c0_i32_1 : i32, i32, i32
  }
  func.func @transform_4(%arg0: i32) -> (i32, i32) {
    %c0_i32 = arith.constant 0 : i32
    %c0_i32_0 = arith.constant 0 : i32
    %c0_i32_1 = arith.constant 0 : i32
    return %c0_i32, %c0_i32_0 : i32, i32
  }
  func.func @transform_5(%arg0: i32) -> (i32, i32) {
    %c0_i32 = arith.constant 0 : i32
    %c0_i32_0 = arith.constant 0 : i32
    %c0_i32_1 = arith.constant 0 : i32
    return %c0_i32, %c0_i32_0 : i32, i32
  }
  func.func @transform_6(%arg0: i32) -> (i32, i32) {
    %c0_i32 = arith.constant 0 : i32
    %c0_i32_0 = arith.constant 0 : i32
    %c0_i32_1 = arith.constant 0 : i32
    return %c0_i32, %c0_i32_0 : i32, i32
  }
  func.func @transform_7(%arg0: i32) -> (i32, i32) {
    %c0_i32 = arith.constant 0 : i32
    %c0_i32_0 = arith.constant 0 : i32
    %c0_i32_1 = arith.constant 0 : i32
    return %c0_i32, %c0_i32_0 : i32, i32
  }
  func.func @transform_8(%arg0: i32) -> (i32, i32) {
    %c0_i32 = arith.constant 0 : i32
    %c0_i32_0 = arith.constant 0 : i32
    %c0_i32_1 = arith.constant 0 : i32
    return %c0_i32, %c0_i32_0 : i32, i32
  }
  func.func @transform_9(%arg0: i32) -> (i32, i32, i32, i32) {
    %c0_i32 = arith.constant 0 : i32
    %c0_i32_0 = arith.constant 0 : i32
    %c0_i32_1 = arith.constant 0 : i32
    %c0_i32_2 = arith.constant 0 : i32
    return %arg0, %c0_i32, %c0_i32_0, %c0_i32_1 : i32, i32, i32, i32
  }
}

</mosaic_0001>

<llo_original>
// kernel: _forward_impl.1
$region0: #{_forward_impl.1}
  #allocation0 [shape = 'u32[]', space=smem, size = 0x4, offset = 0x4, fixed_abs, tag = 'smem constant byte address 0x4 - core index']
  #allocation1 [shape = 'u32[144,128]{1,0:T(1,128)}', space=vmem, size = 0x12000, scoped, tag = 'internal scratch']
  #allocation2 [shape = 'bf16[26,24,4]{2,1,0:T(8,128)(2,1)}', space=vmem, size = 0x27000, scoped, tag = 'scratch operand']
  %s0 = inlined_call_operand.hbm [shape: bf16[2,24,16,8], index: 0, kind: input, shape index: {}]
  %s1 = inlined_call_operand.hbm [shape: bf16[8,4], index: 1, kind: input, shape index: {}]
  %s2 = inlined_call_operand.hbm [shape: f32[1,4], index: 2, kind: input, shape index: {}]
  %s3 = inlined_call_operand.hbm [shape: bf16[3,12,4], index: 3, kind: input, shape index: {}]
  %s4 = inlined_call_operand.hbm [shape: f32[1,4], index: 4, kind: input, shape index: {}]
  %s5 = inlined_call_operand.hbm [shape: bf16[4,16], index: 5, kind: input, shape index: {}]
  %s6 = inlined_call_operand.hbm [shape: f32[1,16], index: 6, kind: input, shape index: {}]
  %s7 = inlined_call_operand.hbm [shape: bf16[8,16], index: 7, kind: input, shape index: {}]
  %s8 = inlined_call_operand.hbm [shape: f32[1,16], index: 8, kind: input, shape index: {}]
  %s9 = inlined_call_operand.hbm [shape: bf16[2,24,16,16], index: 9, kind: output, shape index: {}]
  %s10 = sld [smem:[#allocation0]]
  $region119: #{_forward_impl.1} parent=0
    _
  %s12 = ssub.s32 1, %s10
  %s13 = scalar_select 0, %s12, %s10
  $region1: #{_forward_impl.1} parent=0
    #allocation3 [shape = 'u8[196608]{0}', space=vmem, size = 0x30000, scoped, tag = 'input window, operand 0']
    #allocation4 [shape = 's32[2]{0}', space=sflag, size = 0x8, scoped, tag = 'scoped memory for _forward_impl.1']
    #allocation5 [shape = 's32[2]{0}', space=sflag, size = 0x8, scoped, tag = 'scoped memory for _forward_impl.1']
    #allocation6 [shape = 'u8[2048]{0}', space=vmem, size = 0x800, scoped, tag = 'input window, operand 1, single buffered']
    #allocation7 [shape = 's32[1]{0}', space=sflag, size = 0x4, scoped, tag = 'scoped memory for _forward_impl.1']
    #allocation8 [shape = 'u8[512]{0}', space=vmem, size = 0x400, scoped, tag = 'input window, operand 2, single buffered']
    #allocation9 [shape = 'u8[12288]{0}', space=vmem, size = 0x3000, scoped, tag = 'input window, operand 3, single buffered']
    #allocation10 [shape = 's32[1]{0}', space=sflag, size = 0x4, scoped, tag = 'scoped memory for _forward_impl.1']
    #allocation11 [shape = 'u8[512]{0}', space=vmem, size = 0x400, scoped, tag = 'input window, operand 4, single buffered']
    #allocation12 [shape = 'u8[1024]{0}', space=vmem, size = 0x400, scoped, tag = 'input window, operand 5, single buffered']
    #allocation13 [shape = 's32[1]{0}', space=sflag, size = 0x4, scoped, tag = 'scoped memory for _forward_impl.1']
    #allocation14 [shape = 'u8[512]{0}', space=vmem, size = 0x400, scoped, tag = 'input window, operand 6, single buffered']
    #allocation15 [shape = 'u8[2048]{0}', space=vmem, size = 0x800, scoped, tag = 'input window, operand 7, single buffered']
    #allocation16 [shape = 's32[1]{0}', space=sflag, size = 0x4, scoped, tag = 'scoped memory for _forward_impl.1']
    #allocation17 [shape = 'u8[512]{0}', space=vmem, size = 0x400, scoped, tag = 'input window, operand 8, single buffered']
    #allocation18 [shape = 'u8[196608]{0}', space=vmem, size = 0x30000, scoped, tag = 'output window, operand 0']
    %14 = vsyncpa [#allocation4], 0
    %s15 = scalar_lea.sflag [#allocation4], 1
    %16 = vsyncpa %s15, 0
    %17 = vsyncpa [#allocation7], 0
    %18 = vsyncpa [#allocation10], 0
    %19 = vsyncpa [#allocation13], 0
    %20 = vsyncpa [#allocation16], 0
    %21 = vsyncpa [#allocation5], 0
    %s22 = scalar_lea.sflag [#allocation5], 1
    %23 = vsyncpa %s22, 0
    loop: start=0, step=1, limit=4
    $region2: #{_forward_impl.1} parent=1 // loop_pre_header
      _
    $region3: #{_forward_impl.1} parent=1 // loop_header
      %s25 = sphi 0, %s29
      %p26 = scmp.ge.s32.totalorder %s25, 4
      %s35 = sphi 0, %s37
      %s38 = sphi 0, %s35
      %s39 = sphi 0, %s38
      %s55 = sphi 0, %s39
      %s59 = sphi 0, %s59
      %s61 = sphi 0, %s59
      %s62 = sphi 0, %s61
      %s76 = sphi 0, %s62
      %s80 = sphi 0, %s80
      %s82 = sphi 0, %s80
      %s83 = sphi 0, %s82
      %s97 = sphi 0, %s83
      %s101 = sphi 0, %s101
      %s103 = sphi 0, %s101
      %s104 = sphi 0, %s103
      %s118 = sphi 0, %s104
      %s122 = sphi 0, %s122
      %s124 = sphi 0, %s122
      %s125 = sphi 0, %s124
      %s139 = sphi 0, %s125
      %s143 = sphi 0, %s143
      %s145 = sphi 0, %s143
      %s146 = sphi 0, %s145
      %s160 = sphi 0, %s146
      %s164 = sphi 0, %s164
      %s166 = sphi 0, %s164
      %s167 = sphi 0, %s166
      %s181 = sphi 0, %s167
      %s185 = sphi 0, %s185
      %s187 = sphi 0, %s185
      %s188 = sphi 0, %s187
      %s202 = sphi 0, %s188
      %s206 = sphi 0, %s206
      %s208 = sphi 0, %s206
      %s209 = sphi 0, %s208
      %s223 = sphi 0, %s209
      %s229 = sphi 0, %s231
      %s232 = sphi 0, %s229
      %s233 = sphi 0, %s232
      %s249 = sphi 0, %s233
    $region4: #{_forward_impl.1} parent=1 // loop_header_branch
      %28 = sbr.rel (%p26) target = $region8
    $region5: #{_forward_impl.1} parent=1 // loop_body
      %s30 = ssub.s32 %s25, 1
      %s31 = ssub.s32 %s25, 2
      %s32 = sadd.s32 %s25, 1
      %s33 = ssub.s32 %s25, %s32
      %p34 = scmp.eq.s32.totalorder %s33, 0
      %s36 = sadd.s32 %s35, 1
      %s37 = scalar_select %p34, %s35, %s36
      %p40 = pneg %p34
      %p41 = scmp.eq.s32.totalorder %s25, 1
      %p42 = por %p40, %p41
      %p43 = scmp.ne.s32.totalorder %s35, %s38
      %p44 = scmp.eq.s32.totalorder %s25, 0
      %p45 = por %p43, %p44
      %p46 = scmp.ne.s32.totalorder %s35, %s38
      %p47 = scmp.eq.s32.totalorder %s30, 1
      %p48 = por %p46, %p47
      %p49 = scmp.ne.s32.totalorder %s38, %s39
      %p50 = scmp.eq.s32.totalorder %s30, 0
      %p51 = por %p49, %p50
      %p52 = scmp.ne.s32.totalorder %s38, %s39
      %p53 = scmp.eq.s32.totalorder %s31, 1
      %p54 = por %p52, %p53
      %p56 = scmp.ne.s32.totalorder %s39, %s55
      %p57 = scmp.eq.s32.totalorder %s31, 0
      %p58 = por %p56, %p57
      %s60 = sadd.s32 %s59, 1
      %p63 = scmp.eq.s32.totalorder %s25, 1
      %p64 = scmp.ne.s32.totalorder %s59, %s61
      %p65 = scmp.eq.s32.totalorder %s25, 0
      %p66 = por %p64, %p65
      %p67 = scmp.ne.s32.totalorder %s59, %s61
      %p68 = scmp.eq.s32.totalorder %s30, 1
      %p69 = por %p67, %p68
      %p70 = scmp.ne.s32.totalorder %s61, %s62
      %p71 = scmp.eq.s32.totalorder %s30, 0
      %p72 = por %p70, %p71
      %p73 = scmp.ne.s32.totalorder %s61, %s62
      %p74 = scmp.eq.s32.totalorder %s31, 1
      %p75 = por %p73, %p74
      %p77 = scmp.ne.s32.totalorder %s62, %s76
      %p78 = scmp.eq.s32.totalorder %s31, 0
      %p79 = por %p77, %p78
      %s81 = sadd.s32 %s80, 1
      %p84 = scmp.eq.s32.totalorder %s25, 1
      %p85 = scmp.ne.s32.totalorder %s80, %s82
      %p86 = scmp.eq.s32.totalorder %s25, 0
      %p87 = por %p85, %p86
      %p88 = scmp.ne.s32.totalorder %s80, %s82
      %p89 = scmp.eq.s32.totalorder %s30, 1
      %p90 = por %p88, %p89
      %p91 = scmp.ne.s32.totalorder %s82, %s83
      %p92 = scmp.eq.s32.totalorder %s30, 0
      %p93 = por %p91, %p92
      %p94 = scmp.ne.s32.totalorder %s82, %s83
      %p95 = scmp.eq.s32.totalorder %s31, 1
      %p96 = por %p94, %p95
      %p98 = scmp.ne.s32.totalorder %s83, %s97
      %p99 = scmp.eq.s32.totalorder %s31, 0
      %p100 = por %p98, %p99
      %s102 = sadd.s32 %s101, 1
      %p105 = scmp.eq.s32.totalorder %s25, 1
      %p106 = scmp.ne.s32.totalorder %s101, %s103
      %p107 = scmp.eq.s32.totalorder %s25, 0
      %p108 = por %p106, %p107
      %p109 = scmp.ne.s32.totalorder %s101, %s103
      %p110 = scmp.eq.s32.totalorder %s30, 1
      %p111 = por %p109, %p110
      %p112 = scmp.ne.s32.totalorder %s103, %s104
      %p113 = scmp.eq.s32.totalorder %s30, 0
      %p114 = por %p112, %p113
      %p115 = scmp.ne.s32.totalorder %s103, %s104
      %p116 = scmp.eq.s32.totalorder %s31, 1
      %p117 = por %p115, %p116
      %p119 = scmp.ne.s32.totalorder %s104, %s118
      %p120 = scmp.eq.s32.totalorder %s31, 0
      %p121 = por %p119, %p120
      %s123 = sadd.s32 %s122, 1
      %p126 = scmp.eq.s32.totalorder %s25, 1
      %p127 = scmp.ne.s32.totalorder %s122, %s124
      %p128 = scmp.eq.s32.totalorder %s25, 0
      %p129 = por %p127, %p128
      %p130 = scmp.ne.s32.totalorder %s122, %s124
      %p131 = scmp.eq.s32.totalorder %s30, 1
      %p132 = por %p130, %p131
      %p133 = scmp.ne.s32.totalorder %s124, %s125
      %p134 = scmp.eq.s32.totalorder %s30, 0
      %p135 = por %p133, %p134
      %p136 = scmp.ne.s32.totalorder %s124, %s125
      %p137 = scmp.eq.s32.totalorder %s31, 1
      %p138 = por %p136, %p137
      %p140 = scmp.ne.s32.totalorder %s125, %s139
      %p141 = scmp.eq.s32.totalorder %s31, 0
      %p142 = por %p140, %p141
      %s144 = sadd.s32 %s143, 1
      %p147 = scmp.eq.s32.totalorder %s25, 1
      %p148 = scmp.ne.s32.totalorder %s143, %s145
      %p149 = scmp.eq.s32.totalorder %s25, 0
      %p150 = por %p148, %p149
      %p151 = scmp.ne.s32.totalorder %s143, %s145
      %p152 = scmp.eq.s32.totalorder %s30, 1
      %p153 = por %p151, %p152
      %p154 = scmp.ne.s32.totalorder %s145, %s146
      %p155 = scmp.eq.s32.totalorder %s30, 0
      %p156 = por %p154, %p155
      %p157 = scmp.ne.s32.totalorder %s145, %s146
      %p158 = scmp.eq.s32.totalorder %s31, 1
      %p159 = por %p157, %p158
      %p161 = scmp.ne.s32.totalorder %s146, %s160
      %p162 = scmp.eq.s32.totalorder %s31, 0
      %p163 = por %p161, %p162
      %s165 = sadd.s32 %s164, 1
      %p168 = scmp.eq.s32.totalorder %s25, 1
      %p169 = scmp.ne.s32.totalorder %s164, %s166
      %p170 = scmp.eq.s32.totalorder %s25, 0
      %p171 = por %p169, %p170
      %p172 = scmp.ne.s32.totalorder %s164, %s166
      %p173 = scmp.eq.s32.totalorder %s30, 1
      %p174 = por %p172, %p173
      %p175 = scmp.ne.s32.totalorder %s166, %s167
      %p176 = scmp.eq.s32.totalorder %s30, 0
      %p177 = por %p175, %p176
      %p178 = scmp.ne.s32.totalorder %s166, %s167
      %p179 = scmp.eq.s32.totalorder %s31, 1
      %p180 = por %p178, %p179
      %p182 = scmp.ne.s32.totalorder %s167, %s181
      %p183 = scmp.eq.s32.totalorder %s31, 0
      %p184 = por %p182, %p183
      %s186 = sadd.s32 %s185, 1
      %p189 = scmp.eq.s32.totalorder %s25, 1
      %p190 = scmp.ne.s32.totalorder %s185, %s187
      %p191 = scmp.eq.s32.totalorder %s25, 0
      %p192 = por %p190, %p191
      %p193 = scmp.ne.s32.totalorder %s185, %s187
      %p194 = scmp.eq.s32.totalorder %s30, 1
      %p195 = por %p193, %p194
      %p196 = scmp.ne.s32.totalorder %s187, %s188
      %p197 = scmp.eq.s32.totalorder %s30, 0
      %p198 = por %p196, %p197
      %p199 = scmp.ne.s32.totalorder %s187, %s188
      %p200 = scmp.eq.s32.totalorder %s31, 1
      %p201 = por %p199, %p200
      %p203 = scmp.ne.s32.totalorder %s188, %s202
      %p204 = scmp.eq.s32.totalorder %s31, 0
      %p205 = por %p203, %p204
      %s207 = sadd.s32 %s206, 1
      %p210 = scmp.eq.s32.totalorder %s25, 1
      %p211 = scmp.ne.s32.totalorder %s206, %s208
      %p212 = scmp.eq.s32.totalorder %s25, 0
      %p213 = por %p211, %p212
      %p214 = scmp.ne.s32.totalorder %s206, %s208
      %p215 = scmp.eq.s32.totalorder %s30, 1
      %p216 = por %p214, %p215
      %p217 = scmp.ne.s32.totalorder %s208, %s209
      %p218 = scmp.eq.s32.totalorder %s30, 0
      %p219 = por %p217, %p218
      %p220 = scmp.ne.s32.totalorder %s208, %s209
      %p221 = scmp.eq.s32.totalorder %s31, 1
      %p222 = por %p220, %p221
      %p224 = scmp.ne.s32.totalorder %s209, %s223
      %p225 = scmp.eq.s32.totalorder %s31, 0
      %p226 = por %p224, %p225
      %s227 = ssub.s32 %s25, %s32
      %p228 = scmp.eq.s32.totalorder %s227, 0
      %s230 = sadd.s32 %s229, 1
      %s231 = scalar_select %p228, %s229, %s230
      %p234 = pneg %p228
      %p235 = scmp.eq.s32.totalorder %s25, 1
      %p236 = por %p234, %p235
      %p237 = scmp.ne.s32.totalorder %s229, %s232
      %p238 = scmp.eq.s32.totalorder %s25, 0
      %p239 = por %p237, %p238
      %p240 = scmp.ne.s32.totalorder %s229, %s232
      %p241 = scmp.eq.s32.totalorder %s30, 1
      %p242 = por %p240, %p241
      %p243 = scmp.ne.s32.totalorder %s232, %s233
      %p244 = scmp.eq.s32.totalorder %s30, 0
      %p245 = por %p243, %p244
      %p246 = scmp.ne.s32.totalorder %s232, %s233
      %p247 = scmp.eq.s32.totalorder %s31, 1
      %p248 = por %p246, %p247
      %p250 = scmp.ne.s32.totalorder %s233, %s249
      %p251 = scmp.eq.s32.totalorder %s31, 0
      %p252 = por %p250, %p251
      %p253 = scmp.le.s32.totalorder 1, %s25
      %p254 = scmp.lt.s32.totalorder %s25, 3
      %p255 = pnand %p253, %p254
      %p256 = pneg %p255
      // Predicated region
      $region9: #{_forward_impl.1} parent=5 // pred_check
        _
      $region10: #{_forward_impl.1} parent=5 // pred_check_branch
        %258 = sbr.rel (%p255) target = $region12
      $region11: #{_forward_impl.1} parent=5 // pred_region
        %s259 = ssub.s32 %s25, 1
        // Predicated region
        $region13: #{_forward_impl.1} parent=11 // pred_check
          %p260 = pneg %p72
        $region14: #{_forward_impl.1} parent=11 // pred_check_branch
          %262 = sbr.rel (%p260) target = $region16
        $region15: #{_forward_impl.1} parent=11 // pred_region
          %s264 = ssub.s32 64, 64
          %265 = vsyncadd [#allocation7], %s264
          %s267 = sshll.u32 [#allocation6], 4
          %s268 = int_to_ptr.vmem [resolvable:$true] %s267
          %270 = dma.hbm_to_vmem [thread:$0]  %s1, 64, %s268, [#allocation7]
        $region16: #{_forward_impl.1} parent=11 // pred_fallthru
          _
        // Predicated region
        $region17: #{_forward_impl.1} parent=11 // pred_check
          %p271 = pneg %p93
        $region18: #{_forward_impl.1} parent=11 // pred_check_branch
          %273 = sbr.rel (%p271) target = $region20
        $region19: #{_forward_impl.1} parent=11 // pred_region
          %s275 = ssub.s32 16, 16
          %276 = vsyncadd [#allocation7], %s275
          %s278 = sshll.u32 [#allocation8], 4
          %s279 = int_to_ptr.vmem [resolvable:$true] %s278
          %281 = dma.hbm_to_vmem [thread:$0]  %s2, 16, %s279, [#allocation7]
        $region20: #{_forward_impl.1} parent=11 // pred_fallthru
          _
        // Predicated region
        $region21: #{_forward_impl.1} parent=11 // pred_check
          %p282 = pneg %p114
        $region22: #{_forward_impl.1} parent=11 // pred_check_branch
          %284 = sbr.rel (%p282) target = $region24
        $region23: #{_forward_impl.1} parent=11 // pred_region
          %s286 = ssub.s32 384, 384
          %287 = vsyncadd [#allocation10], %s286
          %s288 = sshll.u32 [#allocation9], 4
          %s289 = int_to_ptr.vmem [resolvable:$true] %s288
          %294 = dma.hbm_to_vmem [thread:$0]  %s3, 384, %s289, [#allocation10], 64, 64, 4
        $region24: #{_forward_impl.1} parent=11 // pred_fallthru
          _
        // Predicated region
        $region25: #{_forward_impl.1} parent=11 // pred_check
          %p295 = pneg %p135
        $region26: #{_forward_impl.1} parent=11 // pred_check_branch
          %297 = sbr.rel (%p295) target = $region28
        $region27: #{_forward_impl.1} parent=11 // pred_region
          %s299 = ssub.s32 16, 16
          %300 = vsyncadd [#allocation10], %s299
          %s302 = sshll.u32 [#allocation11], 4
          %s303 = int_to_ptr.vmem [resolvable:$true] %s302
          %305 = dma.hbm_to_vmem [thread:$0]  %s4, 16, %s303, [#allocation10]
        $region28: #{_forward_impl.1} parent=11 // pred_fallthru
          _
        // Predicated region
        $region29: #{_forward_impl.1} parent=11 // pred_check
          %p306 = pneg %p156
        $region30: #{_forward_impl.1} parent=11 // pred_check_branch
          %308 = sbr.rel (%p306) target = $region32
        $region31: #{_forward_impl.1} parent=11 // pred_region
          %s310 = ssub.s32 32, 32
          %311 = vsyncadd [#allocation13], %s310
          %s313 = sshll.u32 [#allocation12], 4
          %s314 = int_to_ptr.vmem [resolvable:$true] %s313
          %316 = dma.hbm_to_vmem [thread:$0]  %s5, 32, %s314, [#allocation13]
        $region32: #{_forward_impl.1} parent=11 // pred_fallthru
          _
        // Predicated region
        $region33: #{_forward_impl.1} parent=11 // pred_check
          %p317 = pneg %p177
        $region34: #{_forward_impl.1} parent=11 // pred_check_branch
          %319 = sbr.rel (%p317) target = $region36
        $region35: #{_forward_impl.1} parent=11 // pred_region
          %s321 = ssub.s32 16, 16
          %322 = vsyncadd [#allocation13], %s321
          %s324 = sshll.u32 [#allocation14], 4
          %s325 = int_to_ptr.vmem [resolvable:$true] %s324
          %327 = dma.hbm_to_vmem [thread:$0]  %s6, 16, %s325, [#allocation13]
        $region36: #{_forward_impl.1} parent=11 // pred_fallthru
          _
        // Predicated region
        $region37: #{_forward_impl.1} parent=11 // pred_check
          %p328 = pneg %p198
        $region38: #{_forward_impl.1} parent=11 // pred_check_branch
          %330 = sbr.rel (%p328) target = $region40
        $region39: #{_forward_impl.1} parent=11 // pred_region
          %s332 = ssub.s32 64, 64
          %333 = vsyncadd [#allocation16], %s332
          %s335 = sshll.u32 [#allocation15], 4
          %s336 = int_to_ptr.vmem [resolvable:$true] %s335
          %338 = dma.hbm_to_vmem [thread:$0]  %s7, 64, %s336, [#allocation16]
        $region40: #{_forward_impl.1} parent=11 // pred_fallthru
          _
        // Predicated region
        $region41: #{_forward_impl.1} parent=11 // pred_check
          %p339 = pneg %p219
        $region42: #{_forward_impl.1} parent=11 // pred_check_branch
          %341 = sbr.rel (%p339) target = $region44
        $region43: #{_forward_impl.1} parent=11 // pred_region
          %s343 = ssub.s32 16, 16
          %344 = vsyncadd [#allocation16], %s343
          %s346 = sshll.u32 [#allocation17], 4
          %s347 = int_to_ptr.vmem [resolvable:$true] %s346
          %349 = dma.hbm_to_vmem [thread:$0]  %s8, 16, %s347, [#allocation16]
        $region44: #{_forward_impl.1} parent=11 // pred_fallthru
          _
      $region12: #{_forward_impl.1} parent=5 // pred_fallthru
        _
      %p350 = scmp.lt.s32.totalorder %s25, 2
      // Predicated region
      $region45: #{_forward_impl.1} parent=5 // pred_check
        %p351 = pneg %p350
      $region46: #{_forward_impl.1} parent=5 // pred_check_branch
        %353 = sbr.rel (%p351) target = $region48
      $region47: #{_forward_impl.1} parent=5 // pred_region
        // Predicated region
        $region49: #{_forward_impl.1} parent=47 // pred_check
          %p354 = pneg %p45
        $region50: #{_forward_impl.1} parent=47 // pred_check_branch
          %356 = sbr.rel (%p354) target = $region52
        $region51: #{_forward_impl.1} parent=47 // pred_region
          %s357 = sand.u32 %s35, 1
          %s358 = scalar_lea.sflag [#allocation4], %s357
          %s359 = sand.u32 %s35, 1
          %s360 = smul.addr %s359, 192
          %s361 = scalar_lea.vmem [#allocation3], %s360
          %s363 = ssub.s32 3072, 3072
          %364 = vsyncadd %s358, %s363
          %s365 = smul.addr %s25, 48
          %s366 = smul.addr %s365, 64
          %s367 = scalar_lea.hbm %s0, %s366
          %s368 = sshll.u32 %s361, 4
          %s369 = int_to_ptr.vmem [resolvable:$true] %s368
          %374 = dma.hbm_to_vmem [thread:$0]  %s367, 3072, %s369, %s358, 64, 64, 4
        $region52: #{_forward_impl.1} parent=47 // pred_fallthru
          _
      $region48: #{_forward_impl.1} parent=5 // pred_fallthru
        _
      %p375 = scmp.le.s32.totalorder 1, %s25
      %p376 = scmp.lt.s32.totalorder %s25, 3
      %p377 = pnand %p375, %p376
      %p378 = pneg %p377
      // Predicated region
      $region53: #{_forward_impl.1} parent=5 // pred_check
        _
      $region54: #{_forward_impl.1} parent=5 // pred_check_branch
        %380 = sbr.rel (%p377) target = $region56
      $region55: #{_forward_impl.1} parent=5 // pred_region
        %s381 = ssub.s32 %s25, 1
        %s382 = sand.u32 %s38, 1
        %s383 = scalar_lea.sflag [#allocation4], %s382
        %s384 = sand.u32 %s38, 1
        %s385 = smul.addr %s384, 192
        %s386 = scalar_lea.vmem [#allocation3], %s385
        // Predicated region
        $region57: #{_forward_impl.1} parent=55 // pred_check
          %p387 = pneg %p51
        $region58: #{_forward_impl.1} parent=55 // pred_check_branch
          %389 = sbr.rel (%p387) target = $region60
        $region59: #{_forward_impl.1} parent=55 // pred_region
          %390 = dma.done %s383, 3072
        $region60: #{_forward_impl.1} parent=55 // pred_fallthru
          _
        // Predicated region
        $region61: #{_forward_impl.1} parent=55 // pred_check
          %p391 = pneg %p72
        $region62: #{_forward_impl.1} parent=55 // pred_check_branch
          %393 = sbr.rel (%p391) target = $region64
        $region63: #{_forward_impl.1} parent=55 // pred_region
          %394 = dma.done [#allocation7], 64
        $region64: #{_forward_impl.1} parent=55 // pred_fallthru
          _
        // Predicated region
        $region65: #{_forward_impl.1} parent=55 // pred_check
          %p395 = pneg %p93
        $region66: #{_forward_impl.1} parent=55 // pred_check_branch
          %397 = sbr.rel (%p395) target = $region68
        $region67: #{_forward_impl.1} parent=55 // pred_region
          %398 = dma.done [#allocation7], 16
        $region68: #{_forward_impl.1} parent=55 // pred_fallthru
          _
        // Predicated region
        $region69: #{_forward_impl.1} parent=55 // pred_check
          %p399 = pneg %p114
        $region70: #{_forward_impl.1} parent=55 // pred_check_branch
          %401 = sbr.rel (%p399) target = $region72
        $region71: #{_forward_impl.1} parent=55 // pred_region
          %402 = dma.done [#allocation10], 384
        $region72: #{_forward_impl.1} parent=55 // pred_fallthru
          _
        // Predicated region
        $region73: #{_forward_impl.1} parent=55 // pred_check
          %p403 = pneg %p135
        $region74: #{_forward_impl.1} parent=55 // pred_check_branch
          %405 = sbr.rel (%p403) target = $region76
        $region75: #{_forward_impl.1} parent=55 // pred_region
          %406 = dma.done [#allocation10], 16
        $region76: #{_forward_impl.1} parent=55 // pred_fallthru
          _
        // Predicated region
        $region77: #{_forward_impl.1} parent=55 // pred_check
          %p407 = pneg %p156
        $region78: #{_forward_impl.1} parent=55 // pred_check_branch
          %409 = sbr.rel (%p407) target = $region80
        $region79: #{_forward_impl.1} parent=55 // pred_region
          %410 = dma.done [#allocation13], 32
        $region80: #{_forward_impl.1} parent=55 // pred_fallthru
          _
        // Predicated region
        $region81: #{_forward_impl.1} parent=55 // pred_check
          %p411 = pneg %p177
        $region82: #{_forward_impl.1} parent=55 // pred_check_branch
          %413 = sbr.rel (%p411) target = $region84
        $region83: #{_forward_impl.1} parent=55 // pred_region
          %414 = dma.done [#allocation13], 16
        $region84: #{_forward_impl.1} parent=55 // pred_fallthru
          _
        // Predicated region
        $region85: #{_forward_impl.1} parent=55 // pred_check
          %p415 = pneg %p198
        $region86: #{_forward_impl.1} parent=55 // pred_check_branch
          %417 = sbr.rel (%p415) target = $region88
        $region87: #{_forward_impl.1} parent=55 // pred_region
          %418 = dma.done [#allocation16], 64
        $region88: #{_forward_impl.1} parent=55 // pred_fallthru
          _
        // Predicated region
        $region89: #{_forward_impl.1} parent=55 // pred_check
          %p419 = pneg %p219
        $region90: #{_forward_impl.1} parent=55 // pred_check_branch
          %421 = sbr.rel (%p419) target = $region92
        $region91: #{_forward_impl.1} parent=55 // pred_region
          %422 = dma.done [#allocation16], 16
        $region92: #{_forward_impl.1} parent=55 // pred_fallthru
          _
        %s423 = sand.u32 %s38, 1
        %s424 = scalar_lea.sflag [#allocation4], %s423
        %s425 = sand.u32 %s38, 1
        %s426 = smul.addr %s425, 192
        %s427 = scalar_lea.vmem [#allocation3], %s426
        %p428 = pneg %p51
        %p429 = pneg %p48
        %p430 = pneg %p72
        %p431 = pneg %p69
        %p432 = pneg %p93
        %p433 = pneg %p90
        %p434 = pneg %p114
        %p435 = pneg %p111
        %p436 = pneg %p135
        %p437 = pneg %p132
        %p438 = pneg %p156
        %p439 = pneg %p153
        %p440 = pneg %p177
        %p441 = pneg %p174
        %p442 = pneg %p198
        %p443 = pneg %p195
        %p444 = pneg %p219
        %p445 = pneg %p216
        %p446 = pneg %p245
        %p447 = pneg %p242
        %s448 = sand.u32 %s232, 1
        %s449 = scalar_lea.sflag [#allocation5], %s448
        %s450 = sand.u32 %s232, 1
        %s451 = smul.addr %s450, 192
        %s452 = scalar_lea.vmem [#allocation18], %s451
        %vm454 = vcmask 27648
        %455 = vst.msk [vmem:[#allocation2] sm:$0xf] %vm454, 0
        %456 = vst.msk [vmem:[#allocation2 + $0x4] sm:$0xf] %vm454, 0
        %457 = vst.msk [vmem:[#allocation2 + $0x8] sm:$0xf] %vm454, 0
        %s458 = scalar_lea.vmem [#allocation2], 300
        %459 = vst.msk [vmem:[%s458] sm:$0xf] %vm454, 0
        %460 = vst.msk [vmem:[%s458 + $0x4] sm:$0xf] %vm454, 0
        %461 = vst.msk [vmem:[%s458 + $0x8] sm:$0xf] %vm454, 0
        %462 = vst.msk [vmem:[#allocation2] sm:$0xf] %vm454, 0
        %463 = vst.msk [vmem:[#allocation2 + $0xc] sm:$0xf] %vm454, 0
        %464 = vst.msk [vmem:[#allocation2 + $0x18] sm:$0xf] %vm454, 0
        %465 = vst.msk [vmem:[#allocation2 + $0x24] sm:$0xf] %vm454, 0
        %466 = vst.msk [vmem:[#allocation2 + $0x30] sm:$0xf] %vm454, 0
        %467 = vst.msk [vmem:[#allocation2 + $0x3c] sm:$0xf] %vm454, 0
        %468 = vst.msk [vmem:[#allocation2 + $0x48] sm:$0xf] %vm454, 0
        %469 = vst.msk [vmem:[#allocation2 + $0x54] sm:$0xf] %vm454, 0
        %470 = vst.msk [vmem:[#allocation2 + $0x60] sm:$0xf] %vm454, 0
        %471 = vst.msk [vmem:[#allocation2 + $0x6c] sm:$0xf] %vm454, 0
        %472 = vst.msk [vmem:[#allocation2 + $0x78] sm:$0xf] %vm454, 0
        %473 = vst.msk [vmem:[#allocation2 + $0x84] sm:$0xf] %vm454, 0
        %474 = vst.msk [vmem:[#allocation2 + $0x90] sm:$0xf] %vm454, 0
        %475 = vst.msk [vmem:[#allocation2 + $0x9c] sm:$0xf] %vm454, 0
        %476 = vst.msk [vmem:[#allocation2 + $0xa8] sm:$0xf] %vm454, 0
        %477 = vst.msk [vmem:[#allocation2 + $0xb4] sm:$0xf] %vm454, 0
        %478 = vst.msk [vmem:[#allocation2 + $0xc0] sm:$0xf] %vm454, 0
        %479 = vst.msk [vmem:[#allocation2 + $0xcc] sm:$0xf] %vm454, 0
        %480 = vst.msk [vmem:[#allocation2 + $0xd8] sm:$0xf] %vm454, 0
        %481 = vst.msk [vmem:[#allocation2 + $0xe4] sm:$0xf] %vm454, 0
        %482 = vst.msk [vmem:[#allocation2 + $0xf0] sm:$0xf] %vm454, 0
        %483 = vst.msk [vmem:[#allocation2 + $0xfc] sm:$0xf] %vm454, 0
        %484 = vst.msk [vmem:[#allocation2 + $0x108] sm:$0xf] %vm454, 0
        %485 = vst.msk [vmem:[#allocation2 + $0x114] sm:$0xf] %vm454, 0
        %486 = vst.msk [vmem:[#allocation2 + $0x120] sm:$0xf] %vm454, 0
        %487 = vst.msk [vmem:[#allocation2 + $0x12c] sm:$0xf] %vm454, 0
        %488 = vst.msk [vmem:[#allocation2 + $0x8] sm:$0xf] %vm454, 0
        %489 = vst.msk [vmem:[#allocation2 + $0x14] sm:$0xf] %vm454, 0
        %490 = vst.msk [vmem:[#allocation2 + $0x20] sm:$0xf] %vm454, 0
        %491 = vst.msk [vmem:[#allocation2 + $0x2c] sm:$0xf] %vm454, 0
        %492 = vst.msk [vmem:[#allocation2 + $0x38] sm:$0xf] %vm454, 0
        %493 = vst.msk [vmem:[#allocation2 + $0x44] sm:$0xf] %vm454, 0
        %494 = vst.msk [vmem:[#allocation2 + $0x50] sm:$0xf] %vm454, 0
        %495 = vst.msk [vmem:[#allocation2 + $0x5c] sm:$0xf] %vm454, 0
        %496 = vst.msk [vmem:[#allocation2 + $0x68] sm:$0xf] %vm454, 0
        %497 = vst.msk [vmem:[#allocation2 + $0x74] sm:$0xf] %vm454, 0
        %498 = vst.msk [vmem:[#allocation2 + $0x80] sm:$0xf] %vm454, 0
        %499 = vst.msk [vmem:[#allocation2 + $0x8c] sm:$0xf] %vm454, 0
        %500 = vst.msk [vmem:[#allocation2 + $0x98] sm:$0xf] %vm454, 0
        %501 = vst.msk [vmem:[#allocation2 + $0xa4] sm:$0xf] %vm454, 0
        %502 = vst.msk [vmem:[#allocation2 + $0xb0] sm:$0xf] %vm454, 0
        %503 = vst.msk [vmem:[#allocation2 + $0xbc] sm:$0xf] %vm454, 0
        %504 = vst.msk [vmem:[#allocation2 + $0xc8] sm:$0xf] %vm454, 0
        %505 = vst.msk [vmem:[#allocation2 + $0xd4] sm:$0xf] %vm454, 0
        %506 = vst.msk [vmem:[#allocation2 + $0xe0] sm:$0xf] %vm454, 0
        %507 = vst.msk [vmem:[#allocation2 + $0xec] sm:$0xf] %vm454, 0
        %508 = vst.msk [vmem:[#allocation2 + $0xf8] sm:$0xf] %vm454, 0
        %509 = vst.msk [vmem:[#allocation2 + $0x104] sm:$0xf] %vm454, 0
        %510 = vst.msk [vmem:[#allocation2 + $0x110] sm:$0xf] %vm454, 0
        %511 = vst.msk [vmem:[#allocation2 + $0x11c] sm:$0xf] %vm454, 0
        %512 = vst.msk [vmem:[#allocation2 + $0x128] sm:$0xf] %vm454, 0
        %513 = vst.msk [vmem:[#allocation2 + $0x134] sm:$0xf] %vm454, 0
        %v514 = vld [vmem:[#allocation8] sm:$0x1]
        %v515 = vld [vmem:[#allocation11] sm:$0x1]
        %v516 = vld [vmem:[#allocation14] sm:$0x1]
        %v517 = vld [vmem:[#allocation17] sm:$0x1]
        loop: start=0, step=1, limit=2
        $region93: #{_forward_impl.1} parent=55 // loop_pre_header
          _
        $region94: #{_forward_impl.1} parent=55 // loop_header
          %s519 = sphi 0, %s523
          %p520 = scmp.ge.s32.totalorder %s519, 2
        $region95: #{_forward_impl.1} parent=55 // loop_header_branch
          %522 = sbr.rel (%p520) target = $region99
        $region96: #{_forward_impl.1} parent=55 // loop_body
          %s524 = smul.u32 %s519, 12
          %s525 = smul.u32 %s524, 2
          %s526 = smul.addr %s525, 4
          %s527 = scalar_lea.vmem %s386, %s526 [#allocation3]
          %v528 = vld [vmem:[%s527] sm:$0xf]
          %v529 = vld [vmem:[%s527 + $0x4] sm:$0xf]
          %v530 = vld [vmem:[%s527 + $0x8] sm:$0xf]
          %v531 = vld [vmem:[%s527 + $0xc] sm:$0xf]
          %v532 = vld [vmem:[%s527 + $0x10] sm:$0xf]
          %v533 = vld [vmem:[%s527 + $0x14] sm:$0xf]
          %v534 = vld [vmem:[%s527 + $0x18] sm:$0xf]
          %v535 = vld [vmem:[%s527 + $0x1c] sm:$0xf]
          %v536 = vld [vmem:[%s527 + $0x20] sm:$0xf]
          %v537 = vld [vmem:[%s527 + $0x24] sm:$0xf]
          %v538 = vld [vmem:[%s527 + $0x28] sm:$0xf]
          %v539 = vld [vmem:[%s527 + $0x2c] sm:$0xf]
          %v540 = vld [vmem:[%s527 + $0x30] sm:$0xf]
          %v541 = vld [vmem:[%s527 + $0x34] sm:$0xf]
          %v542 = vld [vmem:[%s527 + $0x38] sm:$0xf]
          %v543 = vld [vmem:[%s527 + $0x3c] sm:$0xf]
          %v544 = vld [vmem:[%s527 + $0x40] sm:$0xf]
          %v545 = vld [vmem:[%s527 + $0x44] sm:$0xf]
          %v546 = vld [vmem:[%s527 + $0x48] sm:$0xf]
          %v547 = vld [vmem:[%s527 + $0x4c] sm:$0xf]
          %v548 = vld [vmem:[%s527 + $0x50] sm:$0xf]
          %v549 = vld [vmem:[%s527 + $0x54] sm:$0xf]
          %v550 = vld [vmem:[%s527 + $0x58] sm:$0xf]
          %v551 = vld [vmem:[%s527 + $0x5c] sm:$0xf]
          %v552 = vld [vmem:[#allocation6] sm:$0xf]
          %v554 = vlaneseq
          %v555 = vshrl.u32 %v554, 7
          %v556 = vsub.s32 0, %v555
          %v557 = vrot.slane %v514, %v556
          %v583 = vunpack.c.l.b16 %v528
          %v584 = vunpack.c.l.b16 %v529
          %v585 = vunpack.c.l.b16 %v530
          %v586 = vunpack.c.l.b16 %v531
          %v587 = vunpack.c.l.b16 %v532
          %v588 = vunpack.c.l.b16 %v533
          %v589 = vunpack.c.l.b16 %v534
          %v590 = vunpack.c.l.b16 %v535
          %v591 = vunpack.c.l.b16 %v536
          %v592 = vunpack.c.l.b16 %v537
          %v593 = vunpack.c.l.b16 %v538
          %v594 = vunpack.c.l.b16 %v539
          %v595 = vunpack.c.l.b16 %v540
          %v596 = vunpack.c.l.b16 %v541
          %v597 = vunpack.c.l.b16 %v542
          %v598 = vunpack.c.l.b16 %v543
          %v599 = vunpack.c.l.b16 %v544
          %v600 = vunpack.c.l.b16 %v545
          %v601 = vunpack.c.l.b16 %v546
          %v602 = vunpack.c.l.b16 %v547
          %v603 = vunpack.c.l.b16 %v548
          %v604 = vunpack.c.l.b16 %v549
          %v605 = vunpack.c.l.b16 %v550
          %v606 = vunpack.c.l.b16 %v551
          %v607 = vpack.c.b16 %v584, %v583
          %v608 = vpack.c.b16 %v586, %v585
          %v609 = vpack.c.b16 %v588, %v587
          %v610 = vpack.c.b16 %v590, %v589
          %v611 = vpack.c.b16 %v592, %v591
          %v612 = vpack.c.b16 %v594, %v593
          %v613 = vpack.c.b16 %v596, %v595
          %v614 = vpack.c.b16 %v598, %v597
          %v615 = vpack.c.b16 %v600, %v599
          %v616 = vpack.c.b16 %v602, %v601
          %v617 = vpack.c.b16 %v604, %v603
          %v618 = vpack.c.b16 %v606, %v605
          %vm619 = vcmask 64512
          %v621 = vsel %vm619, %v607, 0
          %v624 = vsel %vm619, %v608, 0
          %v627 = vsel %vm619, %v609, 0
          %v630 = vsel %vm619, %v610, 0
          %v633 = vsel %vm619, %v611, 0
          %v636 = vsel %vm619, %v612, 0
          %v639 = vsel %vm619, %v613, 0
          %v642 = vsel %vm619, %v614, 0
          %v645 = vsel %vm619, %v615, 0
          %v648 = vsel %vm619, %v616, 0
          %v651 = vsel %vm619, %v617, 0
          %v654 = vsel %vm619, %v618, 0
          %vm656 = vcmask 1043456
          %v658 = vsel %vm656, %v552, 0
          %660 = vmatprep.subr.bf16.mxu0 0
          %661 = vmatpush1.bf16.msra.mxu0 %v658
          %662 = vmatprep.subr.bf16.mxu0 0
          %663 = vmatpush1.bf16.msra.mxu0 0
          %664 = vmatprep.subr.bf16.mxu0 0
          %665 = vmatpush1.bf16.msra.mxu0 0
          %666 = vmatprep.subr.bf16.mxu0 0
          %667 = vmatpush1.bf16.msra.mxu0 0
          %668 = vmatprep.subr.bf16.mxu0 0
          %669 = vmatpush1.bf16.msra.mxu0 0
          %670 = vmatprep.subr.bf16.mxu0 0
          %671 = vmatpush1.bf16.msra.mxu0 0
          %672 = vmatprep.subr.bf16.mxu0 0
          %673 = vmatpush1.bf16.msra.mxu0 0
          %674 = vmatprep.subr.bf16.mxu0 0
          %675 = vmatpush1.bf16.msra.mxu0 0
          %676 = vmatprep.subr.bf16.mxu0 0
          %677 = vmatpush1.bf16.msra.mxu0 0
          %678 = vmatprep.subr.bf16.mxu0 0
          %679 = vmatpush1.bf16.msra.mxu0 0
          %680 = vmatprep.subr.bf16.mxu0 0
          %681 = vmatpush1.bf16.msra.mxu0 0
          %682 = vmatprep.subr.bf16.mxu0 0
          %683 = vmatpush1.bf16.msra.mxu0 0
          %684 = vmatprep.subr.bf16.mxu0 0
          %685 = vmatpush1.bf16.msra.mxu0 0
          %686 = vmatprep.subr.bf16.mxu0 0
          %687 = vmatpush1.bf16.msra.mxu0 0
          %688 = vmatprep.subr.bf16.mxu0 0
          %689 = vmatpush1.bf16.msra.mxu0 0
          %690 = vmatprep.subr.bf16.mxu0 0
          %691 = vmatpush1.bf16.msra.mxu0 0
          %692 = vmatprep.mubr.bf16.mxu0 0
          %693 = vmatmul.mubr.bf16.gmra.mrb[0].mxu0 %v621
          %v694 = vpop.f32.mrb[0].mxu0
          %v695 = vadd.f32 %v557, %v694
          %v696 = vpop.f32.mrb[0].mxu0
          %v697 = vpop.f32.mrb[0].mxu0
          %v698 = vadd.f32 %v557, %v697
          %v699 = vpop.f32.mrb[0].mxu0
          %700 = vmatprep.mubr.bf16.mxu0 0
          %701 = vmatmul.mubr.bf16.gmra.mrb[0].mxu0 %v624
          %v702 = vpop.f32.mrb[0].mxu0
          %v703 = vadd.f32 %v557, %v702
          %v704 = vpop.f32.mrb[0].mxu0
          %v705 = vpop.f32.mrb[0].mxu0
          %v706 = vadd.f32 %v557, %v705
          %v707 = vpop.f32.mrb[0].mxu0
          %708 = vmatprep.mubr.bf16.mxu0 0
          %709 = vmatmul.mubr.bf16.gmra.mrb[0].mxu0 %v627
          %v710 = vpop.f32.mrb[0].mxu0
          %v711 = vadd.f32 %v557, %v710
          %v712 = vpop.f32.mrb[0].mxu0
          %v713 = vpop.f32.mrb[0].mxu0
          %v714 = vadd.f32 %v557, %v713
          %v715 = vpop.f32.mrb[0].mxu0
          %716 = vmatprep.mubr.bf16.mxu0 0
          %717 = vmatmul.mubr.bf16.gmra.mrb[0].mxu0 %v630
          %v718 = vpop.f32.mrb[0].mxu0
          %v719 = vadd.f32 %v557, %v718
          %v720 = vpop.f32.mrb[0].mxu0
          %v721 = vpop.f32.mrb[0].mxu0
          %v722 = vadd.f32 %v557, %v721
          %v723 = vpop.f32.mrb[0].mxu0
          %724 = vmatprep.mubr.bf16.mxu0 0
          %725 = vmatmul.mubr.bf16.gmra.mrb[0].mxu0 %v633
          %v726 = vpop.f32.mrb[0].mxu0
          %v727 = vadd.f32 %v557, %v726
          %v728 = vpop.f32.mrb[0].mxu0
          %v729 = vpop.f32.mrb[0].mxu0
          %v730 = vadd.f32 %v557, %v729
          %v731 = vpop.f32.mrb[0].mxu0
          %732 = vmatprep.mubr.bf16.mxu0 0
          %733 = vmatmul.mubr.bf16.gmra.mrb[0].mxu0 %v636
          %v734 = vpop.f32.mrb[0].mxu0
          %v735 = vadd.f32 %v557, %v734
          %v736 = vpop.f32.mrb[0].mxu0
          %v737 = vpop.f32.mrb[0].mxu0
          %v738 = vadd.f32 %v557, %v737
          %v739 = vpop.f32.mrb[0].mxu0
          %740 = vmatprep.mubr.bf16.mxu0 0
          %741 = vmatmul.mubr.bf16.gmra.mrb[0].mxu0 %v639
          %v742 = vpop.f32.mrb[0].mxu0
          %v743 = vadd.f32 %v557, %v742
          %v744 = vpop.f32.mrb[0].mxu0
          %v745 = vpop.f32.mrb[0].mxu0
          %v746 = vadd.f32 %v557, %v745
          %v747 = vpop.f32.mrb[0].mxu0
          %748 = vmatprep.mubr.bf16.mxu0 0
          %749 = vmatmul.mubr.bf16.gmra.mrb[0].mxu0 %v642
          %v750 = vpop.f32.mrb[0].mxu0
          %v751 = vadd.f32 %v557, %v750
          %v752 = vpop.f32.mrb[0].mxu0
          %v753 = vpop.f32.mrb[0].mxu0
          %v754 = vadd.f32 %v557, %v753
          %v755 = vpop.f32.mrb[0].mxu0
          %756 = vmatprep.mubr.bf16.mxu0 0
          %757 = vmatmul.mubr.bf16.gmra.mrb[0].mxu0 %v645
          %v758 = vpop.f32.mrb[0].mxu0
          %v759 = vadd.f32 %v557, %v758
          %v760 = vpop.f32.mrb[0].mxu0
          %v761 = vpop.f32.mrb[0].mxu0
          %v762 = vadd.f32 %v557, %v761
          %v763 = vpop.f32.mrb[0].mxu0
          %764 = vmatprep.mubr.bf16.mxu0 0
          %765 = vmatmul.mubr.bf16.gmra.mrb[0].mxu0 %v648
          %v766 = vpop.f32.mrb[0].mxu0
          %v767 = vadd.f32 %v557, %v766
          %v768 = vpop.f32.mrb[0].mxu0
          %v769 = vpop.f32.mrb[0].mxu0
          %v770 = vadd.f32 %v557, %v769
          %v771 = vpop.f32.mrb[0].mxu0
          %772 = vmatprep.mubr.bf16.mxu0 0
          %773 = vmatmul.mubr.bf16.gmra.mrb[0].mxu0 %v651
          %v774 = vpop.f32.mrb[0].mxu0
          %v775 = vadd.f32 %v557, %v774
          %v776 = vpop.f32.mrb[0].mxu0
          %v777 = vpop.f32.mrb[0].mxu0
          %v778 = vadd.f32 %v557, %v777
          %v779 = vpop.f32.mrb[0].mxu0
          %780 = vmatprep.mubr.bf16.mxu0 0
          %781 = vmatmul.mubr.bf16.gmra.mrb[0].mxu0 %v654
          %v782 = vpop.f32.mrb[0].mxu0
          %v783 = vadd.f32 %v557, %v782
          %v784 = vpop.f32.mrb[0].mxu0
          %v785 = vpop.f32.mrb[0].mxu0
          %v786 = vadd.f32 %v557, %v785
          %v787 = vpop.f32.mrb[0].mxu0
          %788 = vdwg.mxu0
          %v789 = vmax.f32 %v695, 0.0
          %v790 = vmax.f32 %v698, 0.0
          %v791 = vmax.f32 %v703, 0.0
          %v792 = vmax.f32 %v706, 0.0
          %v793 = vmax.f32 %v711, 0.0
          %v794 = vmax.f32 %v714, 0.0
          %v795 = vmax.f32 %v719, 0.0
          %v796 = vmax.f32 %v722, 0.0
          %v797 = vmax.f32 %v727, 0.0
          %v798 = vmax.f32 %v730, 0.0
          %v799 = vmax.f32 %v735, 0.0
          %v800 = vmax.f32 %v738, 0.0
          %v801 = vmax.f32 %v743, 0.0
          %v802 = vmax.f32 %v746, 0.0
          %v803 = vmax.f32 %v751, 0.0
          %v804 = vmax.f32 %v754, 0.0
          %v805 = vmax.f32 %v759, 0.0
          %v806 = vmax.f32 %v762, 0.0
          %v807 = vmax.f32 %v767, 0.0
          %v808 = vmax.f32 %v770, 0.0
          %v809 = vmax.f32 %v775, 0.0
          %v810 = vmax.f32 %v778, 0.0
          %v811 = vmax.f32 %v783, 0.0
          %v812 = vmax.f32 %v786, 0.0
          %v813 = vpack.c.bf16 %v790, %v789
          %v814 = vpack.c.bf16 %v792, %v791
          %v815 = vpack.c.bf16 %v794, %v793
          %v816 = vpack.c.bf16 %v796, %v795
          %v817 = vpack.c.bf16 %v798, %v797
          %v818 = vpack.c.bf16 %v800, %v799
          %v819 = vpack.c.bf16 %v802, %v801
          %v820 = vpack.c.bf16 %v804, %v803
          %v821 = vpack.c.bf16 %v806, %v805
          %v822 = vpack.c.bf16 %v808, %v807
          %v823 = vpack.c.bf16 %v810, %v809
          %v824 = vpack.c.bf16 %v812, %v811
          %s825 = sadd.s32 %s524, 1
          %v838 = vunpack.c.l.b16 %v813
          %v839 = vunpack.c.h.b16 %v813
          %v840 = vunpack.c.l.b16 %v814
          %v841 = vunpack.c.h.b16 %v814
          %v842 = vunpack.c.l.b16 %v815
          %v843 = vunpack.c.h.b16 %v815
          %v844 = vunpack.c.l.b16 %v816
          %v845 = vunpack.c.h.b16 %v816
          %v846 = vunpack.c.l.b16 %v817
          %v847 = vunpack.c.h.b16 %v817
          %v848 = vunpack.c.l.b16 %v818
          %v849 = vunpack.c.h.b16 %v818
          %v850 = vunpack.c.l.b16 %v819
          %v851 = vunpack.c.h.b16 %v819
          %v852 = vunpack.c.l.b16 %v820
          %v853 = vunpack.c.h.b16 %v820
          %v854 = vunpack.c.l.b16 %v821
          %v855 = vunpack.c.h.b16 %v821
          %v856 = vunpack.c.l.b16 %v822
          %v857 = vunpack.c.h.b16 %v822
          %v858 = vunpack.c.l.b16 %v823
          %v859 = vunpack.c.h.b16 %v823
          %v860 = vunpack.c.l.b16 %v824
          %v861 = vunpack.c.h.b16 %v824
          %v862 = vpack.c.b16 %v838, %v838
          %v863 = vpack.c.b16 %v839, %v839
          %v864 = vpack.c.b16 %v840, %v840
          %v865 = vpack.c.b16 %v841, %v841
          %v866 = vpack.c.b16 %v842, %v842
          %v867 = vpack.c.b16 %v843, %v843
          %v868 = vpack.c.b16 %v844, %v844
          %v869 = vpack.c.b16 %v845, %v845
          %v870 = vpack.c.b16 %v846, %v846
          %v871 = vpack.c.b16 %v847, %v847
          %v872 = vpack.c.b16 %v848, %v848
          %v873 = vpack.c.b16 %v849, %v849
          %v874 = vpack.c.b16 %v850, %v850
          %v875 = vpack.c.b16 %v851, %v851
          %v876 = vpack.c.b16 %v852, %v852
          %v877 = vpack.c.b16 %v853, %v853
          %v878 = vpack.c.b16 %v854, %v854
          %v879 = vpack.c.b16 %v855, %v855
          %v880 = vpack.c.b16 %v856, %v856
          %v881 = vpack.c.b16 %v857, %v857
          %v882 = vpack.c.b16 %v858, %v858
          %v883 = vpack.c.b16 %v859, %v859
          %v884 = vpack.c.b16 %v860, %v860
          %v885 = vpack.c.b16 %v861, %v861
          %vm886 = vsmask.f32 256
          %vm887 = vsmask.f32 4368
          %vm888 = vmor %vm886, %vm887
          %v890 = vshrl.u32 %v862, 16
          %v892 = vrot.slane %v890, 7
          %v893 = vshll.u32 %v862, 16
          %v895 = vor.u32 %v892, %v893
          %v896 = vrot.slane %v892, 4
          %v898 = vshrl.u32 %v863, 16
          %v900 = vrot.slane %v898, 7
          %v901 = vshll.u32 %v863, 16
          %v903 = vor.u32 %v900, %v901
          %v904 = vsel %vm888, %v896, %v903
          %v905 = vrot.slane %v900, 4
          %v907 = vshrl.u32 %v864, 16
          %v909 = vrot.slane %v907, 7
          %v910 = vshll.u32 %v864, 16
          %v912 = vor.u32 %v909, %v910
          %v913 = vrot.slane %v909, 4
          %v915 = vshrl.u32 %v865, 16
          %v917 = vrot.slane %v915, 7
          %v918 = vshll.u32 %v865, 16
          %v920 = vor.u32 %v917, %v918
          %v921 = vsel %vm888, %v913, %v920
          %v922 = vrot.slane %v917, 4
          %v924 = vshrl.u32 %v866, 16
          %v926 = vrot.slane %v924, 7
          %v927 = vshll.u32 %v866, 16
          %v929 = vor.u32 %v926, %v927
          %v930 = vrot.slane %v926, 4
          %v932 = vshrl.u32 %v867, 16
          %v934 = vrot.slane %v932, 7
          %v935 = vshll.u32 %v867, 16
          %v937 = vor.u32 %v934, %v935
          %v938 = vsel %vm888, %v930, %v937
          %v939 = vrot.slane %v934, 4
          %v941 = vshrl.u32 %v868, 16
          %v943 = vrot.slane %v941, 7
          %v944 = vshll.u32 %v868, 16
          %v946 = vor.u32 %v943, %v944
          %v947 = vrot.slane %v943, 4
          %v949 = vshrl.u32 %v869, 16
          %v951 = vrot.slane %v949, 7
          %v952 = vshll.u32 %v869, 16
          %v954 = vor.u32 %v951, %v952
          %v955 = vsel %vm888, %v947, %v954
          %v956 = vrot.slane %v951, 4
          %v958 = vshrl.u32 %v870, 16
          %v960 = vrot.slane %v958, 7
          %v961 = vshll.u32 %v870, 16
          %v963 = vor.u32 %v960, %v961
          %v964 = vrot.slane %v960, 4
          %v966 = vshrl.u32 %v871, 16
          %v968 = vrot.slane %v966, 7
          %v969 = vshll.u32 %v871, 16
          %v971 = vor.u32 %v968, %v969
          %v972 = vsel %vm888, %v964, %v971
          %v973 = vrot.slane %v968, 4
          %v975 = vshrl.u32 %v872, 16
          %v977 = vrot.slane %v975, 7
          %v978 = vshll.u32 %v872, 16
          %v980 = vor.u32 %v977, %v978
          %v981 = vrot.slane %v977, 4
          %v983 = vshrl.u32 %v873, 16
          %v985 = vrot.slane %v983, 7
          %v986 = vshll.u32 %v873, 16
          %v988 = vor.u32 %v985, %v986
          %v989 = vsel %vm888, %v981, %v988
          %v990 = vrot.slane %v985, 4
          %v992 = vshrl.u32 %v874, 16
          %v994 = vrot.slane %v992, 7
          %v995 = vshll.u32 %v874, 16
          %v997 = vor.u32 %v994, %v995
          %v998 = vrot.slane %v994, 4
          %v1000 = vshrl.u32 %v875, 16
          %v1002 = vrot.slane %v1000, 7
          %v1003 = vshll.u32 %v875, 16
          %v1005 = vor.u32 %v1002, %v1003
          %v1006 = vsel %vm888, %v998, %v1005
          %v1007 = vrot.slane %v1002, 4
          %v1009 = vshrl.u32 %v876, 16
          %v1011 = vrot.slane %v1009, 7
          %v1012 = vshll.u32 %v876, 16
          %v1014 = vor.u32 %v1011, %v1012
          %v1015 = vrot.slane %v1011, 4
          %v1017 = vshrl.u32 %v877, 16
          %v1019 = vrot.slane %v1017, 7
          %v1020 = vshll.u32 %v877, 16
          %v1022 = vor.u32 %v1019, %v1020
          %v1023 = vsel %vm888, %v1015, %v1022
          %v1024 = vrot.slane %v1019, 4
          %v1026 = vshrl.u32 %v878, 16
          %v1028 = vrot.slane %v1026, 7
          %v1029 = vshll.u32 %v878, 16
          %v1031 = vor.u32 %v1028, %v1029
          %v1032 = vrot.slane %v1028, 4
          %v1034 = vshrl.u32 %v879, 16
          %v1036 = vrot.slane %v1034, 7
          %v1037 = vshll.u32 %v879, 16
          %v1039 = vor.u32 %v1036, %v1037
          %v1040 = vsel %vm888, %v1032, %v1039
          %v1041 = vrot.slane %v1036, 4
          %v1043 = vshrl.u32 %v880, 16
          %v1045 = vrot.slane %v1043, 7
          %v1046 = vshll.u32 %v880, 16
          %v1048 = vor.u32 %v1045, %v1046
          %v1049 = vrot.slane %v1045, 4
          %v1051 = vshrl.u32 %v881, 16
          %v1053 = vrot.slane %v1051, 7
          %v1054 = vshll.u32 %v881, 16
          %v1056 = vor.u32 %v1053, %v1054
          %v1057 = vsel %vm888, %v1049, %v1056
          %v1058 = vrot.slane %v1053, 4
          %v1060 = vshrl.u32 %v882, 16
          %v1062 = vrot.slane %v1060, 7
          %v1063 = vshll.u32 %v882, 16
          %v1065 = vor.u32 %v1062, %v1063
          %v1066 = vrot.slane %v1062, 4
          %v1068 = vshrl.u32 %v883, 16
          %v1070 = vrot.slane %v1068, 7
          %v1071 = vshll.u32 %v883, 16
          %v1073 = vor.u32 %v1070, %v1071
          %v1074 = vsel %vm888, %v1066, %v1073
          %v1075 = vrot.slane %v1070, 4
          %v1077 = vshrl.u32 %v884, 16
          %v1079 = vrot.slane %v1077, 7
          %v1080 = vshll.u32 %v884, 16
          %v1082 = vor.u32 %v1079, %v1080
          %v1083 = vrot.slane %v1079, 4
          %v1085 = vshrl.u32 %v885, 16
          %v1087 = vrot.slane %v1085, 7
          %v1088 = vshll.u32 %v885, 16
          %v1090 = vor.u32 %v1087, %v1088
          %v1091 = vsel %vm888, %v1083, %v1090
          %v1092 = vrot.slane %v1087, 4
          %s1129 = smul.u32 %s825, 3
          %s1130 = smul.addr %s1129, 4
          %s1131 = scalar_lea.vmem [#allocation2], %s1130
          %vm1132 = vcmask 27648
          %vm1133 = vsmask.f32 7938
          %vm1134 = vmand %vm1132, %vm1133
          %v1135 = vld [vmem:[%s1131] sm:$0xf]
          %v1136 = vsel %vm1134, %v895, %v1135
          %1137 = vst [vmem:[%s1131] sm:$0xf] %v1136
          %1138 = vst.msk [vmem:[%s1131 + $0x4] sm:$0xf] %vm454, %v904
          %vm1139 = vcmask 24576
          %vm1140 = vmand %vm1139, %vm886
          %v1141 = vld [vmem:[%s1131 + $0x8] sm:$0x1]
          %v1142 = vsel %vm1140, %v905, %v1141
          %1143 = vst [vmem:[%s1131 + $0x8] sm:$0x1] %v1142
          %v1144 = vld [vmem:[%s1131 + $0xc] sm:$0xf]
          %v1145 = vsel %vm1134, %v912, %v1144
          %1146 = vst [vmem:[%s1131 + $0xc] sm:$0xf] %v1145
          %1147 = vst.msk [vmem:[%s1131 + $0x10] sm:$0xf] %vm454, %v921
          %v1148 = vld [vmem:[%s1131 + $0x14] sm:$0x1]
          %v1149 = vsel %vm1140, %v922, %v1148
          %1150 = vst [vmem:[%s1131 + $0x14] sm:$0x1] %v1149
          %v1151 = vld [vmem:[%s1131 + $0x18] sm:$0xf]
          %v1152 = vsel %vm1134, %v929, %v1151
          %1153 = vst [vmem:[%s1131 + $0x18] sm:$0xf] %v1152
          %1154 = vst.msk [vmem:[%s1131 + $0x1c] sm:$0xf] %vm454, %v938
          %v1155 = vld [vmem:[%s1131 + $0x20] sm:$0x1]
          %v1156 = vsel %vm1140, %v939, %v1155
          %1157 = vst [vmem:[%s1131 + $0x20] sm:$0x1] %v1156
          %v1158 = vld [vmem:[%s1131 + $0x24] sm:$0xf]
          %v1159 = vsel %vm1134, %v946, %v1158
          %1160 = vst [vmem:[%s1131 + $0x24] sm:$0xf] %v1159
          %1161 = vst.msk [vmem:[%s1131 + $0x28] sm:$0xf] %vm454, %v955
          %v1162 = vld [vmem:[%s1131 + $0x2c] sm:$0x1]
          %v1163 = vsel %vm1140, %v956, %v1162
          %1164 = vst [vmem:[%s1131 + $0x2c] sm:$0x1] %v1163
          %v1165 = vld [vmem:[%s1131 + $0x30] sm:$0xf]
          %v1166 = vsel %vm1134, %v963, %v1165
          %1167 = vst [vmem:[%s1131 + $0x30] sm:$0xf] %v1166
          %1168 = vst.msk [vmem:[%s1131 + $0x34] sm:$0xf] %vm454, %v972
          %v1169 = vld [vmem:[%s1131 + $0x38] sm:$0x1]
          %v1170 = vsel %vm1140, %v973, %v1169
          %1171 = vst [vmem:[%s1131 + $0x38] sm:$0x1] %v1170
          %v1172 = vld [vmem:[%s1131 + $0x3c] sm:$0xf]
          %v1173 = vsel %vm1134, %v980, %v1172
          %1174 = vst [vmem:[%s1131 + $0x3c] sm:$0xf] %v1173
          %1175 = vst.msk [vmem:[%s1131 + $0x40] sm:$0xf] %vm454, %v989
          %v1176 = vld [vmem:[%s1131 + $0x44] sm:$0x1]
          %v1177 = vsel %vm1140, %v990, %v1176
          %1178 = vst [vmem:[%s1131 + $0x44] sm:$0x1] %v1177
          %v1179 = vld [vmem:[%s1131 + $0x48] sm:$0xf]
          %v1180 = vsel %vm1134, %v997, %v1179
          %1181 = vst [vmem:[%s1131 + $0x48] sm:$0xf] %v1180
          %1182 = vst.msk [vmem:[%s1131 + $0x4c] sm:$0xf] %vm454, %v1006
          %v1183 = vld [vmem:[%s1131 + $0x50] sm:$0x1]
          %v1184 = vsel %vm1140, %v1007, %v1183
          %1185 = vst [vmem:[%s1131 + $0x50] sm:$0x1] %v1184
          %v1186 = vld [vmem:[%s1131 + $0x54] sm:$0xf]
          %v1187 = vsel %vm1134, %v1014, %v1186
          %1188 = vst [vmem:[%s1131 + $0x54] sm:$0xf] %v1187
          %1189 = vst.msk [vmem:[%s1131 + $0x58] sm:$0xf] %vm454, %v1023
          %v1190 = vld [vmem:[%s1131 + $0x5c] sm:$0x1]
          %v1191 = vsel %vm1140, %v1024, %v1190
          %1192 = vst [vmem:[%s1131 + $0x5c] sm:$0x1] %v1191
          %v1193 = vld [vmem:[%s1131 + $0x60] sm:$0xf]
          %v1194 = vsel %vm1134, %v1031, %v1193
          %1195 = vst [vmem:[%s1131 + $0x60] sm:$0xf] %v1194
          %1196 = vst.msk [vmem:[%s1131 + $0x64] sm:$0xf] %vm454, %v1040
          %v1197 = vld [vmem:[%s1131 + $0x68] sm:$0x1]
          %v1198 = vsel %vm1140, %v1041, %v1197
          %1199 = vst [vmem:[%s1131 + $0x68] sm:$0x1] %v1198
          %v1200 = vld [vmem:[%s1131 + $0x6c] sm:$0xf]
          %v1201 = vsel %vm1134, %v1048, %v1200
          %1202 = vst [vmem:[%s1131 + $0x6c] sm:$0xf] %v1201
          %1203 = vst.msk [vmem:[%s1131 + $0x70] sm:$0xf] %vm454, %v1057
          %v1204 = vld [vmem:[%s1131 + $0x74] sm:$0x1]
          %v1205 = vsel %vm1140, %v1058, %v1204
          %1206 = vst [vmem:[%s1131 + $0x74] sm:$0x1] %v1205
          %v1207 = vld [vmem:[%s1131 + $0x78] sm:$0xf]
          %v1208 = vsel %vm1134, %v1065, %v1207
          %1209 = vst [vmem:[%s1131 + $0x78] sm:$0xf] %v1208
          %1210 = vst.msk [vmem:[%s1131 + $0x7c] sm:$0xf] %vm454, %v1074
          %v1211 = vld [vmem:[%s1131 + $0x80] sm:$0x1]
          %v1212 = vsel %vm1140, %v1075, %v1211
          %1213 = vst [vmem:[%s1131 + $0x80] sm:$0x1] %v1212
          %v1214 = vld [vmem:[%s1131 + $0x84] sm:$0xf]
          %v1215 = vsel %vm1134, %v1082, %v1214
          %1216 = vst [vmem:[%s1131 + $0x84] sm:$0xf] %v1215
          %1217 = vst.msk [vmem:[%s1131 + $0x88] sm:$0xf] %vm454, %v1091
          %v1218 = vld [vmem:[%s1131 + $0x8c] sm:$0x1]
          %v1219 = vsel %vm1140, %v1092, %v1218
          %1220 = vst [vmem:[%s1131 + $0x8c] sm:$0x1] %v1219
        $region97: #{_forward_impl.1} parent=55 // loop_footer
          %s523 = sadd.s32 1, %s519
        $region98: #{_forward_impl.1} parent=55 // loop_footer_branch
          %518 = sbr.rel target = $region94
        $region99: #{_forward_impl.1} parent=55 // loop_exit
          _
        loop: start=0, step=1, limit=2
        $region100: #{_forward_impl.1} parent=55 // loop_pre_header
          _
        $region101: #{_forward_impl.1} parent=55 // loop_header
          %s1222 = sphi 0, %s1226
          %p1223 = scmp.ge.s32.totalorder %s1222, 2
        $region102: #{_forward_impl.1} parent=55 // loop_header_branch
          %1225 = sbr.rel (%p1223) target = $region106
        $region103: #{_forward_impl.1} parent=55 // loop_body
          %s1227 = smul.u32 %s1222, 12
          %s1228 = smul.u32 %s1227, 3
          %s1229 = smul.addr %s1228, 4
          %s1230 = scalar_lea.vmem [#allocation2], %s1229
          %v1231 = vld [vmem:[%s1230] sm:$0xf]
          %v1232 = vld [vmem:[%s1230 + $0x4] sm:$0xf]
          %v1233 = vld [vmem:[%s1230 + $0x8] sm:$0xf]
          %v1234 = vld [vmem:[%s1230 + $0xc] sm:$0xf]
          %v1235 = vld [vmem:[%s1230 + $0x10] sm:$0xf]
          %v1236 = vld [vmem:[%s1230 + $0x14] sm:$0xf]
          %v1237 = vld [vmem:[%s1230 + $0x18] sm:$0xf]
          %v1238 = vld [vmem:[%s1230 + $0x1c] sm:$0xf]
          %v1239 = vld [vmem:[%s1230 + $0x20] sm:$0xf]
          %v1240 = vld [vmem:[%s1230 + $0x24] sm:$0xf]
          %v1241 = vld [vmem:[%s1230 + $0x28] sm:$0xf]
          %v1242 = vld [vmem:[%s1230 + $0x2c] sm:$0xf]
          %v1243 = vld [vmem:[%s1230 + $0x30] sm:$0xf]
          %v1244 = vld [vmem:[%s1230 + $0x34] sm:$0xf]
          %v1245 = vld [vmem:[%s1230 + $0x38] sm:$0xf]
          %v1246 = vld [vmem:[%s1230 + $0x3c] sm:$0xf]
          %v1247 = vld [vmem:[%s1230 + $0x40] sm:$0xf]
          %v1248 = vld [vmem:[%s1230 + $0x44] sm:$0xf]
          %v1249 = vld [vmem:[%s1230 + $0x48] sm:$0xf]
          %v1250 = vld [vmem:[%s1230 + $0x4c] sm:$0xf]
          %v1251 = vld [vmem:[%s1230 + $0x50] sm:$0xf]
          %v1252 = vld [vmem:[%s1230 + $0x54] sm:$0xf]
          %v1253 = vld [vmem:[%s1230 + $0x58] sm:$0xf]
          %v1254 = vld [vmem:[%s1230 + $0x5c] sm:$0xf]
          %v1255 = vld [vmem:[%s1230 + $0x60] sm:$0xf]
          %v1256 = vld [vmem:[%s1230 + $0x64] sm:$0xf]
          %v1257 = vld [vmem:[%s1230 + $0x68] sm:$0xf]
          %v1258 = vld [vmem:[%s1230 + $0x6c] sm:$0xf]
          %v1259 = vld [vmem:[%s1230 + $0x70] sm:$0xf]
          %v1260 = vld [vmem:[%s1230 + $0x74] sm:$0xf]
          %v1261 = vld [vmem:[%s1230 + $0x78] sm:$0xf]
          %v1262 = vld [vmem:[%s1230 + $0x7c] sm:$0xf]
          %v1263 = vld [vmem:[%s1230 + $0x80] sm:$0xf]
          %v1264 = vld [vmem:[%s1230 + $0x84] sm:$0xf]
          %v1265 = vld [vmem:[%s1230 + $0x88] sm:$0xf]
          %v1266 = vld [vmem:[%s1230 + $0x8c] sm:$0xf]
          %v1291 = vunpack.c.l.b16 %v1231
          %v1292 = vunpack.c.l.b16 %v1232
          %v1293 = vunpack.c.l.b16 %v1234
          %v1294 = vunpack.c.l.b16 %v1235
          %v1295 = vunpack.c.l.b16 %v1237
          %v1296 = vunpack.c.l.b16 %v1238
          %v1297 = vunpack.c.l.b16 %v1240
          %v1298 = vunpack.c.l.b16 %v1241
          %v1299 = vunpack.c.l.b16 %v1243
          %v1300 = vunpack.c.l.b16 %v1244
          %v1301 = vunpack.c.l.b16 %v1246
          %v1302 = vunpack.c.l.b16 %v1247
          %v1303 = vunpack.c.l.b16 %v1249
          %v1304 = vunpack.c.l.b16 %v1250
          %v1305 = vunpack.c.l.b16 %v1252
          %v1306 = vunpack.c.l.b16 %v1253
          %v1307 = vunpack.c.l.b16 %v1255
          %v1308 = vunpack.c.l.b16 %v1256
          %v1309 = vunpack.c.l.b16 %v1258
          %v1310 = vunpack.c.l.b16 %v1259
          %v1311 = vunpack.c.l.b16 %v1261
          %v1312 = vunpack.c.l.b16 %v1262
          %v1313 = vunpack.c.l.b16 %v1264
          %v1314 = vunpack.c.l.b16 %v1265
          %v1315 = vpack.c.b16 %v1292, %v1291
          %v1316 = vpack.c.b16 %v1294, %v1293
          %v1317 = vpack.c.b16 %v1296, %v1295
          %v1318 = vpack.c.b16 %v1298, %v1297
          %v1319 = vpack.c.b16 %v1300, %v1299
          %v1320 = vpack.c.b16 %v1302, %v1301
          %v1321 = vpack.c.b16 %v1304, %v1303
          %v1322 = vpack.c.b16 %v1306, %v1305
          %v1323 = vpack.c.b16 %v1308, %v1307
          %v1324 = vpack.c.b16 %v1310, %v1309
          %v1325 = vpack.c.b16 %v1312, %v1311
          %v1326 = vpack.c.b16 %v1314, %v1313
          %v1339 = vunpack.c.l.b16 %v1233
          %v1340 = vunpack.c.l.b16 %v1236
          %v1341 = vunpack.c.l.b16 %v1239
          %v1342 = vunpack.c.l.b16 %v1242
          %v1343 = vunpack.c.l.b16 %v1245
          %v1344 = vunpack.c.l.b16 %v1248
          %v1345 = vunpack.c.l.b16 %v1251
          %v1346 = vunpack.c.l.b16 %v1254
          %v1347 = vunpack.c.l.b16 %v1257
          %v1348 = vunpack.c.l.b16 %v1260
          %v1349 = vunpack.c.l.b16 %v1263
          %v1350 = vunpack.c.l.b16 %v1266
          %v1351 = vpack.c.b16 %v1339, %v1339
          %v1352 = vpack.c.b16 %v1340, %v1340
          %v1353 = vpack.c.b16 %v1341, %v1341
          %v1354 = vpack.c.b16 %v1342, %v1342
          %v1355 = vpack.c.b16 %v1343, %v1343
          %v1356 = vpack.c.b16 %v1344, %v1344
          %v1357 = vpack.c.b16 %v1345, %v1345
          %v1358 = vpack.c.b16 %v1346, %v1346
          %v1359 = vpack.c.b16 %v1347, %v1347
          %v1360 = vpack.c.b16 %v1348, %v1348
          %v1361 = vpack.c.b16 %v1349, %v1349
          %v1362 = vpack.c.b16 %v1350, %v1350
          %vm1363 = vsmask.f32 7424
          %v1365 = vshrl.u32 %v1315, 16
          %v1367 = vshll.u32 %v1315, 16
          %v1369 = vrot.slane %v1367, 1
          %v1370 = vor.u32 %v1365, %v1369
          %v1372 = vshll.u32 %v1351, 16
          %v1374 = vrot.slane %v1372, 1
          %v1375 = vsel %vm1363, %v1370, %v1374
          %v1377 = vshrl.u32 %v1316, 16
          %v1379 = vshll.u32 %v1316, 16
          %v1381 = vrot.slane %v1379, 1
          %v1382 = vor.u32 %v1377, %v1381
          %v1384 = vshll.u32 %v1352, 16
          %v1386 = vrot.slane %v1384, 1
          %v1387 = vsel %vm1363, %v1382, %v1386
          %v1389 = vshrl.u32 %v1317, 16
          %v1391 = vshll.u32 %v1317, 16
          %v1393 = vrot.slane %v1391, 1
          %v1394 = vor.u32 %v1389, %v1393
          %v1396 = vshll.u32 %v1353, 16
          %v1398 = vrot.slane %v1396, 1
          %v1399 = vsel %vm1363, %v1394, %v1398
          %v1401 = vshrl.u32 %v1318, 16
          %v1403 = vshll.u32 %v1318, 16
          %v1405 = vrot.slane %v1403, 1
          %v1406 = vor.u32 %v1401, %v1405
          %v1408 = vshll.u32 %v1354, 16
          %v1410 = vrot.slane %v1408, 1
          %v1411 = vsel %vm1363, %v1406, %v1410
          %v1413 = vshrl.u32 %v1319, 16
          %v1415 = vshll.u32 %v1319, 16
          %v1417 = vrot.slane %v1415, 1
          %v1418 = vor.u32 %v1413, %v1417
          %v1420 = vshll.u32 %v1355, 16
          %v1422 = vrot.slane %v1420, 1
          %v1423 = vsel %vm1363, %v1418, %v1422
          %v1425 = vshrl.u32 %v1320, 16
          %v1427 = vshll.u32 %v1320, 16
          %v1429 = vrot.slane %v1427, 1
          %v1430 = vor.u32 %v1425, %v1429
          %v1432 = vshll.u32 %v1356, 16
          %v1434 = vrot.slane %v1432, 1
          %v1435 = vsel %vm1363, %v1430, %v1434
          %v1437 = vshrl.u32 %v1321, 16
          %v1439 = vshll.u32 %v1321, 16
          %v1441 = vrot.slane %v1439, 1
          %v1442 = vor.u32 %v1437, %v1441
          %v1444 = vshll.u32 %v1357, 16
          %v1446 = vrot.slane %v1444, 1
          %v1447 = vsel %vm1363, %v1442, %v1446
          %v1449 = vshrl.u32 %v1322, 16
          %v1451 = vshll.u32 %v1322, 16
          %v1453 = vrot.slane %v1451, 1
          %v1454 = vor.u32 %v1449, %v1453
          %v1456 = vshll.u32 %v1358, 16
          %v1458 = vrot.slane %v1456, 1
          %v1459 = vsel %vm1363, %v1454, %v1458
          %v1461 = vshrl.u32 %v1323, 16
          %v1463 = vshll.u32 %v1323, 16
          %v1465 = vrot.slane %v1463, 1
          %v1466 = vor.u32 %v1461, %v1465
          %v1468 = vshll.u32 %v1359, 16
          %v1470 = vrot.slane %v1468, 1
          %v1471 = vsel %vm1363, %v1466, %v1470
          %v1473 = vshrl.u32 %v1324, 16
          %v1475 = vshll.u32 %v1324, 16
          %v1477 = vrot.slane %v1475, 1
          %v1478 = vor.u32 %v1473, %v1477
          %v1480 = vshll.u32 %v1360, 16
          %v1482 = vrot.slane %v1480, 1
          %v1483 = vsel %vm1363, %v1478, %v1482
          %v1485 = vshrl.u32 %v1325, 16
          %v1487 = vshll.u32 %v1325, 16
          %v1489 = vrot.slane %v1487, 1
          %v1490 = vor.u32 %v1485, %v1489
          %v1492 = vshll.u32 %v1361, 16
          %v1494 = vrot.slane %v1492, 1
          %v1495 = vsel %vm1363, %v1490, %v1494
          %v1497 = vshrl.u32 %v1326, 16
          %v1499 = vshll.u32 %v1326, 16
          %v1501 = vrot.slane %v1499, 1
          %v1502 = vor.u32 %v1497, %v1501
          %v1504 = vshll.u32 %v1362, 16
          %v1506 = vrot.slane %v1504, 1
          %v1507 = vsel %vm1363, %v1502, %v1506
          %1508 = vrot.lane.b32.xlu0 %v1375, 4
          %v1509 = vpop.permute.xlu0 %1508
          %1510 = vrot.lane.b32.xlu0 %v1387, 4
          %v1511 = vpop.permute.xlu0 %1510
          %1512 = vrot.lane.b32.xlu0 %v1399, 4
          %v1513 = vpop.permute.xlu0 %1512
          %1514 = vrot.lane.b32.xlu0 %v1411, 4
          %v1515 = vpop.permute.xlu0 %1514
          %1516 = vrot.lane.b32.xlu0 %v1423, 4
          %v1517 = vpop.permute.xlu0 %1516
          %1518 = vrot.lane.b32.xlu0 %v1435, 4
          %v1519 = vpop.permute.xlu0 %1518
          %1520 = vrot.lane.b32.xlu0 %v1447, 4
          %v1521 = vpop.permute.xlu0 %1520
          %1522 = vrot.lane.b32.xlu0 %v1459, 4
          %v1523 = vpop.permute.xlu0 %1522
          %1524 = vrot.lane.b32.xlu0 %v1471, 4
          %v1525 = vpop.permute.xlu0 %1524
          %1526 = vrot.lane.b32.xlu0 %v1483, 4
          %v1527 = vpop.permute.xlu0 %1526
          %1528 = vrot.lane.b32.xlu0 %v1495, 4
          %v1529 = vpop.permute.xlu0 %1528
          %1530 = vrot.lane.b32.xlu0 %v1507, 4
          %v1531 = vpop.permute.xlu0 %1530
          %vm1532 = vcmask 1046528
          %v1533 = vrot.slane %v1315, 1
          %v1534 = vrot.slane %v1351, 1
          %v1535 = vsel %vm1532, %v1533, %v1534
          %v1536 = vrot.slane %v1316, 1
          %v1537 = vrot.slane %v1352, 1
          %v1538 = vsel %vm1532, %v1536, %v1537
          %v1539 = vrot.slane %v1317, 1
          %v1540 = vrot.slane %v1353, 1
          %v1541 = vsel %vm1532, %v1539, %v1540
          %v1542 = vrot.slane %v1318, 1
          %v1543 = vrot.slane %v1354, 1
          %v1544 = vsel %vm1532, %v1542, %v1543
          %v1545 = vrot.slane %v1319, 1
          %v1546 = vrot.slane %v1355, 1
          %v1547 = vsel %vm1532, %v1545, %v1546
          %v1548 = vrot.slane %v1320, 1
          %v1549 = vrot.slane %v1356, 1
          %v1550 = vsel %vm1532, %v1548, %v1549
          %v1551 = vrot.slane %v1321, 1
          %v1552 = vrot.slane %v1357, 1
          %v1553 = vsel %vm1532, %v1551, %v1552
          %v1554 = vrot.slane %v1322, 1
          %v1555 = vrot.slane %v1358, 1
          %v1556 = vsel %vm1532, %v1554, %v1555
          %v1557 = vrot.slane %v1323, 1
          %v1558 = vrot.slane %v1359, 1
          %v1559 = vsel %vm1532, %v1557, %v1558
          %v1560 = vrot.slane %v1324, 1
          %v1561 = vrot.slane %v1360, 1
          %v1562 = vsel %vm1532, %v1560, %v1561
          %v1563 = vrot.slane %v1325, 1
          %v1564 = vrot.slane %v1361, 1
          %v1565 = vsel %vm1532, %v1563, %v1564
          %v1566 = vrot.slane %v1326, 1
          %v1567 = vrot.slane %v1362, 1
          %v1568 = vsel %vm1532, %v1566, %v1567
          %1569 = vrot.lane.b32.xlu0 %v1535, 8
          %v1570 = vpop.permute.xlu0 %1569
          %1571 = vrot.lane.b32.xlu0 %v1538, 8
          %v1572 = vpop.permute.xlu0 %1571
          %1573 = vrot.lane.b32.xlu0 %v1541, 8
          %v1574 = vpop.permute.xlu0 %1573
          %1575 = vrot.lane.b32.xlu0 %v1544, 8
          %v1576 = vpop.permute.xlu0 %1575
          %1577 = vrot.lane.b32.xlu0 %v1547, 8
          %v1578 = vpop.permute.xlu0 %1577
          %1579 = vrot.lane.b32.xlu0 %v1550, 8
          %v1580 = vpop.permute.xlu0 %1579
          %1581 = vrot.lane.b32.xlu0 %v1553, 8
          %v1582 = vpop.permute.xlu0 %1581
          %1583 = vrot.lane.b32.xlu0 %v1556, 8
          %v1584 = vpop.permute.xlu0 %1583
          %1585 = vrot.lane.b32.xlu0 %v1559, 8
          %v1586 = vpop.permute.xlu0 %1585
          %1587 = vrot.lane.b32.xlu0 %v1562, 8
          %v1588 = vpop.permute.xlu0 %1587
          %1589 = vrot.lane.b32.xlu0 %v1565, 8
          %v1590 = vpop.permute.xlu0 %1589
          %1591 = vrot.lane.b32.xlu0 %v1568, 8
          %v1592 = vpop.permute.xlu0 %1591
          %vm1593 = vcmask 31744
          %v1595 = vsel %vm1593, %v1315, %v1509
          %v1597 = vsel %vm1593, %v1316, %v1511
          %v1599 = vsel %vm1593, %v1317, %v1513
          %v1601 = vsel %vm1593, %v1318, %v1515
          %v1603 = vsel %vm1593, %v1319, %v1517
          %v1605 = vsel %vm1593, %v1320, %v1519
          %v1607 = vsel %vm1593, %v1321, %v1521
          %v1609 = vsel %vm1593, %v1322, %v1523
          %v1611 = vsel %vm1593, %v1323, %v1525
          %v1613 = vsel %vm1593, %v1324, %v1527
          %v1615 = vsel %vm1593, %v1325, %v1529
          %v1617 = vsel %vm1593, %v1326, %v1531
          %vm1618 = vcmask 64512
          %v1620 = vsel %vm1618, %v1595, %v1570
          %v1622 = vsel %vm1618, %v1597, %v1572
          %v1624 = vsel %vm1618, %v1599, %v1574
          %v1626 = vsel %vm1618, %v1601, %v1576
          %v1628 = vsel %vm1618, %v1603, %v1578
          %v1630 = vsel %vm1618, %v1605, %v1580
          %v1632 = vsel %vm1618, %v1607, %v1582
          %v1634 = vsel %vm1618, %v1609, %v1584
          %v1636 = vsel %vm1618, %v1611, %v1586
          %v1638 = vsel %vm1618, %v1613, %v1588
          %v1640 = vsel %vm1618, %v1615, %v1590
          %v1642 = vsel %vm1618, %v1617, %v1592
          %v1643 = vld [vmem:[#allocation9] sm:$0xf]
          %v1644 = vld [vmem:[#allocation9 + $0x4] sm:$0x3]
          %s1645 = sadd.s32 %s1227, 1
          %s1646 = smul.u32 %s1645, 3
          %s1647 = smul.addr %s1646, 4
          %s1648 = scalar_lea.vmem [#allocation2], %s1647
          %v1649 = vld [vmem:[%s1648] sm:$0xf]
          %v1650 = vld [vmem:[%s1648 + $0x4] sm:$0xf]
          %v1651 = vld [vmem:[%s1648 + $0x8] sm:$0xf]
          %v1652 = vld [vmem:[%s1648 + $0xc] sm:$0xf]
          %v1653 = vld [vmem:[%s1648 + $0x10] sm:$0xf]
          %v1654 = vld [vmem:[%s1648 + $0x14] sm:$0xf]
          %v1655 = vld [vmem:[%s1648 + $0x18] sm:$0xf]
          %v1656 = vld [vmem:[%s1648 + $0x1c] sm:$0xf]
          %v1657 = vld [vmem:[%s1648 + $0x20] sm:$0xf]
          %v1658 = vld [vmem:[%s1648 + $0x24] sm:$0xf]
          %v1659 = vld [vmem:[%s1648 + $0x28] sm:$0xf]
          %v1660 = vld [vmem:[%s1648 + $0x2c] sm:$0xf]
          %v1661 = vld [vmem:[%s1648 + $0x30] sm:$0xf]
          %v1662 = vld [vmem:[%s1648 + $0x34] sm:$0xf]
          %v1663 = vld [vmem:[%s1648 + $0x38] sm:$0xf]
          %v1664 = vld [vmem:[%s1648 + $0x3c] sm:$0xf]
          %v1665 = vld [vmem:[%s1648 + $0x40] sm:$0xf]
          %v1666 = vld [vmem:[%s1648 + $0x44] sm:$0xf]
          %v1667 = vld [vmem:[%s1648 + $0x48] sm:$0xf]
          %v1668 = vld [vmem:[%s1648 + $0x4c] sm:$0xf]
          %v1669 = vld [vmem:[%s1648 + $0x50] sm:$0xf]
          %v1670 = vld [vmem:[%s1648 + $0x54] sm:$0xf]
          %v1671 = vld [vmem:[%s1648 + $0x58] sm:$0xf]
          %v1672 = vld [vmem:[%s1648 + $0x5c] sm:$0xf]
          %v1673 = vld [vmem:[%s1648 + $0x60] sm:$0xf]
          %v1674 = vld [vmem:[%s1648 + $0x64] sm:$0xf]
          %v1675 = vld [vmem:[%s1648 + $0x68] sm:$0xf]
          %v1676 = vld [vmem:[%s1648 + $0x6c] sm:$0xf]
          %v1677 = vld [vmem:[%s1648 + $0x70] sm:$0xf]
          %v1678 = vld [vmem:[%s1648 + $0x74] sm:$0xf]
          %v1679 = vld [vmem:[%s1648 + $0x78] sm:$0xf]
          %v1680 = vld [vmem:[%s1648 + $0x7c] sm:$0xf]
          %v1681 = vld [vmem:[%s1648 + $0x80] sm:$0xf]
          %v1682 = vld [vmem:[%s1648 + $0x84] sm:$0xf]
          %v1683 = vld [vmem:[%s1648 + $0x88] sm:$0xf]
          %v1684 = vld [vmem:[%s1648 + $0x8c] sm:$0xf]
          %v1709 = vunpack.c.l.b16 %v1649
          %v1710 = vunpack.c.l.b16 %v1650
          %v1711 = vunpack.c.l.b16 %v1652
          %v1712 = vunpack.c.l.b16 %v1653
          %v1713 = vunpack.c.l.b16 %v1655
          %v1714 = vunpack.c.l.b16 %v1656
          %v1715 = vunpack.c.l.b16 %v1658
          %v1716 = vunpack.c.l.b16 %v1659
          %v1717 = vunpack.c.l.b16 %v1661
          %v1718 = vunpack.c.l.b16 %v1662
          %v1719 = vunpack.c.l.b16 %v1664
          %v1720 = vunpack.c.l.b16 %v1665
          %v1721 = vunpack.c.l.b16 %v1667
          %v1722 = vunpack.c.l.b16 %v1668
          %v1723 = vunpack.c.l.b16 %v1670
          %v1724 = vunpack.c.l.b16 %v1671
          %v1725 = vunpack.c.l.b16 %v1673
          %v1726 = vunpack.c.l.b16 %v1674
          %v1727 = vunpack.c.l.b16 %v1676
          %v1728 = vunpack.c.l.b16 %v1677
          %v1729 = vunpack.c.l.b16 %v1679
          %v1730 = vunpack.c.l.b16 %v1680
          %v1731 = vunpack.c.l.b16 %v1682
          %v1732 = vunpack.c.l.b16 %v1683
          %v1733 = vpack.c.b16 %v1710, %v1709
          %v1734 = vpack.c.b16 %v1712, %v1711
          %v1735 = vpack.c.b16 %v1714, %v1713
          %v1736 = vpack.c.b16 %v1716, %v1715
          %v1737 = vpack.c.b16 %v1718, %v1717
          %v1738 = vpack.c.b16 %v1720, %v1719
          %v1739 = vpack.c.b16 %v1722, %v1721
          %v1740 = vpack.c.b16 %v1724, %v1723
          %v1741 = vpack.c.b16 %v1726, %v1725
          %v1742 = vpack.c.b16 %v1728, %v1727
          %v1743 = vpack.c.b16 %v1730, %v1729
          %v1744 = vpack.c.b16 %v1732, %v1731
          %v1757 = vunpack.c.l.b16 %v1651
          %v1758 = vunpack.c.l.b16 %v1654
          %v1759 = vunpack.c.l.b16 %v1657
          %v1760 = vunpack.c.l.b16 %v1660
          %v1761 = vunpack.c.l.b16 %v1663
          %v1762 = vunpack.c.l.b16 %v1666
          %v1763 = vunpack.c.l.b16 %v1669
          %v1764 = vunpack.c.l.b16 %v1672
          %v1765 = vunpack.c.l.b16 %v1675
          %v1766 = vunpack.c.l.b16 %v1678
          %v1767 = vunpack.c.l.b16 %v1681
          %v1768 = vunpack.c.l.b16 %v1684
          %v1769 = vpack.c.b16 %v1757, %v1757
          %v1770 = vpack.c.b16 %v1758, %v1758
          %v1771 = vpack.c.b16 %v1759, %v1759
          %v1772 = vpack.c.b16 %v1760, %v1760
          %v1773 = vpack.c.b16 %v1761, %v1761
          %v1774 = vpack.c.b16 %v1762, %v1762
          %v1775 = vpack.c.b16 %v1763, %v1763
          %v1776 = vpack.c.b16 %v1764, %v1764
          %v1777 = vpack.c.b16 %v1765, %v1765
          %v1778 = vpack.c.b16 %v1766, %v1766
          %v1779 = vpack.c.b16 %v1767, %v1767
          %v1780 = vpack.c.b16 %v1768, %v1768
          %v1782 = vshrl.u32 %v1733, 16
          %v1784 = vshll.u32 %v1733, 16
          %v1786 = vrot.slane %v1784, 1
          %v1787 = vor.u32 %v1782, %v1786
          %v1789 = vshll.u32 %v1769, 16
          %v1791 = vrot.slane %v1789, 1
          %v1792 = vsel %vm1363, %v1787, %v1791
          %v1794 = vshrl.u32 %v1734, 16
          %v1796 = vshll.u32 %v1734, 16
          %v1798 = vrot.slane %v1796, 1
          %v1799 = vor.u32 %v1794, %v1798
          %v1801 = vshll.u32 %v1770, 16
          %v1803 = vrot.slane %v1801, 1
          %v1804 = vsel %vm1363, %v1799, %v1803
          %v1806 = vshrl.u32 %v1735, 16
          %v1808 = vshll.u32 %v1735, 16
          %v1810 = vrot.slane %v1808, 1
          %v1811 = vor.u32 %v1806, %v1810
          %v1813 = vshll.u32 %v1771, 16
          %v1815 = vrot.slane %v1813, 1
          %v1816 = vsel %vm1363, %v1811, %v1815
          %v1818 = vshrl.u32 %v1736, 16
          %v1820 = vshll.u32 %v1736, 16
          %v1822 = vrot.slane %v1820, 1
          %v1823 = vor.u32 %v1818, %v1822
          %v1825 = vshll.u32 %v1772, 16
          %v1827 = vrot.slane %v1825, 1
          %v1828 = vsel %vm1363, %v1823, %v1827
          %v1830 = vshrl.u32 %v1737, 16
          %v1832 = vshll.u32 %v1737, 16
          %v1834 = vrot.slane %v1832, 1
          %v1835 = vor.u32 %v1830, %v1834
          %v1837 = vshll.u32 %v1773, 16
          %v1839 = vrot.slane %v1837, 1
          %v1840 = vsel %vm1363, %v1835, %v1839
          %v1842 = vshrl.u32 %v1738, 16
          %v1844 = vshll.u32 %v1738, 16
          %v1846 = vrot.slane %v1844, 1
          %v1847 = vor.u32 %v1842, %v1846
          %v1849 = vshll.u32 %v1774, 16
          %v1851 = vrot.slane %v1849, 1
          %v1852 = vsel %vm1363, %v1847, %v1851
          %v1854 = vshrl.u32 %v1739, 16
          %v1856 = vshll.u32 %v1739, 16
          %v1858 = vrot.slane %v1856, 1
          %v1859 = vor.u32 %v1854, %v1858
          %v1861 = vshll.u32 %v1775, 16
          %v1863 = vrot.slane %v1861, 1
          %v1864 = vsel %vm1363, %v1859, %v1863
          %v1866 = vshrl.u32 %v1740, 16
          %v1868 = vshll.u32 %v1740, 16
          %v1870 = vrot.slane %v1868, 1
          %v1871 = vor.u32 %v1866, %v1870
          %v1873 = vshll.u32 %v1776, 16
          %v1875 = vrot.slane %v1873, 1
          %v1876 = vsel %vm1363, %v1871, %v1875
          %v1878 = vshrl.u32 %v1741, 16
          %v1880 = vshll.u32 %v1741, 16
          %v1882 = vrot.slane %v1880, 1
          %v1883 = vor.u32 %v1878, %v1882
          %v1885 = vshll.u32 %v1777, 16
          %v1887 = vrot.slane %v1885, 1
          %v1888 = vsel %vm1363, %v1883, %v1887
          %v1890 = vshrl.u32 %v1742, 16
          %v1892 = vshll.u32 %v1742, 16
          %v1894 = vrot.slane %v1892, 1
          %v1895 = vor.u32 %v1890, %v1894
          %v1897 = vshll.u32 %v1778, 16
          %v1899 = vrot.slane %v1897, 1
          %v1900 = vsel %vm1363, %v1895, %v1899
          %v1902 = vshrl.u32 %v1743, 16
          %v1904 = vshll.u32 %v1743, 16
          %v1906 = vrot.slane %v1904, 1
          %v1907 = vor.u32 %v1902, %v1906
          %v1909 = vshll.u32 %v1779, 16
          %v1911 = vrot.slane %v1909, 1
          %v1912 = vsel %vm1363, %v1907, %v1911
          %v1914 = vshrl.u32 %v1744, 16
          %v1916 = vshll.u32 %v1744, 16
          %v1918 = vrot.slane %v1916, 1
          %v1919 = vor.u32 %v1914, %v1918
          %v1921 = vshll.u32 %v1780, 16
          %v1923 = vrot.slane %v1921, 1
          %v1924 = vsel %vm1363, %v1919, %v1923
          %1925 = vrot.lane.b32.xlu0 %v1792, 4
          %v1926 = vpop.permute.xlu0 %1925
          %1927 = vrot.lane.b32.xlu0 %v1804, 4
          %v1928 = vpop.permute.xlu0 %1927
          %1929 = vrot.lane.b32.xlu0 %v1816, 4
          %v1930 = vpop.permute.xlu0 %1929
          %1931 = vrot.lane.b32.xlu0 %v1828, 4
          %v1932 = vpop.permute.xlu0 %1931
          %1933 = vrot.lane.b32.xlu0 %v1840, 4
          %v1934 = vpop.permute.xlu0 %1933
          %1935 = vrot.lane.b32.xlu0 %v1852, 4
          %v1936 = vpop.permute.xlu0 %1935
          %1937 = vrot.lane.b32.xlu0 %v1864, 4
          %v1938 = vpop.permute.xlu0 %1937
          %1939 = vrot.lane.b32.xlu0 %v1876, 4
          %v1940 = vpop.permute.xlu0 %1939
          %1941 = vrot.lane.b32.xlu0 %v1888, 4
          %v1942 = vpop.permute.xlu0 %1941
          %1943 = vrot.lane.b32.xlu0 %v1900, 4
          %v1944 = vpop.permute.xlu0 %1943
          %1945 = vrot.lane.b32.xlu0 %v1912, 4
          %v1946 = vpop.permute.xlu0 %1945
          %1947 = vrot.lane.b32.xlu0 %v1924, 4
          %v1948 = vpop.permute.xlu0 %1947
          %v1949 = vrot.slane %v1733, 1
          %v1950 = vrot.slane %v1769, 1
          %v1951 = vsel %vm1532, %v1949, %v1950
          %v1952 = vrot.slane %v1734, 1
          %v1953 = vrot.slane %v1770, 1
          %v1954 = vsel %vm1532, %v1952, %v1953
          %v1955 = vrot.slane %v1735, 1
          %v1956 = vrot.slane %v1771, 1
          %v1957 = vsel %vm1532, %v1955, %v1956
          %v1958 = vrot.slane %v1736, 1
          %v1959 = vrot.slane %v1772, 1
          %v1960 = vsel %vm1532, %v1958, %v1959
          %v1961 = vrot.slane %v1737, 1
          %v1962 = vrot.slane %v1773, 1
          %v1963 = vsel %vm1532, %v1961, %v1962
          %v1964 = vrot.slane %v1738, 1
          %v1965 = vrot.slane %v1774, 1
          %v1966 = vsel %vm1532, %v1964, %v1965
          %v1967 = vrot.slane %v1739, 1
          %v1968 = vrot.slane %v1775, 1
          %v1969 = vsel %vm1532, %v1967, %v1968
          %v1970 = vrot.slane %v1740, 1
          %v1971 = vrot.slane %v1776, 1
          %v1972 = vsel %vm1532, %v1970, %v1971
          %v1973 = vrot.slane %v1741, 1
          %v1974 = vrot.slane %v1777, 1
          %v1975 = vsel %vm1532, %v1973, %v1974
          %v1976 = vrot.slane %v1742, 1
          %v1977 = vrot.slane %v1778, 1
          %v1978 = vsel %vm1532, %v1976, %v1977
          %v1979 = vrot.slane %v1743, 1
          %v1980 = vrot.slane %v1779, 1
          %v1981 = vsel %vm1532, %v1979, %v1980
          %v1982 = vrot.slane %v1744, 1
          %v1983 = vrot.slane %v1780, 1
          %v1984 = vsel %vm1532, %v1982, %v1983
          %1985 = vrot.lane.b32.xlu0 %v1951, 8
          %v1986 = vpop.permute.xlu0 %1985
          %1987 = vrot.lane.b32.xlu0 %v1954, 8
          %v1988 = vpop.permute.xlu0 %1987
          %1989 = vrot.lane.b32.xlu0 %v1957, 8
          %v1990 = vpop.permute.xlu0 %1989
          %1991 = vrot.lane.b32.xlu0 %v1960, 8
          %v1992 = vpop.permute.xlu0 %1991
          %1993 = vrot.lane.b32.xlu0 %v1963, 8
          %v1994 = vpop.permute.xlu0 %1993
          %1995 = vrot.lane.b32.xlu0 %v1966, 8
          %v1996 = vpop.permute.xlu0 %1995
          %1997 = vrot.lane.b32.xlu0 %v1969, 8
          %v1998 = vpop.permute.xlu0 %1997
          %1999 = vrot.lane.b32.xlu0 %v1972, 8
          %v2000 = vpop.permute.xlu0 %1999
          %2001 = vrot.lane.b32.xlu0 %v1975, 8
          %v2002 = vpop.permute.xlu0 %2001
          %2003 = vrot.lane.b32.xlu0 %v1978, 8
          %v2004 = vpop.permute.xlu0 %2003
          %2005 = vrot.lane.b32.xlu0 %v1981, 8
          %v2006 = vpop.permute.xlu0 %2005
          %2007 = vrot.lane.b32.xlu0 %v1984, 8
          %v2008 = vpop.permute.xlu0 %2007
          %v2010 = vsel %vm1593, %v1733, %v1926
          %v2012 = vsel %vm1593, %v1734, %v1928
          %v2014 = vsel %vm1593, %v1735, %v1930
          %v2016 = vsel %vm1593, %v1736, %v1932
          %v2018 = vsel %vm1593, %v1737, %v1934
          %v2020 = vsel %vm1593, %v1738, %v1936
          %v2022 = vsel %vm1593, %v1739, %v1938
          %v2024 = vsel %vm1593, %v1740, %v1940
          %v2026 = vsel %vm1593, %v1741, %v1942
          %v2028 = vsel %vm1593, %v1742, %v1944
          %v2030 = vsel %vm1593, %v1743, %v1946
          %v2032 = vsel %vm1593, %v1744, %v1948
          %v2034 = vsel %vm1618, %v2010, %v1986
          %v2036 = vsel %vm1618, %v2012, %v1988
          %v2038 = vsel %vm1618, %v2014, %v1990
          %v2040 = vsel %vm1618, %v2016, %v1992
          %v2042 = vsel %vm1618, %v2018, %v1994
          %v2044 = vsel %vm1618, %v2020, %v1996
          %v2046 = vsel %vm1618, %v2022, %v1998
          %v2048 = vsel %vm1618, %v2024, %v2000
          %v2050 = vsel %vm1618, %v2026, %v2002
          %v2052 = vsel %vm1618, %v2028, %v2004
          %v2054 = vsel %vm1618, %v2030, %v2006
          %v2056 = vsel %vm1618, %v2032, %v2008
          %s2057 = scalar_lea.vmem [#allocation9], 8
          %v2058 = vld [vmem:[%s2057] sm:$0xf]
          %v2059 = vld [vmem:[%s2057 + $0x4] sm:$0x3]
          %v2062 = vunpack.c.l.b16 %v2058
          %v2063 = vunpack.c.l.b16 %v2059
          %v2064 = vpack.c.b16 %v2063, %v2062
          %vm2065 = vcmask 97280
          %v2066 = vsel %vm2065, %v2034, 0
          %v2068 = vsel %vm2065, %v2036, 0
          %v2070 = vsel %vm2065, %v2038, 0
          %v2072 = vsel %vm2065, %v2040, 0
          %v2074 = vsel %vm2065, %v2042, 0
          %v2076 = vsel %vm2065, %v2044, 0
          %v2078 = vsel %vm2065, %v2046, 0
          %v2080 = vsel %vm2065, %v2048, 0
          %v2082 = vsel %vm2065, %v2050, 0
          %v2084 = vsel %vm2065, %v2052, 0
          %v2086 = vsel %vm2065, %v2054, 0
          %v2088 = vsel %vm2065, %v2056, 0
          %vm2090 = vcmask 1045504
          %v2092 = vsel %vm2090, %v2064, 0
          %2094 = vmatprep.subr.bf16.mxu0 0
          %2095 = vmatpush1.bf16.msra.mxu0 %v2092
          %2096 = vmatprep.subr.bf16.mxu0 0
          %2097 = vmatpush1.bf16.msra.mxu0 0
          %2098 = vmatprep.subr.bf16.mxu0 0
          %2099 = vmatpush1.bf16.msra.mxu0 0
          %2100 = vmatprep.subr.bf16.mxu0 0
          %2101 = vmatpush1.bf16.msra.mxu0 0
          %2102 = vmatprep.subr.bf16.mxu0 0
          %2103 = vmatpush1.bf16.msra.mxu0 0
          %2104 = vmatprep.subr.bf16.mxu0 0
          %2105 = vmatpush1.bf16.msra.mxu0 0
          %2106 = vmatprep.subr.bf16.mxu0 0
          %2107 = vmatpush1.bf16.msra.mxu0 0
          %2108 = vmatprep.subr.bf16.mxu0 0
          %2109 = vmatpush1.bf16.msra.mxu0 0
          %2110 = vmatprep.subr.bf16.mxu0 0
          %2111 = vmatpush1.bf16.msra.mxu0 0
          %2112 = vmatprep.subr.bf16.mxu0 0
          %2113 = vmatpush1.bf16.msra.mxu0 0
          %2114 = vmatprep.subr.bf16.mxu0 0
          %2115 = vmatpush1.bf16.msra.mxu0 0
          %2116 = vmatprep.subr.bf16.mxu0 0
          %2117 = vmatpush1.bf16.msra.mxu0 0
          %2118 = vmatprep.subr.bf16.mxu0 0
          %2119 = vmatpush1.bf16.msra.mxu0 0
          %2120 = vmatprep.subr.bf16.mxu0 0
          %2121 = vmatpush1.bf16.msra.mxu0 0
          %2122 = vmatprep.subr.bf16.mxu0 0
          %2123 = vmatpush1.bf16.msra.mxu0 0
          %2124 = vmatprep.subr.bf16.mxu0 0
          %2125 = vmatpush1.bf16.msra.mxu0 0
          %2126 = vmatprep.mubr.bf16.mxu0 0
          %2127 = vmatmul.mubr.bf16.gmra.mrb[0].mxu0 %v2066
          %v2128 = vpop.f32.mrb[0].mxu0
          %v2129 = vadd.f32 0.0, %v2128
          %v2130 = vpop.f32.mrb[0].mxu0
          %v2131 = vpop.f32.mrb[0].mxu0
          %v2132 = vadd.f32 0.0, %v2131
          %v2133 = vpop.f32.mrb[0].mxu0
          %2134 = vmatprep.mubr.bf16.mxu0 0
          %2135 = vmatmul.mubr.bf16.gmra.mrb[0].mxu0 %v2068
          %v2136 = vpop.f32.mrb[0].mxu0
          %v2137 = vadd.f32 0.0, %v2136
          %v2138 = vpop.f32.mrb[0].mxu0
          %v2139 = vpop.f32.mrb[0].mxu0
          %v2140 = vadd.f32 0.0, %v2139
          %v2141 = vpop.f32.mrb[0].mxu0
          %2142 = vmatprep.mubr.bf16.mxu0 0
          %2143 = vmatmul.mubr.bf16.gmra.mrb[0].mxu0 %v2070
          %v2144 = vpop.f32.mrb[0].mxu0
          %v2145 = vadd.f32 0.0, %v2144
          %v2146 = vpop.f32.mrb[0].mxu0
          %v2147 = vpop.f32.mrb[0].mxu0
          %v2148 = vadd.f32 0.0, %v2147
          %v2149 = vpop.f32.mrb[0].mxu0
          %2150 = vmatprep.mubr.bf16.mxu0 0
          %2151 = vmatmul.mubr.bf16.gmra.mrb[0].mxu0 %v2072
          %v2152 = vpop.f32.mrb[0].mxu0
          %v2153 = vadd.f32 0.0, %v2152
          %v2154 = vpop.f32.mrb[0].mxu0
          %v2155 = vpop.f32.mrb[0].mxu0
          %v2156 = vadd.f32 0.0, %v2155
          %v2157 = vpop.f32.mrb[0].mxu0
          %2158 = vmatprep.mubr.bf16.mxu0 0
          %2159 = vmatmul.mubr.bf16.gmra.mrb[0].mxu0 %v2074
          %v2160 = vpop.f32.mrb[0].mxu0
          %v2161 = vadd.f32 0.0, %v2160
          %v2162 = vpop.f32.mrb[0].mxu0
          %v2163 = vpop.f32.mrb[0].mxu0
          %v2164 = vadd.f32 0.0, %v2163
          %v2165 = vpop.f32.mrb[0].mxu0
          %2166 = vmatprep.mubr.bf16.mxu0 0
          %2167 = vmatmul.mubr.bf16.gmra.mrb[0].mxu0 %v2076
          %v2168 = vpop.f32.mrb[0].mxu0
          %v2169 = vadd.f32 0.0, %v2168
          %v2170 = vpop.f32.mrb[0].mxu0
          %v2171 = vpop.f32.mrb[0].mxu0
          %v2172 = vadd.f32 0.0, %v2171
          %v2173 = vpop.f32.mrb[0].mxu0
          %2174 = vmatprep.mubr.bf16.mxu0 0
          %2175 = vmatmul.mubr.bf16.gmra.mrb[0].mxu0 %v2078
          %v2176 = vpop.f32.mrb[0].mxu0
          %v2177 = vadd.f32 0.0, %v2176
          %v2178 = vpop.f32.mrb[0].mxu0
          %v2179 = vpop.f32.mrb[0].mxu0
          %v2180 = vadd.f32 0.0, %v2179
          %v2181 = vpop.f32.mrb[0].mxu0
          %2182 = vmatprep.mubr.bf16.mxu0 0
          %2183 = vmatmul.mubr.bf16.gmra.mrb[0].mxu0 %v2080
          %v2184 = vpop.f32.mrb[0].mxu0
          %v2185 = vadd.f32 0.0, %v2184
          %v2186 = vpop.f32.mrb[0].mxu0
          %v2187 = vpop.f32.mrb[0].mxu0
          %v2188 = vadd.f32 0.0, %v2187
          %v2189 = vpop.f32.mrb[0].mxu0
          %2190 = vmatprep.mubr.bf16.mxu0 0
          %2191 = vmatmul.mubr.bf16.gmra.mrb[0].mxu0 %v2082
          %v2192 = vpop.f32.mrb[0].mxu0
          %v2193 = vadd.f32 0.0, %v2192
          %v2194 = vpop.f32.mrb[0].mxu0
          %v2195 = vpop.f32.mrb[0].mxu0
          %v2196 = vadd.f32 0.0, %v2195
          %v2197 = vpop.f32.mrb[0].mxu0
          %2198 = vmatprep.mubr.bf16.mxu0 0
          %2199 = vmatmul.mubr.bf16.gmra.mrb[0].mxu0 %v2084
          %v2200 = vpop.f32.mrb[0].mxu0
          %v2201 = vadd.f32 0.0, %v2200
          %v2202 = vpop.f32.mrb[0].mxu0
          %v2203 = vpop.f32.mrb[0].mxu0
          %v2204 = vadd.f32 0.0, %v2203
          %v2205 = vpop.f32.mrb[0].mxu0
          %2206 = vmatprep.mubr.bf16.mxu0 0
          %2207 = vmatmul.mubr.bf16.gmra.mrb[0].mxu0 %v2086
          %v2208 = vpop.f32.mrb[0].mxu0
          %v2209 = vadd.f32 0.0, %v2208
          %v2210 = vpop.f32.mrb[0].mxu0
          %v2211 = vpop.f32.mrb[0].mxu0
          %v2212 = vadd.f32 0.0, %v2211
          %v2213 = vpop.f32.mrb[0].mxu0
          %2214 = vmatprep.mubr.bf16.mxu0 0
          %2215 = vmatmul.mubr.bf16.gmra.mrb[0].mxu0 %v2088
          %v2216 = vpop.f32.mrb[0].mxu0
          %v2217 = vadd.f32 0.0, %v2216
          %v2218 = vpop.f32.mrb[0].mxu0
          %v2219 = vpop.f32.mrb[0].mxu0
          %v2220 = vadd.f32 0.0, %v2219
          %v2221 = vpop.f32.mrb[0].mxu0
          %2222 = vdwg.mxu0
          %v2225 = vunpack.c.l.b16 %v1643
          %v2226 = vunpack.c.l.b16 %v1644
          %v2227 = vpack.c.b16 %v2226, %v2225
          %v2228 = vsel %vm2065, %v1620, 0
          %v2230 = vsel %vm2065, %v1622, 0
          %v2232 = vsel %vm2065, %v1624, 0
          %v2234 = vsel %vm2065, %v1626, 0
          %v2236 = vsel %vm2065, %v1628, 0
          %v2238 = vsel %vm2065, %v1630, 0
          %v2240 = vsel %vm2065, %v1632, 0
          %v2242 = vsel %vm2065, %v1634, 0
          %v2244 = vsel %vm2065, %v1636, 0
          %v2246 = vsel %vm2065, %v1638, 0
          %v2248 = vsel %vm2065, %v1640, 0
          %v2250 = vsel %vm2065, %v1642, 0
          %v2253 = vsel %vm2090, %v2227, 0
          %2255 = vmatprep.subr.bf16.mxu0 0
          %2256 = vmatpush1.bf16.msra.mxu0 %v2253
          %2257 = vmatprep.subr.bf16.mxu0 0
          %2258 = vmatpush1.bf16.msra.mxu0 0
          %2259 = vmatprep.subr.bf16.mxu0 0
          %2260 = vmatpush1.bf16.msra.mxu0 0
          %2261 = vmatprep.subr.bf16.mxu0 0
          %2262 = vmatpush1.bf16.msra.mxu0 0
          %2263 = vmatprep.subr.bf16.mxu0 0
          %2264 = vmatpush1.bf16.msra.mxu0 0
          %2265 = vmatprep.subr.bf16.mxu0 0
          %2266 = vmatpush1.bf16.msra.mxu0 0
          %2267 = vmatprep.subr.bf16.mxu0 0
          %2268 = vmatpush1.bf16.msra.mxu0 0
          %2269 = vmatprep.subr.bf16.mxu0 0
          %2270 = vmatpush1.bf16.msra.mxu0 0
          %2271 = vmatprep.subr.bf16.mxu0 0
          %2272 = vmatpush1.bf16.msra.mxu0 0
          %2273 = vmatprep.subr.bf16.mxu0 0
          %2274 = vmatpush1.bf16.msra.mxu0 0
          %2275 = vmatprep.subr.bf16.mxu0 0
          %2276 = vmatpush1.bf16.msra.mxu0 0
          %2277 = vmatprep.subr.bf16.mxu0 0
          %2278 = vmatpush1.bf16.msra.mxu0 0
          %2279 = vmatprep.subr.bf16.mxu0 0
          %2280 = vmatpush1.bf16.msra.mxu0 0
          %2281 = vmatprep.subr.bf16.mxu0 0
          %2282 = vmatpush1.bf16.msra.mxu0 0
          %2283 = vmatprep.subr.bf16.mxu0 0
          %2284 = vmatpush1.bf16.msra.mxu0 0
          %2285 = vmatprep.subr.bf16.mxu0 0
          %2286 = vmatpush1.bf16.msra.mxu0 0
          %2287 = vmatprep.mubr.bf16.mxu0 0
          %2288 = vmatmul.mubr.bf16.gmra.mrb[0].mxu0 %v2228
          %v2289 = vpop.f32.mrb[0].mxu0
          %v2290 = vadd.f32 %v2129, %v2289
          %v2291 = vpop.f32.mrb[0].mxu0
          %v2292 = vpop.f32.mrb[0].mxu0
          %v2293 = vadd.f32 %v2132, %v2292
          %v2294 = vpop.f32.mrb[0].mxu0
          %2295 = vmatprep.mubr.bf16.mxu0 0
          %2296 = vmatmul.mubr.bf16.gmra.mrb[0].mxu0 %v2230
          %v2297 = vpop.f32.mrb[0].mxu0
          %v2298 = vadd.f32 %v2137, %v2297
          %v2299 = vpop.f32.mrb[0].mxu0
          %v2300 = vpop.f32.mrb[0].mxu0
          %v2301 = vadd.f32 %v2140, %v2300
          %v2302 = vpop.f32.mrb[0].mxu0
          %2303 = vmatprep.mubr.bf16.mxu0 0
          %2304 = vmatmul.mubr.bf16.gmra.mrb[0].mxu0 %v2232
          %v2305 = vpop.f32.mrb[0].mxu0
          %v2306 = vadd.f32 %v2145, %v2305
          %v2307 = vpop.f32.mrb[0].mxu0
          %v2308 = vpop.f32.mrb[0].mxu0
          %v2309 = vadd.f32 %v2148, %v2308
          %v2310 = vpop.f32.mrb[0].mxu0
          %2311 = vmatprep.mubr.bf16.mxu0 0
          %2312 = vmatmul.mubr.bf16.gmra.mrb[0].mxu0 %v2234
          %v2313 = vpop.f32.mrb[0].mxu0
          %v2314 = vadd.f32 %v2153, %v2313
          %v2315 = vpop.f32.mrb[0].mxu0
          %v2316 = vpop.f32.mrb[0].mxu0
          %v2317 = vadd.f32 %v2156, %v2316
          %v2318 = vpop.f32.mrb[0].mxu0
          %2319 = vmatprep.mubr.bf16.mxu0 0
          %2320 = vmatmul.mubr.bf16.gmra.mrb[0].mxu0 %v2236
          %v2321 = vpop.f32.mrb[0].mxu0
          %v2322 = vadd.f32 %v2161, %v2321
          %v2323 = vpop.f32.mrb[0].mxu0
          %v2324 = vpop.f32.mrb[0].mxu0
          %v2325 = vadd.f32 %v2164, %v2324
          %v2326 = vpop.f32.mrb[0].mxu0
          %2327 = vmatprep.mubr.bf16.mxu0 0
          %2328 = vmatmul.mubr.bf16.gmra.mrb[0].mxu0 %v2238
          %v2329 = vpop.f32.mrb[0].mxu0
          %v2330 = vadd.f32 %v2169, %v2329
          %v2331 = vpop.f32.mrb[0].mxu0
          %v2332 = vpop.f32.mrb[0].mxu0
          %v2333 = vadd.f32 %v2172, %v2332
          %v2334 = vpop.f32.mrb[0].mxu0
          %2335 = vmatprep.mubr.bf16.mxu0 0
          %2336 = vmatmul.mubr.bf16.gmra.mrb[0].mxu0 %v2240
          %v2337 = vpop.f32.mrb[0].mxu0
          %v2338 = vadd.f32 %v2177, %v2337
          %v2339 = vpop.f32.mrb[0].mxu0
          %v2340 = vpop.f32.mrb[0].mxu0
          %v2341 = vadd.f32 %v2180, %v2340
          %v2342 = vpop.f32.mrb[0].mxu0
          %2343 = vmatprep.mubr.bf16.mxu0 0
          %2344 = vmatmul.mubr.bf16.gmra.mrb[0].mxu0 %v2242
          %v2345 = vpop.f32.mrb[0].mxu0
          %v2346 = vadd.f32 %v2185, %v2345
          %v2347 = vpop.f32.mrb[0].mxu0
          %v2348 = vpop.f32.mrb[0].mxu0
          %v2349 = vadd.f32 %v2188, %v2348
          %v2350 = vpop.f32.mrb[0].mxu0
          %2351 = vmatprep.mubr.bf16.mxu0 0
          %2352 = vmatmul.mubr.bf16.gmra.mrb[0].mxu0 %v2244
          %v2353 = vpop.f32.mrb[0].mxu0
          %v2354 = vadd.f32 %v2193, %v2353
          %v2355 = vpop.f32.mrb[0].mxu0
          %v2356 = vpop.f32.mrb[0].mxu0
          %v2357 = vadd.f32 %v2196, %v2356
          %v2358 = vpop.f32.mrb[0].mxu0
          %2359 = vmatprep.mubr.bf16.mxu0 0
          %2360 = vmatmul.mubr.bf16.gmra.mrb[0].mxu0 %v2246
          %v2361 = vpop.f32.mrb[0].mxu0
          %v2362 = vadd.f32 %v2201, %v2361
          %v2363 = vpop.f32.mrb[0].mxu0
          %v2364 = vpop.f32.mrb[0].mxu0
          %v2365 = vadd.f32 %v2204, %v2364
          %v2366 = vpop.f32.mrb[0].mxu0
          %2367 = vmatprep.mubr.bf16.mxu0 0
          %2368 = vmatmul.mubr.bf16.gmra.mrb[0].mxu0 %v2248
          %v2369 = vpop.f32.mrb[0].mxu0
          %v2370 = vadd.f32 %v2209, %v2369
          %v2371 = vpop.f32.mrb[0].mxu0
          %v2372 = vpop.f32.mrb[0].mxu0
          %v2373 = vadd.f32 %v2212, %v2372
          %v2374 = vpop.f32.mrb[0].mxu0
          %2375 = vmatprep.mubr.bf16.mxu0 0
          %2376 = vmatmul.mubr.bf16.gmra.mrb[0].mxu0 %v2250
          %v2377 = vpop.f32.mrb[0].mxu0
          %v2378 = vadd.f32 %v2217, %v2377
          %v2379 = vpop.f32.mrb[0].mxu0
          %v2380 = vpop.f32.mrb[0].mxu0
          %v2381 = vadd.f32 %v2220, %v2380
          %v2382 = vpop.f32.mrb[0].mxu0
          %2383 = vdwg.mxu0
          %s2384 = sadd.s32 %s1227, 2
          %s2385 = smul.u32 %s2384, 3
          %s2386 = smul.addr %s2385, 4
          %s2387 = scalar_lea.vmem [#allocation2], %s2386
          %v2388 = vld [vmem:[%s2387] sm:$0xf]
          %v2389 = vld [vmem:[%s2387 + $0x4] sm:$0xf]
          %v2390 = vld [vmem:[%s2387 + $0x8] sm:$0xf]
          %v2391 = vld [vmem:[%s2387 + $0xc] sm:$0xf]
          %v2392 = vld [vmem:[%s2387 + $0x10] sm:$0xf]
          %v2393 = vld [vmem:[%s2387 + $0x14] sm:$0xf]
          %v2394 = vld [vmem:[%s2387 + $0x18] sm:$0xf]
          %v2395 = vld [vmem:[%s2387 + $0x1c] sm:$0xf]
          %v2396 = vld [vmem:[%s2387 + $0x20] sm:$0xf]
          %v2397 = vld [vmem:[%s2387 + $0x24] sm:$0xf]
          %v2398 = vld [vmem:[%s2387 + $0x28] sm:$0xf]
          %v2399 = vld [vmem:[%s2387 + $0x2c] sm:$0xf]
          %v2400 = vld [vmem:[%s2387 + $0x30] sm:$0xf]
          %v2401 = vld [vmem:[%s2387 + $0x34] sm:$0xf]
          %v2402 = vld [vmem:[%s2387 + $0x38] sm:$0xf]
          %v2403 = vld [vmem:[%s2387 + $0x3c] sm:$0xf]
          %v2404 = vld [vmem:[%s2387 + $0x40] sm:$0xf]
          %v2405 = vld [vmem:[%s2387 + $0x44] sm:$0xf]
          %v2406 = vld [vmem:[%s2387 + $0x48] sm:$0xf]
          %v2407 = vld [vmem:[%s2387 + $0x4c] sm:$0xf]
          %v2408 = vld [vmem:[%s2387 + $0x50] sm:$0xf]
          %v2409 = vld [vmem:[%s2387 + $0x54] sm:$0xf]
          %v2410 = vld [vmem:[%s2387 + $0x58] sm:$0xf]
          %v2411 = vld [vmem:[%s2387 + $0x5c] sm:$0xf]
          %v2412 = vld [vmem:[%s2387 + $0x60] sm:$0xf]
          %v2413 = vld [vmem:[%s2387 + $0x64] sm:$0xf]
          %v2414 = vld [vmem:[%s2387 + $0x68] sm:$0xf]
          %v2415 = vld [vmem:[%s2387 + $0x6c] sm:$0xf]
          %v2416 = vld [vmem:[%s2387 + $0x70] sm:$0xf]
          %v2417 = vld [vmem:[%s2387 + $0x74] sm:$0xf]
          %v2418 = vld [vmem:[%s2387 + $0x78] sm:$0xf]
          %v2419 = vld [vmem:[%s2387 + $0x7c] sm:$0xf]
          %v2420 = vld [vmem:[%s2387 + $0x80] sm:$0xf]
          %v2421 = vld [vmem:[%s2387 + $0x84] sm:$0xf]
          %v2422 = vld [vmem:[%s2387 + $0x88] sm:$0xf]
          %v2423 = vld [vmem:[%s2387 + $0x8c] sm:$0xf]
          %v2448 = vunpack.c.l.b16 %v2388
          %v2449 = vunpack.c.l.b16 %v2389
          %v2450 = vunpack.c.l.b16 %v2391
          %v2451 = vunpack.c.l.b16 %v2392
          %v2452 = vunpack.c.l.b16 %v2394
          %v2453 = vunpack.c.l.b16 %v2395
          %v2454 = vunpack.c.l.b16 %v2397
          %v2455 = vunpack.c.l.b16 %v2398
          %v2456 = vunpack.c.l.b16 %v2400
          %v2457 = vunpack.c.l.b16 %v2401
          %v2458 = vunpack.c.l.b16 %v2403
          %v2459 = vunpack.c.l.b16 %v2404
          %v2460 = vunpack.c.l.b16 %v2406
          %v2461 = vunpack.c.l.b16 %v2407
          %v2462 = vunpack.c.l.b16 %v2409
          %v2463 = vunpack.c.l.b16 %v2410
          %v2464 = vunpack.c.l.b16 %v2412
          %v2465 = vunpack.c.l.b16 %v2413
          %v2466 = vunpack.c.l.b16 %v2415
          %v2467 = vunpack.c.l.b16 %v2416
          %v2468 = vunpack.c.l.b16 %v2418
          %v2469 = vunpack.c.l.b16 %v2419
          %v2470 = vunpack.c.l.b16 %v2421
          %v2471 = vunpack.c.l.b16 %v2422
          %v2472 = vpack.c.b16 %v2449, %v2448
          %v2473 = vpack.c.b16 %v2451, %v2450
          %v2474 = vpack.c.b16 %v2453, %v2452
          %v2475 = vpack.c.b16 %v2455, %v2454
          %v2476 = vpack.c.b16 %v2457, %v2456
          %v2477 = vpack.c.b16 %v2459, %v2458
          %v2478 = vpack.c.b16 %v2461, %v2460
          %v2479 = vpack.c.b16 %v2463, %v2462
          %v2480 = vpack.c.b16 %v2465, %v2464
          %v2481 = vpack.c.b16 %v2467, %v2466
          %v2482 = vpack.c.b16 %v2469, %v2468
          %v2483 = vpack.c.b16 %v2471, %v2470
          %v2496 = vunpack.c.l.b16 %v2390
          %v2497 = vunpack.c.l.b16 %v2393
          %v2498 = vunpack.c.l.b16 %v2396
          %v2499 = vunpack.c.l.b16 %v2399
          %v2500 = vunpack.c.l.b16 %v2402
          %v2501 = vunpack.c.l.b16 %v2405
          %v2502 = vunpack.c.l.b16 %v2408
          %v2503 = vunpack.c.l.b16 %v2411
          %v2504 = vunpack.c.l.b16 %v2414
          %v2505 = vunpack.c.l.b16 %v2417
          %v2506 = vunpack.c.l.b16 %v2420
          %v2507 = vunpack.c.l.b16 %v2423
          %v2508 = vpack.c.b16 %v2496, %v2496
          %v2509 = vpack.c.b16 %v2497, %v2497
          %v2510 = vpack.c.b16 %v2498, %v2498
          %v2511 = vpack.c.b16 %v2499, %v2499
          %v2512 = vpack.c.b16 %v2500, %v2500
          %v2513 = vpack.c.b16 %v2501, %v2501
          %v2514 = vpack.c.b16 %v2502, %v2502
          %v2515 = vpack.c.b16 %v2503, %v2503
          %v2516 = vpack.c.b16 %v2504, %v2504
          %v2517 = vpack.c.b16 %v2505, %v2505
          %v2518 = vpack.c.b16 %v2506, %v2506
          %v2519 = vpack.c.b16 %v2507, %v2507
          %v2521 = vshrl.u32 %v2472, 16
          %v2523 = vshll.u32 %v2472, 16
          %v2525 = vrot.slane %v2523, 1
          %v2526 = vor.u32 %v2521, %v2525
          %v2528 = vshll.u32 %v2508, 16
          %v2530 = vrot.slane %v2528, 1
          %v2531 = vsel %vm1363, %v2526, %v2530
          %v2533 = vshrl.u32 %v2473, 16
          %v2535 = vshll.u32 %v2473, 16
          %v2537 = vrot.slane %v2535, 1
          %v2538 = vor.u32 %v2533, %v2537
          %v2540 = vshll.u32 %v2509, 16
          %v2542 = vrot.slane %v2540, 1
          %v2543 = vsel %vm1363, %v2538, %v2542
          %v2545 = vshrl.u32 %v2474, 16
          %v2547 = vshll.u32 %v2474, 16
          %v2549 = vrot.slane %v2547, 1
          %v2550 = vor.u32 %v2545, %v2549
          %v2552 = vshll.u32 %v2510, 16
          %v2554 = vrot.slane %v2552, 1
          %v2555 = vsel %vm1363, %v2550, %v2554
          %v2557 = vshrl.u32 %v2475, 16
          %v2559 = vshll.u32 %v2475, 16
          %v2561 = vrot.slane %v2559, 1
          %v2562 = vor.u32 %v2557, %v2561
          %v2564 = vshll.u32 %v2511, 16
          %v2566 = vrot.slane %v2564, 1
          %v2567 = vsel %vm1363, %v2562, %v2566
          %v2569 = vshrl.u32 %v2476, 16
          %v2571 = vshll.u32 %v2476, 16
          %v2573 = vrot.slane %v2571, 1
          %v2574 = vor.u32 %v2569, %v2573
          %v2576 = vshll.u32 %v2512, 16
          %v2578 = vrot.slane %v2576, 1
          %v2579 = vsel %vm1363, %v2574, %v2578
          %v2581 = vshrl.u32 %v2477, 16
          %v2583 = vshll.u32 %v2477, 16
          %v2585 = vrot.slane %v2583, 1
          %v2586 = vor.u32 %v2581, %v2585
          %v2588 = vshll.u32 %v2513, 16
          %v2590 = vrot.slane %v2588, 1
          %v2591 = vsel %vm1363, %v2586, %v2590
          %v2593 = vshrl.u32 %v2478, 16
          %v2595 = vshll.u32 %v2478, 16
          %v2597 = vrot.slane %v2595, 1
          %v2598 = vor.u32 %v2593, %v2597
          %v2600 = vshll.u32 %v2514, 16
          %v2602 = vrot.slane %v2600, 1
          %v2603 = vsel %vm1363, %v2598, %v2602
          %v2605 = vshrl.u32 %v2479, 16
          %v2607 = vshll.u32 %v2479, 16
          %v2609 = vrot.slane %v2607, 1
          %v2610 = vor.u32 %v2605, %v2609
          %v2612 = vshll.u32 %v2515, 16
          %v2614 = vrot.slane %v2612, 1
          %v2615 = vsel %vm1363, %v2610, %v2614
          %v2617 = vshrl.u32 %v2480, 16
          %v2619 = vshll.u32 %v2480, 16
          %v2621 = vrot.slane %v2619, 1
          %v2622 = vor.u32 %v2617, %v2621
          %v2624 = vshll.u32 %v2516, 16
          %v2626 = vrot.slane %v2624, 1
          %v2627 = vsel %vm1363, %v2622, %v2626
          %v2629 = vshrl.u32 %v2481, 16
          %v2631 = vshll.u32 %v2481, 16
          %v2633 = vrot.slane %v2631, 1
          %v2634 = vor.u32 %v2629, %v2633
          %v2636 = vshll.u32 %v2517, 16
          %v2638 = vrot.slane %v2636, 1
          %v2639 = vsel %vm1363, %v2634, %v2638
          %v2641 = vshrl.u32 %v2482, 16
          %v2643 = vshll.u32 %v2482, 16
          %v2645 = vrot.slane %v2643, 1
          %v2646 = vor.u32 %v2641, %v2645
          %v2648 = vshll.u32 %v2518, 16
          %v2650 = vrot.slane %v2648, 1
          %v2651 = vsel %vm1363, %v2646, %v2650
          %v2653 = vshrl.u32 %v2483, 16
          %v2655 = vshll.u32 %v2483, 16
          %v2657 = vrot.slane %v2655, 1
          %v2658 = vor.u32 %v2653, %v2657
          %v2660 = vshll.u32 %v2519, 16
          %v2662 = vrot.slane %v2660, 1
          %v2663 = vsel %vm1363, %v2658, %v2662
          %2664 = vrot.lane.b32.xlu0 %v2531, 4
          %v2665 = vpop.permute.xlu0 %2664
          %2666 = vrot.lane.b32.xlu0 %v2543, 4
          %v2667 = vpop.permute.xlu0 %2666
          %2668 = vrot.lane.b32.xlu0 %v2555, 4
          %v2669 = vpop.permute.xlu0 %2668
          %2670 = vrot.lane.b32.xlu0 %v2567, 4
          %v2671 = vpop.permute.xlu0 %2670
          %2672 = vrot.lane.b32.xlu0 %v2579, 4
          %v2673 = vpop.permute.xlu0 %2672
          %2674 = vrot.lane.b32.xlu0 %v2591, 4
          %v2675 = vpop.permute.xlu0 %2674
          %2676 = vrot.lane.b32.xlu0 %v2603, 4
          %v2677 = vpop.permute.xlu0 %2676
          %2678 = vrot.lane.b32.xlu0 %v2615, 4
          %v2679 = vpop.permute.xlu0 %2678
          %2680 = vrot.lane.b32.xlu0 %v2627, 4
          %v2681 = vpop.permute.xlu0 %2680
          %2682 = vrot.lane.b32.xlu0 %v2639, 4
          %v2683 = vpop.permute.xlu0 %2682
          %2684 = vrot.lane.b32.xlu0 %v2651, 4
          %v2685 = vpop.permute.xlu0 %2684
          %2686 = vrot.lane.b32.xlu0 %v2663, 4
          %v2687 = vpop.permute.xlu0 %2686
          %v2688 = vrot.slane %v2472, 1
          %v2689 = vrot.slane %v2508, 1
          %v2690 = vsel %vm1532, %v2688, %v2689
          %v2691 = vrot.slane %v2473, 1
          %v2692 = vrot.slane %v2509, 1
          %v2693 = vsel %vm1532, %v2691, %v2692
          %v2694 = vrot.slane %v2474, 1
          %v2695 = vrot.slane %v2510, 1
          %v2696 = vsel %vm1532, %v2694, %v2695
          %v2697 = vrot.slane %v2475, 1
          %v2698 = vrot.slane %v2511, 1
          %v2699 = vsel %vm1532, %v2697, %v2698
          %v2700 = vrot.slane %v2476, 1
          %v2701 = vrot.slane %v2512, 1
          %v2702 = vsel %vm1532, %v2700, %v2701
          %v2703 = vrot.slane %v2477, 1
          %v2704 = vrot.slane %v2513, 1
          %v2705 = vsel %vm1532, %v2703, %v2704
          %v2706 = vrot.slane %v2478, 1
          %v2707 = vrot.slane %v2514, 1
          %v2708 = vsel %vm1532, %v2706, %v2707
          %v2709 = vrot.slane %v2479, 1
          %v2710 = vrot.slane %v2515, 1
          %v2711 = vsel %vm1532, %v2709, %v2710
          %v2712 = vrot.slane %v2480, 1
          %v2713 = vrot.slane %v2516, 1
          %v2714 = vsel %vm1532, %v2712, %v2713
          %v2715 = vrot.slane %v2481, 1
          %v2716 = vrot.slane %v2517, 1
          %v2717 = vsel %vm1532, %v2715, %v2716
          %v2718 = vrot.slane %v2482, 1
          %v2719 = vrot.slane %v2518, 1
          %v2720 = vsel %vm1532, %v2718, %v2719
          %v2721 = vrot.slane %v2483, 1
          %v2722 = vrot.slane %v2519, 1
          %v2723 = vsel %vm1532, %v2721, %v2722
          %2724 = vrot.lane.b32.xlu0 %v2690, 8
          %v2725 = vpop.permute.xlu0 %2724
          %2726 = vrot.lane.b32.xlu0 %v2693, 8
          %v2727 = vpop.permute.xlu0 %2726
          %2728 = vrot.lane.b32.xlu0 %v2696, 8
          %v2729 = vpop.permute.xlu0 %2728
          %2730 = vrot.lane.b32.xlu0 %v2699, 8
          %v2731 = vpop.permute.xlu0 %2730
          %2732 = vrot.lane.b32.xlu0 %v2702, 8
          %v2733 = vpop.permute.xlu0 %2732
          %2734 = vrot.lane.b32.xlu0 %v2705, 8
          %v2735 = vpop.permute.xlu0 %2734
          %2736 = vrot.lane.b32.xlu0 %v2708, 8
          %v2737 = vpop.permute.xlu0 %2736
          %2738 = vrot.lane.b32.xlu0 %v2711, 8
          %v2739 = vpop.permute.xlu0 %2738
          %2740 = vrot.lane.b32.xlu0 %v2714, 8
          %v2741 = vpop.permute.xlu0 %2740
          %2742 = vrot.lane.b32.xlu0 %v2717, 8
          %v2743 = vpop.permute.xlu0 %2742
          %2744 = vrot.lane.b32.xlu0 %v2720, 8
          %v2745 = vpop.permute.xlu0 %2744
          %2746 = vrot.lane.b32.xlu0 %v2723, 8
          %v2747 = vpop.permute.xlu0 %2746
          %v2749 = vsel %vm1593, %v2472, %v2665
          %v2751 = vsel %vm1593, %v2473, %v2667
          %v2753 = vsel %vm1593, %v2474, %v2669
          %v2755 = vsel %vm1593, %v2475, %v2671
          %v2757 = vsel %vm1593, %v2476, %v2673
          %v2759 = vsel %vm1593, %v2477, %v2675
          %v2761 = vsel %vm1593, %v2478, %v2677
          %v2763 = vsel %vm1593, %v2479, %v2679
          %v2765 = vsel %vm1593, %v2480, %v2681
          %v2767 = vsel %vm1593, %v2481, %v2683
          %v2769 = vsel %vm1593, %v2482, %v2685
          %v2771 = vsel %vm1593, %v2483, %v2687
          %v2773 = vsel %vm1618, %v2749, %v2725
          %v2775 = vsel %vm1618, %v2751, %v2727
          %v2777 = vsel %vm1618, %v2753, %v2729
          %v2779 = vsel %vm1618, %v2755, %v2731
          %v2781 = vsel %vm1618, %v2757, %v2733
          %v2783 = vsel %vm1618, %v2759, %v2735
          %v2785 = vsel %vm1618, %v2761, %v2737
          %v2787 = vsel %vm1618, %v2763, %v2739
          %v2789 = vsel %vm1618, %v2765, %v2741
          %v2791 = vsel %vm1618, %v2767, %v2743
          %v2793 = vsel %vm1618, %v2769, %v2745
          %v2795 = vsel %vm1618, %v2771, %v2747
          %s2796 = scalar_lea.vmem [#allocation9], 16
          %v2797 = vld [vmem:[%s2796] sm:$0xf]
          %v2798 = vld [vmem:[%s2796 + $0x4] sm:$0x3]
          %v2801 = vunpack.c.l.b16 %v2797
          %v2802 = vunpack.c.l.b16 %v2798
          %v2803 = vpack.c.b16 %v2802, %v2801
          %v2804 = vsel %vm2065, %v2773, 0
          %v2806 = vsel %vm2065, %v2775, 0
          %v2808 = vsel %vm2065, %v2777, 0
          %v2810 = vsel %vm2065, %v2779, 0
          %v2812 = vsel %vm2065, %v2781, 0
          %v2814 = vsel %vm2065, %v2783, 0
          %v2816 = vsel %vm2065, %v2785, 0
          %v2818 = vsel %vm2065, %v2787, 0
          %v2820 = vsel %vm2065, %v2789, 0
          %v2822 = vsel %vm2065, %v2791, 0
          %v2824 = vsel %vm2065, %v2793, 0
          %v2826 = vsel %vm2065, %v2795, 0
          %v2829 = vsel %vm2090, %v2803, 0
          %2831 = vmatprep.subr.bf16.mxu0 0
          %2832 = vmatpush1.bf16.msra.mxu0 %v2829
          %2833 = vmatprep.subr.bf16.mxu0 0
          %2834 = vmatpush1.bf16.msra.mxu0 0
          %2835 = vmatprep.subr.bf16.mxu0 0
          %2836 = vmatpush1.bf16.msra.mxu0 0
          %2837 = vmatprep.subr.bf16.mxu0 0
          %2838 = vmatpush1.bf16.msra.mxu0 0
          %2839 = vmatprep.subr.bf16.mxu0 0
          %2840 = vmatpush1.bf16.msra.mxu0 0
          %2841 = vmatprep.subr.bf16.mxu0 0
          %2842 = vmatpush1.bf16.msra.mxu0 0
          %2843 = vmatprep.subr.bf16.mxu0 0
          %2844 = vmatpush1.bf16.msra.mxu0 0
          %2845 = vmatprep.subr.bf16.mxu0 0
          %2846 = vmatpush1.bf16.msra.mxu0 0
          %2847 = vmatprep.subr.bf16.mxu0 0
          %2848 = vmatpush1.bf16.msra.mxu0 0
          %2849 = vmatprep.subr.bf16.mxu0 0
          %2850 = vmatpush1.bf16.msra.mxu0 0
          %2851 = vmatprep.subr.bf16.mxu0 0
          %2852 = vmatpush1.bf16.msra.mxu0 0
          %2853 = vmatprep.subr.bf16.mxu0 0
          %2854 = vmatpush1.bf16.msra.mxu0 0
          %2855 = vmatprep.subr.bf16.mxu0 0
          %2856 = vmatpush1.bf16.msra.mxu0 0
          %2857 = vmatprep.subr.bf16.mxu0 0
          %2858 = vmatpush1.bf16.msra.mxu0 0
          %2859 = vmatprep.subr.bf16.mxu0 0
          %2860 = vmatpush1.bf16.msra.mxu0 0
          %2861 = vmatprep.subr.bf16.mxu0 0
          %2862 = vmatpush1.bf16.msra.mxu0 0
          %2863 = vmatprep.mubr.bf16.mxu0 0
          %2864 = vmatmul.mubr.bf16.gmra.mrb[0].mxu0 %v2804
          %v2865 = vpop.f32.mrb[0].mxu0
          %v2866 = vadd.f32 0.0, %v2865
          %v2867 = vpop.f32.mrb[0].mxu0
          %v2868 = vpop.f32.mrb[0].mxu0
          %v2869 = vadd.f32 0.0, %v2868
          %v2870 = vpop.f32.mrb[0].mxu0
          %2871 = vmatprep.mubr.bf16.mxu0 0
          %2872 = vmatmul.mubr.bf16.gmra.mrb[0].mxu0 %v2806
          %v2873 = vpop.f32.mrb[0].mxu0
          %v2874 = vadd.f32 0.0, %v2873
          %v2875 = vpop.f32.mrb[0].mxu0
          %v2876 = vpop.f32.mrb[0].mxu0
          %v2877 = vadd.f32 0.0, %v2876
          %v2878 = vpop.f32.mrb[0].mxu0
          %2879 = vmatprep.mubr.bf16.mxu0 0
          %2880 = vmatmul.mubr.bf16.gmra.mrb[0].mxu0 %v2808
          %v2881 = vpop.f32.mrb[0].mxu0
          %v2882 = vadd.f32 0.0, %v2881
          %v2883 = vpop.f32.mrb[0].mxu0
          %v2884 = vpop.f32.mrb[0].mxu0
          %v2885 = vadd.f32 0.0, %v2884
          %v2886 = vpop.f32.mrb[0].mxu0
          %2887 = vmatprep.mubr.bf16.mxu0 0
          %2888 = vmatmul.mubr.bf16.gmra.mrb[0].mxu0 %v2810
          %v2889 = vpop.f32.mrb[0].mxu0
          %v2890 = vadd.f32 0.0, %v2889
          %v2891 = vpop.f32.mrb[0].mxu0
          %v2892 = vpop.f32.mrb[0].mxu0
          %v2893 = vadd.f32 0.0, %v2892
          %v2894 = vpop.f32.mrb[0].mxu0
          %2895 = vmatprep.mubr.bf16.mxu0 0
          %2896 = vmatmul.mubr.bf16.gmra.mrb[0].mxu0 %v2812
          %v2897 = vpop.f32.mrb[0].mxu0
          %v2898 = vadd.f32 0.0, %v2897
          %v2899 = vpop.f32.mrb[0].mxu0
          %v2900 = vpop.f32.mrb[0].mxu0
          %v2901 = vadd.f32 0.0, %v2900
          %v2902 = vpop.f32.mrb[0].mxu0
          %2903 = vmatprep.mubr.bf16.mxu0 0
          %2904 = vmatmul.mubr.bf16.gmra.mrb[0].mxu0 %v2814
          %v2905 = vpop.f32.mrb[0].mxu0
          %v2906 = vadd.f32 0.0, %v2905
          %v2907 = vpop.f32.mrb[0].mxu0
          %v2908 = vpop.f32.mrb[0].mxu0
          %v2909 = vadd.f32 0.0, %v2908
          %v2910 = vpop.f32.mrb[0].mxu0
          %2911 = vmatprep.mubr.bf16.mxu0 0
          %2912 = vmatmul.mubr.bf16.gmra.mrb[0].mxu0 %v2816
          %v2913 = vpop.f32.mrb[0].mxu0
          %v2914 = vadd.f32 0.0, %v2913
          %v2915 = vpop.f32.mrb[0].mxu0
          %v2916 = vpop.f32.mrb[0].mxu0
          %v2917 = vadd.f32 0.0, %v2916
          %v2918 = vpop.f32.mrb[0].mxu0
          %2919 = vmatprep.mubr.bf16.mxu0 0
          %2920 = vmatmul.mubr.bf16.gmra.mrb[0].mxu0 %v2818
          %v2921 = vpop.f32.mrb[0].mxu0
          %v2922 = vadd.f32 0.0, %v2921
          %v2923 = vpop.f32.mrb[0].mxu0
          %v2924 = vpop.f32.mrb[0].mxu0
          %v2925 = vadd.f32 0.0, %v2924
          %v2926 = vpop.f32.mrb[0].mxu0
          %2927 = vmatprep.mubr.bf16.mxu0 0
          %2928 = vmatmul.mubr.bf16.gmra.mrb[0].mxu0 %v2820
          %v2929 = vpop.f32.mrb[0].mxu0
          %v2930 = vadd.f32 0.0, %v2929
          %v2931 = vpop.f32.mrb[0].mxu0
          %v2932 = vpop.f32.mrb[0].mxu0
          %v2933 = vadd.f32 0.0, %v2932
          %v2934 = vpop.f32.mrb[0].mxu0
          %2935 = vmatprep.mubr.bf16.mxu0 0
          %2936 = vmatmul.mubr.bf16.gmra.mrb[0].mxu0 %v2822
          %v2937 = vpop.f32.mrb[0].mxu0
          %v2938 = vadd.f32 0.0, %v2937
          %v2939 = vpop.f32.mrb[0].mxu0
          %v2940 = vpop.f32.mrb[0].mxu0
          %v2941 = vadd.f32 0.0, %v2940
          %v2942 = vpop.f32.mrb[0].mxu0
          %2943 = vmatprep.mubr.bf16.mxu0 0
          %2944 = vmatmul.mubr.bf16.gmra.mrb[0].mxu0 %v2824
          %v2945 = vpop.f32.mrb[0].mxu0
          %v2946 = vadd.f32 0.0, %v2945
          %v2947 = vpop.f32.mrb[0].mxu0
          %v2948 = vpop.f32.mrb[0].mxu0
          %v2949 = vadd.f32 0.0, %v2948
          %v2950 = vpop.f32.mrb[0].mxu0
          %2951 = vmatprep.mubr.bf16.mxu0 0
          %2952 = vmatmul.mubr.bf16.gmra.mrb[0].mxu0 %v2826
          %v2953 = vpop.f32.mrb[0].mxu0
          %v2954 = vadd.f32 0.0, %v2953
          %v2955 = vpop.f32.mrb[0].mxu0
          %v2956 = vpop.f32.mrb[0].mxu0
          %v2957 = vadd.f32 0.0, %v2956
          %v2958 = vpop.f32.mrb[0].mxu0
          %2959 = vdwg.mxu0
          %v2960 = vadd.f32 %v2290, %v2866
          %v2961 = vadd.f32 %v2293, %v2869
          %v2962 = vadd.f32 %v2298, %v2874
          %v2963 = vadd.f32 %v2301, %v2877
          %v2964 = vadd.f32 %v2306, %v2882
          %v2965 = vadd.f32 %v2309, %v2885
          %v2966 = vadd.f32 %v2314, %v2890
          %v2967 = vadd.f32 %v2317, %v2893
          %v2968 = vadd.f32 %v2322, %v2898
          %v2969 = vadd.f32 %v2325, %v2901
          %v2970 = vadd.f32 %v2330, %v2906
          %v2971 = vadd.f32 %v2333, %v2909
          %v2972 = vadd.f32 %v2338, %v2914
          %v2973 = vadd.f32 %v2341, %v2917
          %v2974 = vadd.f32 %v2346, %v2922
          %v2975 = vadd.f32 %v2349, %v2925
          %v2976 = vadd.f32 %v2354, %v2930
          %v2977 = vadd.f32 %v2357, %v2933
          %v2978 = vadd.f32 %v2362, %v2938
          %v2979 = vadd.f32 %v2365, %v2941
          %v2980 = vadd.f32 %v2370, %v2946
          %v2981 = vadd.f32 %v2373, %v2949
          %v2982 = vadd.f32 %v2378, %v2954
          %v2983 = vadd.f32 %v2381, %v2957
          %v2985 = vlaneseq
          %v2986 = vshrl.u32 %v2985, 7
          %v2987 = vsub.s32 0, %v2986
          %v2988 = vrot.slane %v515, %v2987
          %v2990 = vadd.f32 %v2960, %v2988
          %v2991 = vadd.f32 %v2961, %v2988
          %v2992 = vadd.f32 %v2962, %v2988
          %v2993 = vadd.f32 %v2963, %v2988
          %v2994 = vadd.f32 %v2964, %v2988
          %v2995 = vadd.f32 %v2965, %v2988
          %v2996 = vadd.f32 %v2966, %v2988
          %v2997 = vadd.f32 %v2967, %v2988
          %v2998 = vadd.f32 %v2968, %v2988
          %v2999 = vadd.f32 %v2969, %v2988
          %v3000 = vadd.f32 %v2970, %v2988
          %v3001 = vadd.f32 %v2971, %v2988
          %v3002 = vadd.f32 %v2972, %v2988
          %v3003 = vadd.f32 %v2973, %v2988
          %v3004 = vadd.f32 %v2974, %v2988
          %v3005 = vadd.f32 %v2975, %v2988
          %v3006 = vadd.f32 %v2976, %v2988
          %v3007 = vadd.f32 %v2977, %v2988
          %v3008 = vadd.f32 %v2978, %v2988
          %v3009 = vadd.f32 %v2979, %v2988
          %v3010 = vadd.f32 %v2980, %v2988
          %v3011 = vadd.f32 %v2981, %v2988
          %v3012 = vadd.f32 %v2982, %v2988
          %v3013 = vadd.f32 %v2983, %v2988
          %v3014 = vmax.f32 %v2990, 0.0
          %v3015 = vmax.f32 %v2991, 0.0
          %v3016 = vmax.f32 %v2992, 0.0
          %v3017 = vmax.f32 %v2993, 0.0
          %v3018 = vmax.f32 %v2994, 0.0
          %v3019 = vmax.f32 %v2995, 0.0
          %v3020 = vmax.f32 %v2996, 0.0
          %v3021 = vmax.f32 %v2997, 0.0
          %v3022 = vmax.f32 %v2998, 0.0
          %v3023 = vmax.f32 %v2999, 0.0
          %v3024 = vmax.f32 %v3000, 0.0
          %v3025 = vmax.f32 %v3001, 0.0
          %v3026 = vmax.f32 %v3002, 0.0
          %v3027 = vmax.f32 %v3003, 0.0
          %v3028 = vmax.f32 %v3004, 0.0
          %v3029 = vmax.f32 %v3005, 0.0
          %v3030 = vmax.f32 %v3006, 0.0
          %v3031 = vmax.f32 %v3007, 0.0
          %v3032 = vmax.f32 %v3008, 0.0
          %v3033 = vmax.f32 %v3009, 0.0
          %v3034 = vmax.f32 %v3010, 0.0
          %v3035 = vmax.f32 %v3011, 0.0
          %v3036 = vmax.f32 %v3012, 0.0
          %v3037 = vmax.f32 %v3013, 0.0
          %v3038 = vpack.c.bf16 %v3015, %v3014
          %v3039 = vpack.c.bf16 %v3017, %v3016
          %v3040 = vpack.c.bf16 %v3019, %v3018
          %v3041 = vpack.c.bf16 %v3021, %v3020
          %v3042 = vpack.c.bf16 %v3023, %v3022
          %v3043 = vpack.c.bf16 %v3025, %v3024
          %v3044 = vpack.c.bf16 %v3027, %v3026
          %v3045 = vpack.c.bf16 %v3029, %v3028
          %v3046 = vpack.c.bf16 %v3031, %v3030
          %v3047 = vpack.c.bf16 %v3033, %v3032
          %v3048 = vpack.c.bf16 %v3035, %v3034
          %v3049 = vpack.c.bf16 %v3037, %v3036
          %v3050 = vld [vmem:[#allocation12] sm:$0x3]
          %v3052 = vlaneseq
          %v3053 = vshrl.u32 %v3052, 7
          %v3054 = vsub.s32 0, %v3053
          %v3055 = vrot.slane %v516, %v3054
          %v3058 = vsel %vm1593, %v3038, 0
          %v3061 = vsel %vm1593, %v3039, 0
          %v3064 = vsel %vm1593, %v3040, 0
          %v3067 = vsel %vm1593, %v3041, 0
          %v3070 = vsel %vm1593, %v3042, 0
          %v3073 = vsel %vm1593, %v3043, 0
          %v3076 = vsel %vm1593, %v3044, 0
          %v3079 = vsel %vm1593, %v3045, 0
          %v3082 = vsel %vm1593, %v3046, 0
          %v3085 = vsel %vm1593, %v3047, 0
          %v3088 = vsel %vm1593, %v3048, 0
          %v3091 = vsel %vm1593, %v3049, 0
          %vm3093 = vcmask 1041408
          %v3095 = vsel %vm3093, %v3050, 0
          %3097 = vmatprep.subr.bf16.mxu0 0
          %3098 = vmatpush1.bf16.msra.mxu0 %v3095
          %3099 = vmatprep.subr.bf16.mxu0 0
          %3100 = vmatpush1.bf16.msra.mxu0 0
          %3101 = vmatprep.subr.bf16.mxu0 0
          %3102 = vmatpush1.bf16.msra.mxu0 0
          %3103 = vmatprep.subr.bf16.mxu0 0
          %3104 = vmatpush1.bf16.msra.mxu0 0
          %3105 = vmatprep.subr.bf16.mxu0 0
          %3106 = vmatpush1.bf16.msra.mxu0 0
          %3107 = vmatprep.subr.bf16.mxu0 0
          %3108 = vmatpush1.bf16.msra.mxu0 0
          %3109 = vmatprep.subr.bf16.mxu0 0
          %3110 = vmatpush1.bf16.msra.mxu0 0
          %3111 = vmatprep.subr.bf16.mxu0 0
          %3112 = vmatpush1.bf16.msra.mxu0 0
          %3113 = vmatprep.subr.bf16.mxu0 0
          %3114 = vmatpush1.bf16.msra.mxu0 0
          %3115 = vmatprep.subr.bf16.mxu0 0
          %3116 = vmatpush1.bf16.msra.mxu0 0
          %3117 = vmatprep.subr.bf16.mxu0 0
          %3118 = vmatpush1.bf16.msra.mxu0 0
          %3119 = vmatprep.subr.bf16.mxu0 0
          %3120 = vmatpush1.bf16.msra.mxu0 0
          %3121 = vmatprep.subr.bf16.mxu0 0
          %3122 = vmatpush1.bf16.msra.mxu0 0
          %3123 = vmatprep.subr.bf16.mxu0 0
          %3124 = vmatpush1.bf16.msra.mxu0 0
          %3125 = vmatprep.subr.bf16.mxu0 0
          %3126 = vmatpush1.bf16.msra.mxu0 0
          %3127 = vmatprep.subr.bf16.mxu0 0
          %3128 = vmatpush1.bf16.msra.mxu0 0
          %3129 = vmatprep.mubr.bf16.mxu0 0
          %3130 = vmatmul.mubr.bf16.gmra.mrb[0].mxu0 %v3058
          %v3131 = vpop.f32.mrb[0].mxu0
          %v3132 = vadd.f32 %v3055, %v3131
          %v3133 = vpop.f32.mrb[0].mxu0
          %v3134 = vpop.f32.mrb[0].mxu0
          %v3135 = vadd.f32 %v3055, %v3134
          %v3136 = vpop.f32.mrb[0].mxu0
          %3137 = vmatprep.mubr.bf16.mxu0 0
          %3138 = vmatmul.mubr.bf16.gmra.mrb[0].mxu0 %v3061
          %v3139 = vpop.f32.mrb[0].mxu0
          %v3140 = vadd.f32 %v3055, %v3139
          %v3141 = vpop.f32.mrb[0].mxu0
          %v3142 = vpop.f32.mrb[0].mxu0
          %v3143 = vadd.f32 %v3055, %v3142
          %v3144 = vpop.f32.mrb[0].mxu0
          %3145 = vmatprep.mubr.bf16.mxu0 0
          %3146 = vmatmul.mubr.bf16.gmra.mrb[0].mxu0 %v3064
          %v3147 = vpop.f32.mrb[0].mxu0
          %v3148 = vadd.f32 %v3055, %v3147
          %v3149 = vpop.f32.mrb[0].mxu0
          %v3150 = vpop.f32.mrb[0].mxu0
          %v3151 = vadd.f32 %v3055, %v3150
          %v3152 = vpop.f32.mrb[0].mxu0
          %3153 = vmatprep.mubr.bf16.mxu0 0
          %3154 = vmatmul.mubr.bf16.gmra.mrb[0].mxu0 %v3067
          %v3155 = vpop.f32.mrb[0].mxu0
          %v3156 = vadd.f32 %v3055, %v3155
          %v3157 = vpop.f32.mrb[0].mxu0
          %v3158 = vpop.f32.mrb[0].mxu0
          %v3159 = vadd.f32 %v3055, %v3158
          %v3160 = vpop.f32.mrb[0].mxu0
          %3161 = vmatprep.mubr.bf16.mxu0 0
          %3162 = vmatmul.mubr.bf16.gmra.mrb[0].mxu0 %v3070
          %v3163 = vpop.f32.mrb[0].mxu0
          %v3164 = vadd.f32 %v3055, %v3163
          %v3165 = vpop.f32.mrb[0].mxu0
          %v3166 = vpop.f32.mrb[0].mxu0
          %v3167 = vadd.f32 %v3055, %v3166
          %v3168 = vpop.f32.mrb[0].mxu0
          %3169 = vmatprep.mubr.bf16.mxu0 0
          %3170 = vmatmul.mubr.bf16.gmra.mrb[0].mxu0 %v3073
          %v3171 = vpop.f32.mrb[0].mxu0
          %v3172 = vadd.f32 %v3055, %v3171
          %v3173 = vpop.f32.mrb[0].mxu0
          %v3174 = vpop.f32.mrb[0].mxu0
          %v3175 = vadd.f32 %v3055, %v3174
          %v3176 = vpop.f32.mrb[0].mxu0
          %3177 = vmatprep.mubr.bf16.mxu0 0
          %3178 = vmatmul.mubr.bf16.gmra.mrb[0].mxu0 %v3076
          %v3179 = vpop.f32.mrb[0].mxu0
          %v3180 = vadd.f32 %v3055, %v3179
          %v3181 = vpop.f32.mrb[0].mxu0
          %v3182 = vpop.f32.mrb[0].mxu0
          %v3183 = vadd.f32 %v3055, %v3182
          %v3184 = vpop.f32.mrb[0].mxu0
          %3185 = vmatprep.mubr.bf16.mxu0 0
          %3186 = vmatmul.mubr.bf16.gmra.mrb[0].mxu0 %v3079
          %v3187 = vpop.f32.mrb[0].mxu0
          %v3188 = vadd.f32 %v3055, %v3187
          %v3189 = vpop.f32.mrb[0].mxu0
          %v3190 = vpop.f32.mrb[0].mxu0
          %v3191 = vadd.f32 %v3055, %v3190
          %v3192 = vpop.f32.mrb[0].mxu0
          %3193 = vmatprep.mubr.bf16.mxu0 0
          %3194 = vmatmul.mubr.bf16.gmra.mrb[0].mxu0 %v3082
          %v3195 = vpop.f32.mrb[0].mxu0
          %v3196 = vadd.f32 %v3055, %v3195
          %v3197 = vpop.f32.mrb[0].mxu0
          %v3198 = vpop.f32.mrb[0].mxu0
          %v3199 = vadd.f32 %v3055, %v3198
          %v3200 = vpop.f32.mrb[0].mxu0
          %3201 = vmatprep.mubr.bf16.mxu0 0
          %3202 = vmatmul.mubr.bf16.gmra.mrb[0].mxu0 %v3085
          %v3203 = vpop.f32.mrb[0].mxu0
          %v3204 = vadd.f32 %v3055, %v3203
          %v3205 = vpop.f32.mrb[0].mxu0
          %v3206 = vpop.f32.mrb[0].mxu0
          %v3207 = vadd.f32 %v3055, %v3206
          %v3208 = vpop.f32.mrb[0].mxu0
          %3209 = vmatprep.mubr.bf16.mxu0 0
          %3210 = vmatmul.mubr.bf16.gmra.mrb[0].mxu0 %v3088
          %v3211 = vpop.f32.mrb[0].mxu0
          %v3212 = vadd.f32 %v3055, %v3211
          %v3213 = vpop.f32.mrb[0].mxu0
          %v3214 = vpop.f32.mrb[0].mxu0
          %v3215 = vadd.f32 %v3055, %v3214
          %v3216 = vpop.f32.mrb[0].mxu0
          %3217 = vmatprep.mubr.bf16.mxu0 0
          %3218 = vmatmul.mubr.bf16.gmra.mrb[0].mxu0 %v3091
          %v3219 = vpop.f32.mrb[0].mxu0
          %v3220 = vadd.f32 %v3055, %v3219
          %v3221 = vpop.f32.mrb[0].mxu0
          %v3222 = vpop.f32.mrb[0].mxu0
          %v3223 = vadd.f32 %v3055, %v3222
          %v3224 = vpop.f32.mrb[0].mxu0
          %3225 = vdwg.mxu0
          %s3226 = smul.u32 %s1227, 2
          %s3227 = smul.addr %s3226, 4
          %s3228 = scalar_lea.vmem %s386, %s3227 [#allocation3]
          %v3229 = vld [vmem:[%s3228] sm:$0xf]
          %v3230 = vld [vmem:[%s3228 + $0x4] sm:$0xf]
          %v3231 = vld [vmem:[%s3228 + $0x8] sm:$0xf]
          %v3232 = vld [vmem:[%s3228 + $0xc] sm:$0xf]
          %v3233 = vld [vmem:[%s3228 + $0x10] sm:$0xf]
          %v3234 = vld [vmem:[%s3228 + $0x14] sm:$0xf]
          %v3235 = vld [vmem:[%s3228 + $0x18] sm:$0xf]
          %v3236 = vld [vmem:[%s3228 + $0x1c] sm:$0xf]
          %v3237 = vld [vmem:[%s3228 + $0x20] sm:$0xf]
          %v3238 = vld [vmem:[%s3228 + $0x24] sm:$0xf]
          %v3239 = vld [vmem:[%s3228 + $0x28] sm:$0xf]
          %v3240 = vld [vmem:[%s3228 + $0x2c] sm:$0xf]
          %v3241 = vld [vmem:[%s3228 + $0x30] sm:$0xf]
          %v3242 = vld [vmem:[%s3228 + $0x34] sm:$0xf]
          %v3243 = vld [vmem:[%s3228 + $0x38] sm:$0xf]
          %v3244 = vld [vmem:[%s3228 + $0x3c] sm:$0xf]
          %v3245 = vld [vmem:[%s3228 + $0x40] sm:$0xf]
          %v3246 = vld [vmem:[%s3228 + $0x44] sm:$0xf]
          %v3247 = vld [vmem:[%s3228 + $0x48] sm:$0xf]
          %v3248 = vld [vmem:[%s3228 + $0x4c] sm:$0xf]
          %v3249 = vld [vmem:[%s3228 + $0x50] sm:$0xf]
          %v3250 = vld [vmem:[%s3228 + $0x54] sm:$0xf]
          %v3251 = vld [vmem:[%s3228 + $0x58] sm:$0xf]
          %v3252 = vld [vmem:[%s3228 + $0x5c] sm:$0xf]
          %v3253 = vld [vmem:[#allocation15] sm:$0xf]
          %v3255 = vlaneseq
          %v3256 = vshrl.u32 %v3255, 7
          %v3257 = vsub.s32 0, %v3256
          %v3258 = vrot.slane %v517, %v3257
          %v3284 = vunpack.c.l.b16 %v3229
          %v3285 = vunpack.c.l.b16 %v3230
          %v3286 = vunpack.c.l.b16 %v3231
          %v3287 = vunpack.c.l.b16 %v3232
          %v3288 = vunpack.c.l.b16 %v3233
          %v3289 = vunpack.c.l.b16 %v3234
          %v3290 = vunpack.c.l.b16 %v3235
          %v3291 = vunpack.c.l.b16 %v3236
          %v3292 = vunpack.c.l.b16 %v3237
          %v3293 = vunpack.c.l.b16 %v3238
          %v3294 = vunpack.c.l.b16 %v3239
          %v3295 = vunpack.c.l.b16 %v3240
          %v3296 = vunpack.c.l.b16 %v3241
          %v3297 = vunpack.c.l.b16 %v3242
          %v3298 = vunpack.c.l.b16 %v3243
          %v3299 = vunpack.c.l.b16 %v3244
          %v3300 = vunpack.c.l.b16 %v3245
          %v3301 = vunpack.c.l.b16 %v3246
          %v3302 = vunpack.c.l.b16 %v3247
          %v3303 = vunpack.c.l.b16 %v3248
          %v3304 = vunpack.c.l.b16 %v3249
          %v3305 = vunpack.c.l.b16 %v3250
          %v3306 = vunpack.c.l.b16 %v3251
          %v3307 = vunpack.c.l.b16 %v3252
          %v3308 = vpack.c.b16 %v3285, %v3284
          %v3309 = vpack.c.b16 %v3287, %v3286
          %v3310 = vpack.c.b16 %v3289, %v3288
          %v3311 = vpack.c.b16 %v3291, %v3290
          %v3312 = vpack.c.b16 %v3293, %v3292
          %v3313 = vpack.c.b16 %v3295, %v3294
          %v3314 = vpack.c.b16 %v3297, %v3296
          %v3315 = vpack.c.b16 %v3299, %v3298
          %v3316 = vpack.c.b16 %v3301, %v3300
          %v3317 = vpack.c.b16 %v3303, %v3302
          %v3318 = vpack.c.b16 %v3305, %v3304
          %v3319 = vpack.c.b16 %v3307, %v3306
          %v3321 = vsel %vm1618, %v3308, 0
          %v3324 = vsel %vm1618, %v3309, 0
          %v3327 = vsel %vm1618, %v3310, 0
          %v3330 = vsel %vm1618, %v3311, 0
          %v3333 = vsel %vm1618, %v3312, 0
          %v3336 = vsel %vm1618, %v3313, 0
          %v3339 = vsel %vm1618, %v3314, 0
          %v3342 = vsel %vm1618, %v3315, 0
          %v3345 = vsel %vm1618, %v3316, 0
          %v3348 = vsel %vm1618, %v3317, 0
          %v3351 = vsel %vm1618, %v3318, 0
          %v3354 = vsel %vm1618, %v3319, 0
          %vm3356 = vcmask 1043456
          %v3358 = vsel %vm3356, %v3253, 0
          %3360 = vmatprep.subr.bf16.mxu0 0
          %3361 = vmatpush1.bf16.msra.mxu0 %v3358
          %3362 = vmatprep.subr.bf16.mxu0 0
          %3363 = vmatpush1.bf16.msra.mxu0 0
          %3364 = vmatprep.subr.bf16.mxu0 0
          %3365 = vmatpush1.bf16.msra.mxu0 0
          %3366 = vmatprep.subr.bf16.mxu0 0
          %3367 = vmatpush1.bf16.msra.mxu0 0
          %3368 = vmatprep.subr.bf16.mxu0 0
          %3369 = vmatpush1.bf16.msra.mxu0 0
          %3370 = vmatprep.subr.bf16.mxu0 0
          %3371 = vmatpush1.bf16.msra.mxu0 0
          %3372 = vmatprep.subr.bf16.mxu0 0
          %3373 = vmatpush1.bf16.msra.mxu0 0
          %3374 = vmatprep.subr.bf16.mxu0 0
          %3375 = vmatpush1.bf16.msra.mxu0 0
          %3376 = vmatprep.subr.bf16.mxu0 0
          %3377 = vmatpush1.bf16.msra.mxu0 0
          %3378 = vmatprep.subr.bf16.mxu0 0
          %3379 = vmatpush1.bf16.msra.mxu0 0
          %3380 = vmatprep.subr.bf16.mxu0 0
          %3381 = vmatpush1.bf16.msra.mxu0 0
          %3382 = vmatprep.subr.bf16.mxu0 0
          %3383 = vmatpush1.bf16.msra.mxu0 0
          %3384 = vmatprep.subr.bf16.mxu0 0
          %3385 = vmatpush1.bf16.msra.mxu0 0
          %3386 = vmatprep.subr.bf16.mxu0 0
          %3387 = vmatpush1.bf16.msra.mxu0 0
          %3388 = vmatprep.subr.bf16.mxu0 0
          %3389 = vmatpush1.bf16.msra.mxu0 0
          %3390 = vmatprep.subr.bf16.mxu0 0
          %3391 = vmatpush1.bf16.msra.mxu0 0
          %3392 = vmatprep.mubr.bf16.mxu0 0
          %3393 = vmatmul.mubr.bf16.gmra.mrb[0].mxu0 %v3321
          %v3394 = vpop.f32.mrb[0].mxu0
          %v3395 = vadd.f32 %v3258, %v3394
          %v3396 = vpop.f32.mrb[0].mxu0
          %v3397 = vpop.f32.mrb[0].mxu0
          %v3398 = vadd.f32 %v3258, %v3397
          %v3399 = vpop.f32.mrb[0].mxu0
          %3400 = vmatprep.mubr.bf16.mxu0 0
          %3401 = vmatmul.mubr.bf16.gmra.mrb[0].mxu0 %v3324
          %v3402 = vpop.f32.mrb[0].mxu0
          %v3403 = vadd.f32 %v3258, %v3402
          %v3404 = vpop.f32.mrb[0].mxu0
          %v3405 = vpop.f32.mrb[0].mxu0
          %v3406 = vadd.f32 %v3258, %v3405
          %v3407 = vpop.f32.mrb[0].mxu0
          %3408 = vmatprep.mubr.bf16.mxu0 0
          %3409 = vmatmul.mubr.bf16.gmra.mrb[0].mxu0 %v3327
          %v3410 = vpop.f32.mrb[0].mxu0
          %v3411 = vadd.f32 %v3258, %v3410
          %v3412 = vpop.f32.mrb[0].mxu0
          %v3413 = vpop.f32.mrb[0].mxu0
          %v3414 = vadd.f32 %v3258, %v3413
          %v3415 = vpop.f32.mrb[0].mxu0
          %3416 = vmatprep.mubr.bf16.mxu0 0
          %3417 = vmatmul.mubr.bf16.gmra.mrb[0].mxu0 %v3330
          %v3418 = vpop.f32.mrb[0].mxu0
          %v3419 = vadd.f32 %v3258, %v3418
          %v3420 = vpop.f32.mrb[0].mxu0
          %v3421 = vpop.f32.mrb[0].mxu0
          %v3422 = vadd.f32 %v3258, %v3421
          %v3423 = vpop.f32.mrb[0].mxu0
          %3424 = vmatprep.mubr.bf16.mxu0 0
          %3425 = vmatmul.mubr.bf16.gmra.mrb[0].mxu0 %v3333
          %v3426 = vpop.f32.mrb[0].mxu0
          %v3427 = vadd.f32 %v3258, %v3426
          %v3428 = vpop.f32.mrb[0].mxu0
          %v3429 = vpop.f32.mrb[0].mxu0
          %v3430 = vadd.f32 %v3258, %v3429
          %v3431 = vpop.f32.mrb[0].mxu0
          %3432 = vmatprep.mubr.bf16.mxu0 0
          %3433 = vmatmul.mubr.bf16.gmra.mrb[0].mxu0 %v3336
          %v3434 = vpop.f32.mrb[0].mxu0
          %v3435 = vadd.f32 %v3258, %v3434
          %v3436 = vpop.f32.mrb[0].mxu0
          %v3437 = vpop.f32.mrb[0].mxu0
          %v3438 = vadd.f32 %v3258, %v3437
          %v3439 = vpop.f32.mrb[0].mxu0
          %3440 = vmatprep.mubr.bf16.mxu0 0
          %3441 = vmatmul.mubr.bf16.gmra.mrb[0].mxu0 %v3339
          %v3442 = vpop.f32.mrb[0].mxu0
          %v3443 = vadd.f32 %v3258, %v3442
          %v3444 = vpop.f32.mrb[0].mxu0
          %v3445 = vpop.f32.mrb[0].mxu0
          %v3446 = vadd.f32 %v3258, %v3445
          %v3447 = vpop.f32.mrb[0].mxu0
          %3448 = vmatprep.mubr.bf16.mxu0 0
          %3449 = vmatmul.mubr.bf16.gmra.mrb[0].mxu0 %v3342
          %v3450 = vpop.f32.mrb[0].mxu0
          %v3451 = vadd.f32 %v3258, %v3450
          %v3452 = vpop.f32.mrb[0].mxu0
          %v3453 = vpop.f32.mrb[0].mxu0
          %v3454 = vadd.f32 %v3258, %v3453
          %v3455 = vpop.f32.mrb[0].mxu0
          %3456 = vmatprep.mubr.bf16.mxu0 0
          %3457 = vmatmul.mubr.bf16.gmra.mrb[0].mxu0 %v3345
          %v3458 = vpop.f32.mrb[0].mxu0
          %v3459 = vadd.f32 %v3258, %v3458
          %v3460 = vpop.f32.mrb[0].mxu0
          %v3461 = vpop.f32.mrb[0].mxu0
          %v3462 = vadd.f32 %v3258, %v3461
          %v3463 = vpop.f32.mrb[0].mxu0
          %3464 = vmatprep.mubr.bf16.mxu0 0
          %3465 = vmatmul.mubr.bf16.gmra.mrb[0].mxu0 %v3348
          %v3466 = vpop.f32.mrb[0].mxu0
          %v3467 = vadd.f32 %v3258, %v3466
          %v3468 = vpop.f32.mrb[0].mxu0
          %v3469 = vpop.f32.mrb[0].mxu0
          %v3470 = vadd.f32 %v3258, %v3469
          %v3471 = vpop.f32.mrb[0].mxu0
          %3472 = vmatprep.mubr.bf16.mxu0 0
          %3473 = vmatmul.mubr.bf16.gmra.mrb[0].mxu0 %v3351
          %v3474 = vpop.f32.mrb[0].mxu0
          %v3475 = vadd.f32 %v3258, %v3474
          %v3476 = vpop.f32.mrb[0].mxu0
          %v3477 = vpop.f32.mrb[0].mxu0
          %v3478 = vadd.f32 %v3258, %v3477
          %v3479 = vpop.f32.mrb[0].mxu0
          %3480 = vmatprep.mubr.bf16.mxu0 0
          %3481 = vmatmul.mubr.bf16.gmra.mrb[0].mxu0 %v3354
          %v3482 = vpop.f32.mrb[0].mxu0
          %v3483 = vadd.f32 %v3258, %v3482
          %v3484 = vpop.f32.mrb[0].mxu0
          %v3485 = vpop.f32.mrb[0].mxu0
          %v3486 = vadd.f32 %v3258, %v3485
          %v3487 = vpop.f32.mrb[0].mxu0
          %3488 = vdwg.mxu0
          %v3489 = vadd.f32 %v3132, %v3395
          %v3490 = vadd.f32 %v3135, %v3398
          %v3491 = vadd.f32 %v3140, %v3403
          %v3492 = vadd.f32 %v3143, %v3406
          %v3493 = vadd.f32 %v3148, %v3411
          %v3494 = vadd.f32 %v3151, %v3414
          %v3495 = vadd.f32 %v3156, %v3419
          %v3496 = vadd.f32 %v3159, %v3422
          %v3497 = vadd.f32 %v3164, %v3427
          %v3498 = vadd.f32 %v3167, %v3430
          %v3499 = vadd.f32 %v3172, %v3435
          %v3500 = vadd.f32 %v3175, %v3438
          %v3501 = vadd.f32 %v3180, %v3443
          %v3502 = vadd.f32 %v3183, %v3446
          %v3503 = vadd.f32 %v3188, %v3451
          %v3504 = vadd.f32 %v3191, %v3454
          %v3505 = vadd.f32 %v3196, %v3459
          %v3506 = vadd.f32 %v3199, %v3462
          %v3507 = vadd.f32 %v3204, %v3467
          %v3508 = vadd.f32 %v3207, %v3470
          %v3509 = vadd.f32 %v3212, %v3475
          %v3510 = vadd.f32 %v3215, %v3478
          %v3511 = vadd.f32 %v3220, %v3483
          %v3512 = vadd.f32 %v3223, %v3486
          %v3513 = vmax.f32 %v3489, 0.0
          %v3514 = vmax.f32 %v3490, 0.0
          %v3515 = vmax.f32 %v3491, 0.0
          %v3516 = vmax.f32 %v3492, 0.0
          %v3517 = vmax.f32 %v3493, 0.0
          %v3518 = vmax.f32 %v3494, 0.0
          %v3519 = vmax.f32 %v3495, 0.0
          %v3520 = vmax.f32 %v3496, 0.0
          %v3521 = vmax.f32 %v3497, 0.0
          %v3522 = vmax.f32 %v3498, 0.0
          %v3523 = vmax.f32 %v3499, 0.0
          %v3524 = vmax.f32 %v3500, 0.0
          %v3525 = vmax.f32 %v3501, 0.0
          %v3526 = vmax.f32 %v3502, 0.0
          %v3527 = vmax.f32 %v3503, 0.0
          %v3528 = vmax.f32 %v3504, 0.0
          %v3529 = vmax.f32 %v3505, 0.0
          %v3530 = vmax.f32 %v3506, 0.0
          %v3531 = vmax.f32 %v3507, 0.0
          %v3532 = vmax.f32 %v3508, 0.0
          %v3533 = vmax.f32 %v3509, 0.0
          %v3534 = vmax.f32 %v3510, 0.0
          %v3535 = vmax.f32 %v3511, 0.0
          %v3536 = vmax.f32 %v3512, 0.0
          %v3537 = vpack.c.bf16 %v3514, %v3513
          %v3538 = vpack.c.bf16 %v3516, %v3515
          %v3539 = vpack.c.bf16 %v3518, %v3517
          %v3540 = vpack.c.bf16 %v3520, %v3519
          %v3541 = vpack.c.bf16 %v3522, %v3521
          %v3542 = vpack.c.bf16 %v3524, %v3523
          %v3543 = vpack.c.bf16 %v3526, %v3525
          %v3544 = vpack.c.bf16 %v3528, %v3527
          %v3545 = vpack.c.bf16 %v3530, %v3529
          %v3546 = vpack.c.bf16 %v3532, %v3531
          %v3547 = vpack.c.bf16 %v3534, %v3533
          %v3548 = vpack.c.bf16 %v3536, %v3535
          %v3561 = vunpack.c.l.b16 %v3537
          %v3562 = vunpack.c.h.b16 %v3537
          %v3563 = vunpack.c.l.b16 %v3538
          %v3564 = vunpack.c.h.b16 %v3538
          %v3565 = vunpack.c.l.b16 %v3539
          %v3566 = vunpack.c.h.b16 %v3539
          %v3567 = vunpack.c.l.b16 %v3540
          %v3568 = vunpack.c.h.b16 %v3540
          %v3569 = vunpack.c.l.b16 %v3541
          %v3570 = vunpack.c.h.b16 %v3541
          %v3571 = vunpack.c.l.b16 %v3542
          %v3572 = vunpack.c.h.b16 %v3542
          %v3573 = vunpack.c.l.b16 %v3543
          %v3574 = vunpack.c.h.b16 %v3543
          %v3575 = vunpack.c.l.b16 %v3544
          %v3576 = vunpack.c.h.b16 %v3544
          %v3577 = vunpack.c.l.b16 %v3545
          %v3578 = vunpack.c.h.b16 %v3545
          %v3579 = vunpack.c.l.b16 %v3546
          %v3580 = vunpack.c.h.b16 %v3546
          %v3581 = vunpack.c.l.b16 %v3547
          %v3582 = vunpack.c.h.b16 %v3547
          %v3583 = vunpack.c.l.b16 %v3548
          %v3584 = vunpack.c.h.b16 %v3548
          %v3585 = vpack.c.b16 %v3561, %v3561
          %v3586 = vpack.c.b16 %v3562, %v3562
          %v3587 = vpack.c.b16 %v3563, %v3563
          %v3588 = vpack.c.b16 %v3564, %v3564
          %v3589 = vpack.c.b16 %v3565, %v3565
          %v3590 = vpack.c.b16 %v3566, %v3566
          %v3591 = vpack.c.b16 %v3567, %v3567
          %v3592 = vpack.c.b16 %v3568, %v3568
          %v3593 = vpack.c.b16 %v3569, %v3569
          %v3594 = vpack.c.b16 %v3570, %v3570
          %v3595 = vpack.c.b16 %v3571, %v3571
          %v3596 = vpack.c.b16 %v3572, %v3572
          %v3597 = vpack.c.b16 %v3573, %v3573
          %v3598 = vpack.c.b16 %v3574, %v3574
          %v3599 = vpack.c.b16 %v3575, %v3575
          %v3600 = vpack.c.b16 %v3576, %v3576
          %v3601 = vpack.c.b16 %v3577, %v3577
          %v3602 = vpack.c.b16 %v3578, %v3578
          %v3603 = vpack.c.b16 %v3579, %v3579
          %v3604 = vpack.c.b16 %v3580, %v3580
          %v3605 = vpack.c.b16 %v3581, %v3581
          %v3606 = vpack.c.b16 %v3582, %v3582
          %v3607 = vpack.c.b16 %v3583, %v3583
          %v3608 = vpack.c.b16 %v3584, %v3584
          %s3633 = smul.addr %s3226, 4
          %s3634 = scalar_lea.vmem %s452, %s3633 [#allocation18]
          %vm3635 = vcmask 125952
          %3636 = vst.msk [vmem:[%s3634] sm:$0xf] %vm3635, %v3585
          %3637 = vst.msk [vmem:[%s3634 + $0x4] sm:$0xf] %vm3635, %v3586
          %3638 = vst.msk [vmem:[%s3634 + $0x8] sm:$0xf] %vm3635, %v3587
          %3639 = vst.msk [vmem:[%s3634 + $0xc] sm:$0xf] %vm3635, %v3588
          %3640 = vst.msk [vmem:[%s3634 + $0x10] sm:$0xf] %vm3635, %v3589
          %3641 = vst.msk [vmem:[%s3634 + $0x14] sm:$0xf] %vm3635, %v3590
          %3642 = vst.msk [vmem:[%s3634 + $0x18] sm:$0xf] %vm3635, %v3591
          %3643 = vst.msk [vmem:[%s3634 + $0x1c] sm:$0xf] %vm3635, %v3592
          %3644 = vst.msk [vmem:[%s3634 + $0x20] sm:$0xf] %vm3635, %v3593
          %3645 = vst.msk [vmem:[%s3634 + $0x24] sm:$0xf] %vm3635, %v3594
          %3646 = vst.msk [vmem:[%s3634 + $0x28] sm:$0xf] %vm3635, %v3595
          %3647 = vst.msk [vmem:[%s3634 + $0x2c] sm:$0xf] %vm3635, %v3596
          %3648 = vst.msk [vmem:[%s3634 + $0x30] sm:$0xf] %vm3635, %v3597
          %3649 = vst.msk [vmem:[%s3634 + $0x34] sm:$0xf] %vm3635, %v3598
          %3650 = vst.msk [vmem:[%s3634 + $0x38] sm:$0xf] %vm3635, %v3599
          %3651 = vst.msk [vmem:[%s3634 + $0x3c] sm:$0xf] %vm3635, %v3600
          %3652 = vst.msk [vmem:[%s3634 + $0x40] sm:$0xf] %vm3635, %v3601
          %3653 = vst.msk [vmem:[%s3634 + $0x44] sm:$0xf] %vm3635, %v3602
          %3654 = vst.msk [vmem:[%s3634 + $0x48] sm:$0xf] %vm3635, %v3603
          %3655 = vst.msk [vmem:[%s3634 + $0x4c] sm:$0xf] %vm3635, %v3604
          %3656 = vst.msk [vmem:[%s3634 + $0x50] sm:$0xf] %vm3635, %v3605
          %3657 = vst.msk [vmem:[%s3634 + $0x54] sm:$0xf] %vm3635, %v3606
          %3658 = vst.msk [vmem:[%s3634 + $0x58] sm:$0xf] %vm3635, %v3607
          %3659 = vst.msk [vmem:[%s3634 + $0x5c] sm:$0xf] %vm3635, %v3608
        $region104: #{_forward_impl.1} parent=55 // loop_footer
          %s1226 = sadd.s32 1, %s1222
        $region105: #{_forward_impl.1} parent=55 // loop_footer_branch
          %1221 = sbr.rel target = $region101
        $region106: #{_forward_impl.1} parent=55 // loop_exit
          _
        %s3660 = sand.u32 %s232, 1
        %s3661 = scalar_lea.sflag [#allocation5], %s3660
        %s3662 = sand.u32 %s232, 1
        %s3663 = smul.addr %s3662, 192
        %s3664 = scalar_lea.vmem [#allocation18], %s3663
        // Predicated region
        $region107: #{_forward_impl.1} parent=55 // pred_check
          %p3665 = pneg %p242
        $region108: #{_forward_impl.1} parent=55 // pred_check_branch
          %3667 = sbr.rel (%p3665) target = $region110
        $region109: #{_forward_impl.1} parent=55 // pred_region
          %s3669 = ssub.s32 3072, 3072
          %3670 = vsyncadd %s3661, %s3669
          %s3671 = smul.addr %s30, 48
          %s3672 = smul.addr %s3671, 64
          %s3673 = scalar_lea.hbm %s9, %s3672
          %s3674 = sshll.u32 %s3664, 4
          %s3675 = int_to_ptr.vmem [resolvable:$true] %s3674
          %3680 = dma.vmem_to_hbm [thread:$0]  %s3675, 3072, %s3673, %s3661, 64, 64, 4
        $region110: #{_forward_impl.1} parent=55 // pred_fallthru
          _
      $region56: #{_forward_impl.1} parent=5 // pred_fallthru
        _
      %p3681 = scmp.le.s32.totalorder 2, %s25
      // Predicated region
      $region111: #{_forward_impl.1} parent=5 // pred_check
        %p3682 = pneg %p3681
      $region112: #{_forward_impl.1} parent=5 // pred_check_branch
        %3684 = sbr.rel (%p3682) target = $region114
      $region113: #{_forward_impl.1} parent=5 // pred_region
        %s3685 = ssub.s32 %s25, 2
        // Predicated region
        $region115: #{_forward_impl.1} parent=113 // pred_check
          %p3686 = pneg %p248
        $region116: #{_forward_impl.1} parent=113 // pred_check_branch
          %3688 = sbr.rel (%p3686) target = $region118
        $region117: #{_forward_impl.1} parent=113 // pred_region
          %s3689 = sand.u32 %s233, 1
          %s3690 = scalar_lea.sflag [#allocation5], %s3689
          %s3691 = sand.u32 %s233, 1
          %s3692 = smul.addr %s3691, 192
          %s3693 = scalar_lea.vmem [#allocation18], %s3692
          %3694 = dma.done %s3690, 3072
        $region118: #{_forward_impl.1} parent=113 // pred_fallthru
          _
      $region114: #{_forward_impl.1} parent=5 // pred_fallthru
        _
    $region6: #{_forward_impl.1} parent=1 // loop_footer
      %s29 = sadd.s32 1, %s25
    $region7: #{_forward_impl.1} parent=1 // loop_footer_branch
      %24 = sbr.rel target = $region3
    $region8: #{_forward_impl.1} parent=1 // loop_exit
      _
    %3695 = vsyncpa [#allocation4], 1
    %s3696 = scalar_lea.sflag [#allocation4], 1
    %3697 = vsyncpa %s3696, 1
    %3698 = vsyncpa [#allocation7], 1
    %3699 = vsyncpa [#allocation10], 1
    %3700 = vsyncpa [#allocation13], 1
    %3701 = vsyncpa [#allocation16], 1
    %3702 = vsyncpa [#allocation5], 1
    %s3703 = scalar_lea.sflag [#allocation5], 1
    %3704 = vsyncpa %s3703, 1

// kernel: _forward_impl.1
$region0: #{_forward_impl.1}
  #allocation0 [shape = 'u32[]', space=smem, size = 0x4, offset = 0x4, fixed_abs, tag = 'smem constant byte address 0x4 - core index']
  #allocation1 [shape = 'u32[144,128]{1,0:T(1,128)}', space=vmem, size = 0x12000, scoped, tag = 'internal scratch']
  #allocation2 [shape = 'bf16[26,24,4]{2,1,0:T(8,128)(2,1)}', space=vmem, size = 0x27000, scoped, tag = 'scratch operand']
  %s0 = inlined_call_operand.hbm [shape: bf16[2,24,16,8], index: 0, kind: input, shape index: {}]
  %s1 = inlined_call_operand.hbm [shape: bf16[8,4], index: 1, kind: input, shape index: {}]
  %s2 = inlined_call_operand.hbm [shape: f32[1,4], index: 2, kind: input, shape index: {}]
  %s3 = inlined_call_operand.hbm [shape: bf16[3,12,4], index: 3, kind: input, shape index: {}]
  %s4 = inlined_call_operand.hbm [shape: f32[1,4], index: 4, kind: input, shape index: {}]
  %s5 = inlined_call_operand.hbm [shape: bf16[4,16], index: 5, kind: input, shape index: {}]
  %s6 = inlined_call_operand.hbm [shape: f32[1,16], index: 6, kind: input, shape index: {}]
  %s7 = inlined_call_operand.hbm [shape: bf16[8,16], index: 7, kind: input, shape index: {}]
  %s8 = inlined_call_operand.hbm [shape: f32[1,16], index: 8, kind: input, shape index: {}]
  %s9 = inlined_call_operand.hbm [shape: bf16[2,24,16,16], index: 9, kind: output, shape index: {}]
  %s10 = sld [smem:[#allocation0]]
  $region119: #{_forward_impl.1} parent=0
    _
  %s12 = ssub.s32 1, %s10
  %s13 = scalar_select 0, %s12, %s10
  $region1: #{_forward_impl.1} parent=0
    #allocation3 [shape = 'u8[196608]{0}', space=vmem, size = 0x30000, scoped, tag = 'input window, operand 0']
    #allocation4 [shape = 's32[2]{0}', space=sflag, size = 0x8, scoped, tag = 'scoped memory for _forward_impl.1']
    #allocation5 [shape = 's32[2]{0}', space=sflag, size = 0x8, scoped, tag = 'scoped memory for _forward_impl.1']
    #allocation6 [shape = 'u8[2048]{0}', space=vmem, size = 0x800, scoped, tag = 'input window, operand 1, single buffered']
    #allocation7 [shape = 's32[1]{0}', space=sflag, size = 0x4, scoped, tag = 'scoped memory for _forward_impl.1']
    #allocation8 [shape = 'u8[512]{0}', space=vmem, size = 0x400, scoped, tag = 'input window, operand 2, single buffered']
    #allocation9 [shape = 'u8[12288]{0}', space=vmem, size = 0x3000, scoped, tag = 'input window, operand 3, single buffered']
    #allocation10 [shape = 's32[1]{0}', space=sflag, size = 0x4, scoped, tag = 'scoped memory for _forward_impl.1']
    #allocation11 [shape = 'u8[512]{0}', space=vmem, size = 0x400, scoped, tag = 'input window, operand 4, single buffered']
    #allocation12 [shape = 'u8[1024]{0}', space=vmem, size = 0x400, scoped, tag = 'input window, operand 5, single buffered']
    #allocation13 [shape = 's32[1]{0}', space=sflag, size = 0x4, scoped, tag = 'scoped memory for _forward_impl.1']
    #allocation14 [shape = 'u8[512]{0}', space=vmem, size = 0x400, scoped, tag = 'input window, operand 6, single buffered']
    #allocation15 [shape = 'u8[2048]{0}', space=vmem, size = 0x800, scoped, tag = 'input window, operand 7, single buffered']
    #allocation16 [shape = 's32[1]{0}', space=sflag, size = 0x4, scoped, tag = 'scoped memory for _forward_impl.1']
    #allocation17 [shape = 'u8[512]{0}', space=vmem, size = 0x400, scoped, tag = 'input window, operand 8, single buffered']
    #allocation18 [shape = 'u8[196608]{0}', space=vmem, size = 0x30000, scoped, tag = 'output window, operand 0']
    %14 = vsyncpa [#allocation4], 0
    %s15 = scalar_lea.sflag [#allocation4], 1
    %16 = vsyncpa %s15, 0
    %17 = vsyncpa [#allocation7], 0
    %18 = vsyncpa [#allocation10], 0
    %19 = vsyncpa [#allocation13], 0
    %20 = vsyncpa [#allocation16], 0
    %21 = vsyncpa [#allocation5], 0
    %s22 = scalar_lea.sflag [#allocation5], 1
    %23 = vsyncpa %s22, 0
    loop: start=0, step=1, limit=4
    $region2: #{_forward_impl.1} parent=1 // loop_pre_header
      _
    $region3: #{_forward_impl.1} parent=1 // loop_header
      %s25 = sphi 0, %s29
      %p26 = scmp.ge.s32.totalorder %s25, 4
      %s35 = sphi 0, %s37
      %s38 = sphi 0, %s35
      %s39 = sphi 0, %s38
      %s55 = sphi 0, %s39
      %s59 = sphi 0, %s59
      %s61 = sphi 0, %s59
      %s62 = sphi 0, %s61
      %s76 = sphi 0, %s62
      %s80 = sphi 0, %s80
      %s82 = sphi 0, %s80
      %s83 = sphi 0, %s82
      %s97 = sphi 0, %s83
      %s101 = sphi 0, %s101
      %s103 = sphi 0, %s101
      %s104 = sphi 0, %s103
      %s118 = sphi 0, %s104
      %s122 = sphi 0, %s122
      %s124 = sphi 0, %s122
      %s125 = sphi 0, %s124
      %s139 = sphi 0, %s125
      %s143 = sphi 0, %s143
      %s145 = sphi 0, %s143
      %s146 = sphi 0, %s145
      %s160 = sphi 0, %s146
      %s164 = sphi 0, %s164
      %s166 = sphi 0, %s164
      %s167 = sphi 0, %s166
      %s181 = sphi 0, %s167
      %s185 = sphi 0, %s185
      %s187 = sphi 0, %s185
      %s188 = sphi 0, %s187
      %s202 = sphi 0, %s188
      %s206 = sphi 0, %s206
      %s208 = sphi 0, %s206
      %s209 = sphi 0, %s208
      %s223 = sphi 0, %s209
      %s229 = sphi 0, %s231
      %s232 = sphi 0, %s229
      %s233 = sphi 0, %s232
      %s249 = sphi 0, %s233
    $region4: #{_forward_impl.1} parent=1 // loop_header_branch
      %28 = sbr.rel (%p26) target = $region8
    $region5: #{_forward_impl.1} parent=1 // loop_body
      %s30 = ssub.s32 %s25, 1
      %s31 = ssub.s32 %s25, 2
      %s32 = sadd.s32 %s25, 1
      %s33 = ssub.s32 %s25, %s32
      %p34 = scmp.eq.s32.totalorder %s33, 0
      %s36 = sadd.s32 %s35, 1
      %s37 = scalar_select %p34, %s35, %s36
      %p40 = pneg %p34
      %p41 = scmp.eq.s32.totalorder %s25, 1
      %p42 = por %p40, %p41
      %p43 = scmp.ne.s32.totalorder %s35, %s38
      %p44 = scmp.eq.s32.totalorder %s25, 0
      %p45 = por %p43, %p44
      %p46 = scmp.ne.s32.totalorder %s35, %s38
      %p47 = scmp.eq.s32.totalorder %s30, 1
      %p48 = por %p46, %p47
      %p49 = scmp.ne.s32.totalorder %s38, %s39
      %p50 = scmp.eq.s32.totalorder %s30, 0
      %p51 = por %p49, %p50
      %p52 = scmp.ne.s32.totalorder %s38, %s39
      %p53 = scmp.eq.s32.totalorder %s31, 1
      %p54 = por %p52, %p53
      %p56 = scmp.ne.s32.totalorder %s39, %s55
      %p57 = scmp.eq.s32.totalorder %s31, 0
      %p58 = por %p56, %p57
      %s60 = sadd.s32 %s59, 1
      %p63 = scmp.eq.s32.totalorder %s25, 1
      %p64 = scmp.ne.s32.totalorder %s59, %s61
      %p65 = scmp.eq.s32.totalorder %s25, 0
      %p66 = por %p64, %p65
      %p67 = scmp.ne.s32.totalorder %s59, %s61
      %p68 = scmp.eq.s32.totalorder %s30, 1
      %p69 = por %p67, %p68
      %p70 = scmp.ne.s32.totalorder %s61, %s62
      %p71 = scmp.eq.s32.totalorder %s30, 0
      %p72 = por %p70, %p71
      %p73 = scmp.ne.s32.totalorder %s61, %s62
      %p74 = scmp.eq.s32.totalorder %s31, 1
      %p75 = por %p73, %p74
      %p77 = scmp.ne.s32.totalorder %s62, %s76
      %p78 = scmp.eq.s32.totalorder %s31, 0
      %p79 = por %p77, %p78
      %s81 = sadd.s32 %s80, 1
      %p84 = scmp.eq.s32.totalorder %s25, 1
      %p85 = scmp.ne.s32.totalorder %s80, %s82
      %p86 = scmp.eq.s32.totalorder %s25, 0
      %p87 = por %p85, %p86
      %p88 = scmp.ne.s32.totalorder %s80, %s82
      %p89 = scmp.eq.s32.totalorder %s30, 1
      %p90 = por %p88, %p89
      %p91 = scmp.ne.s32.totalorder %s82, %s83
      %p92 = scmp.eq.s32.totalorder %s30, 0
      %p93 = por %p91, %p92
      %p94 = scmp.ne.s32.totalorder %s82, %s83
      %p95 = scmp.eq.s32.totalorder %s31, 1
      %p96 = por %p94, %p95
      %p98 = scmp.ne.s32.totalorder %s83, %s97
      %p99 = scmp.eq.s32.totalorder %s31, 0
      %p100 = por %p98, %p99
      %s102 = sadd.s32 %s101, 1
      %p105 = scmp.eq.s32.totalorder %s25, 1
      %p106 = scmp.ne.s32.totalorder %s101, %s103
      %p107 = scmp.eq.s32.totalorder %s25, 0
      %p108 = por %p106, %p107
      %p109 = scmp.ne.s32.totalorder %s101, %s103
      %p110 = scmp.eq.s32.totalorder %s30, 1
      %p111 = por %p109, %p110
      %p112 = scmp.ne.s32.totalorder %s103, %s104
      %p113 = scmp.eq.s32.totalorder %s30, 0
      %p114 = por %p112, %p113
      %p115 = scmp.ne.s32.totalorder %s103, %s104
      %p116 = scmp.eq.s32.totalorder %s31, 1
      %p117 = por %p115, %p116
      %p119 = scmp.ne.s32.totalorder %s104, %s118
      %p120 = scmp.eq.s32.totalorder %s31, 0
      %p121 = por %p119, %p120
      %s123 = sadd.s32 %s122, 1
      %p126 = scmp.eq.s32.totalorder %s25, 1
      %p127 = scmp.ne.s32.totalorder %s122, %s124
      %p128 = scmp.eq.s32.totalorder %s25, 0
      %p129 = por %p127, %p128
      %p130 = scmp.ne.s32.totalorder %s122, %s124
      %p131 = scmp.eq.s32.totalorder %s30, 1
      %p132 = por %p130, %p131
      %p133 = scmp.ne.s32.totalorder %s124, %s125
      %p134 = scmp.eq.s32.totalorder %s30, 0
      %p135 = por %p133, %p134
      %p136 = scmp.ne.s32.totalorder %s124, %s125
      %p137 = scmp.eq.s32.totalorder %s31, 1
      %p138 = por %p136, %p137
      %p140 = scmp.ne.s32.totalorder %s125, %s139
      %p141 = scmp.eq.s32.totalorder %s31, 0
      %p142 = por %p140, %p141
      %s144 = sadd.s32 %s143, 1
      %p147 = scmp.eq.s32.totalorder %s25, 1
      %p148 = scmp.ne.s32.totalorder %s143, %s145
      %p149 = scmp.eq.s32.totalorder %s25, 0
      %p150 = por %p148, %p149
      %p151 = scmp.ne.s32.totalorder %s143, %s145
      %p152 = scmp.eq.s32.totalorder %s30, 1
      %p153 = por %p151, %p152
      %p154 = scmp.ne.s32.totalorder %s145, %s146
      %p155 = scmp.eq.s32.totalorder %s30, 0
      %p156 = por %p154, %p155
      %p157 = scmp.ne.s32.totalorder %s145, %s146
      %p158 = scmp.eq.s32.totalorder %s31, 1
      %p159 = por %p157, %p158
      %p161 = scmp.ne.s32.totalorder %s146, %s160
      %p162 = scmp.eq.s32.totalorder %s31, 0
      %p163 = por %p161, %p162
      %s165 = sadd.s32 %s164, 1
      %p168 = scmp.eq.s32.totalorder %s25, 1
      %p169 = scmp.ne.s32.totalorder %s164, %s166
      %p170 = scmp.eq.s32.totalorder %s25, 0
      %p171 = por %p169, %p170
      %p172 = scmp.ne.s32.totalorder %s164, %s166
      %p173 = scmp.eq.s32.totalorder %s30, 1
      %p174 = por %p172, %p173
      %p175 = scmp.ne.s32.totalorder %s166, %s167
      %p176 = scmp.eq.s32.totalorder %s30, 0
      %p177 = por %p175, %p176
      %p178 = scmp.ne.s32.totalorder %s166, %s167
      %p179 = scmp.eq.s32.totalorder %s31, 1
      %p180 = por %p178, %p179
      %p182 = scmp.ne.s32.totalorder %s167, %s181
      %p183 = scmp.eq.s32.totalorder %s31, 0
      %p184 = por %p182, %p183
      %s186 = sadd.s32 %s185, 1
      %p189 = scmp.eq.s32.totalorder %s25, 1
      %p190 = scmp.ne.s32.totalorder %s185, %s187
      %p191 = scmp.eq.s32.totalorder %s25, 0
      %p192 = por %p190, %p191
      %p193 = scmp.ne.s32.totalorder %s185, %s187
      %p194 = scmp.eq.s32.totalorder %s30, 1
      %p195 = por %p193, %p194
      %p196 = scmp.ne.s32.totalorder %s187, %s188
      %p197 = scmp.eq.s32.totalorder %s30, 0
      %p198 = por %p196, %p197
      %p199 = scmp.ne.s32.totalorder %s187, %s188
      %p200 = scmp.eq.s32.totalorder %s31, 1
      %p201 = por %p199, %p200
      %p203 = scmp.ne.s32.totalorder %s188, %s202
      %p204 = scmp.eq.s32.totalorder %s31, 0
      %p205 = por %p203, %p204
      %s207 = sadd.s32 %s206, 1
      %p210 = scmp.eq.s32.totalorder %s25, 1
      %p211 = scmp.ne.s32.totalorder %s206, %s208
      %p212 = scmp.eq.s32.totalorder %s25, 0
      %p213 = por %p211, %p212
      %p214 = scmp.ne.s32.totalorder %s206, %s208
      %p215 = scmp.eq.s32.totalorder %s30, 1
      %p216 = por %p214, %p215
      %p217 = scmp.ne.s32.totalorder %s208, %s209
      %p218 = scmp.eq.s32.totalorder %s30, 0
      %p219 = por %p217, %p218
      %p220 = scmp.ne.s32.totalorder %s208, %s209
      %p221 = scmp.eq.s32.totalorder %s31, 1
      %p222 = por %p220, %p221
      %p224 = scmp.ne.s32.totalorder %s209, %s223
      %p225 = scmp.eq.s32.totalorder %s31, 0
      %p226 = por %p224, %p225
      %s227 = ssub.s32 %s25, %s32
      %p228 = scmp.eq.s32.totalorder %s227, 0
      %s230 = sadd.s32 %s229, 1
      %s231 = scalar_select %p228, %s229, %s230
      %p234 = pneg %p228
      %p235 = scmp.eq.s32.totalorder %s25, 1
      %p236 = por %p234, %p235
      %p237 = scmp.ne.s32.totalorder %s229, %s232
      %p238 = scmp.eq.s32.totalorder %s25, 0
      %p239 = por %p237, %p238
      %p240 = scmp.ne.s32.totalorder %s229, %s232
      %p241 = scmp.eq.s32.totalorder %s30, 1
      %p242 = por %p240, %p241
      %p243 = scmp.ne.s32.totalorder %s232, %s233
      %p244 = scmp.eq.s32.totalorder %s30, 0
      %p245 = por %p243, %p244
      %p246 = scmp.ne.s32.totalorder %s232, %s233
      %p247 = scmp.eq.s32.totalorder %s31, 1
      %p248 = por %p246, %p247
      %p250 = scmp.ne.s32.totalorder %s233, %s249
      %p251 = scmp.eq.s32.totalorder %s31, 0
      %p252 = por %p250, %p251
      %p253 = scmp.le.s32.totalorder 1, %s25
      %p254 = scmp.lt.s32.totalorder %s25, 3
      %p255 = pnand %p253, %p254
      %p256 = pneg %p255
      // Predicated region
      $region9: #{_forward_impl.1} parent=5 // pred_check
        _
      $region10: #{_forward_impl.1} parent=5 // pred_check_branch
        %258 = sbr.rel (%p255) target = $region12
      $region11: #{_forward_impl.1} parent=5 // pred_region
        %s259 = ssub.s32 %s25, 1
        // Predicated region
        $region13: #{_forward_impl.1} parent=11 // pred_check
          %p260 = pneg %p72
        $region14: #{_forward_impl.1} parent=11 // pred_check_branch
          %262 = sbr.rel (%p260) target = $region16
        $region15: #{_forward_impl.1} parent=11 // pred_region
          %s264 = ssub.s32 64, 64
          %265 = vsyncadd [#allocation7], %s264
          %s267 = sshll.u32 [#allocation6], 4
          %s268 = int_to_ptr.vmem [resolvable:$true] %s267
          %270 = dma.hbm_to_vmem [thread:$0]  %s1, 64, %s268, [#allocation7]
        $region16: #{_forward_impl.1} parent=11 // pred_fallthru
          _
        // Predicated region
        $region17: #{_forward_impl.1} parent=11 // pred_check
          %p271 = pneg %p93
        $region18: #{_forward_impl.1} parent=11 // pred_check_branch
          %273 = sbr.rel (%p271) target = $region20
        $region19: #{_forward_impl.1} parent=11 // pred_region
          %s275 = ssub.s32 16, 16
          %276 = vsyncadd [#allocation7], %s275
          %s278 = sshll.u32 [#allocation8], 4
          %s279 = int_to_ptr.vmem [resolvable:$true] %s278
          %281 = dma.hbm_to_vmem [thread:$0]  %s2, 16, %s279, [#allocation7]
        $region20: #{_forward_impl.1} parent=11 // pred_fallthru
          _
        // Predicated region
        $region21: #{_forward_impl.1} parent=11 // pred_check
          %p282 = pneg %p114
        $region22: #{_forward_impl.1} parent=11 // pred_check_branch
          %284 = sbr.rel (%p282) target = $region24
        $region23: #{_forward_impl.1} parent=11 // pred_region
          %s286 = ssub.s32 384, 384
          %287 = vsyncadd [#allocation10], %s286
          %s288 = sshll.u32 [#allocation9], 4
          %s289 = int_to_ptr.vmem [resolvable:$true] %s288
          %294 = dma.hbm_to_vmem [thread:$0]  %s3, 384, %s289, [#allocation10], 64, 64, 4
        $region24: #{_forward_impl.1} parent=11 // pred_fallthru
          _
        // Predicated region
        $region25: #{_forward_impl.1} parent=11 // pred_check
          %p295 = pneg %p135
        $region26: #{_forward_impl.1} parent=11 // pred_check_branch
          %297 = sbr.rel (%p295) target = $region28
        $region27: #{_forward_impl.1} parent=11 // pred_region
          %s299 = ssub.s32 16, 16
          %300 = vsyncadd [#allocation10], %s299
          %s302 = sshll.u32 [#allocation11], 4
          %s303 = int_to_ptr.vmem [resolvable:$true] %s302
          %305 = dma.hbm_to_vmem [thread:$0]  %s4, 16, %s303, [#allocation10]
        $region28: #{_forward_impl.1} parent=11 // pred_fallthru
          _
        // Predicated region
        $region29: #{_forward_impl.1} parent=11 // pred_check
          %p306 = pneg %p156
        $region30: #{_forward_impl.1} parent=11 // pred_check_branch
          %308 = sbr.rel (%p306) target = $region32
        $region31: #{_forward_impl.1} parent=11 // pred_region
          %s310 = ssub.s32 32, 32
          %311 = vsyncadd [#allocation13], %s310
          %s313 = sshll.u32 [#allocation12], 4
          %s314 = int_to_ptr.vmem [resolvable:$true] %s313
          %316 = dma.hbm_to_vmem [thread:$0]  %s5, 32, %s314, [#allocation13]
        $region32: #{_forward_impl.1} parent=11 // pred_fallthru
          _
        // Predicated region
        $region33: #{_forward_impl.1} parent=11 // pred_check
          %p317 = pneg %p177
        $region34: #{_forward_impl.1} parent=11 // pred_check_branch
          %319 = sbr.rel (%p317) target = $region36
        $region35: #{_forward_impl.1} parent=11 // pred_region
          %s321 = ssub.s32 16, 16
          %322 = vsyncadd [#allocation13], %s321
          %s324 = sshll.u32 [#allocation14], 4
          %s325 = int_to_ptr.vmem [resolvable:$true] %s324
          %327 = dma.hbm_to_vmem [thread:$0]  %s6, 16, %s325, [#allocation13]
        $region36: #{_forward_impl.1} parent=11 // pred_fallthru
          _
        // Predicated region
        $region37: #{_forward_impl.1} parent=11 // pred_check
          %p328 = pneg %p198
        $region38: #{_forward_impl.1} parent=11 // pred_check_branch
          %330 = sbr.rel (%p328) target = $region40
        $region39: #{_forward_impl.1} parent=11 // pred_region
          %s332 = ssub.s32 64, 64
          %333 = vsyncadd [#allocation16], %s332
          %s335 = sshll.u32 [#allocation15], 4
          %s336 = int_to_ptr.vmem [resolvable:$true] %s335
          %338 = dma.hbm_to_vmem [thread:$0]  %s7, 64, %s336, [#allocation16]
        $region40: #{_forward_impl.1} parent=11 // pred_fallthru
          _
        // Predicated region
        $region41: #{_forward_impl.1} parent=11 // pred_check
          %p339 = pneg %p219
        $region42: #{_forward_impl.1} parent=11 // pred_check_branch
          %341 = sbr.rel (%p339) target = $region44
        $region43: #{_forward_impl.1} parent=11 // pred_region
          %s343 = ssub.s32 16, 16
          %344 = vsyncadd [#allocation16], %s343
          %s346 = sshll.u32 [#allocation17], 4
          %s347 = int_to_ptr.vmem [resolvable:$true] %s346
          %349 = dma.hbm_to_vmem [thread:$0]  %s8, 16, %s347, [#allocation16]
        $region44: #{_forward_impl.1} parent=11 // pred_fallthru
          _
      $region12: #{_forward_impl.1} parent=5 // pred_fallthru
        _
      %p350 = scmp.lt.s32.totalorder %s25, 2
      // Predicated region
      $region45: #{_forward_impl.1} parent=5 // pred_check
        %p351 = pneg %p350
      $region46: #{_forward_impl.1} parent=5 // pred_check_branch
        %353 = sbr.rel (%p351) target = $region48
      $region47: #{_forward_impl.1} parent=5 // pred_region
        // Predicated region
        $region49: #{_forward_impl.1} parent=47 // pred_check
          %p354 = pneg %p45
        $region50: #{_forward_impl.1} parent=47 // pred_check_branch
          %356 = sbr.rel (%p354) target = $region52
        $region51: #{_forward_impl.1} parent=47 // pred_region
          %s357 = sand.u32 %s35, 1
          %s358 = scalar_lea.sflag [#allocation4], %s357
          %s359 = sand.u32 %s35, 1
          %s360 = smul.addr %s359, 192
          %s361 = scalar_lea.vmem [#allocation3], %s360
          %s363 = ssub.s32 3072, 3072
          %364 = vsyncadd %s358, %s363
          %s365 = smul.addr %s25, 48
          %s366 = smul.addr %s365, 64
          %s367 = scalar_lea.hbm %s0, %s366
          %s368 = sshll.u32 %s361, 4
          %s369 = int_to_ptr.vmem [resolvable:$true] %s368
          %374 = dma.hbm_to_vmem [thread:$0]  %s367, 3072, %s369, %s358, 64, 64, 4
        $region52: #{_forward_impl.1} parent=47 // pred_fallthru
          _
      $region48: #{_forward_impl.1} parent=5 // pred_fallthru
        _
      %p375 = scmp.le.s32.totalorder 1, %s25
      %p376 = scmp.lt.s32.totalorder %s25, 3
      %p377 = pnand %p375, %p376
      %p378 = pneg %p377
      // Predicated region
      $region53: #{_forward_impl.1} parent=5 // pred_check
        _
      $region54: #{_forward_impl.1} parent=5 // pred_check_branch
        %380 = sbr.rel (%p377) target = $region56
      $region55: #{_forward_impl.1} parent=5 // pred_region
        %s381 = ssub.s32 %s25, 1
        %s382 = sand.u32 %s38, 1
        %s383 = scalar_lea.sflag [#allocation4], %s382
        %s384 = sand.u32 %s38, 1
        %s385 = smul.addr %s384, 192
        %s386 = scalar_lea.vmem [#allocation3], %s385
        // Predicated region
        $region57: #{_forward_impl.1} parent=55 // pred_check
          %p387 = pneg %p51
        $region58: #{_forward_impl.1} parent=55 // pred_check_branch
          %389 = sbr.rel (%p387) target = $region60
        $region59: #{_forward_impl.1} parent=55 // pred_region
          %390 = dma.done %s383, 3072
        $region60: #{_forward_impl.1} parent=55 // pred_fallthru
          _
        // Predicated region
        $region61: #{_forward_impl.1} parent=55 // pred_check
          %p391 = pneg %p72
        $region62: #{_forward_impl.1} parent=55 // pred_check_branch
          %393 = sbr.rel (%p391) target = $region64
        $region63: #{_forward_impl.1} parent=55 // pred_region
          %394 = dma.done [#allocation7], 64
        $region64: #{_forward_impl.1} parent=55 // pred_fallthru
          _
        // Predicated region
        $region65: #{_forward_impl.1} parent=55 // pred_check
          %p395 = pneg %p93
        $region66: #{_forward_impl.1} parent=55 // pred_check_branch
          %397 = sbr.rel (%p395) target = $region68
        $region67: #{_forward_impl.1} parent=55 // pred_region
          %398 = dma.done [#allocation7], 16
        $region68: #{_forward_impl.1} parent=55 // pred_fallthru
          _
        // Predicated region
        $region69: #{_forward_impl.1} parent=55 // pred_check
          %p399 = pneg %p114
        $region70: #{_forward_impl.1} parent=55 // pred_check_branch
          %401 = sbr.rel (%p399) target = $region72
        $region71: #{_forward_impl.1} parent=55 // pred_region
          %402 = dma.done [#allocation10], 384
        $region72: #{_forward_impl.1} parent=55 // pred_fallthru
          _
        // Predicated region
        $region73: #{_forward_impl.1} parent=55 // pred_check
          %p403 = pneg %p135
        $region74: #{_forward_impl.1} parent=55 // pred_check_branch
          %405 = sbr.rel (%p403) target = $region76
        $region75: #{_forward_impl.1} parent=55 // pred_region
          %406 = dma.done [#allocation10], 16
        $region76: #{_forward_impl.1} parent=55 // pred_fallthru
          _
        // Predicated region
        $region77: #{_forward_impl.1} parent=55 // pred_check
          %p407 = pneg %p156
        $region78: #{_forward_impl.1} parent=55 // pred_check_branch
          %409 = sbr.rel (%p407) target = $region80
        $region79: #{_forward_impl.1} parent=55 // pred_region
          %410 = dma.done [#allocation13], 32
        $region80: #{_forward_impl.1} parent=55 // pred_fallthru
          _
        // Predicated region
        $region81: #{_forward_impl.1} parent=55 // pred_check
          %p411 = pneg %p177
        $region82: #{_forward_impl.1} parent=55 // pred_check_branch
          %413 = sbr.rel (%p411) target = $region84
        $region83: #{_forward_impl.1} parent=55 // pred_region
          %414 = dma.done [#allocation13], 16
        $region84: #{_forward_impl.1} parent=55 // pred_fallthru
          _
        // Predicated region
        $region85: #{_forward_impl.1} parent=55 // pred_check
          %p415 = pneg %p198
        $region86: #{_forward_impl.1} parent=55 // pred_check_branch
          %417 = sbr.rel (%p415) target = $region88
        $region87: #{_forward_impl.1} parent=55 // pred_region
          %418 = dma.done [#allocation16], 64
        $region88: #{_forward_impl.1} parent=55 // pred_fallthru
          _
        // Predicated region
        $region89: #{_forward_impl.1} parent=55 // pred_check
          %p419 = pneg %p219
        $region90: #{_forward_impl.1} parent=55 // pred_check_branch
          %421 = sbr.rel (%p419) target = $region92
        $region91: #{_forward_impl.1} parent=55 // pred_region
          %422 = dma.done [#allocation16], 16
        $region92: #{_forward_impl.1} parent=55 // pred_fallthru
          _
        %s423 = sand.u32 %s38, 1
        %s424 = scalar_lea.sflag [#allocation4], %s423
        %s425 = sand.u32 %s38, 1
        %s426 = smul.addr %s425, 192
        %s427 = scalar_lea.vmem [#allocation3], %s426
        %p428 = pneg %p51
        %p429 = pneg %p48
        %p430 = pneg %p72
        %p431 = pneg %p69
        %p432 = pneg %p93
        %p433 = pneg %p90
        %p434 = pneg %p114
        %p435 = pneg %p111
        %p436 = pneg %p135
        %p437 = pneg %p132
        %p438 = pneg %p156
        %p439 = pneg %p153
        %p440 = pneg %p177
        %p441 = pneg %p174
        %p442 = pneg %p198
        %p443 = pneg %p195
        %p444 = pneg %p219
        %p445 = pneg %p216
        %p446 = pneg %p245
        %p447 = pneg %p242
        %s448 = sand.u32 %s232, 1
        %s449 = scalar_lea.sflag [#allocation5], %s448
        %s450 = sand.u32 %s232, 1
        %s451 = smul.addr %s450, 192
        %s452 = scalar_lea.vmem [#allocation18], %s451
        %vm454 = vcmask 27648
        %455 = vst.msk [vmem:[#allocation2] sm:$0xf] %vm454, 0
        %456 = vst.msk [vmem:[#allocation2 + $0x4] sm:$0xf] %vm454, 0
        %457 = vst.msk [vmem:[#allocation2 + $0x8] sm:$0xf] %vm454, 0
        %s458 = scalar_lea.vmem [#allocation2], 300
        %459 = vst.msk [vmem:[%s458] sm:$0xf] %vm454, 0
        %460 = vst.msk [vmem:[%s458 + $0x4] sm:$0xf] %vm454, 0
        %461 = vst.msk [vmem:[%s458 + $0x8] sm:$0xf] %vm454, 0
        %462 = vst.msk [vmem:[#allocation2] sm:$0xf] %vm454, 0
        %463 = vst.msk [vmem:[#allocation2 + $0xc] sm:$0xf] %vm454, 0
        %464 = vst.msk [vmem:[#allocation2 + $0x18] sm:$0xf] %vm454, 0
        %465 = vst.msk [vmem:[#allocation2 + $0x24] sm:$0xf] %vm454, 0
        %466 = vst.msk [vmem:[#allocation2 + $0x30] sm:$0xf] %vm454, 0
        %467 = vst.msk [vmem:[#allocation2 + $0x3c] sm:$0xf] %vm454, 0
        %468 = vst.msk [vmem:[#allocation2 + $0x48] sm:$0xf] %vm454, 0
        %469 = vst.msk [vmem:[#allocation2 + $0x54] sm:$0xf] %vm454, 0
        %470 = vst.msk [vmem:[#allocation2 + $0x60] sm:$0xf] %vm454, 0
        %471 = vst.msk [vmem:[#allocation2 + $0x6c] sm:$0xf] %vm454, 0
        %472 = vst.msk [vmem:[#allocation2 + $0x78] sm:$0xf] %vm454, 0
        %473 = vst.msk [vmem:[#allocation2 + $0x84] sm:$0xf] %vm454, 0
        %474 = vst.msk [vmem:[#allocation2 + $0x90] sm:$0xf] %vm454, 0
        %475 = vst.msk [vmem:[#allocation2 + $0x9c] sm:$0xf] %vm454, 0
        %476 = vst.msk [vmem:[#allocation2 + $0xa8] sm:$0xf] %vm454, 0
        %477 = vst.msk [vmem:[#allocation2 + $0xb4] sm:$0xf] %vm454, 0
        %478 = vst.msk [vmem:[#allocation2 + $0xc0] sm:$0xf] %vm454, 0
        %479 = vst.msk [vmem:[#allocation2 + $0xcc] sm:$0xf] %vm454, 0
        %480 = vst.msk [vmem:[#allocation2 + $0xd8] sm:$0xf] %vm454, 0
        %481 = vst.msk [vmem:[#allocation2 + $0xe4] sm:$0xf] %vm454, 0
        %482 = vst.msk [vmem:[#allocation2 + $0xf0] sm:$0xf] %vm454, 0
        %483 = vst.msk [vmem:[#allocation2 + $0xfc] sm:$0xf] %vm454, 0
        %484 = vst.msk [vmem:[#allocation2 + $0x108] sm:$0xf] %vm454, 0
        %485 = vst.msk [vmem:[#allocation2 + $0x114] sm:$0xf] %vm454, 0
        %486 = vst.msk [vmem:[#allocation2 + $0x120] sm:$0xf] %vm454, 0
        %487 = vst.msk [vmem:[#allocation2 + $0x12c] sm:$0xf] %vm454, 0
        %488 = vst.msk [vmem:[#allocation2 + $0x8] sm:$0xf] %vm454, 0
        %489 = vst.msk [vmem:[#allocation2 + $0x14] sm:$0xf] %vm454, 0
        %490 = vst.msk [vmem:[#allocation2 + $0x20] sm:$0xf] %vm454, 0
        %491 = vst.msk [vmem:[#allocation2 + $0x2c] sm:$0xf] %vm454, 0
        %492 = vst.msk [vmem:[#allocation2 + $0x38] sm:$0xf] %vm454, 0
        %493 = vst.msk [vmem:[#allocation2 + $0x44] sm:$0xf] %vm454, 0
        %494 = vst.msk [vmem:[#allocation2 + $0x50] sm:$0xf] %vm454, 0
        %495 = vst.msk [vmem:[#allocation2 + $0x5c] sm:$0xf] %vm454, 0
        %496 = vst.msk [vmem:[#allocation2 + $0x68] sm:$0xf] %vm454, 0
        %497 = vst.msk [vmem:[#allocation2 + $0x74] sm:$0xf] %vm454, 0
        %498 = vst.msk [vmem:[#allocation2 + $0x80] sm:$0xf] %vm454, 0
        %499 = vst.msk [vmem:[#allocation2 + $0x8c] sm:$0xf] %vm454, 0
        %500 = vst.msk [vmem:[#allocation2 + $0x98] sm:$0xf] %vm454, 0
        %501 = vst.msk [vmem:[#allocation2 + $0xa4] sm:$0xf] %vm454, 0
        %502 = vst.msk [vmem:[#allocation2 + $0xb0] sm:$0xf] %vm454, 0
        %503 = vst.msk [vmem:[#allocation2 + $0xbc] sm:$0xf] %vm454, 0
        %504 = vst.msk [vmem:[#allocation2 + $0xc8] sm:$0xf] %vm454, 0
        %505 = vst.msk [vmem:[#allocation2 + $0xd4] sm:$0xf] %vm454, 0
        %506 = vst.msk [vmem:[#allocation2 + $0xe0] sm:$0xf] %vm454, 0
        %507 = vst.msk [vmem:[#allocation2 + $0xec] sm:$0xf] %vm454, 0
        %508 = vst.msk [vmem:[#allocation2 + $0xf8] sm:$0xf] %vm454, 0
        %509 = vst.msk [vmem:[#allocation2 + $0x104] sm:$0xf] %vm454, 0
        %510 = vst.msk [vmem:[#allocation2 + $0x110] sm:$0xf] %vm454, 0
        %511 = vst.msk [vmem:[#allocation2 + $0x11c] sm:$0xf] %vm454, 0
        %512 = vst.msk [vmem:[#allocation2 + $0x128] sm:$0xf] %vm454, 0
        %513 = vst.msk [vmem:[#allocation2 + $0x134] sm:$0xf] %vm454, 0
        %v514 = vld [vmem:[#allocation8] sm:$0x1]
        %v515 = vld [vmem:[#allocation11] sm:$0x1]
        %v516 = vld [vmem:[#allocation14] sm:$0x1]
        %v517 = vld [vmem:[#allocation17] sm:$0x1]
        loop: start=0, step=1, limit=2
        $region93: #{_forward_impl.1} parent=55 // loop_pre_header
          _
        $region94: #{_forward_impl.1} parent=55 // loop_header
          %s519 = sphi 0, %s523
          %p520 = scmp.ge.s32.totalorder %s519, 2
        $region95: #{_forward_impl.1} parent=55 // loop_header_branch
          %522 = sbr.rel (%p520) target = $region99
        $region96: #{_forward_impl.1} parent=55 // loop_body
          %s524 = smul.u32 %s519, 12
          %s525 = smul.u32 %s524, 2
          %s526 = smul.addr %s525, 4
          %s527 = scalar_lea.vmem %s386, %s526 [#allocation3]
          %v528 = vld [vmem:[%s527] sm:$0xf]
          %v529 = vld [vmem:[%s527 + $0x4] sm:$0xf]
          %v530 = vld [vmem:[%s527 + $0x8] sm:$0xf]
          %v531 = vld [vmem:[%s527 + $0xc] sm:$0xf]
          %v532 = vld [vmem:[%s527 + $0x10] sm:$0xf]
          %v533 = vld [vmem:[%s527 + $0x14] sm:$0xf]
          %v534 = vld [vmem:[%s527 + $0x18] sm:$0xf]
          %v535 = vld [vmem:[%s527 + $0x1c] sm:$0xf]
          %v536 = vld [vmem:[%s527 + $0x20] sm:$0xf]
          %v537 = vld [vmem:[%s527 + $0x24] sm:$0xf]
          %v538 = vld [vmem:[%s527 + $0x28] sm:$0xf]
          %v539 = vld [vmem:[%s527 + $0x2c] sm:$0xf]
          %v540 = vld [vmem:[%s527 + $0x30] sm:$0xf]
          %v541 = vld [vmem:[%s527 + $0x34] sm:$0xf]
          %v542 = vld [vmem:[%s527 + $0x38] sm:$0xf]
          %v543 = vld [vmem:[%s527 + $0x3c] sm:$0xf]
          %v544 = vld [vmem:[%s527 + $0x40] sm:$0xf]
          %v545 = vld [vmem:[%s527 + $0x44] sm:$0xf]
          %v546 = vld [vmem:[%s527 + $0x48] sm:$0xf]
          %v547 = vld [vmem:[%s527 + $0x4c] sm:$0xf]
          %v548 = vld [vmem:[%s527 + $0x50] sm:$0xf]
          %v549 = vld [vmem:[%s527 + $0x54] sm:$0xf]
          %v550 = vld [vmem:[%s527 + $0x58] sm:$0xf]
          %v551 = vld [vmem:[%s527 + $0x5c] sm:$0xf]
          %v552 = vld [vmem:[#allocation6] sm:$0xf]
          %v554 = vlaneseq
          %v555 = vshrl.u32 %v554, 7
          %v556 = vsub.s32 0, %v555
          %v557 = vrot.slane %v514, %v556
          %v583 = vunpack.c.l.b16 %v528
          %v584 = vunpack.c.l.b16 %v529
          %v585 = vunpack.c.l.b16 %v530
          %v586 = vunpack.c.l.b16 %v531
          %v587 = vunpack.c.l.b16 %v532
          %v588 = vunpack.c.l.b16 %v533
          %v589 = vunpack.c.l.b16 %v534
          %v590 = vunpack.c.l.b16 %v535
          %v591 = vunpack.c.l.b16 %v536
          %v592 = vunpack.c.l.b16 %v537
          %v593 = vunpack.c.l.b16 %v538
          %v594 = vunpack.c.l.b16 %v539
          %v595 = vunpack.c.l.b16 %v540
          %v596 = vunpack.c.l.b16 %v541
          %v597 = vunpack.c.l.b16 %v542
          %v598 = vunpack.c.l.b16 %v543
          %v599 = vunpack.c.l.b16 %v544
          %v600 = vunpack.c.l.b16 %v545
          %v601 = vunpack.c.l.b16 %v546
          %v602 = vunpack.c.l.b16 %v547
          %v603 = vunpack.c.l.b16 %v548
          %v604 = vunpack.c.l.b16 %v549
          %v605 = vunpack.c.l.b16 %v550
          %v606 = vunpack.c.l.b16 %v551
          %v607 = vpack.c.b16 %v584, %v583
          %v608 = vpack.c.b16 %v586, %v585
          %v609 = vpack.c.b16 %v588, %v587
          %v610 = vpack.c.b16 %v590, %v589
          %v611 = vpack.c.b16 %v592, %v591
          %v612 = vpack.c.b16 %v594, %v593
          %v613 = vpack.c.b16 %v596, %v595
          %v614 = vpack.c.b16 %v598, %v597
          %v615 = vpack.c.b16 %v600, %v599
          %v616 = vpack.c.b16 %v602, %v601
          %v617 = vpack.c.b16 %v604, %v603
          %v618 = vpack.c.b16 %v606, %v605
          %vm619 = vcmask 64512
          %v621 = vsel %vm619, %v607, 0
          %v624 = vsel %vm619, %v608, 0
          %v627 = vsel %vm619, %v609, 0
          %v630 = vsel %vm619, %v610, 0
          %v633 = vsel %vm619, %v611, 0
          %v636 = vsel %vm619, %v612, 0
          %v639 = vsel %vm619, %v613, 0
          %v642 = vsel %vm619, %v614, 0
          %v645 = vsel %vm619, %v615, 0
          %v648 = vsel %vm619, %v616, 0
          %v651 = vsel %vm619, %v617, 0
          %v654 = vsel %vm619, %v618, 0
          %vm656 = vcmask 1043456
          %v658 = vsel %vm656, %v552, 0
          %660 = vmatprep.subr.bf16.mxu0 0
          %661 = vmatpush1.bf16.msra.mxu0 %v658
          %662 = vmatprep.subr.bf16.mxu0 0
          %663 = vmatpush1.bf16.msra.mxu0 0
          %664 = vmatprep.subr.bf16.mxu0 0
          %665 = vmatpush1.bf16.msra.mxu0 0
          %666 = vmatprep.subr.bf16.mxu0 0
          %667 = vmatpush1.bf16.msra.mxu0 0
          %668 = vmatprep.subr.bf16.mxu0 0
          %669 = vmatpush1.bf16.msra.mxu0 0
          %670 = vmatprep.subr.bf16.mxu0 0
          %671 = vmatpush1.bf16.msra.mxu0 0
          %672 = vmatprep.subr.bf16.mxu0 0
          %673 = vmatpush1.bf16.msra.mxu0 0
          %674 = vmatprep.subr.bf16.mxu0 0
          %675 = vmatpush1.bf16.msra.mxu0 0
          %676 = vmatprep.subr.bf16.mxu0 0
          %677 = vmatpush1.bf16.msra.mxu0 0
          %678 = vmatprep.subr.bf16.mxu0 0
          %679 = vmatpush1.bf16.msra.mxu0 0
          %680 = vmatprep.subr.bf16.mxu0 0
          %681 = vmatpush1.bf16.msra.mxu0 0
          %682 = vmatprep.subr.bf16.mxu0 0
          %683 = vmatpush1.bf16.msra.mxu0 0
          %684 = vmatprep.subr.bf16.mxu0 0
          %685 = vmatpush1.bf16.msra.mxu0 0
          %686 = vmatprep.subr.bf16.mxu0 0
          %687 = vmatpush1.bf16.msra.mxu0 0
          %688 = vmatprep.subr.bf16.mxu0 0
          %689 = vmatpush1.bf16.msra.mxu0 0
          %690 = vmatprep.subr.bf16.mxu0 0
          %691 = vmatpush1.bf16.msra.mxu0 0
          %692 = vmatprep.mubr.bf16.mxu0 0
          %693 = vmatmul.mubr.bf16.gmra.mrb[0].mxu0 %v621
          %v694 = vpop.f32.mrb[0].mxu0
          %v695 = vadd.f32 %v557, %v694
          %v696 = vpop.f32.mrb[0].mxu0
          %v697 = vpop.f32.mrb[0].mxu0
          %v698 = vadd.f32 %v557, %v697
          %v699 = vpop.f32.mrb[0].mxu0
          %700 = vmatprep.mubr.bf16.mxu0 0
          %701 = vmatmul.mubr.bf16.gmra.mrb[0].mxu0 %v624
          %v702 = vpop.f32.mrb[0].mxu0
          %v703 = vadd.f32 %v557, %v702
          %v704 = vpop.f32.mrb[0].mxu0
          %v705 = vpop.f32.mrb[0].mxu0
          %v706 = vadd.f32 %v557, %v705
          %v707 = vpop.f32.mrb[0].mxu0
          %708 = vmatprep.mubr.bf16.mxu0 0
          %709 = vmatmul.mubr.bf16.gmra.mrb[0].mxu0 %v627
          %v710 = vpop.f32.mrb[0].mxu0
          %v711 = vadd.f32 %v557, %v710
          %v712 = vpop.f32.mrb[0].mxu0
          %v713 = vpop.f32.mrb[0].mxu0
          %v714 = vadd.f32 %v557, %v713
          %v715 = vpop.f32.mrb[0].mxu0
          %716 = vmatprep.mubr.bf16.mxu0 0
          %717 = vmatmul.mubr.bf16.gmra.mrb[0].mxu0 %v630
          %v718 = vpop.f32.mrb[0].mxu0
          %v719 = vadd.f32 %v557, %v718
          %v720 = vpop.f32.mrb[0].mxu0
          %v721 = vpop.f32.mrb[0].mxu0
          %v722 = vadd.f32 %v557, %v721
          %v723 = vpop.f32.mrb[0].mxu0
          %724 = vmatprep.mubr.bf16.mxu0 0
          %725 = vmatmul.mubr.bf16.gmra.mrb[0].mxu0 %v633
          %v726 = vpop.f32.mrb[0].mxu0
          %v727 = vadd.f32 %v557, %v726
          %v728 = vpop.f32.mrb[0].mxu0
          %v729 = vpop.f32.mrb[0].mxu0
          %v730 = vadd.f32 %v557, %v729
          %v731 = vpop.f32.mrb[0].mxu0
          %732 = vmatprep.mubr.bf16.mxu0 0
          %733 = vmatmul.mubr.bf16.gmra.mrb[0].mxu0 %v636
          %v734 = vpop.f32.mrb[0].mxu0
          %v735 = vadd.f32 %v557, %v734
          %v736 = vpop.f32.mrb[0].mxu0
          %v737 = vpop.f32.mrb[0].mxu0
          %v738 = vadd.f32 %v557, %v737
          %v739 = vpop.f32.mrb[0].mxu0
          %740 = vmatprep.mubr.bf16.mxu0 0
          %741 = vmatmul.mubr.bf16.gmra.mrb[0].mxu0 %v639
          %v742 = vpop.f32.mrb[0].mxu0
          %v743 = vadd.f32 %v557, %v742
          %v744 = vpop.f32.mrb[0].mxu0
          %v745 = vpop.f32.mrb[0].mxu0
          %v746 = vadd.f32 %v557, %v745
          %v747 = vpop.f32.mrb[0].mxu0
          %748 = vmatprep.mubr.bf16.mxu0 0
          %749 = vmatmul.mubr.bf16.gmra.mrb[0].mxu0 %v642
          %v750 = vpop.f32.mrb[0].mxu0
          %v751 = vadd.f32 %v557, %v750
          %v752 = vpop.f32.mrb[0].mxu0
          %v753 = vpop.f32.mrb[0].mxu0
          %v754 = vadd.f32 %v557, %v753
          %v755 = vpop.f32.mrb[0].mxu0
          %756 = vmatprep.mubr.bf16.mxu0 0
          %757 = vmatmul.mubr.bf16.gmra.mrb[0].mxu0 %v645
          %v758 = vpop.f32.mrb[0].mxu0
          %v759 = vadd.f32 %v557, %v758
          %v760 = vpop.f32.mrb[0].mxu0
          %v761 = vpop.f32.mrb[0].mxu0
          %v762 = vadd.f32 %v557, %v761
          %v763 = vpop.f32.mrb[0].mxu0
          %764 = vmatprep.mubr.bf16.mxu0 0
          %765 = vmatmul.mubr.bf16.gmra.mrb[0].mxu0 %v648
          %v766 = vpop.f32.mrb[0].mxu0
          %v767 = vadd.f32 %v557, %v766
          %v768 = vpop.f32.mrb[0].mxu0
          %v769 = vpop.f32.mrb[0].mxu0
          %v770 = vadd.f32 %v557, %v769
          %v771 = vpop.f32.mrb[0].mxu0
          %772 = vmatprep.mubr.bf16.mxu0 0
          %773 = vmatmul.mubr.bf16.gmra.mrb[0].mxu0 %v651
          %v774 = vpop.f32.mrb[0].mxu0
          %v775 = vadd.f32 %v557, %v774
          %v776 = vpop.f32.mrb[0].mxu0
          %v777 = vpop.f32.mrb[0].mxu0
          %v778 = vadd.f32 %v557, %v777
          %v779 = vpop.f32.mrb[0].mxu0
          %780 = vmatprep.mubr.bf16.mxu0 0
          %781 = vmatmul.mubr.bf16.gmra.mrb[0].mxu0 %v654
          %v782 = vpop.f32.mrb[0].mxu0
          %v783 = vadd.f32 %v557, %v782
          %v784 = vpop.f32.mrb[0].mxu0
          %v785 = vpop.f32.mrb[0].mxu0
          %v786 = vadd.f32 %v557, %v785
          %v787 = vpop.f32.mrb[0].mxu0
          %788 = vdwg.mxu0
          %v789 = vmax.f32 %v695, 0.0
          %v790 = vmax.f32 %v698, 0.0
          %v791 = vmax.f32 %v703, 0.0
          %v792 = vmax.f32 %v706, 0.0
          %v793 = vmax.f32 %v711, 0.0
          %v794 = vmax.f32 %v714, 0.0
          %v795 = vmax.f32 %v719, 0.0
          %v796 = vmax.f32 %v722, 0.0
          %v797 = vmax.f32 %v727, 0.0
          %v798 = vmax.f32 %v730, 0.0
          %v799 = vmax.f32 %v735, 0.0
          %v800 = vmax.f32 %v738, 0.0
          %v801 = vmax.f32 %v743, 0.0
          %v802 = vmax.f32 %v746, 0.0
          %v803 = vmax.f32 %v751, 0.0
          %v804 = vmax.f32 %v754, 0.0
          %v805 = vmax.f32 %v759, 0.0
          %v806 = vmax.f32 %v762, 0.0
          %v807 = vmax.f32 %v767, 0.0
          %v808 = vmax.f32 %v770, 0.0
          %v809 = vmax.f32 %v775, 0.0
          %v810 = vmax.f32 %v778, 0.0
          %v811 = vmax.f32 %v783, 0.0
          %v812 = vmax.f32 %v786, 0.0
          %v813 = vpack.c.bf16 %v790, %v789
          %v814 = vpack.c.bf16 %v792, %v791
          %v815 = vpack.c.bf16 %v794, %v793
          %v816 = vpack.c.bf16 %v796, %v795
          %v817 = vpack.c.bf16 %v798, %v797
          %v818 = vpack.c.bf16 %v800, %v799
          %v819 = vpack.c.bf16 %v802, %v801
          %v820 = vpack.c.bf16 %v804, %v803
          %v821 = vpack.c.bf16 %v806, %v805
          %v822 = vpack.c.bf16 %v808, %v807
          %v823 = vpack.c.bf16 %v810, %v809
          %v824 = vpack.c.bf16 %v812, %v811
          %s825 = sadd.s32 %s524, 1
          %v838 = vunpack.c.l.b16 %v813
          %v839 = vunpack.c.h.b16 %v813
          %v840 = vunpack.c.l.b16 %v814
          %v841 = vunpack.c.h.b16 %v814
          %v842 = vunpack.c.l.b16 %v815
          %v843 = vunpack.c.h.b16 %v815
          %v844 = vunpack.c.l.b16 %v816
          %v845 = vunpack.c.h.b16 %v816
          %v846 = vunpack.c.l.b16 %v817
          %v847 = vunpack.c.h.b16 %v817
          %v848 = vunpack.c.l.b16 %v818
          %v849 = vunpack.c.h.b16 %v818
          %v850 = vunpack.c.l.b16 %v819
          %v851 = vunpack.c.h.b16 %v819
          %v852 = vunpack.c.l.b16 %v820
          %v853 = vunpack.c.h.b16 %v820
          %v854 = vunpack.c.l.b16 %v821
          %v855 = vunpack.c.h.b16 %v821
          %v856 = vunpack.c.l.b16 %v822
          %v857 = vunpack.c.h.b16 %v822
          %v858 = vunpack.c.l.b16 %v823
          %v859 = vunpack.c.h.b16 %v823
          %v860 = vunpack.c.l.b16 %v824
          %v861 = vunpack.c.h.b16 %v824
          %v862 = vpack.c.b16 %v838, %v838
          %v863 = vpack.c.b16 %v839, %v839
          %v864 = vpack.c.b16 %v840, %v840
          %v865 = vpack.c.b16 %v841, %v841
          %v866 = vpack.c.b16 %v842, %v842
          %v867 = vpack.c.b16 %v843, %v843
          %v868 = vpack.c.b16 %v844, %v844
          %v869 = vpack.c.b16 %v845, %v845
          %v870 = vpack.c.b16 %v846, %v846
          %v871 = vpack.c.b16 %v847, %v847
          %v872 = vpack.c.b16 %v848, %v848
          %v873 = vpack.c.b16 %v849, %v849
          %v874 = vpack.c.b16 %v850, %v850
          %v875 = vpack.c.b16 %v851, %v851
          %v876 = vpack.c.b16 %v852, %v852
          %v877 = vpack.c.b16 %v853, %v853
          %v878 = vpack.c.b16 %v854, %v854
          %v879 = vpack.c.b16 %v855, %v855
          %v880 = vpack.c.b16 %v856, %v856
          %v881 = vpack.c.b16 %v857, %v857
          %v882 = vpack.c.b16 %v858, %v858
          %v883 = vpack.c.b16 %v859, %v859
          %v884 = vpack.c.b16 %v860, %v860
          %v885 = vpack.c.b16 %v861, %v861
          %vm886 = vsmask.f32 256
          %vm887 = vsmask.f32 4368
          %vm888 = vmor %vm886, %vm887
          %v890 = vshrl.u32 %v862, 16
          %v892 = vrot.slane %v890, 7
          %v893 = vshll.u32 %v862, 16
          %v895 = vor.u32 %v892, %v893
          %v896 = vrot.slane %v892, 4
          %v898 = vshrl.u32 %v863, 16
          %v900 = vrot.slane %v898, 7
          %v901 = vshll.u32 %v863, 16
          %v903 = vor.u32 %v900, %v901
          %v904 = vsel %vm888, %v896, %v903
          %v905 = vrot.slane %v900, 4
          %v907 = vshrl.u32 %v864, 16
          %v909 = vrot.slane %v907, 7
          %v910 = vshll.u32 %v864, 16
          %v912 = vor.u32 %v909, %v910
          %v913 = vrot.slane %v909, 4
          %v915 = vshrl.u32 %v865, 16
          %v917 = vrot.slane %v915, 7
          %v918 = vshll.u32 %v865, 16
          %v920 = vor.u32 %v917, %v918
          %v921 = vsel %vm888, %v913, %v920
          %v922 = vrot.slane %v917, 4
          %v924 = vshrl.u32 %v866, 16
          %v926 = vrot.slane %v924, 7
          %v927 = vshll.u32 %v866, 16
          %v929 = vor.u32 %v926, %v927
          %v930 = vrot.slane %v926, 4
          %v932 = vshrl.u32 %v867, 16
          %v934 = vrot.slane %v932, 7
          %v935 = vshll.u32 %v867, 16
          %v937 = vor.u32 %v934, %v935
          %v938 = vsel %vm888, %v930, %v937
          %v939 = vrot.slane %v934, 4
          %v941 = vshrl.u32 %v868, 16
          %v943 = vrot.slane %v941, 7
          %v944 = vshll.u32 %v868, 16
          %v946 = vor.u32 %v943, %v944
          %v947 = vrot.slane %v943, 4
          %v949 = vshrl.u32 %v869, 16
          %v951 = vrot.slane %v949, 7
          %v952 = vshll.u32 %v869, 16
          %v954 = vor.u32 %v951, %v952
          %v955 = vsel %vm888, %v947, %v954
          %v956 = vrot.slane %v951, 4
          %v958 = vshrl.u32 %v870, 16
          %v960 = vrot.slane %v958, 7
          %v961 = vshll.u32 %v870, 16
          %v963 = vor.u32 %v960, %v961
          %v964 = vrot.slane %v960, 4
          %v966 = vshrl.u32 %v871, 16
          %v968 = vrot.slane %v966, 7
          %v969 = vshll.u32 %v871, 16
          %v971 = vor.u32 %v968, %v969
          %v972 = vsel %vm888, %v964, %v971
          %v973 = vrot.slane %v968, 4
          %v975 = vshrl.u32 %v872, 16
          %v977 = vrot.slane %v975, 7
          %v978 = vshll.u32 %v872, 16
          %v980 = vor.u32 %v977, %v978
          %v981 = vrot.slane %v977, 4
          %v983 = vshrl.u32 %v873, 16
          %v985 = vrot.slane %v983, 7
          %v986 = vshll.u32 %v873, 16
          %v988 = vor.u32 %v985, %v986
          %v989 = vsel %vm888, %v981, %v988
          %v990 = vrot.slane %v985, 4
          %v992 = vshrl.u32 %v874, 16
          %v994 = vrot.slane %v992, 7
          %v995 = vshll.u32 %v874, 16
          %v997 = vor.u32 %v994, %v995
          %v998 = vrot.slane %v994, 4
          %v1000 = vshrl.u32 %v875, 16
          %v1002 = vrot.slane %v1000, 7
          %v1003 = vshll.u32 %v875, 16
          %v1005 = vor.u32 %v1002, %v1003
          %v1006 = vsel %vm888, %v998, %v1005
          %v1007 = vrot.slane %v1002, 4
          %v1009 = vshrl.u32 %v876, 16
          %v1011 = vrot.slane %v1009, 7
          %v1012 = vshll.u32 %v876, 16
          %v1014 = vor.u32 %v1011, %v1012
          %v1015 = vrot.slane %v1011, 4
          %v1017 = vshrl.u32 %v877, 16
          %v1019 = vrot.slane %v1017, 7
          %v1020 = vshll.u32 %v877, 16
          %v1022 = vor.u32 %v1019, %v1020
          %v1023 = vsel %vm888, %v1015, %v1022
          %v1024 = vrot.slane %v1019, 4
          %v1026 = vshrl.u32 %v878, 16
          %v1028 = vrot.slane %v1026, 7
          %v1029 = vshll.u32 %v878, 16
          %v1031 = vor.u32 %v1028, %v1029
          %v1032 = vrot.slane %v1028, 4
          %v1034 = vshrl.u32 %v879, 16
          %v1036 = vrot.slane %v1034, 7
          %v1037 = vshll.u32 %v879, 16
          %v1039 = vor.u32 %v1036, %v1037
          %v1040 = vsel %vm888, %v1032, %v1039
          %v1041 = vrot.slane %v1036, 4
          %v1043 = vshrl.u32 %v880, 16
          %v1045 = vrot.slane %v1043, 7
          %v1046 = vshll.u32 %v880, 16
          %v1048 = vor.u32 %v1045, %v1046
          %v1049 = vrot.slane %v1045, 4
          %v1051 = vshrl.u32 %v881, 16
          %v1053 = vrot.slane %v1051, 7
          %v1054 = vshll.u32 %v881, 16
          %v1056 = vor.u32 %v1053, %v1054
          %v1057 = vsel %vm888, %v1049, %v1056
          %v1058 = vrot.slane %v1053, 4
          %v1060 = vshrl.u32 %v882, 16
          %v1062 = vrot.slane %v1060, 7
          %v1063 = vshll.u32 %v882, 16
          %v1065 = vor.u32 %v1062, %v1063
          %v1066 = vrot.slane %v1062, 4
          %v1068 = vshrl.u32 %v883, 16
          %v1070 = vrot.slane %v1068, 7
          %v1071 = vshll.u32 %v883, 16
          %v1073 = vor.u32 %v1070, %v1071
          %v1074 = vsel %vm888, %v1066, %v1073
          %v1075 = vrot.slane %v1070, 4
          %v1077 = vshrl.u32 %v884, 16
          %v1079 = vrot.slane %v1077, 7
          %v1080 = vshll.u32 %v884, 16
          %v1082 = vor.u32 %v1079, %v1080
          %v1083 = vrot.slane %v1079, 4
          %v1085 = vshrl.u32 %v885, 16
          %v1087 = vrot.slane %v1085, 7
          %v1088 = vshll.u32 %v885, 16
          %v1090 = vor.u32 %v1087, %v1088
          %v1091 = vsel %vm888, %v1083, %v1090
          %v1092 = vrot.slane %v1087, 4
          %s1129 = smul.u32 %s825, 3
          %s1130 = smul.addr %s1129, 4
          %s1131 = scalar_lea.vmem [#allocation2], %s1130
          %vm1132 = vcmask 27648
          %vm1133 = vsmask.f32 7938
          %vm1134 = vmand %vm1132, %vm1133
          %v1135 = vld [vmem:[%s1131] sm:$0xf]
          %v1136 = vsel %vm1134, %v895, %v1135
          %1137 = vst [vmem:[%s1131] sm:$0xf] %v1136
          %1138 = vst.msk [vmem:[%s1131 + $0x4] sm:$0xf] %vm454, %v904
          %vm1139 = vcmask 24576
          %vm1140 = vmand %vm1139, %vm886
          %v1141 = vld [vmem:[%s1131 + $0x8] sm:$0x1]
          %v1142 = vsel %vm1140, %v905, %v1141
          %1143 = vst [vmem:[%s1131 + $0x8] sm:$0x1] %v1142
          %v1144 = vld [vmem:[%s1131 + $0xc] sm:$0xf]
          %v1145 = vsel %vm1134, %v912, %v1144
          %1146 = vst [vmem:[%s1131 + $0xc] sm:$0xf] %v1145
          %1147 = vst.msk [vmem:[%s1131 + $0x10] sm:$0xf] %vm454, %v921
          %v1148 = vld [vmem:[%s1131 + $0x14] sm:$0x1]
          %v1149 = vsel %vm1140, %v922, %v1148
          %1150 = vst [vmem:[%s1131 + $0x14] sm:$0x1] %v1149
          %v1151 = vld [vmem:[%s1131 + $0x18] sm:$0xf]
          %v1152 = vsel %vm1134, %v929, %v1151
          %1153 = vst [vmem:[%s1131 + $0x18] sm:$0xf] %v1152
          %1154 = vst.msk [vmem:[%s1131 + $0x1c] sm:$0xf] %vm454, %v938
          %v1155 = vld [vmem:[%s1131 + $0x20] sm:$0x1]
          %v1156 = vsel %vm1140, %v939, %v1155
          %1157 = vst [vmem:[%s1131 + $0x20] sm:$0x1] %v1156
          %v1158 = vld [vmem:[%s1131 + $0x24] sm:$0xf]
          %v1159 = vsel %vm1134, %v946, %v1158
          %1160 = vst [vmem:[%s1131 + $0x24] sm:$0xf] %v1159
          %1161 = vst.msk [vmem:[%s1131 + $0x28] sm:$0xf] %vm454, %v955
          %v1162 = vld [vmem:[%s1131 + $0x2c] sm:$0x1]
          %v1163 = vsel %vm1140, %v956, %v1162
          %1164 = vst [vmem:[%s1131 + $0x2c] sm:$0x1] %v1163
          %v1165 = vld [vmem:[%s1131 + $0x30] sm:$0xf]
          %v1166 = vsel %vm1134, %v963, %v1165
          %1167 = vst [vmem:[%s1131 + $0x30] sm:$0xf] %v1166
          %1168 = vst.msk [vmem:[%s1131 + $0x34] sm:$0xf] %vm454, %v972
          %v1169 = vld [vmem:[%s1131 + $0x38] sm:$0x1]
          %v1170 = vsel %vm1140, %v973, %v1169
          %1171 = vst [vmem:[%s1131 + $0x38] sm:$0x1] %v1170
          %v1172 = vld [vmem:[%s1131 + $0x3c] sm:$0xf]
          %v1173 = vsel %vm1134, %v980, %v1172
          %1174 = vst [vmem:[%s1131 + $0x3c] sm:$0xf] %v1173
          %1175 = vst.msk [vmem:[%s1131 + $0x40] sm:$0xf] %vm454, %v989
          %v1176 = vld [vmem:[%s1131 + $0x44] sm:$0x1]
          %v1177 = vsel %vm1140, %v990, %v1176
          %1178 = vst [vmem:[%s1131 + $0x44] sm:$0x1] %v1177
          %v1179 = vld [vmem:[%s1131 + $0x48] sm:$0xf]
          %v1180 = vsel %vm1134, %v997, %v1179
          %1181 = vst [vmem:[%s1131 + $0x48] sm:$0xf] %v1180
          %1182 = vst.msk [vmem:[%s1131 + $0x4c] sm:$0xf] %vm454, %v1006
          %v1183 = vld [vmem:[%s1131 + $0x50] sm:$0x1]
          %v1184 = vsel %vm1140, %v1007, %v1183
          %1185 = vst [vmem:[%s1131 + $0x50] sm:$0x1] %v1184
          %v1186 = vld [vmem:[%s1131 + $0x54] sm:$0xf]
          %v1187 = vsel %vm1134, %v1014, %v1186
          %1188 = vst [vmem:[%s1131 + $0x54] sm:$0xf] %v1187
          %1189 = vst.msk [vmem:[%s1131 + $0x58] sm:$0xf] %vm454, %v1023
          %v1190 = vld [vmem:[%s1131 + $0x5c] sm:$0x1]
          %v1191 = vsel %vm1140, %v1024, %v1190
          %1192 = vst [vmem:[%s1131 + $0x5c] sm:$0x1] %v1191
          %v1193 = vld [vmem:[%s1131 + $0x60] sm:$0xf]
          %v1194 = vsel %vm1134, %v1031, %v1193
          %1195 = vst [vmem:[%s1131 + $0x60] sm:$0xf] %v1194
          %1196 = vst.msk [vmem:[%s1131 + $0x64] sm:$0xf] %vm454, %v1040
          %v1197 = vld [vmem:[%s1131 + $0x68] sm:$0x1]
          %v1198 = vsel %vm1140, %v1041, %v1197
          %1199 = vst [vmem:[%s1131 + $0x68] sm:$0x1] %v1198
          %v1200 = vld [vmem:[%s1131 + $0x6c] sm:$0xf]
          %v1201 = vsel %vm1134, %v1048, %v1200
          %1202 = vst [vmem:[%s1131 + $0x6c] sm:$0xf] %v1201
          %1203 = vst.msk [vmem:[%s1131 + $0x70] sm:$0xf] %vm454, %v1057
          %v1204 = vld [vmem:[%s1131 + $0x74] sm:$0x1]
          %v1205 = vsel %vm1140, %v1058, %v1204
          %1206 = vst [vmem:[%s1131 + $0x74] sm:$0x1] %v1205
          %v1207 = vld [vmem:[%s1131 + $0x78] sm:$0xf]
          %v1208 = vsel %vm1134, %v1065, %v1207
          %1209 = vst [vmem:[%s1131 + $0x78] sm:$0xf] %v1208
          %1210 = vst.msk [vmem:[%s1131 + $0x7c] sm:$0xf] %vm454, %v1074
          %v1211 = vld [vmem:[%s1131 + $0x80] sm:$0x1]
          %v1212 = vsel %vm1140, %v1075, %v1211
          %1213 = vst [vmem:[%s1131 + $0x80] sm:$0x1] %v1212
          %v1214 = vld [vmem:[%s1131 + $0x84] sm:$0xf]
          %v1215 = vsel %vm1134, %v1082, %v1214
          %1216 = vst [vmem:[%s1131 + $0x84] sm:$0xf] %v1215
          %1217 = vst.msk [vmem:[%s1131 + $0x88] sm:$0xf] %vm454, %v1091
          %v1218 = vld [vmem:[%s1131 + $0x8c] sm:$0x1]
          %v1219 = vsel %vm1140, %v1092, %v1218
          %1220 = vst [vmem:[%s1131 + $0x8c] sm:$0x1] %v1219
        $region97: #{_forward_impl.1} parent=55 // loop_footer
          %s523 = sadd.s32 1, %s519
        $region98: #{_forward_impl.1} parent=55 // loop_footer_branch
          %518 = sbr.rel target = $region94
        $region99: #{_forward_impl.1} parent=55 // loop_exit
          _
        loop: start=0, step=1, limit=2
        $region100: #{_forward_impl.1} parent=55 // loop_pre_header
          _
        $region101: #{_forward_impl.1} parent=55 // loop_header
          %s1222 = sphi 0, %s1226
          %p1223 = scmp.ge.s32.totalorder %s1222, 2
        $region102: #{_forward_impl.1} parent=55 // loop_header_branch
          %1225 = sbr.rel (%p1223) target = $region106
        $region103: #{_forward_impl.1} parent=55 // loop_body
          %s1227 = smul.u32 %s1222, 12
          %s1228 = smul.u32 %s1227, 3
          %s1229 = smul.addr %s1228, 4
          %s1230 = scalar_lea.vmem [#allocation2], %s1229
          %v1231 = vld [vmem:[%s1230] sm:$0xf]
          %v1232 = vld [vmem:[%s1230 + $0x4] sm:$0xf]
          %v1233 = vld [vmem:[%s1230 + $0x8] sm:$0xf]
          %v1234 = vld [vmem:[%s1230 + $0xc] sm:$0xf]
          %v1235 = vld [vmem:[%s1230 + $0x10] sm:$0xf]
          %v1236 = vld [vmem:[%s1230 + $0x14] sm:$0xf]
          %v1237 = vld [vmem:[%s1230 + $0x18] sm:$0xf]
          %v1238 = vld [vmem:[%s1230 + $0x1c] sm:$0xf]
          %v1239 = vld [vmem:[%s1230 + $0x20] sm:$0xf]
          %v1240 = vld [vmem:[%s1230 + $0x24] sm:$0xf]
          %v1241 = vld [vmem:[%s1230 + $0x28] sm:$0xf]
          %v1242 = vld [vmem:[%s1230 + $0x2c] sm:$0xf]
          %v1243 = vld [vmem:[%s1230 + $0x30] sm:$0xf]
          %v1244 = vld [vmem:[%s1230 + $0x34] sm:$0xf]
          %v1245 = vld [vmem:[%s1230 + $0x38] sm:$0xf]
          %v1246 = vld [vmem:[%s1230 + $0x3c] sm:$0xf]
          %v1247 = vld [vmem:[%s1230 + $0x40] sm:$0xf]
          %v1248 = vld [vmem:[%s1230 + $0x44] sm:$0xf]
          %v1249 = vld [vmem:[%s1230 + $0x48] sm:$0xf]
          %v1250 = vld [vmem:[%s1230 + $0x4c] sm:$0xf]
          %v1251 = vld [vmem:[%s1230 + $0x50] sm:$0xf]
          %v1252 = vld [vmem:[%s1230 + $0x54] sm:$0xf]
          %v1253 = vld [vmem:[%s1230 + $0x58] sm:$0xf]
          %v1254 = vld [vmem:[%s1230 + $0x5c] sm:$0xf]
          %v1255 = vld [vmem:[%s1230 + $0x60] sm:$0xf]
          %v1256 = vld [vmem:[%s1230 + $0x64] sm:$0xf]
          %v1257 = vld [vmem:[%s1230 + $0x68] sm:$0xf]
          %v1258 = vld [vmem:[%s1230 + $0x6c] sm:$0xf]
          %v1259 = vld [vmem:[%s1230 + $0x70] sm:$0xf]
          %v1260 = vld [vmem:[%s1230 + $0x74] sm:$0xf]
          %v1261 = vld [vmem:[%s1230 + $0x78] sm:$0xf]
          %v1262 = vld [vmem:[%s1230 + $0x7c] sm:$0xf]
          %v1263 = vld [vmem:[%s1230 + $0x80] sm:$0xf]
          %v1264 = vld [vmem:[%s1230 + $0x84] sm:$0xf]
          %v1265 = vld [vmem:[%s1230 + $0x88] sm:$0xf]
          %v1266 = vld [vmem:[%s1230 + $0x8c] sm:$0xf]
          %v1291 = vunpack.c.l.b16 %v1231
          %v1292 = vunpack.c.l.b16 %v1232
          %v1293 = vunpack.c.l.b16 %v1234
          %v1294 = vunpack.c.l.b16 %v1235
          %v1295 = vunpack.c.l.b16 %v1237
          %v1296 = vunpack.c.l.b16 %v1238
          %v1297 = vunpack.c.l.b16 %v1240
          %v1298 = vunpack.c.l.b16 %v1241
          %v1299 = vunpack.c.l.b16 %v1243
          %v1300 = vunpack.c.l.b16 %v1244
          %v1301 = vunpack.c.l.b16 %v1246
          %v1302 = vunpack.c.l.b16 %v1247
          %v1303 = vunpack.c.l.b16 %v1249
          %v1304 = vunpack.c.l.b16 %v1250
          %v1305 = vunpack.c.l.b16 %v1252
          %v1306 = vunpack.c.l.b16 %v1253
          %v1307 = vunpack.c.l.b16 %v1255
          %v1308 = vunpack.c.l.b16 %v1256
          %v1309 = vunpack.c.l.b16 %v1258
          %v1310 = vunpack.c.l.b16 %v1259
          %v1311 = vunpack.c.l.b16 %v1261
          %v1312 = vunpack.c.l.b16 %v1262
          %v1313 = vunpack.c.l.b16 %v1264
          %v1314 = vunpack.c.l.b16 %v1265
          %v1315 = vpack.c.b16 %v1292, %v1291
          %v1316 = vpack.c.b16 %v1294, %v1293
          %v1317 = vpack.c.b16 %v1296, %v1295
          %v1318 = vpack.c.b16 %v1298, %v1297
          %v1319 = vpack.c.b16 %v1300, %v1299
          %v1320 = vpack.c.b16 %v1302, %v1301
          %v1321 = vpack.c.b16 %v1304, %v1303
          %v1322 = vpack.c.b16 %v1306, %v1305
          %v1323 = vpack.c.b16 %v1308, %v1307
          %v1324 = vpack.c.b16 %v1310, %v1309
          %v1325 = vpack.c.b16 %v1312, %v1311
          %v1326 = vpack.c.b16 %v1314, %v1313
          %v1339 = vunpack.c.l.b16 %v1233
          %v1340 = vunpack.c.l.b16 %v1236
          %v1341 = vunpack.c.l.b16 %v1239
          %v1342 = vunpack.c.l.b16 %v1242
          %v1343 = vunpack.c.l.b16 %v1245
          %v1344 = vunpack.c.l.b16 %v1248
          %v1345 = vunpack.c.l.b16 %v1251
          %v1346 = vunpack.c.l.b16 %v1254
          %v1347 = vunpack.c.l.b16 %v1257
          %v1348 = vunpack.c.l.b16 %v1260
          %v1349 = vunpack.c.l.b16 %v1263
          %v1350 = vunpack.c.l.b16 %v1266
          %v1351 = vpack.c.b16 %v1339, %v1339
          %v1352 = vpack.c.b16 %v1340, %v1340
          %v1353 = vpack.c.b16 %v1341, %v1341
          %v1354 = vpack.c.b16 %v1342, %v1342
          %v1355 = vpack.c.b16 %v1343, %v1343
          %v1356 = vpack.c.b16 %v1344, %v1344
          %v1357 = vpack.c.b16 %v1345, %v1345
          %v1358 = vpack.c.b16 %v1346, %v1346
          %v1359 = vpack.c.b16 %v1347, %v1347
          %v1360 = vpack.c.b16 %v1348, %v1348
          %v1361 = vpack.c.b16 %v1349, %v1349
          %v1362 = vpack.c.b16 %v1350, %v1350
          %vm1363 = vsmask.f32 7424
          %v1365 = vshrl.u32 %v1315, 16
          %v1367 = vshll.u32 %v1315, 16
          %v1369 = vrot.slane %v1367, 1
          %v1370 = vor.u32 %v1365, %v1369
          %v1372 = vshll.u32 %v1351, 16
          %v1374 = vrot.slane %v1372, 1
          %v1375 = vsel %vm1363, %v1370, %v1374
          %v1377 = vshrl.u32 %v1316, 16
          %v1379 = vshll.u32 %v1316, 16
          %v1381 = vrot.slane %v1379, 1
          %v1382 = vor.u32 %v1377, %v1381
          %v1384 = vshll.u32 %v1352, 16
          %v1386 = vrot.slane %v1384, 1
          %v1387 = vsel %vm1363, %v1382, %v1386
          %v1389 = vshrl.u32 %v1317, 16
          %v1391 = vshll.u32 %v1317, 16
          %v1393 = vrot.slane %v1391, 1
          %v1394 = vor.u32 %v1389, %v1393
          %v1396 = vshll.u32 %v1353, 16
          %v1398 = vrot.slane %v1396, 1
          %v1399 = vsel %vm1363, %v1394, %v1398
          %v1401 = vshrl.u32 %v1318, 16
          %v1403 = vshll.u32 %v1318, 16
          %v1405 = vrot.slane %v1403, 1
          %v1406 = vor.u32 %v1401, %v1405
          %v1408 = vshll.u32 %v1354, 16
          %v1410 = vrot.slane %v1408, 1
          %v1411 = vsel %vm1363, %v1406, %v1410
          %v1413 = vshrl.u32 %v1319, 16
          %v1415 = vshll.u32 %v1319, 16
          %v1417 = vrot.slane %v1415, 1
          %v1418 = vor.u32 %v1413, %v1417
          %v1420 = vshll.u32 %v1355, 16
          %v1422 = vrot.slane %v1420, 1
          %v1423 = vsel %vm1363, %v1418, %v1422
          %v1425 = vshrl.u32 %v1320, 16
          %v1427 = vshll.u32 %v1320, 16
          %v1429 = vrot.slane %v1427, 1
          %v1430 = vor.u32 %v1425, %v1429
          %v1432 = vshll.u32 %v1356, 16
          %v1434 = vrot.slane %v1432, 1
          %v1435 = vsel %vm1363, %v1430, %v1434
          %v1437 = vshrl.u32 %v1321, 16
          %v1439 = vshll.u32 %v1321, 16
          %v1441 = vrot.slane %v1439, 1
          %v1442 = vor.u32 %v1437, %v1441
          %v1444 = vshll.u32 %v1357, 16
          %v1446 = vrot.slane %v1444, 1
          %v1447 = vsel %vm1363, %v1442, %v1446
          %v1449 = vshrl.u32 %v1322, 16
          %v1451 = vshll.u32 %v1322, 16
          %v1453 = vrot.slane %v1451, 1
          %v1454 = vor.u32 %v1449, %v1453
          %v1456 = vshll.u32 %v1358, 16
          %v1458 = vrot.slane %v1456, 1
          %v1459 = vsel %vm1363, %v1454, %v1458
          %v1461 = vshrl.u32 %v1323, 16
          %v1463 = vshll.u32 %v1323, 16
          %v1465 = vrot.slane %v1463, 1
          %v1466 = vor.u32 %v1461, %v1465
          %v1468 = vshll.u32 %v1359, 16
          %v1470 = vrot.slane %v1468, 1
          %v1471 = vsel %vm1363, %v1466, %v1470
          %v1473 = vshrl.u32 %v1324, 16
          %v1475 = vshll.u32 %v1324, 16
          %v1477 = vrot.slane %v1475, 1
          %v1478 = vor.u32 %v1473, %v1477
          %v1480 = vshll.u32 %v1360, 16
          %v1482 = vrot.slane %v1480, 1
          %v1483 = vsel %vm1363, %v1478, %v1482
          %v1485 = vshrl.u32 %v1325, 16
          %v1487 = vshll.u32 %v1325, 16
          %v1489 = vrot.slane %v1487, 1
          %v1490 = vor.u32 %v1485, %v1489
          %v1492 = vshll.u32 %v1361, 16
          %v1494 = vrot.slane %v1492, 1
          %v1495 = vsel %vm1363, %v1490, %v1494
          %v1497 = vshrl.u32 %v1326, 16
          %v1499 = vshll.u32 %v1326, 16
          %v1501 = vrot.slane %v1499, 1
          %v1502 = vor.u32 %v1497, %v1501
          %v1504 = vshll.u32 %v1362, 16
          %v1506 = vrot.slane %v1504, 1
          %v1507 = vsel %vm1363, %v1502, %v1506
          %1508 = vrot.lane.b32.xlu0 %v1375, 4
          %v1509 = vpop.permute.xlu0 %1508
          %1510 = vrot.lane.b32.xlu0 %v1387, 4
          %v1511 = vpop.permute.xlu0 %1510
          %1512 = vrot.lane.b32.xlu0 %v1399, 4
          %v1513 = vpop.permute.xlu0 %1512
          %1514 = vrot.lane.b32.xlu0 %v1411, 4
          %v1515 = vpop.permute.xlu0 %1514
          %1516 = vrot.lane.b32.xlu0 %v1423, 4
          %v1517 = vpop.permute.xlu0 %1516
          %1518 = vrot.lane.b32.xlu0 %v1435, 4
          %v1519 = vpop.permute.xlu0 %1518
          %1520 = vrot.lane.b32.xlu0 %v1447, 4
          %v1521 = vpop.permute.xlu0 %1520
          %1522 = vrot.lane.b32.xlu0 %v1459, 4
          %v1523 = vpop.permute.xlu0 %1522
          %1524 = vrot.lane.b32.xlu0 %v1471, 4
          %v1525 = vpop.permute.xlu0 %1524
          %1526 = vrot.lane.b32.xlu0 %v1483, 4
          %v1527 = vpop.permute.xlu0 %1526
          %1528 = vrot.lane.b32.xlu0 %v1495, 4
          %v1529 = vpop.permute.xlu0 %1528
          %1530 = vrot.lane.b32.xlu0 %v1507, 4
          %v1531 = vpop.permute.xlu0 %1530
          %vm1532 = vcmask 1046528
          %v1533 = vrot.slane %v1315, 1
          %v1534 = vrot.slane %v1351, 1
          %v1535 = vsel %vm1532, %v1533, %v1534
          %v1536 = vrot.slane %v1316, 1
          %v1537 = vrot.slane %v1352, 1
          %v1538 = vsel %vm1532, %v1536, %v1537
          %v1539 = vrot.slane %v1317, 1
          %v1540 = vrot.slane %v1353, 1
          %v1541 = vsel %vm1532, %v1539, %v1540
          %v1542 = vrot.slane %v1318, 1
          %v1543 = vrot.slane %v1354, 1
          %v1544 = vsel %vm1532, %v1542, %v1543
          %v1545 = vrot.slane %v1319, 1
          %v1546 = vrot.slane %v1355, 1
          %v1547 = vsel %vm1532, %v1545, %v1546
          %v1548 = vrot.slane %v1320, 1
          %v1549 = vrot.slane %v1356, 1
          %v1550 = vsel %vm1532, %v1548, %v1549
          %v1551 = vrot.slane %v1321, 1
          %v1552 = vrot.slane %v1357, 1
          %v1553 = vsel %vm1532, %v1551, %v1552
          %v1554 = vrot.slane %v1322, 1
          %v1555 = vrot.slane %v1358, 1
          %v1556 = vsel %vm1532, %v1554, %v1555
          %v1557 = vrot.slane %v1323, 1
          %v1558 = vrot.slane %v1359, 1
          %v1559 = vsel %vm1532, %v1557, %v1558
          %v1560 = vrot.slane %v1324, 1
          %v1561 = vrot.slane %v1360, 1
          %v1562 = vsel %vm1532, %v1560, %v1561
          %v1563 = vrot.slane %v1325, 1
          %v1564 = vrot.slane %v1361, 1
          %v1565 = vsel %vm1532, %v1563, %v1564
          %v1566 = vrot.slane %v1326, 1
          %v1567 = vrot.slane %v1362, 1
          %v1568 = vsel %vm1532, %v1566, %v1567
          %1569 = vrot.lane.b32.xlu0 %v1535, 8
          %v1570 = vpop.permute.xlu0 %1569
          %1571 = vrot.lane.b32.xlu0 %v1538, 8
          %v1572 = vpop.permute.xlu0 %1571
          %1573 = vrot.lane.b32.xlu0 %v1541, 8
          %v1574 = vpop.permute.xlu0 %1573
          %1575 = vrot.lane.b32.xlu0 %v1544, 8
          %v1576 = vpop.permute.xlu0 %1575
          %1577 = vrot.lane.b32.xlu0 %v1547, 8
          %v1578 = vpop.permute.xlu0 %1577
          %1579 = vrot.lane.b32.xlu0 %v1550, 8
          %v1580 = vpop.permute.xlu0 %1579
          %1581 = vrot.lane.b32.xlu0 %v1553, 8
          %v1582 = vpop.permute.xlu0 %1581
          %1583 = vrot.lane.b32.xlu0 %v1556, 8
          %v1584 = vpop.permute.xlu0 %1583
          %1585 = vrot.lane.b32.xlu0 %v1559, 8
          %v1586 = vpop.permute.xlu0 %1585
          %1587 = vrot.lane.b32.xlu0 %v1562, 8
          %v1588 = vpop.permute.xlu0 %1587
          %1589 = vrot.lane.b32.xlu0 %v1565, 8
          %v1590 = vpop.permute.xlu0 %1589
          %1591 = vrot.lane.b32.xlu0 %v1568, 8
          %v1592 = vpop.permute.xlu0 %1591
          %vm1593 = vcmask 31744
          %v1595 = vsel %vm1593, %v1315, %v1509
          %v1597 = vsel %vm1593, %v1316, %v1511
          %v1599 = vsel %vm1593, %v1317, %v1513
          %v1601 = vsel %vm1593, %v1318, %v1515
          %v1603 = vsel %vm1593, %v1319, %v1517
          %v1605 = vsel %vm1593, %v1320, %v1519
          %v1607 = vsel %vm1593, %v1321, %v1521
          %v1609 = vsel %vm1593, %v1322, %v1523
          %v1611 = vsel %vm1593, %v1323, %v1525
          %v1613 = vsel %vm1593, %v1324, %v1527
          %v1615 = vsel %vm1593, %v1325, %v1529
          %v1617 = vsel %vm1593, %v1326, %v1531
          %vm1618 = vcmask 64512
          %v1620 = vsel %vm1618, %v1595, %v1570
          %v1622 = vsel %vm1618, %v1597, %v1572
          %v1624 = vsel %vm1618, %v1599, %v1574
          %v1626 = vsel %vm1618, %v1601, %v1576
          %v1628 = vsel %vm1618, %v1603, %v1578
          %v1630 = vsel %vm1618, %v1605, %v1580
          %v1632 = vsel %vm1618, %v1607, %v1582
          %v1634 = vsel %vm1618, %v1609, %v1584
          %v1636 = vsel %vm1618, %v1611, %v1586
          %v1638 = vsel %vm1618, %v1613, %v1588
          %v1640 = vsel %vm1618, %v1615, %v1590
          %v1642 = vsel %vm1618, %v1617, %v1592
          %v1643 = vld [vmem:[#allocation9] sm:$0xf]
          %v1644 = vld [vmem:[#allocation9 + $0x4] sm:$0x3]
          %s1645 = sadd.s32 %s1227, 1
          %s1646 = smul.u32 %s1645, 3
          %s1647 = smul.addr %s1646, 4
          %s1648 = scalar_lea.vmem [#allocation2], %s1647
          %v1649 = vld [vmem:[%s1648] sm:$0xf]
          %v1650 = vld [vmem:[%s1648 + $0x4] sm:$0xf]
          %v1651 = vld [vmem:[%s1648 + $0x8] sm:$0xf]
          %v1652 = vld [vmem:[%s1648 + $0xc] sm:$0xf]
          %v1653 = vld [vmem:[%s1648 + $0x10] sm:$0xf]
          %v1654 = vld [vmem:[%s1648 + $0x14] sm:$0xf]
          %v1655 = vld [vmem:[%s1648 + $0x18] sm:$0xf]
          %v1656 = vld [vmem:[%s1648 + $0x1c] sm:$0xf]
          %v1657 = vld [vmem:[%s1648 + $0x20] sm:$0xf]
          %v1658 = vld [vmem:[%s1648 + $0x24] sm:$0xf]
          %v1659 = vld [vmem:[%s1648 + $0x28] sm:$0xf]
          %v1660 = vld [vmem:[%s1648 + $0x2c] sm:$0xf]
          %v1661 = vld [vmem:[%s1648 + $0x30] sm:$0xf]
          %v1662 = vld [vmem:[%s1648 + $0x34] sm:$0xf]
          %v1663 = vld [vmem:[%s1648 + $0x38] sm:$0xf]
          %v1664 = vld [vmem:[%s1648 + $0x3c] sm:$0xf]
          %v1665 = vld [vmem:[%s1648 + $0x40] sm:$0xf]
          %v1666 = vld [vmem:[%s1648 + $0x44] sm:$0xf]
          %v1667 = vld [vmem:[%s1648 + $0x48] sm:$0xf]
          %v1668 = vld [vmem:[%s1648 + $0x4c] sm:$0xf]
          %v1669 = vld [vmem:[%s1648 + $0x50] sm:$0xf]
          %v1670 = vld [vmem:[%s1648 + $0x54] sm:$0xf]
          %v1671 = vld [vmem:[%s1648 + $0x58] sm:$0xf]
          %v1672 = vld [vmem:[%s1648 + $0x5c] sm:$0xf]
          %v1673 = vld [vmem:[%s1648 + $0x60] sm:$0xf]
          %v1674 = vld [vmem:[%s1648 + $0x64] sm:$0xf]
          %v1675 = vld [vmem:[%s1648 + $0x68] sm:$0xf]
          %v1676 = vld [vmem:[%s1648 + $0x6c] sm:$0xf]
          %v1677 = vld [vmem:[%s1648 + $0x70] sm:$0xf]
          %v1678 = vld [vmem:[%s1648 + $0x74] sm:$0xf]
          %v1679 = vld [vmem:[%s1648 + $0x78] sm:$0xf]
          %v1680 = vld [vmem:[%s1648 + $0x7c] sm:$0xf]
          %v1681 = vld [vmem:[%s1648 + $0x80] sm:$0xf]
          %v1682 = vld [vmem:[%s1648 + $0x84] sm:$0xf]
          %v1683 = vld [vmem:[%s1648 + $0x88] sm:$0xf]
          %v1684 = vld [vmem:[%s1648 + $0x8c] sm:$0xf]
          %v1709 = vunpack.c.l.b16 %v1649
          %v1710 = vunpack.c.l.b16 %v1650
          %v1711 = vunpack.c.l.b16 %v1652
          %v1712 = vunpack.c.l.b16 %v1653
          %v1713 = vunpack.c.l.b16 %v1655
          %v1714 = vunpack.c.l.b16 %v1656
          %v1715 = vunpack.c.l.b16 %v1658
          %v1716 = vunpack.c.l.b16 %v1659
          %v1717 = vunpack.c.l.b16 %v1661
          %v1718 = vunpack.c.l.b16 %v1662
          %v1719 = vunpack.c.l.b16 %v1664
          %v1720 = vunpack.c.l.b16 %v1665
          %v1721 = vunpack.c.l.b16 %v1667
          %v1722 = vunpack.c.l.b16 %v1668
          %v1723 = vunpack.c.l.b16 %v1670
          %v1724 = vunpack.c.l.b16 %v1671
          %v1725 = vunpack.c.l.b16 %v1673
          %v1726 = vunpack.c.l.b16 %v1674
          %v1727 = vunpack.c.l.b16 %v1676
          %v1728 = vunpack.c.l.b16 %v1677
          %v1729 = vunpack.c.l.b16 %v1679
          %v1730 = vunpack.c.l.b16 %v1680
          %v1731 = vunpack.c.l.b16 %v1682
          %v1732 = vunpack.c.l.b16 %v1683
          %v1733 = vpack.c.b16 %v1710, %v1709
          %v1734 = vpack.c.b16 %v1712, %v1711
          %v1735 = vpack.c.b16 %v1714, %v1713
          %v1736 = vpack.c.b16 %v1716, %v1715
          %v1737 = vpack.c.b16 %v1718, %v1717
          %v1738 = vpack.c.b16 %v1720, %v1719
          %v1739 = vpack.c.b16 %v1722, %v1721
          %v1740 = vpack.c.b16 %v1724, %v1723
          %v1741 = vpack.c.b16 %v1726, %v1725
          %v1742 = vpack.c.b16 %v1728, %v1727
          %v1743 = vpack.c.b16 %v1730, %v1729
          %v1744 = vpack.c.b16 %v1732, %v1731
          %v1757 = vunpack.c.l.b16 %v1651
          %v1758 = vunpack.c.l.b16 %v1654
          %v1759 = vunpack.c.l.b16 %v1657
          %v1760 = vunpack.c.l.b16 %v1660
          %v1761 = vunpack.c.l.b16 %v1663
          %v1762 = vunpack.c.l.b16 %v1666
          %v1763 = vunpack.c.l.b16 %v1669
          %v1764 = vunpack.c.l.b16 %v1672
          %v1765 = vunpack.c.l.b16 %v1675
          %v1766 = vunpack.c.l.b16 %v1678
          %v1767 = vunpack.c.l.b16 %v1681
          %v1768 = vunpack.c.l.b16 %v1684
          %v1769 = vpack.c.b16 %v1757, %v1757
          %v1770 = vpack.c.b16 %v1758, %v1758
          %v1771 = vpack.c.b16 %v1759, %v1759
          %v1772 = vpack.c.b16 %v1760, %v1760
          %v1773 = vpack.c.b16 %v1761, %v1761
          %v1774 = vpack.c.b16 %v1762, %v1762
          %v1775 = vpack.c.b16 %v1763, %v1763
          %v1776 = vpack.c.b16 %v1764, %v1764
          %v1777 = vpack.c.b16 %v1765, %v1765
          %v1778 = vpack.c.b16 %v1766, %v1766
          %v1779 = vpack.c.b16 %v1767, %v1767
          %v1780 = vpack.c.b16 %v1768, %v1768
          %v1782 = vshrl.u32 %v1733, 16
          %v1784 = vshll.u32 %v1733, 16
          %v1786 = vrot.slane %v1784, 1
          %v1787 = vor.u32 %v1782, %v1786
          %v1789 = vshll.u32 %v1769, 16
          %v1791 = vrot.slane %v1789, 1
          %v1792 = vsel %vm1363, %v1787, %v1791
          %v1794 = vshrl.u32 %v1734, 16
          %v1796 = vshll.u32 %v1734, 16
          %v1798 = vrot.slane %v1796, 1
          %v1799 = vor.u32 %v1794, %v1798
          %v1801 = vshll.u32 %v1770, 16
          %v1803 = vrot.slane %v1801, 1
          %v1804 = vsel %vm1363, %v1799, %v1803
          %v1806 = vshrl.u32 %v1735, 16
          %v1808 = vshll.u32 %v1735, 16
          %v1810 = vrot.slane %v1808, 1
          %v1811 = vor.u32 %v1806, %v1810
          %v1813 = vshll.u32 %v1771, 16
          %v1815 = vrot.slane %v1813, 1
          %v1816 = vsel %vm1363, %v1811, %v1815
          %v1818 = vshrl.u32 %v1736, 16
          %v1820 = vshll.u32 %v1736, 16
          %v1822 = vrot.slane %v1820, 1
          %v1823 = vor.u32 %v1818, %v1822
          %v1825 = vshll.u32 %v1772, 16
          %v1827 = vrot.slane %v1825, 1
          %v1828 = vsel %vm1363, %v1823, %v1827
          %v1830 = vshrl.u32 %v1737, 16
          %v1832 = vshll.u32 %v1737, 16
          %v1834 = vrot.slane %v1832, 1
          %v1835 = vor.u32 %v1830, %v1834
          %v1837 = vshll.u32 %v1773, 16
          %v1839 = vrot.slane %v1837, 1
          %v1840 = vsel %vm1363, %v1835, %v1839
          %v1842 = vshrl.u32 %v1738, 16
          %v1844 = vshll.u32 %v1738, 16
          %v1846 = vrot.slane %v1844, 1
          %v1847 = vor.u32 %v1842, %v1846
          %v1849 = vshll.u32 %v1774, 16
          %v1851 = vrot.slane %v1849, 1
          %v1852 = vsel %vm1363, %v1847, %v1851
          %v1854 = vshrl.u32 %v1739, 16
          %v1856 = vshll.u32 %v1739, 16
          %v1858 = vrot.slane %v1856, 1
          %v1859 = vor.u32 %v1854, %v1858
          %v1861 = vshll.u32 %v1775, 16
          %v1863 = vrot.slane %v1861, 1
          %v1864 = vsel %vm1363, %v1859, %v1863
          %v1866 = vshrl.u32 %v1740, 16
          %v1868 = vshll.u32 %v1740, 16
          %v1870 = vrot.slane %v1868, 1
          %v1871 = vor.u32 %v1866, %v1870
          %v1873 = vshll.u32 %v1776, 16
          %v1875 = vrot.slane %v1873, 1
          %v1876 = vsel %vm1363, %v1871, %v1875
          %v1878 = vshrl.u32 %v1741, 16
          %v1880 = vshll.u32 %v1741, 16
          %v1882 = vrot.slane %v1880, 1
          %v1883 = vor.u32 %v1878, %v1882
          %v1885 = vshll.u32 %v1777, 16
          %v1887 = vrot.slane %v1885, 1
          %v1888 = vsel %vm1363, %v1883, %v1887
          %v1890 = vshrl.u32 %v1742, 16
          %v1892 = vshll.u32 %v1742, 16
          %v1894 = vrot.slane %v1892, 1
          %v1895 = vor.u32 %v1890, %v1894
          %v1897 = vshll.u32 %v1778, 16
          %v1899 = vrot.slane %v1897, 1
          %v1900 = vsel %vm1363, %v1895, %v1899
          %v1902 = vshrl.u32 %v1743, 16
          %v1904 = vshll.u32 %v1743, 16
          %v1906 = vrot.slane %v1904, 1
          %v1907 = vor.u32 %v1902, %v1906
          %v1909 = vshll.u32 %v1779, 16
          %v1911 = vrot.slane %v1909, 1
          %v1912 = vsel %vm1363, %v1907, %v1911
          %v1914 = vshrl.u32 %v1744, 16
          %v1916 = vshll.u32 %v1744, 16
          %v1918 = vrot.slane %v1916, 1
          %v1919 = vor.u32 %v1914, %v1918
          %v1921 = vshll.u32 %v1780, 16
          %v1923 = vrot.slane %v1921, 1
          %v1924 = vsel %vm1363, %v1919, %v1923
          %1925 = vrot.lane.b32.xlu0 %v1792, 4
          %v1926 = vpop.permute.xlu0 %1925
          %1927 = vrot.lane.b32.xlu0 %v1804, 4
          %v1928 = vpop.permute.xlu0 %1927
          %1929 = vrot.lane.b32.xlu0 %v1816, 4
          %v1930 = vpop.permute.xlu0 %1929
          %1931 = vrot.lane.b32.xlu0 %v1828, 4
          %v1932 = vpop.permute.xlu0 %1931
          %1933 = vrot.lane.b32.xlu0 %v1840, 4
          %v1934 = vpop.permute.xlu0 %1933
          %1935 = vrot.lane.b32.xlu0 %v1852, 4
          %v1936 = vpop.permute.xlu0 %1935
          %1937 = vrot.lane.b32.xlu0 %v1864, 4
          %v1938 = vpop.permute.xlu0 %1937
          %1939 = vrot.lane.b32.xlu0 %v1876, 4
          %v1940 = vpop.permute.xlu0 %1939
          %1941 = vrot.lane.b32.xlu0 %v1888, 4
          %v1942 = vpop.permute.xlu0 %1941
          %1943 = vrot.lane.b32.xlu0 %v1900, 4
          %v1944 = vpop.permute.xlu0 %1943
          %1945 = vrot.lane.b32.xlu0 %v1912, 4
          %v1946 = vpop.permute.xlu0 %1945
          %1947 = vrot.lane.b32.xlu0 %v1924, 4
          %v1948 = vpop.permute.xlu0 %1947
          %v1949 = vrot.slane %v1733, 1
          %v1950 = vrot.slane %v1769, 1
          %v1951 = vsel %vm1532, %v1949, %v1950
          %v1952 = vrot.slane %v1734, 1
          %v1953 = vrot.slane %v1770, 1
          %v1954 = vsel %vm1532, %v1952, %v1953
          %v1955 = vrot.slane %v1735, 1
          %v1956 = vrot.slane %v1771, 1
          %v1957 = vsel %vm1532, %v1955, %v1956
          %v1958 = vrot.slane %v1736, 1
          %v1959 = vrot.slane %v1772, 1
          %v1960 = vsel %vm1532, %v1958, %v1959
          %v1961 = vrot.slane %v1737, 1
          %v1962 = vrot.slane %v1773, 1
          %v1963 = vsel %vm1532, %v1961, %v1962
          %v1964 = vrot.slane %v1738, 1
          %v1965 = vrot.slane %v1774, 1
          %v1966 = vsel %vm1532, %v1964, %v1965
          %v1967 = vrot.slane %v1739, 1
          %v1968 = vrot.slane %v1775, 1
          %v1969 = vsel %vm1532, %v1967, %v1968
          %v1970 = vrot.slane %v1740, 1
          %v1971 = vrot.slane %v1776, 1
          %v1972 = vsel %vm1532, %v1970, %v1971
          %v1973 = vrot.slane %v1741, 1
          %v1974 = vrot.slane %v1777, 1
          %v1975 = vsel %vm1532, %v1973, %v1974
          %v1976 = vrot.slane %v1742, 1
          %v1977 = vrot.slane %v1778, 1
          %v1978 = vsel %vm1532, %v1976, %v1977
          %v1979 = vrot.slane %v1743, 1
          %v1980 = vrot.slane %v1779, 1
          %v1981 = vsel %vm1532, %v1979, %v1980
          %v1982 = vrot.slane %v1744, 1
          %v1983 = vrot.slane %v1780, 1
          %v1984 = vsel %vm1532, %v1982, %v1983
          %1985 = vrot.lane.b32.xlu0 %v1951, 8
          %v1986 = vpop.permute.xlu0 %1985
          %1987 = vrot.lane.b32.xlu0 %v1954, 8
          %v1988 = vpop.permute.xlu0 %1987
          %1989 = vrot.lane.b32.xlu0 %v1957, 8
          %v1990 = vpop.permute.xlu0 %1989
          %1991 = vrot.lane.b32.xlu0 %v1960, 8
          %v1992 = vpop.permute.xlu0 %1991
          %1993 = vrot.lane.b32.xlu0 %v1963, 8
          %v1994 = vpop.permute.xlu0 %1993
          %1995 = vrot.lane.b32.xlu0 %v1966, 8
          %v1996 = vpop.permute.xlu0 %1995
          %1997 = vrot.lane.b32.xlu0 %v1969, 8
          %v1998 = vpop.permute.xlu0 %1997
          %1999 = vrot.lane.b32.xlu0 %v1972, 8
          %v2000 = vpop.permute.xlu0 %1999
          %2001 = vrot.lane.b32.xlu0 %v1975, 8
          %v2002 = vpop.permute.xlu0 %2001
          %2003 = vrot.lane.b32.xlu0 %v1978, 8
          %v2004 = vpop.permute.xlu0 %2003
          %2005 = vrot.lane.b32.xlu0 %v1981, 8
          %v2006 = vpop.permute.xlu0 %2005
          %2007 = vrot.lane.b32.xlu0 %v1984, 8
          %v2008 = vpop.permute.xlu0 %2007
          %v2010 = vsel %vm1593, %v1733, %v1926
          %v2012 = vsel %vm1593, %v1734, %v1928
          %v2014 = vsel %vm1593, %v1735, %v1930
          %v2016 = vsel %vm1593, %v1736, %v1932
          %v2018 = vsel %vm1593, %v1737, %v1934
          %v2020 = vsel %vm1593, %v1738, %v1936
          %v2022 = vsel %vm1593, %v1739, %v1938
          %v2024 = vsel %vm1593, %v1740, %v1940
          %v2026 = vsel %vm1593, %v1741, %v1942
          %v2028 = vsel %vm1593, %v1742, %v1944
          %v2030 = vsel %vm1593, %v1743, %v1946
          %v2032 = vsel %vm1593, %v1744, %v1948
          %v2034 = vsel %vm1618, %v2010, %v1986
          %v2036 = vsel %vm1618, %v2012, %v1988
          %v2038 = vsel %vm1618, %v2014, %v1990
          %v2040 = vsel %vm1618, %v2016, %v1992
          %v2042 = vsel %vm1618, %v2018, %v1994
          %v2044 = vsel %vm1618, %v2020, %v1996
          %v2046 = vsel %vm1618, %v2022, %v1998
          %v2048 = vsel %vm1618, %v2024, %v2000
          %v2050 = vsel %vm1618, %v2026, %v2002
          %v2052 = vsel %vm1618, %v2028, %v2004
          %v2054 = vsel %vm1618, %v2030, %v2006
          %v2056 = vsel %vm1618, %v2032, %v2008
          %s2057 = scalar_lea.vmem [#allocation9], 8
          %v2058 = vld [vmem:[%s2057] sm:$0xf]
          %v2059 = vld [vmem:[%s2057 + $0x4] sm:$0x3]
          %v2062 = vunpack.c.l.b16 %v2058
          %v2063 = vunpack.c.l.b16 %v2059
          %v2064 = vpack.c.b16 %v2063, %v2062
          %vm2065 = vcmask 97280
          %v2066 = vsel %vm2065, %v2034, 0
          %v2068 = vsel %vm2065, %v2036, 0
          %v2070 = vsel %vm2065, %v2038, 0
          %v2072 = vsel %vm2065, %v2040, 0
          %v2074 = vsel %vm2065, %v2042, 0
          %v2076 = vsel %vm2065, %v2044, 0
          %v2078 = vsel %vm2065, %v2046, 0
          %v2080 = vsel %vm2065, %v2048, 0
          %v2082 = vsel %vm2065, %v2050, 0
          %v2084 = vsel %vm2065, %v2052, 0
          %v2086 = vsel %vm2065, %v2054, 0
          %v2088 = vsel %vm2065, %v2056, 0
          %vm2090 = vcmask 1045504
          %v2092 = vsel %vm2090, %v2064, 0
          %2094 = vmatprep.subr.bf16.mxu0 0
          %2095 = vmatpush1.bf16.msra.mxu0 %v2092
          %2096 = vmatprep.subr.bf16.mxu0 0
          %2097 = vmatpush1.bf16.msra.mxu0 0
          %2098 = vmatprep.subr.bf16.mxu0 0
          %2099 = vmatpush1.bf16.msra.mxu0 0
          %2100 = vmatprep.subr.bf16.mxu0 0
          %2101 = vmatpush1.bf16.msra.mxu0 0
          %2102 = vmatprep.subr.bf16.mxu0 0
          %2103 = vmatpush1.bf16.msra.mxu0 0
          %2104 = vmatprep.subr.bf16.mxu0 0
          %2105 = vmatpush1.bf16.msra.mxu0 0
          %2106 = vmatprep.subr.bf16.mxu0 0
          %2107 = vmatpush1.bf16.msra.mxu0 0
          %2108 = vmatprep.subr.bf16.mxu0 0
          %2109 = vmatpush1.bf16.msra.mxu0 0
          %2110 = vmatprep.subr.bf16.mxu0 0
          %2111 = vmatpush1.bf16.msra.mxu0 0
          %2112 = vmatprep.subr.bf16.mxu0 0
          %2113 = vmatpush1.bf16.msra.mxu0 0
          %2114 = vmatprep.subr.bf16.mxu0 0
          %2115 = vmatpush1.bf16.msra.mxu0 0
          %2116 = vmatprep.subr.bf16.mxu0 0
          %2117 = vmatpush1.bf16.msra.mxu0 0
          %2118 = vmatprep.subr.bf16.mxu0 0
          %2119 = vmatpush1.bf16.msra.mxu0 0
          %2120 = vmatprep.subr.bf16.mxu0 0
          %2121 = vmatpush1.bf16.msra.mxu0 0
          %2122 = vmatprep.subr.bf16.mxu0 0
          %2123 = vmatpush1.bf16.msra.mxu0 0
          %2124 = vmatprep.subr.bf16.mxu0 0
          %2125 = vmatpush1.bf16.msra.mxu0 0
          %2126 = vmatprep.mubr.bf16.mxu0 0
          %2127 = vmatmul.mubr.bf16.gmra.mrb[0].mxu0 %v2066
          %v2128 = vpop.f32.mrb[0].mxu0
          %v2129 = vadd.f32 0.0, %v2128
          %v2130 = vpop.f32.mrb[0].mxu0
          %v2131 = vpop.f32.mrb[0].mxu0
          %v2132 = vadd.f32 0.0, %v2131
          %v2133 = vpop.f32.mrb[0].mxu0
          %2134 = vmatprep.mubr.bf16.mxu0 0
          %2135 = vmatmul.mubr.bf16.gmra.mrb[0].mxu0 %v2068
          %v2136 = vpop.f32.mrb[0].mxu0
          %v2137 = vadd.f32 0.0, %v2136
          %v2138 = vpop.f32.mrb[0].mxu0
          %v2139 = vpop.f32.mrb[0].mxu0
          %v2140 = vadd.f32 0.0, %v2139
          %v2141 = vpop.f32.mrb[0].mxu0
          %2142 = vmatprep.mubr.bf16.mxu0 0
          %2143 = vmatmul.mubr.bf16.gmra.mrb[0].mxu0 %v2070
          %v2144 = vpop.f32.mrb[0].mxu0
          %v2145 = vadd.f32 0.0, %v2144
          %v2146 = vpop.f32.mrb[0].mxu0
          %v2147 = vpop.f32.mrb[0].mxu0
          %v2148 = vadd.f32 0.0, %v2147
          %v2149 = vpop.f32.mrb[0].mxu0
          %2150 = vmatprep.mubr.bf16.mxu0 0
          %2151 = vmatmul.mubr.bf16.gmra.mrb[0].mxu0 %v2072
          %v2152 = vpop.f32.mrb[0].mxu0
          %v2153 = vadd.f32 0.0, %v2152
          %v2154 = vpop.f32.mrb[0].mxu0
          %v2155 = vpop.f32.mrb[0].mxu0
          %v2156 = vadd.f32 0.0, %v2155
          %v2157 = vpop.f32.mrb[0].mxu0
          %2158 = vmatprep.mubr.bf16.mxu0 0
          %2159 = vmatmul.mubr.bf16.gmra.mrb[0].mxu0 %v2074
          %v2160 = vpop.f32.mrb[0].mxu0
          %v2161 = vadd.f32 0.0, %v2160
          %v2162 = vpop.f32.mrb[0].mxu0
          %v2163 = vpop.f32.mrb[0].mxu0
          %v2164 = vadd.f32 0.0, %v2163
          %v2165 = vpop.f32.mrb[0].mxu0
          %2166 = vmatprep.mubr.bf16.mxu0 0
          %2167 = vmatmul.mubr.bf16.gmra.mrb[0].mxu0 %v2076
          %v2168 = vpop.f32.mrb[0].mxu0
          %v2169 = vadd.f32 0.0, %v2168
          %v2170 = vpop.f32.mrb[0].mxu0
          %v2171 = vpop.f32.mrb[0].mxu0
          %v2172 = vadd.f32 0.0, %v2171
          %v2173 = vpop.f32.mrb[0].mxu0
          %2174 = vmatprep.mubr.bf16.mxu0 0
          %2175 = vmatmul.mubr.bf16.gmra.mrb[0].mxu0 %v2078
          %v2176 = vpop.f32.mrb[0].mxu0
          %v2177 = vadd.f32 0.0, %v2176
          %v2178 = vpop.f32.mrb[0].mxu0
          %v2179 = vpop.f32.mrb[0].mxu0
          %v2180 = vadd.f32 0.0, %v2179
          %v2181 = vpop.f32.mrb[0].mxu0
          %2182 = vmatprep.mubr.bf16.mxu0 0
          %2183 = vmatmul.mubr.bf16.gmra.mrb[0].mxu0 %v2080
          %v2184 = vpop.f32.mrb[0].mxu0
          %v2185 = vadd.f32 0.0, %v2184
          %v2186 = vpop.f32.mrb[0].mxu0
          %v2187 = vpop.f32.mrb[0].mxu0
          %v2188 = vadd.f32 0.0, %v2187
          %v2189 = vpop.f32.mrb[0].mxu0
          %2190 = vmatprep.mubr.bf16.mxu0 0
          %2191 = vmatmul.mubr.bf16.gmra.mrb[0].mxu0 %v2082
          %v2192 = vpop.f32.mrb[0].mxu0
          %v2193 = vadd.f32 0.0, %v2192
          %v2194 = vpop.f32.mrb[0].mxu0
          %v2195 = vpop.f32.mrb[0].mxu0
          %v2196 = vadd.f32 0.0, %v2195
          %v2197 = vpop.f32.mrb[0].mxu0
          %2198 = vmatprep.mubr.bf16.mxu0 0
          %2199 = vmatmul.mubr.bf16.gmra.mrb[0].mxu0 %v2084
          %v2200 = vpop.f32.mrb[0].mxu0
          %v2201 = vadd.f32 0.0, %v2200
          %v2202 = vpop.f32.mrb[0].mxu0
          %v2203 = vpop.f32.mrb[0].mxu0
          %v2204 = vadd.f32 0.0, %v2203
          %v2205 = vpop.f32.mrb[0].mxu0
          %2206 = vmatprep.mubr.bf16.mxu0 0
          %2207 = vmatmul.mubr.bf16.gmra.mrb[0].mxu0 %v2086
          %v2208 = vpop.f32.mrb[0].mxu0
          %v2209 = vadd.f32 0.0, %v2208
          %v2210 = vpop.f32.mrb[0].mxu0
          %v2211 = vpop.f32.mrb[0].mxu0
          %v2212 = vadd.f32 0.0, %v2211
          %v2213 = vpop.f32.mrb[0].mxu0
          %2214 = vmatprep.mubr.bf16.mxu0 0
          %2215 = vmatmul.mubr.bf16.gmra.mrb[0].mxu0 %v2088
          %v2216 = vpop.f32.mrb[0].mxu0
          %v2217 = vadd.f32 0.0, %v2216
          %v2218 = vpop.f32.mrb[0].mxu0
          %v2219 = vpop.f32.mrb[0].mxu0
          %v2220 = vadd.f32 0.0, %v2219
          %v2221 = vpop.f32.mrb[0].mxu0
          %2222 = vdwg.mxu0
          %v2225 = vunpack.c.l.b16 %v1643
          %v2226 = vunpack.c.l.b16 %v1644
          %v2227 = vpack.c.b16 %v2226, %v2225
          %v2228 = vsel %vm2065, %v1620, 0
          %v2230 = vsel %vm2065, %v1622, 0
          %v2232 = vsel %vm2065, %v1624, 0
          %v2234 = vsel %vm2065, %v1626, 0
          %v2236 = vsel %vm2065, %v1628, 0
          %v2238 = vsel %vm2065, %v1630, 0
          %v2240 = vsel %vm2065, %v1632, 0
          %v2242 = vsel %vm2065, %v1634, 0
          %v2244 = vsel %vm2065, %v1636, 0
          %v2246 = vsel %vm2065, %v1638, 0
          %v2248 = vsel %vm2065, %v1640, 0
          %v2250 = vsel %vm2065, %v1642, 0
          %v2253 = vsel %vm2090, %v2227, 0
          %2255 = vmatprep.subr.bf16.mxu0 0
          %2256 = vmatpush1.bf16.msra.mxu0 %v2253
          %2257 = vmatprep.subr.bf16.mxu0 0
          %2258 = vmatpush1.bf16.msra.mxu0 0
          %2259 = vmatprep.subr.bf16.mxu0 0
          %2260 = vmatpush1.bf16.msra.mxu0 0
          %2261 = vmatprep.subr.bf16.mxu0 0
          %2262 = vmatpush1.bf16.msra.mxu0 0
          %2263 = vmatprep.subr.bf16.mxu0 0
          %2264 = vmatpush1.bf16.msra.mxu0 0
          %2265 = vmatprep.subr.bf16.mxu0 0
          %2266 = vmatpush1.bf16.msra.mxu0 0
          %2267 = vmatprep.subr.bf16.mxu0 0
          %2268 = vmatpush1.bf16.msra.mxu0 0
          %2269 = vmatprep.subr.bf16.mxu0 0
          %2270 = vmatpush1.bf16.msra.mxu0 0
          %2271 = vmatprep.subr.bf16.mxu0 0
          %2272 = vmatpush1.bf16.msra.mxu0 0
          %2273 = vmatprep.subr.bf16.mxu0 0
          %2274 = vmatpush1.bf16.msra.mxu0 0
          %2275 = vmatprep.subr.bf16.mxu0 0
          %2276 = vmatpush1.bf16.msra.mxu0 0
          %2277 = vmatprep.subr.bf16.mxu0 0
          %2278 = vmatpush1.bf16.msra.mxu0 0
          %2279 = vmatprep.subr.bf16.mxu0 0
          %2280 = vmatpush1.bf16.msra.mxu0 0
          %2281 = vmatprep.subr.bf16.mxu0 0
          %2282 = vmatpush1.bf16.msra.mxu0 0
          %2283 = vmatprep.subr.bf16.mxu0 0
          %2284 = vmatpush1.bf16.msra.mxu0 0
          %2285 = vmatprep.subr.bf16.mxu0 0
          %2286 = vmatpush1.bf16.msra.mxu0 0
          %2287 = vmatprep.mubr.bf16.mxu0 0
          %2288 = vmatmul.mubr.bf16.gmra.mrb[0].mxu0 %v2228
          %v2289 = vpop.f32.mrb[0].mxu0
          %v2290 = vadd.f32 %v2129, %v2289
          %v2291 = vpop.f32.mrb[0].mxu0
          %v2292 = vpop.f32.mrb[0].mxu0
          %v2293 = vadd.f32 %v2132, %v2292
          %v2294 = vpop.f32.mrb[0].mxu0
          %2295 = vmatprep.mubr.bf16.mxu0 0
          %2296 = vmatmul.mubr.bf16.gmra.mrb[0].mxu0 %v2230
          %v2297 = vpop.f32.mrb[0].mxu0
          %v2298 = vadd.f32 %v2137, %v2297
          %v2299 = vpop.f32.mrb[0].mxu0
          %v2300 = vpop.f32.mrb[0].mxu0
          %v2301 = vadd.f32 %v2140, %v2300
          %v2302 = vpop.f32.mrb[0].mxu0
          %2303 = vmatprep.mubr.bf16.mxu0 0
          %2304 = vmatmul.mubr.bf16.gmra.mrb[0].mxu0 %v2232
          %v2305 = vpop.f32.mrb[0].mxu0
          %v2306 = vadd.f32 %v2145, %v2305
          %v2307 = vpop.f32.mrb[0].mxu0
          %v2308 = vpop.f32.mrb[0].mxu0
          %v2309 = vadd.f32 %v2148, %v2308
          %v2310 = vpop.f32.mrb[0].mxu0
          %2311 = vmatprep.mubr.bf16.mxu0 0
          %2312 = vmatmul.mubr.bf16.gmra.mrb[0].mxu0 %v2234
          %v2313 = vpop.f32.mrb[0].mxu0
          %v2314 = vadd.f32 %v2153, %v2313
          %v2315 = vpop.f32.mrb[0].mxu0
          %v2316 = vpop.f32.mrb[0].mxu0
          %v2317 = vadd.f32 %v2156, %v2316
          %v2318 = vpop.f32.mrb[0].mxu0
          %2319 = vmatprep.mubr.bf16.mxu0 0
          %2320 = vmatmul.mubr.bf16.gmra.mrb[0].mxu0 %v2236
          %v2321 = vpop.f32.mrb[0].mxu0
          %v2322 = vadd.f32 %v2161, %v2321
          %v2323 = vpop.f32.mrb[0].mxu0
          %v2324 = vpop.f32.mrb[0].mxu0
          %v2325 = vadd.f32 %v2164, %v2324
          %v2326 = vpop.f32.mrb[0].mxu0
          %2327 = vmatprep.mubr.bf16.mxu0 0
          %2328 = vmatmul.mubr.bf16.gmra.mrb[0].mxu0 %v2238
          %v2329 = vpop.f32.mrb[0].mxu0
          %v2330 = vadd.f32 %v2169, %v2329
          %v2331 = vpop.f32.mrb[0].mxu0
          %v2332 = vpop.f32.mrb[0].mxu0
          %v2333 = vadd.f32 %v2172, %v2332
          %v2334 = vpop.f32.mrb[0].mxu0
          %2335 = vmatprep.mubr.bf16.mxu0 0
          %2336 = vmatmul.mubr.bf16.gmra.mrb[0].mxu0 %v2240
          %v2337 = vpop.f32.mrb[0].mxu0
          %v2338 = vadd.f32 %v2177, %v2337
          %v2339 = vpop.f32.mrb[0].mxu0
          %v2340 = vpop.f32.mrb[0].mxu0
          %v2341 = vadd.f32 %v2180, %v2340
          %v2342 = vpop.f32.mrb[0].mxu0
          %2343 = vmatprep.mubr.bf16.mxu0 0
          %2344 = vmatmul.mubr.bf16.gmra.mrb[0].mxu0 %v2242
          %v2345 = vpop.f32.mrb[0].mxu0
          %v2346 = vadd.f32 %v2185, %v2345
          %v2347 = vpop.f32.mrb[0].mxu0
          %v2348 = vpop.f32.mrb[0].mxu0
          %v2349 = vadd.f32 %v2188, %v2348
          %v2350 = vpop.f32.mrb[0].mxu0
          %2351 = vmatprep.mubr.bf16.mxu0 0
          %2352 = vmatmul.mubr.bf16.gmra.mrb[0].mxu0 %v2244
          %v2353 = vpop.f32.mrb[0].mxu0
          %v2354 = vadd.f32 %v2193, %v2353
          %v2355 = vpop.f32.mrb[0].mxu0
          %v2356 = vpop.f32.mrb[0].mxu0
          %v2357 = vadd.f32 %v2196, %v2356
          %v2358 = vpop.f32.mrb[0].mxu0
          %2359 = vmatprep.mubr.bf16.mxu0 0
          %2360 = vmatmul.mubr.bf16.gmra.mrb[0].mxu0 %v2246
          %v2361 = vpop.f32.mrb[0].mxu0
          %v2362 = vadd.f32 %v2201, %v2361
          %v2363 = vpop.f32.mrb[0].mxu0
          %v2364 = vpop.f32.mrb[0].mxu0
          %v2365 = vadd.f32 %v2204, %v2364
          %v2366 = vpop.f32.mrb[0].mxu0
          %2367 = vmatprep.mubr.bf16.mxu0 0
          %2368 = vmatmul.mubr.bf16.gmra.mrb[0].mxu0 %v2248
          %v2369 = vpop.f32.mrb[0].mxu0
          %v2370 = vadd.f32 %v2209, %v2369
          %v2371 = vpop.f32.mrb[0].mxu0
          %v2372 = vpop.f32.mrb[0].mxu0
          %v2373 = vadd.f32 %v2212, %v2372
          %v2374 = vpop.f32.mrb[0].mxu0
          %2375 = vmatprep.mubr.bf16.mxu0 0
          %2376 = vmatmul.mubr.bf16.gmra.mrb[0].mxu0 %v2250
          %v2377 = vpop.f32.mrb[0].mxu0
          %v2378 = vadd.f32 %v2217, %v2377
          %v2379 = vpop.f32.mrb[0].mxu0
          %v2380 = vpop.f32.mrb[0].mxu0
          %v2381 = vadd.f32 %v2220, %v2380
          %v2382 = vpop.f32.mrb[0].mxu0
          %2383 = vdwg.mxu0
          %s2384 = sadd.s32 %s1227, 2
          %s2385 = smul.u32 %s2384, 3
          %s2386 = smul.addr %s2385, 4
          %s2387 = scalar_lea.vmem [#allocation2], %s2386
          %v2388 = vld [vmem:[%s2387] sm:$0xf]
          %v2389 = vld [vmem:[%s2387 + $0x4] sm:$0xf]
          %v2390 = vld [vmem:[%s2387 + $0x8] sm:$0xf]
          %v2391 = vld [vmem:[%s2387 + $0xc] sm:$0xf]
          %v2392 = vld [vmem:[%s2387 + $0x10] sm:$0xf]
          %v2393 = vld [vmem:[%s2387 + $0x14] sm:$0xf]
          %v2394 = vld [vmem:[%s2387 + $0x18] sm:$0xf]
          %v2395 = vld [vmem:[%s2387 + $0x1c] sm:$0xf]
          %v2396 = vld [vmem:[%s2387 + $0x20] sm:$0xf]
          %v2397 = vld [vmem:[%s2387 + $0x24] sm:$0xf]
          %v2398 = vld [vmem:[%s2387 + $0x28] sm:$0xf]
          %v2399 = vld [vmem:[%s2387 + $0x2c] sm:$0xf]
          %v2400 = vld [vmem:[%s2387 + $0x30] sm:$0xf]
          %v2401 = vld [vmem:[%s2387 + $0x34] sm:$0xf]
          %v2402 = vld [vmem:[%s2387 + $0x38] sm:$0xf]
          %v2403 = vld [vmem:[%s2387 + $0x3c] sm:$0xf]
          %v2404 = vld [vmem:[%s2387 + $0x40] sm:$0xf]
          %v2405 = vld [vmem:[%s2387 + $0x44] sm:$0xf]
          %v2406 = vld [vmem:[%s2387 + $0x48] sm:$0xf]
          %v2407 = vld [vmem:[%s2387 + $0x4c] sm:$0xf]
          %v2408 = vld [vmem:[%s2387 + $0x50] sm:$0xf]
          %v2409 = vld [vmem:[%s2387 + $0x54] sm:$0xf]
          %v2410 = vld [vmem:[%s2387 + $0x58] sm:$0xf]
          %v2411 = vld [vmem:[%s2387 + $0x5c] sm:$0xf]
          %v2412 = vld [vmem:[%s2387 + $0x60] sm:$0xf]
          %v2413 = vld [vmem:[%s2387 + $0x64] sm:$0xf]
          %v2414 = vld [vmem:[%s2387 + $0x68] sm:$0xf]
          %v2415 = vld [vmem:[%s2387 + $0x6c] sm:$0xf]
          %v2416 = vld [vmem:[%s2387 + $0x70] sm:$0xf]
          %v2417 = vld [vmem:[%s2387 + $0x74] sm:$0xf]
          %v2418 = vld [vmem:[%s2387 + $0x78] sm:$0xf]
          %v2419 = vld [vmem:[%s2387 + $0x7c] sm:$0xf]
          %v2420 = vld [vmem:[%s2387 + $0x80] sm:$0xf]
          %v2421 = vld [vmem:[%s2387 + $0x84] sm:$0xf]
          %v2422 = vld [vmem:[%s2387 + $0x88] sm:$0xf]
          %v2423 = vld [vmem:[%s2387 + $0x8c] sm:$0xf]
          %v2448 = vunpack.c.l.b16 %v2388
          %v2449 = vunpack.c.l.b16 %v2389
          %v2450 = vunpack.c.l.b16 %v2391
          %v2451 = vunpack.c.l.b16 %v2392
          %v2452 = vunpack.c.l.b16 %v2394
          %v2453 = vunpack.c.l.b16 %v2395
          %v2454 = vunpack.c.l.b16 %v2397
          %v2455 = vunpack.c.l.b16 %v2398
          %v2456 = vunpack.c.l.b16 %v2400
          %v2457 = vunpack.c.l.b16 %v2401
          %v2458 = vunpack.c.l.b16 %v2403
          %v2459 = vunpack.c.l.b16 %v2404
          %v2460 = vunpack.c.l.b16 %v2406
          %v2461 = vunpack.c.l.b16 %v2407
          %v2462 = vunpack.c.l.b16 %v2409
          %v2463 = vunpack.c.l.b16 %v2410
          %v2464 = vunpack.c.l.b16 %v2412
          %v2465 = vunpack.c.l.b16 %v2413
          %v2466 = vunpack.c.l.b16 %v2415
          %v2467 = vunpack.c.l.b16 %v2416
          %v2468 = vunpack.c.l.b16 %v2418
          %v2469 = vunpack.c.l.b16 %v2419
          %v2470 = vunpack.c.l.b16 %v2421
          %v2471 = vunpack.c.l.b16 %v2422
          %v2472 = vpack.c.b16 %v2449, %v2448
          %v2473 = vpack.c.b16 %v2451, %v2450
          %v2474 = vpack.c.b16 %v2453, %v2452
          %v2475 = vpack.c.b16 %v2455, %v2454
          %v2476 = vpack.c.b16 %v2457, %v2456
          %v2477 = vpack.c.b16 %v2459, %v2458
          %v2478 = vpack.c.b16 %v2461, %v2460
          %v2479 = vpack.c.b16 %v2463, %v2462
          %v2480 = vpack.c.b16 %v2465, %v2464
          %v2481 = vpack.c.b16 %v2467, %v2466
          %v2482 = vpack.c.b16 %v2469, %v2468
          %v2483 = vpack.c.b16 %v2471, %v2470
          %v2496 = vunpack.c.l.b16 %v2390
          %v2497 = vunpack.c.l.b16 %v2393
          %v2498 = vunpack.c.l.b16 %v2396
          %v2499 = vunpack.c.l.b16 %v2399
          %v2500 = vunpack.c.l.b16 %v2402
          %v2501 = vunpack.c.l.b16 %v2405
          %v2502 = vunpack.c.l.b16 %v2408
          %v2503 = vunpack.c.l.b16 %v2411
          %v2504 = vunpack.c.l.b16 %v2414
          %v2505 = vunpack.c.l.b16 %v2417
          %v2506 = vunpack.c.l.b16 %v2420
          %v2507 = vunpack.c.l.b16 %v2423
          %v2508 = vpack.c.b16 %v2496, %v2496
          %v2509 = vpack.c.b16 %v2497, %v2497
          %v2510 = vpack.c.b16 %v2498, %v2498
          %v2511 = vpack.c.b16 %v2499, %v2499
          %v2512 = vpack.c.b16 %v2500, %v2500
          %v2513 = vpack.c.b16 %v2501, %v2501
          %v2514 = vpack.c.b16 %v2502, %v2502
          %v2515 = vpack.c.b16 %v2503, %v2503
          %v2516 = vpack.c.b16 %v2504, %v2504
          %v2517 = vpack.c.b16 %v2505, %v2505
          %v2518 = vpack.c.b16 %v2506, %v2506
          %v2519 = vpack.c.b16 %v2507, %v2507
          %v2521 = vshrl.u32 %v2472, 16
          %v2523 = vshll.u32 %v2472, 16
          %v2525 = vrot.slane %v2523, 1
          %v2526 = vor.u32 %v2521, %v2525
          %v2528 = vshll.u32 %v2508, 16
          %v2530 = vrot.slane %v2528, 1
          %v2531 = vsel %vm1363, %v2526, %v2530
          %v2533 = vshrl.u32 %v2473, 16
          %v2535 = vshll.u32 %v2473, 16
          %v2537 = vrot.slane %v2535, 1
          %v2538 = vor.u32 %v2533, %v2537
          %v2540 = vshll.u32 %v2509, 16
          %v2542 = vrot.slane %v2540, 1
          %v2543 = vsel %vm1363, %v2538, %v2542
          %v2545 = vshrl.u32 %v2474, 16
          %v2547 = vshll.u32 %v2474, 16
          %v2549 = vrot.slane %v2547, 1
          %v2550 = vor.u32 %v2545, %v2549
          %v2552 = vshll.u32 %v2510, 16
          %v2554 = vrot.slane %v2552, 1
          %v2555 = vsel %vm1363, %v2550, %v2554
          %v2557 = vshrl.u32 %v2475, 16
          %v2559 = vshll.u32 %v2475, 16
          %v2561 = vrot.slane %v2559, 1
          %v2562 = vor.u32 %v2557, %v2561
          %v2564 = vshll.u32 %v2511, 16
          %v2566 = vrot.slane %v2564, 1
          %v2567 = vsel %vm1363, %v2562, %v2566
          %v2569 = vshrl.u32 %v2476, 16
          %v2571 = vshll.u32 %v2476, 16
          %v2573 = vrot.slane %v2571, 1
          %v2574 = vor.u32 %v2569, %v2573
          %v2576 = vshll.u32 %v2512, 16
          %v2578 = vrot.slane %v2576, 1
          %v2579 = vsel %vm1363, %v2574, %v2578
          %v2581 = vshrl.u32 %v2477, 16
          %v2583 = vshll.u32 %v2477, 16
          %v2585 = vrot.slane %v2583, 1
          %v2586 = vor.u32 %v2581, %v2585
          %v2588 = vshll.u32 %v2513, 16
          %v2590 = vrot.slane %v2588, 1
          %v2591 = vsel %vm1363, %v2586, %v2590
          %v2593 = vshrl.u32 %v2478, 16
          %v2595 = vshll.u32 %v2478, 16
          %v2597 = vrot.slane %v2595, 1
          %v2598 = vor.u32 %v2593, %v2597
          %v2600 = vshll.u32 %v2514, 16
          %v2602 = vrot.slane %v2600, 1
          %v2603 = vsel %vm1363, %v2598, %v2602
          %v2605 = vshrl.u32 %v2479, 16
          %v2607 = vshll.u32 %v2479, 16
          %v2609 = vrot.slane %v2607, 1
          %v2610 = vor.u32 %v2605, %v2609
          %v2612 = vshll.u32 %v2515, 16
          %v2614 = vrot.slane %v2612, 1
          %v2615 = vsel %vm1363, %v2610, %v2614
          %v2617 = vshrl.u32 %v2480, 16
          %v2619 = vshll.u32 %v2480, 16
          %v2621 = vrot.slane %v2619, 1
          %v2622 = vor.u32 %v2617, %v2621
          %v2624 = vshll.u32 %v2516, 16
          %v2626 = vrot.slane %v2624, 1
          %v2627 = vsel %vm1363, %v2622, %v2626
          %v2629 = vshrl.u32 %v2481, 16
          %v2631 = vshll.u32 %v2481, 16
          %v2633 = vrot.slane %v2631, 1
          %v2634 = vor.u32 %v2629, %v2633
          %v2636 = vshll.u32 %v2517, 16
          %v2638 = vrot.slane %v2636, 1
          %v2639 = vsel %vm1363, %v2634, %v2638
          %v2641 = vshrl.u32 %v2482, 16
          %v2643 = vshll.u32 %v2482, 16
          %v2645 = vrot.slane %v2643, 1
          %v2646 = vor.u32 %v2641, %v2645
          %v2648 = vshll.u32 %v2518, 16
          %v2650 = vrot.slane %v2648, 1
          %v2651 = vsel %vm1363, %v2646, %v2650
          %v2653 = vshrl.u32 %v2483, 16
          %v2655 = vshll.u32 %v2483, 16
          %v2657 = vrot.slane %v2655, 1
          %v2658 = vor.u32 %v2653, %v2657
          %v2660 = vshll.u32 %v2519, 16
          %v2662 = vrot.slane %v2660, 1
          %v2663 = vsel %vm1363, %v2658, %v2662
          %2664 = vrot.lane.b32.xlu0 %v2531, 4
          %v2665 = vpop.permute.xlu0 %2664
          %2666 = vrot.lane.b32.xlu0 %v2543, 4
          %v2667 = vpop.permute.xlu0 %2666
          %2668 = vrot.lane.b32.xlu0 %v2555, 4
          %v2669 = vpop.permute.xlu0 %2668
          %2670 = vrot.lane.b32.xlu0 %v2567, 4
          %v2671 = vpop.permute.xlu0 %2670
          %2672 = vrot.lane.b32.xlu0 %v2579, 4
          %v2673 = vpop.permute.xlu0 %2672
          %2674 = vrot.lane.b32.xlu0 %v2591, 4
          %v2675 = vpop.permute.xlu0 %2674
          %2676 = vrot.lane.b32.xlu0 %v2603, 4
          %v2677 = vpop.permute.xlu0 %2676
          %2678 = vrot.lane.b32.xlu0 %v2615, 4
          %v2679 = vpop.permute.xlu0 %2678
          %2680 = vrot.lane.b32.xlu0 %v2627, 4
          %v2681 = vpop.permute.xlu0 %2680
          %2682 = vrot.lane.b32.xlu0 %v2639, 4
          %v2683 = vpop.permute.xlu0 %2682
          %2684 = vrot.lane.b32.xlu0 %v2651, 4
          %v2685 = vpop.permute.xlu0 %2684
          %2686 = vrot.lane.b32.xlu0 %v2663, 4
          %v2687 = vpop.permute.xlu0 %2686
          %v2688 = vrot.slane %v2472, 1
          %v2689 = vrot.slane %v2508, 1
          %v2690 = vsel %vm1532, %v2688, %v2689
          %v2691 = vrot.slane %v2473, 1
          %v2692 = vrot.slane %v2509, 1
          %v2693 = vsel %vm1532, %v2691, %v2692
          %v2694 = vrot.slane %v2474, 1
          %v2695 = vrot.slane %v2510, 1
          %v2696 = vsel %vm1532, %v2694, %v2695
          %v2697 = vrot.slane %v2475, 1
          %v2698 = vrot.slane %v2511, 1
          %v2699 = vsel %vm1532, %v2697, %v2698
          %v2700 = vrot.slane %v2476, 1
          %v2701 = vrot.slane %v2512, 1
          %v2702 = vsel %vm1532, %v2700, %v2701
          %v2703 = vrot.slane %v2477, 1
          %v2704 = vrot.slane %v2513, 1
          %v2705 = vsel %vm1532, %v2703, %v2704
          %v2706 = vrot.slane %v2478, 1
          %v2707 = vrot.slane %v2514, 1
          %v2708 = vsel %vm1532, %v2706, %v2707
          %v2709 = vrot.slane %v2479, 1
          %v2710 = vrot.slane %v2515, 1
          %v2711 = vsel %vm1532, %v2709, %v2710
          %v2712 = vrot.slane %v2480, 1
          %v2713 = vrot.slane %v2516, 1
          %v2714 = vsel %vm1532, %v2712, %v2713
          %v2715 = vrot.slane %v2481, 1
          %v2716 = vrot.slane %v2517, 1
          %v2717 = vsel %vm1532, %v2715, %v2716
          %v2718 = vrot.slane %v2482, 1
          %v2719 = vrot.slane %v2518, 1
          %v2720 = vsel %vm1532, %v2718, %v2719
          %v2721 = vrot.slane %v2483, 1
          %v2722 = vrot.slane %v2519, 1
          %v2723 = vsel %vm1532, %v2721, %v2722
          %2724 = vrot.lane.b32.xlu0 %v2690, 8
          %v2725 = vpop.permute.xlu0 %2724
          %2726 = vrot.lane.b32.xlu0 %v2693, 8
          %v2727 = vpop.permute.xlu0 %2726
          %2728 = vrot.lane.b32.xlu0 %v2696, 8
          %v2729 = vpop.permute.xlu0 %2728
          %2730 = vrot.lane.b32.xlu0 %v2699, 8
          %v2731 = vpop.permute.xlu0 %2730
          %2732 = vrot.lane.b32.xlu0 %v2702, 8
          %v2733 = vpop.permute.xlu0 %2732
          %2734 = vrot.lane.b32.xlu0 %v2705, 8
          %v2735 = vpop.permute.xlu0 %2734
          %2736 = vrot.lane.b32.xlu0 %v2708, 8
          %v2737 = vpop.permute.xlu0 %2736
          %2738 = vrot.lane.b32.xlu0 %v2711, 8
          %v2739 = vpop.permute.xlu0 %2738
          %2740 = vrot.lane.b32.xlu0 %v2714, 8
          %v2741 = vpop.permute.xlu0 %2740
          %2742 = vrot.lane.b32.xlu0 %v2717, 8
          %v2743 = vpop.permute.xlu0 %2742
          %2744 = vrot.lane.b32.xlu0 %v2720, 8
          %v2745 = vpop.permute.xlu0 %2744
          %2746 = vrot.lane.b32.xlu0 %v2723, 8
          %v2747 = vpop.permute.xlu0 %2746
          %v2749 = vsel %vm1593, %v2472, %v2665
          %v2751 = vsel %vm1593, %v2473, %v2667
          %v2753 = vsel %vm1593, %v2474, %v2669
          %v2755 = vsel %vm1593, %v2475, %v2671
          %v2757 = vsel %vm1593, %v2476, %v2673
          %v2759 = vsel %vm1593, %v2477, %v2675
          %v2761 = vsel %vm1593, %v2478, %v2677
          %v2763 = vsel %vm1593, %v2479, %v2679
          %v2765 = vsel %vm1593, %v2480, %v2681
          %v2767 = vsel %vm1593, %v2481, %v2683
          %v2769 = vsel %vm1593, %v2482, %v2685
          %v2771 = vsel %vm1593, %v2483, %v2687
          %v2773 = vsel %vm1618, %v2749, %v2725
          %v2775 = vsel %vm1618, %v2751, %v2727
          %v2777 = vsel %vm1618, %v2753, %v2729
          %v2779 = vsel %vm1618, %v2755, %v2731
          %v2781 = vsel %vm1618, %v2757, %v2733
          %v2783 = vsel %vm1618, %v2759, %v2735
          %v2785 = vsel %vm1618, %v2761, %v2737
          %v2787 = vsel %vm1618, %v2763, %v2739
          %v2789 = vsel %vm1618, %v2765, %v2741
          %v2791 = vsel %vm1618, %v2767, %v2743
          %v2793 = vsel %vm1618, %v2769, %v2745
          %v2795 = vsel %vm1618, %v2771, %v2747
          %s2796 = scalar_lea.vmem [#allocation9], 16
          %v2797 = vld [vmem:[%s2796] sm:$0xf]
          %v2798 = vld [vmem:[%s2796 + $0x4] sm:$0x3]
          %v2801 = vunpack.c.l.b16 %v2797
          %v2802 = vunpack.c.l.b16 %v2798
          %v2803 = vpack.c.b16 %v2802, %v2801
          %v2804 = vsel %vm2065, %v2773, 0
          %v2806 = vsel %vm2065, %v2775, 0
          %v2808 = vsel %vm2065, %v2777, 0
          %v2810 = vsel %vm2065, %v2779, 0
          %v2812 = vsel %vm2065, %v2781, 0
          %v2814 = vsel %vm2065, %v2783, 0
          %v2816 = vsel %vm2065, %v2785, 0
          %v2818 = vsel %vm2065, %v2787, 0
          %v2820 = vsel %vm2065, %v2789, 0
          %v2822 = vsel %vm2065, %v2791, 0
          %v2824 = vsel %vm2065, %v2793, 0
          %v2826 = vsel %vm2065, %v2795, 0
          %v2829 = vsel %vm2090, %v2803, 0
          %2831 = vmatprep.subr.bf16.mxu0 0
          %2832 = vmatpush1.bf16.msra.mxu0 %v2829
          %2833 = vmatprep.subr.bf16.mxu0 0
          %2834 = vmatpush1.bf16.msra.mxu0 0
          %2835 = vmatprep.subr.bf16.mxu0 0
          %2836 = vmatpush1.bf16.msra.mxu0 0
          %2837 = vmatprep.subr.bf16.mxu0 0
          %2838 = vmatpush1.bf16.msra.mxu0 0
          %2839 = vmatprep.subr.bf16.mxu0 0
          %2840 = vmatpush1.bf16.msra.mxu0 0
          %2841 = vmatprep.subr.bf16.mxu0 0
          %2842 = vmatpush1.bf16.msra.mxu0 0
          %2843 = vmatprep.subr.bf16.mxu0 0
          %2844 = vmatpush1.bf16.msra.mxu0 0
          %2845 = vmatprep.subr.bf16.mxu0 0
          %2846 = vmatpush1.bf16.msra.mxu0 0
          %2847 = vmatprep.subr.bf16.mxu0 0
          %2848 = vmatpush1.bf16.msra.mxu0 0
          %2849 = vmatprep.subr.bf16.mxu0 0
          %2850 = vmatpush1.bf16.msra.mxu0 0
          %2851 = vmatprep.subr.bf16.mxu0 0
          %2852 = vmatpush1.bf16.msra.mxu0 0
          %2853 = vmatprep.subr.bf16.mxu0 0
          %2854 = vmatpush1.bf16.msra.mxu0 0
          %2855 = vmatprep.subr.bf16.mxu0 0
          %2856 = vmatpush1.bf16.msra.mxu0 0
          %2857 = vmatprep.subr.bf16.mxu0 0
          %2858 = vmatpush1.bf16.msra.mxu0 0
          %2859 = vmatprep.subr.bf16.mxu0 0
          %2860 = vmatpush1.bf16.msra.mxu0 0
          %2861 = vmatprep.subr.bf16.mxu0 0
          %2862 = vmatpush1.bf16.msra.mxu0 0
          %2863 = vmatprep.mubr.bf16.mxu0 0
          %2864 = vmatmul.mubr.bf16.gmra.mrb[0].mxu0 %v2804
          %v2865 = vpop.f32.mrb[0].mxu0
          %v2866 = vadd.f32 0.0, %v2865
          %v2867 = vpop.f32.mrb[0].mxu0
          %v2868 = vpop.f32.mrb[0].mxu0
          %v2869 = vadd.f32 0.0, %v2868
          %v2870 = vpop.f32.mrb[0].mxu0
          %2871 = vmatprep.mubr.bf16.mxu0 0
          %2872 = vmatmul.mubr.bf16.gmra.mrb[0].mxu0 %v2806
          %v2873 = vpop.f32.mrb[0].mxu0
          %v2874 = vadd.f32 0.0, %v2873
          %v2875 = vpop.f32.mrb[0].mxu0
          %v2876 = vpop.f32.mrb[0].mxu0
          %v2877 = vadd.f32 0.0, %v2876
          %v2878 = vpop.f32.mrb[0].mxu0
          %2879 = vmatprep.mubr.bf16.mxu0 0
          %2880 = vmatmul.mubr.bf16.gmra.mrb[0].mxu0 %v2808
          %v2881 = vpop.f32.mrb[0].mxu0
          %v2882 = vadd.f32 0.0, %v2881
          %v2883 = vpop.f32.mrb[0].mxu0
          %v2884 = vpop.f32.mrb[0].mxu0
          %v2885 = vadd.f32 0.0, %v2884
          %v2886 = vpop.f32.mrb[0].mxu0
          %2887 = vmatprep.mubr.bf16.mxu0 0
          %2888 = vmatmul.mubr.bf16.gmra.mrb[0].mxu0 %v2810
          %v2889 = vpop.f32.mrb[0].mxu0
          %v2890 = vadd.f32 0.0, %v2889
          %v2891 = vpop.f32.mrb[0].mxu0
          %v2892 = vpop.f32.mrb[0].mxu0
          %v2893 = vadd.f32 0.0, %v2892
          %v2894 = vpop.f32.mrb[0].mxu0
          %2895 = vmatprep.mubr.bf16.mxu0 0
          %2896 = vmatmul.mubr.bf16.gmra.mrb[0].mxu0 %v2812
          %v2897 = vpop.f32.mrb[0].mxu0
          %v2898 = vadd.f32 0.0, %v2897
          %v2899 = vpop.f32.mrb[0].mxu0
          %v2900 = vpop.f32.mrb[0].mxu0
          %v2901 = vadd.f32 0.0, %v2900
          %v2902 = vpop.f32.mrb[0].mxu0
          %2903 = vmatprep.mubr.bf16.mxu0 0
          %2904 = vmatmul.mubr.bf16.gmra.mrb[0].mxu0 %v2814
          %v2905 = vpop.f32.mrb[0].mxu0
          %v2906 = vadd.f32 0.0, %v2905
          %v2907 = vpop.f32.mrb[0].mxu0
          %v2908 = vpop.f32.mrb[0].mxu0
          %v2909 = vadd.f32 0.0, %v2908
          %v2910 = vpop.f32.mrb[0].mxu0
          %2911 = vmatprep.mubr.bf16.mxu0 0
          %2912 = vmatmul.mubr.bf16.gmra.mrb[0].mxu0 %v2816
          %v2913 = vpop.f32.mrb[0].mxu0
          %v2914 = vadd.f32 0.0, %v2913
          %v2915 = vpop.f32.mrb[0].mxu0
          %v2916 = vpop.f32.mrb[0].mxu0
          %v2917 = vadd.f32 0.0, %v2916
          %v2918 = vpop.f32.mrb[0].mxu0
          %2919 = vmatprep.mubr.bf16.mxu0 0
          %2920 = vmatmul.mubr.bf16.gmra.mrb[0].mxu0 %v2818
          %v2921 = vpop.f32.mrb[0].mxu0
          %v2922 = vadd.f32 0.0, %v2921
          %v2923 = vpop.f32.mrb[0].mxu0
          %v2924 = vpop.f32.mrb[0].mxu0
          %v2925 = vadd.f32 0.0, %v2924
          %v2926 = vpop.f32.mrb[0].mxu0
          %2927 = vmatprep.mubr.bf16.mxu0 0
          %2928 = vmatmul.mubr.bf16.gmra.mrb[0].mxu0 %v2820
          %v2929 = vpop.f32.mrb[0].mxu0
          %v2930 = vadd.f32 0.0, %v2929
          %v2931 = vpop.f32.mrb[0].mxu0
          %v2932 = vpop.f32.mrb[0].mxu0
          %v2933 = vadd.f32 0.0, %v2932
          %v2934 = vpop.f32.mrb[0].mxu0
          %2935 = vmatprep.mubr.bf16.mxu0 0
          %2936 = vmatmul.mubr.bf16.gmra.mrb[0].mxu0 %v2822
          %v2937 = vpop.f32.mrb[0].mxu0
          %v2938 = vadd.f32 0.0, %v2937
          %v2939 = vpop.f32.mrb[0].mxu0
          %v2940 = vpop.f32.mrb[0].mxu0
          %v2941 = vadd.f32 0.0, %v2940
          %v2942 = vpop.f32.mrb[0].mxu0
          %2943 = vmatprep.mubr.bf16.mxu0 0
          %2944 = vmatmul.mubr.bf16.gmra.mrb[0].mxu0 %v2824
          %v2945 = vpop.f32.mrb[0].mxu0
          %v2946 = vadd.f32 0.0, %v2945
          %v2947 = vpop.f32.mrb[0].mxu0
          %v2948 = vpop.f32.mrb[0].mxu0
          %v2949 = vadd.f32 0.0, %v2948
          %v2950 = vpop.f32.mrb[0].mxu0
          %2951 = vmatprep.mubr.bf16.mxu0 0
          %2952 = vmatmul.mubr.bf16.gmra.mrb[0].mxu0 %v2826
          %v2953 = vpop.f32.mrb[0].mxu0
          %v2954 = vadd.f32 0.0, %v2953
          %v2955 = vpop.f32.mrb[0].mxu0
          %v2956 = vpop.f32.mrb[0].mxu0
          %v2957 = vadd.f32 0.0, %v2956
          %v2958 = vpop.f32.mrb[0].mxu0
          %2959 = vdwg.mxu0
          %v2960 = vadd.f32 %v2290, %v2866
          %v2961 = vadd.f32 %v2293, %v2869
          %v2962 = vadd.f32 %v2298, %v2874
          %v2963 = vadd.f32 %v2301, %v2877
          %v2964 = vadd.f32 %v2306, %v2882
          %v2965 = vadd.f32 %v2309, %v2885
          %v2966 = vadd.f32 %v2314, %v2890
          %v2967 = vadd.f32 %v2317, %v2893
          %v2968 = vadd.f32 %v2322, %v2898
          %v2969 = vadd.f32 %v2325, %v2901
          %v2970 = vadd.f32 %v2330, %v2906
          %v2971 = vadd.f32 %v2333, %v2909
          %v2972 = vadd.f32 %v2338, %v2914
          %v2973 = vadd.f32 %v2341, %v2917
          %v2974 = vadd.f32 %v2346, %v2922
          %v2975 = vadd.f32 %v2349, %v2925
          %v2976 = vadd.f32 %v2354, %v2930
          %v2977 = vadd.f32 %v2357, %v2933
          %v2978 = vadd.f32 %v2362, %v2938
          %v2979 = vadd.f32 %v2365, %v2941
          %v2980 = vadd.f32 %v2370, %v2946
          %v2981 = vadd.f32 %v2373, %v2949
          %v2982 = vadd.f32 %v2378, %v2954
          %v2983 = vadd.f32 %v2381, %v2957
          %v2985 = vlaneseq
          %v2986 = vshrl.u32 %v2985, 7
          %v2987 = vsub.s32 0, %v2986
          %v2988 = vrot.slane %v515, %v2987
          %v2990 = vadd.f32 %v2960, %v2988
          %v2991 = vadd.f32 %v2961, %v2988
          %v2992 = vadd.f32 %v2962, %v2988
          %v2993 = vadd.f32 %v2963, %v2988
          %v2994 = vadd.f32 %v2964, %v2988
          %v2995 = vadd.f32 %v2965, %v2988
          %v2996 = vadd.f32 %v2966, %v2988
          %v2997 = vadd.f32 %v2967, %v2988
          %v2998 = vadd.f32 %v2968, %v2988
          %v2999 = vadd.f32 %v2969, %v2988
          %v3000 = vadd.f32 %v2970, %v2988
          %v3001 = vadd.f32 %v2971, %v2988
          %v3002 = vadd.f32 %v2972, %v2988
          %v3003 = vadd.f32 %v2973, %v2988
          %v3004 = vadd.f32 %v2974, %v2988
          %v3005 = vadd.f32 %v2975, %v2988
          %v3006 = vadd.f32 %v2976, %v2988
          %v3007 = vadd.f32 %v2977, %v2988
          %v3008 = vadd.f32 %v2978, %v2988
          %v3009 = vadd.f32 %v2979, %v2988
          %v3010 = vadd.f32 %v2980, %v2988
          %v3011 = vadd.f32 %v2981, %v2988
          %v3012 = vadd.f32 %v2982, %v2988
          %v3013 = vadd.f32 %v2983, %v2988
          %v3014 = vmax.f32 %v2990, 0.0
          %v3015 = vmax.f32 %v2991, 0.0
          %v3016 = vmax.f32 %v2992, 0.0
          %v3017 = vmax.f32 %v2993, 0.0
          %v3018 = vmax.f32 %v2994, 0.0
          %v3019 = vmax.f32 %v2995, 0.0
          %v3020 = vmax.f32 %v2996, 0.0
          %v3021 = vmax.f32 %v2997, 0.0
          %v3022 = vmax.f32 %v2998, 0.0
          %v3023 = vmax.f32 %v2999, 0.0
          %v3024 = vmax.f32 %v3000, 0.0
          %v3025 = vmax.f32 %v3001, 0.0
          %v3026 = vmax.f32 %v3002, 0.0
          %v3027 = vmax.f32 %v3003, 0.0
          %v3028 = vmax.f32 %v3004, 0.0
          %v3029 = vmax.f32 %v3005, 0.0
          %v3030 = vmax.f32 %v3006, 0.0
          %v3031 = vmax.f32 %v3007, 0.0
          %v3032 = vmax.f32 %v3008, 0.0
          %v3033 = vmax.f32 %v3009, 0.0
          %v3034 = vmax.f32 %v3010, 0.0
          %v3035 = vmax.f32 %v3011, 0.0
          %v3036 = vmax.f32 %v3012, 0.0
          %v3037 = vmax.f32 %v3013, 0.0
          %v3038 = vpack.c.bf16 %v3015, %v3014
          %v3039 = vpack.c.bf16 %v3017, %v3016
          %v3040 = vpack.c.bf16 %v3019, %v3018
          %v3041 = vpack.c.bf16 %v3021, %v3020
          %v3042 = vpack.c.bf16 %v3023, %v3022
          %v3043 = vpack.c.bf16 %v3025, %v3024
          %v3044 = vpack.c.bf16 %v3027, %v3026
          %v3045 = vpack.c.bf16 %v3029, %v3028
          %v3046 = vpack.c.bf16 %v3031, %v3030
          %v3047 = vpack.c.bf16 %v3033, %v3032
          %v3048 = vpack.c.bf16 %v3035, %v3034
          %v3049 = vpack.c.bf16 %v3037, %v3036
          %v3050 = vld [vmem:[#allocation12] sm:$0x3]
          %v3052 = vlaneseq
          %v3053 = vshrl.u32 %v3052, 7
          %v3054 = vsub.s32 0, %v3053
          %v3055 = vrot.slane %v516, %v3054
          %v3058 = vsel %vm1593, %v3038, 0
          %v3061 = vsel %vm1593, %v3039, 0
          %v3064 = vsel %vm1593, %v3040, 0
          %v3067 = vsel %vm1593, %v3041, 0
          %v3070 = vsel %vm1593, %v3042, 0
          %v3073 = vsel %vm1593, %v3043, 0
          %v3076 = vsel %vm1593, %v3044, 0
          %v3079 = vsel %vm1593, %v3045, 0
          %v3082 = vsel %vm1593, %v3046, 0
          %v3085 = vsel %vm1593, %v3047, 0
          %v3088 = vsel %vm1593, %v3048, 0
          %v3091 = vsel %vm1593, %v3049, 0
          %vm3093 = vcmask 1041408
          %v3095 = vsel %vm3093, %v3050, 0
          %3097 = vmatprep.subr.bf16.mxu0 0
          %3098 = vmatpush1.bf16.msra.mxu0 %v3095
          %3099 = vmatprep.subr.bf16.mxu0 0
          %3100 = vmatpush1.bf16.msra.mxu0 0
          %3101 = vmatprep.subr.bf16.mxu0 0
          %3102 = vmatpush1.bf16.msra.mxu0 0
          %3103 = vmatprep.subr.bf16.mxu0 0
          %3104 = vmatpush1.bf16.msra.mxu0 0
          %3105 = vmatprep.subr.bf16.mxu0 0
          %3106 = vmatpush1.bf16.msra.mxu0 0
          %3107 = vmatprep.subr.bf16.mxu0 0
          %3108 = vmatpush1.bf16.msra.mxu0 0
          %3109 = vmatprep.subr.bf16.mxu0 0
          %3110 = vmatpush1.bf16.msra.mxu0 0
          %3111 = vmatprep.subr.bf16.mxu0 0
          %3112 = vmatpush1.bf16.msra.mxu0 0
          %3113 = vmatprep.subr.bf16.mxu0 0
          %3114 = vmatpush1.bf16.msra.mxu0 0
          %3115 = vmatprep.subr.bf16.mxu0 0
          %3116 = vmatpush1.bf16.msra.mxu0 0
          %3117 = vmatprep.subr.bf16.mxu0 0
          %3118 = vmatpush1.bf16.msra.mxu0 0
          %3119 = vmatprep.subr.bf16.mxu0 0
          %3120 = vmatpush1.bf16.msra.mxu0 0
          %3121 = vmatprep.subr.bf16.mxu0 0
          %3122 = vmatpush1.bf16.msra.mxu0 0
          %3123 = vmatprep.subr.bf16.mxu0 0
          %3124 = vmatpush1.bf16.msra.mxu0 0
          %3125 = vmatprep.subr.bf16.mxu0 0
          %3126 = vmatpush1.bf16.msra.mxu0 0
          %3127 = vmatprep.subr.bf16.mxu0 0
          %3128 = vmatpush1.bf16.msra.mxu0 0
          %3129 = vmatprep.mubr.bf16.mxu0 0
          %3130 = vmatmul.mubr.bf16.gmra.mrb[0].mxu0 %v3058
          %v3131 = vpop.f32.mrb[0].mxu0
          %v3132 = vadd.f32 %v3055, %v3131
          %v3133 = vpop.f32.mrb[0].mxu0
          %v3134 = vpop.f32.mrb[0].mxu0
          %v3135 = vadd.f32 %v3055, %v3134
          %v3136 = vpop.f32.mrb[0].mxu0
          %3137 = vmatprep.mubr.bf16.mxu0 0
          %3138 = vmatmul.mubr.bf16.gmra.mrb[0].mxu0 %v3061
          %v3139 = vpop.f32.mrb[0].mxu0
          %v3140 = vadd.f32 %v3055, %v3139
          %v3141 = vpop.f32.mrb[0].mxu0
          %v3142 = vpop.f32.mrb[0].mxu0
          %v3143 = vadd.f32 %v3055, %v3142
          %v3144 = vpop.f32.mrb[0].mxu0
          %3145 = vmatprep.mubr.bf16.mxu0 0
          %3146 = vmatmul.mubr.bf16.gmra.mrb[0].mxu0 %v3064
          %v3147 = vpop.f32.mrb[0].mxu0
          %v3148 = vadd.f32 %v3055, %v3147
          %v3149 = vpop.f32.mrb[0].mxu0
          %v3150 = vpop.f32.mrb[0].mxu0
          %v3151 = vadd.f32 %v3055, %v3150
          %v3152 = vpop.f32.mrb[0].mxu0
          %3153 = vmatprep.mubr.bf16.mxu0 0
          %3154 = vmatmul.mubr.bf16.gmra.mrb[0].mxu0 %v3067
          %v3155 = vpop.f32.mrb[0].mxu0
          %v3156 = vadd.f32 %v3055, %v3155
          %v3157 = vpop.f32.mrb[0].mxu0
          %v3158 = vpop.f32.mrb[0].mxu0
          %v3159 = vadd.f32 %v3055, %v3158
          %v3160 = vpop.f32.mrb[0].mxu0
          %3161 = vmatprep.mubr.bf16.mxu0 0
          %3162 = vmatmul.mubr.bf16.gmra.mrb[0].mxu0 %v3070
          %v3163 = vpop.f32.mrb[0].mxu0
          %v3164 = vadd.f32 %v3055, %v3163
          %v3165 = vpop.f32.mrb[0].mxu0
          %v3166 = vpop.f32.mrb[0].mxu0
          %v3167 = vadd.f32 %v3055, %v3166
          %v3168 = vpop.f32.mrb[0].mxu0
          %3169 = vmatprep.mubr.bf16.mxu0 0
          %3170 = vmatmul.mubr.bf16.gmra.mrb[0].mxu0 %v3073
          %v3171 = vpop.f32.mrb[0].mxu0
          %v3172 = vadd.f32 %v3055, %v3171
          %v3173 = vpop.f32.mrb[0].mxu0
          %v3174 = vpop.f32.mrb[0].mxu0
          %v3175 = vadd.f32 %v3055, %v3174
          %v3176 = vpop.f32.mrb[0].mxu0
          %3177 = vmatprep.mubr.bf16.mxu0 0
          %3178 = vmatmul.mubr.bf16.gmra.mrb[0].mxu0 %v3076
          %v3179 = vpop.f32.mrb[0].mxu0
          %v3180 = vadd.f32 %v3055, %v3179
          %v3181 = vpop.f32.mrb[0].mxu0
          %v3182 = vpop.f32.mrb[0].mxu0
          %v3183 = vadd.f32 %v3055, %v3182
          %v3184 = vpop.f32.mrb[0].mxu0
          %3185 = vmatprep.mubr.bf16.mxu0 0
          %3186 = vmatmul.mubr.bf16.gmra.mrb[0].mxu0 %v3079
          %v3187 = vpop.f32.mrb[0].mxu0
          %v3188 = vadd.f32 %v3055, %v3187
          %v3189 = vpop.f32.mrb[0].mxu0
          %v3190 = vpop.f32.mrb[0].mxu0
          %v3191 = vadd.f32 %v3055, %v3190
          %v3192 = vpop.f32.mrb[0].mxu0
          %3193 = vmatprep.mubr.bf16.mxu0 0
          %3194 = vmatmul.mubr.bf16.gmra.mrb[0].mxu0 %v3082
          %v3195 = vpop.f32.mrb[0].mxu0
          %v3196 = vadd.f32 %v3055, %v3195
          %v3197 = vpop.f32.mrb[0].mxu0
          %v3198 = vpop.f32.mrb[0].mxu0
          %v3199 = vadd.f32 %v3055, %v3198
          %v3200 = vpop.f32.mrb[0].mxu0
          %3201 = vmatprep.mubr.bf16.mxu0 0
          %3202 = vmatmul.mubr.bf16.gmra.mrb[0].mxu0 %v3085
          %v3203 = vpop.f32.mrb[0].mxu0
          %v3204 = vadd.f32 %v3055, %v3203
          %v3205 = vpop.f32.mrb[0].mxu0
          %v3206 = vpop.f32.mrb[0].mxu0
          %v3207 = vadd.f32 %v3055, %v3206
          %v3208 = vpop.f32.mrb[0].mxu0
          %3209 = vmatprep.mubr.bf16.mxu0 0
          %3210 = vmatmul.mubr.bf16.gmra.mrb[0].mxu0 %v3088
          %v3211 = vpop.f32.mrb[0].mxu0
          %v3212 = vadd.f32 %v3055, %v3211
          %v3213 = vpop.f32.mrb[0].mxu0
          %v3214 = vpop.f32.mrb[0].mxu0
          %v3215 = vadd.f32 %v3055, %v3214
          %v3216 = vpop.f32.mrb[0].mxu0
          %3217 = vmatprep.mubr.bf16.mxu0 0
          %3218 = vmatmul.mubr.bf16.gmra.mrb[0].mxu0 %v3091
          %v3219 = vpop.f32.mrb[0].mxu0
          %v3220 = vadd.f32 %v3055, %v3219
          %v3221 = vpop.f32.mrb[0].mxu0
          %v3222 = vpop.f32.mrb[0].mxu0
          %v3223 = vadd.f32 %v3055, %v3222
          %v3224 = vpop.f32.mrb[0].mxu0
          %3225 = vdwg.mxu0
          %s3226 = smul.u32 %s1227, 2
          %s3227 = smul.addr %s3226, 4
          %s3228 = scalar_lea.vmem %s386, %s3227 [#allocation3]
          %v3229 = vld [vmem:[%s3228] sm:$0xf]
          %v3230 = vld [vmem:[%s3228 + $0x4] sm:$0xf]
          %v3231 = vld [vmem:[%s3228 + $0x8] sm:$0xf]
          %v3232 = vld [vmem:[%s3228 + $0xc] sm:$0xf]
          %v3233 = vld [vmem:[%s3228 + $0x10] sm:$0xf]
          %v3234 = vld [vmem:[%s3228 + $0x14] sm:$0xf]
          %v3235 = vld [vmem:[%s3228 + $0x18] sm:$0xf]
          %v3236 = vld [vmem:[%s3228 + $0x1c] sm:$0xf]
          %v3237 = vld [vmem:[%s3228 + $0x20] sm:$0xf]
          %v3238 = vld [vmem:[%s3228 + $0x24] sm:$0xf]
          %v3239 = vld [vmem:[%s3228 + $0x28] sm:$0xf]
          %v3240 = vld [vmem:[%s3228 + $0x2c] sm:$0xf]
          %v3241 = vld [vmem:[%s3228 + $0x30] sm:$0xf]
          %v3242 = vld [vmem:[%s3228 + $0x34] sm:$0xf]
          %v3243 = vld [vmem:[%s3228 + $0x38] sm:$0xf]
          %v3244 = vld [vmem:[%s3228 + $0x3c] sm:$0xf]
          %v3245 = vld [vmem:[%s3228 + $0x40] sm:$0xf]
          %v3246 = vld [vmem:[%s3228 + $0x44] sm:$0xf]
          %v3247 = vld [vmem:[%s3228 + $0x48] sm:$0xf]
          %v3248 = vld [vmem:[%s3228 + $0x4c] sm:$0xf]
          %v3249 = vld [vmem:[%s3228 + $0x50] sm:$0xf]
          %v3250 = vld [vmem:[%s3228 + $0x54] sm:$0xf]
          %v3251 = vld [vmem:[%s3228 + $0x58] sm:$0xf]
          %v3252 = vld [vmem:[%s3228 + $0x5c] sm:$0xf]
          %v3253 = vld [vmem:[#allocation15] sm:$0xf]
          %v3255 = vlaneseq
          %v3256 = vshrl.u32 %v3255, 7
          %v3257 = vsub.s32 0, %v3256
          %v3258 = vrot.slane %v517, %v3257
          %v3284 = vunpack.c.l.b16 %v3229
          %v3285 = vunpack.c.l.b16 %v3230
          %v3286 = vunpack.c.l.b16 %v3231
          %v3287 = vunpack.c.l.b16 %v3232
          %v3288 = vunpack.c.l.b16 %v3233
          %v3289 = vunpack.c.l.b16 %v3234
          %v3290 = vunpack.c.l.b16 %v3235
          %v3291 = vunpack.c.l.b16 %v3236
          %v3292 = vunpack.c.l.b16 %v3237
          %v3293 = vunpack.c.l.b16 %v3238
          %v3294 = vunpack.c.l.b16 %v3239
          %v3295 = vunpack.c.l.b16 %v3240
          %v3296 = vunpack.c.l.b16 %v3241
          %v3297 = vunpack.c.l.b16 %v3242
          %v3298 = vunpack.c.l.b16 %v3243
          %v3299 = vunpack.c.l.b16 %v3244
          %v3300 = vunpack.c.l.b16 %v3245
          %v3301 = vunpack.c.l.b16 %v3246
          %v3302 = vunpack.c.l.b16 %v3247
          %v3303 = vunpack.c.l.b16 %v3248
          %v3304 = vunpack.c.l.b16 %v3249
          %v3305 = vunpack.c.l.b16 %v3250
          %v3306 = vunpack.c.l.b16 %v3251
          %v3307 = vunpack.c.l.b16 %v3252
          %v3308 = vpack.c.b16 %v3285, %v3284
          %v3309 = vpack.c.b16 %v3287, %v3286
          %v3310 = vpack.c.b16 %v3289, %v3288
          %v3311 = vpack.c.b16 %v3291, %v3290
          %v3312 = vpack.c.b16 %v3293, %v3292
          %v3313 = vpack.c.b16 %v3295, %v3294
          %v3314 = vpack.c.b16 %v3297, %v3296
          %v3315 = vpack.c.b16 %v3299, %v3298
          %v3316 = vpack.c.b16 %v3301, %v3300
          %v3317 = vpack.c.b16 %v3303, %v3302
          %v3318 = vpack.c.b16 %v3305, %v3304
          %v3319 = vpack.c.b16 %v3307, %v3306
          %v3321 = vsel %vm1618, %v3308, 0
          %v3324 = vsel %vm1618, %v3309, 0
          %v3327 = vsel %vm1618, %v3310, 0
          %v3330 = vsel %vm1618, %v3311, 0
          %v3333 = vsel %vm1618, %v3312, 0
          %v3336 = vsel %vm1618, %v3313, 0
          %v3339 = vsel %vm1618, %v3314, 0
          %v3342 = vsel %vm1618, %v3315, 0
          %v3345 = vsel %vm1618, %v3316, 0
          %v3348 = vsel %vm1618, %v3317, 0
          %v3351 = vsel %vm1618, %v3318, 0
          %v3354 = vsel %vm1618, %v3319, 0
          %vm3356 = vcmask 1043456
          %v3358 = vsel %vm3356, %v3253, 0
          %3360 = vmatprep.subr.bf16.mxu0 0
          %3361 = vmatpush1.bf16.msra.mxu0 %v3358
          %3362 = vmatprep.subr.bf16.mxu0 0
          %3363 = vmatpush1.bf16.msra.mxu0 0
          %3364 = vmatprep.subr.bf16.mxu0 0
          %3365 = vmatpush1.bf16.msra.mxu0 0
          %3366 = vmatprep.subr.bf16.mxu0 0
          %3367 = vmatpush1.bf16.msra.mxu0 0
          %3368 = vmatprep.subr.bf16.mxu0 0
          %3369 = vmatpush1.bf16.msra.mxu0 0
          %3370 = vmatprep.subr.bf16.mxu0 0
          %3371 = vmatpush1.bf16.msra.mxu0 0
          %3372 = vmatprep.subr.bf16.mxu0 0
          %3373 = vmatpush1.bf16.msra.mxu0 0
          %3374 = vmatprep.subr.bf16.mxu0 0
          %3375 = vmatpush1.bf16.msra.mxu0 0
          %3376 = vmatprep.subr.bf16.mxu0 0
          %3377 = vmatpush1.bf16.msra.mxu0 0
          %3378 = vmatprep.subr.bf16.mxu0 0
          %3379 = vmatpush1.bf16.msra.mxu0 0
          %3380 = vmatprep.subr.bf16.mxu0 0
          %3381 = vmatpush1.bf16.msra.mxu0 0
          %3382 = vmatprep.subr.bf16.mxu0 0
          %3383 = vmatpush1.bf16.msra.mxu0 0
          %3384 = vmatprep.subr.bf16.mxu0 0
          %3385 = vmatpush1.bf16.msra.mxu0 0
          %3386 = vmatprep.subr.bf16.mxu0 0
          %3387 = vmatpush1.bf16.msra.mxu0 0
          %3388 = vmatprep.subr.bf16.mxu0 0
          %3389 = vmatpush1.bf16.msra.mxu0 0
          %3390 = vmatprep.subr.bf16.mxu0 0
          %3391 = vmatpush1.bf16.msra.mxu0 0
          %3392 = vmatprep.mubr.bf16.mxu0 0
          %3393 = vmatmul.mubr.bf16.gmra.mrb[0].mxu0 %v3321
          %v3394 = vpop.f32.mrb[0].mxu0
          %v3395 = vadd.f32 %v3258, %v3394
          %v3396 = vpop.f32.mrb[0].mxu0
          %v3397 = vpop.f32.mrb[0].mxu0
          %v3398 = vadd.f32 %v3258, %v3397
          %v3399 = vpop.f32.mrb[0].mxu0
          %3400 = vmatprep.mubr.bf16.mxu0 0
          %3401 = vmatmul.mubr.bf16.gmra.mrb[0].mxu0 %v3324
          %v3402 = vpop.f32.mrb[0].mxu0
          %v3403 = vadd.f32 %v3258, %v3402
          %v3404 = vpop.f32.mrb[0].mxu0
          %v3405 = vpop.f32.mrb[0].mxu0
          %v3406 = vadd.f32 %v3258, %v3405
          %v3407 = vpop.f32.mrb[0].mxu0
          %3408 = vmatprep.mubr.bf16.mxu0 0
          %3409 = vmatmul.mubr.bf16.gmra.mrb[0].mxu0 %v3327
          %v3410 = vpop.f32.mrb[0].mxu0
          %v3411 = vadd.f32 %v3258, %v3410
          %v3412 = vpop.f32.mrb[0].mxu0
          %v3413 = vpop.f32.mrb[0].mxu0
          %v3414 = vadd.f32 %v3258, %v3413
          %v3415 = vpop.f32.mrb[0].mxu0
          %3416 = vmatprep.mubr.bf16.mxu0 0
          %3417 = vmatmul.mubr.bf16.gmra.mrb[0].mxu0 %v3330
          %v3418 = vpop.f32.mrb[0].mxu0
          %v3419 = vadd.f32 %v3258, %v3418
          %v3420 = vpop.f32.mrb[0].mxu0
          %v3421 = vpop.f32.mrb[0].mxu0
          %v3422 = vadd.f32 %v3258, %v3421
          %v3423 = vpop.f32.mrb[0].mxu0
          %3424 = vmatprep.mubr.bf16.mxu0 0
          %3425 = vmatmul.mubr.bf16.gmra.mrb[0].mxu0 %v3333
          %v3426 = vpop.f32.mrb[0].mxu0
          %v3427 = vadd.f32 %v3258, %v3426
          %v3428 = vpop.f32.mrb[0].mxu0
          %v3429 = vpop.f32.mrb[0].mxu0
          %v3430 = vadd.f32 %v3258, %v3429
          %v3431 = vpop.f32.mrb[0].mxu0
          %3432 = vmatprep.mubr.bf16.mxu0 0
          %3433 = vmatmul.mubr.bf16.gmra.mrb[0].mxu0 %v3336
          %v3434 = vpop.f32.mrb[0].mxu0
          %v3435 = vadd.f32 %v3258, %v3434
          %v3436 = vpop.f32.mrb[0].mxu0
          %v3437 = vpop.f32.mrb[0].mxu0
          %v3438 = vadd.f32 %v3258, %v3437
          %v3439 = vpop.f32.mrb[0].mxu0
          %3440 = vmatprep.mubr.bf16.mxu0 0
          %3441 = vmatmul.mubr.bf16.gmra.mrb[0].mxu0 %v3339
          %v3442 = vpop.f32.mrb[0].mxu0
          %v3443 = vadd.f32 %v3258, %v3442
          %v3444 = vpop.f32.mrb[0].mxu0
          %v3445 = vpop.f32.mrb[0].mxu0
          %v3446 = vadd.f32 %v3258, %v3445
          %v3447 = vpop.f32.mrb[0].mxu0
          %3448 = vmatprep.mubr.bf16.mxu0 0
          %3449 = vmatmul.mubr.bf16.gmra.mrb[0].mxu0 %v3342
          %v3450 = vpop.f32.mrb[0].mxu0
          %v3451 = vadd.f32 %v3258, %v3450
          %v3452 = vpop.f32.mrb[0].mxu0
          %v3453 = vpop.f32.mrb[0].mxu0
          %v3454 = vadd.f32 %v3258, %v3453
          %v3455 = vpop.f32.mrb[0].mxu0
          %3456 = vmatprep.mubr.bf16.mxu0 0
          %3457 = vmatmul.mubr.bf16.gmra.mrb[0].mxu0 %v3345
          %v3458 = vpop.f32.mrb[0].mxu0
          %v3459 = vadd.f32 %v3258, %v3458
          %v3460 = vpop.f32.mrb[0].mxu0
          %v3461 = vpop.f32.mrb[0].mxu0
          %v3462 = vadd.f32 %v3258, %v3461
          %v3463 = vpop.f32.mrb[0].mxu0
          %3464 = vmatprep.mubr.bf16.mxu0 0
          %3465 = vmatmul.mubr.bf16.gmra.mrb[0].mxu0 %v3348
          %v3466 = vpop.f32.mrb[0].mxu0
          %v3467 = vadd.f32 %v3258, %v3466
          %v3468 = vpop.f32.mrb[0].mxu0
          %v3469 = vpop.f32.mrb[0].mxu0
          %v3470 = vadd.f32 %v3258, %v3469
          %v3471 = vpop.f32.mrb[0].mxu0
          %3472 = vmatprep.mubr.bf16.mxu0 0
          %3473 = vmatmul.mubr.bf16.gmra.mrb[0].mxu0 %v3351
          %v3474 = vpop.f32.mrb[0].mxu0
          %v3475 = vadd.f32 %v3258, %v3474
          %v3476 = vpop.f32.mrb[0].mxu0
          %v3477 = vpop.f32.mrb[0].mxu0
          %v3478 = vadd.f32 %v3258, %v3477
          %v3479 = vpop.f32.mrb[0].mxu0
          %3480 = vmatprep.mubr.bf16.mxu0 0
          %3481 = vmatmul.mubr.bf16.gmra.mrb[0].mxu0 %v3354
          %v3482 = vpop.f32.mrb[0].mxu0
          %v3483 = vadd.f32 %v3258, %v3482
          %v3484 = vpop.f32.mrb[0].mxu0
          %v3485 = vpop.f32.mrb[0].mxu0
          %v3486 = vadd.f32 %v3258, %v3485
          %v3487 = vpop.f32.mrb[0].mxu0
          %3488 = vdwg.mxu0
          %v3489 = vadd.f32 %v3132, %v3395
          %v3490 = vadd.f32 %v3135, %v3398
          %v3491 = vadd.f32 %v3140, %v3403
          %v3492 = vadd.f32 %v3143, %v3406
          %v3493 = vadd.f32 %v3148, %v3411
          %v3494 = vadd.f32 %v3151, %v3414
          %v3495 = vadd.f32 %v3156, %v3419
          %v3496 = vadd.f32 %v3159, %v3422
          %v3497 = vadd.f32 %v3164, %v3427
          %v3498 = vadd.f32 %v3167, %v3430
          %v3499 = vadd.f32 %v3172, %v3435
          %v3500 = vadd.f32 %v3175, %v3438
          %v3501 = vadd.f32 %v3180, %v3443
          %v3502 = vadd.f32 %v3183, %v3446
          %v3503 = vadd.f32 %v3188, %v3451
          %v3504 = vadd.f32 %v3191, %v3454
          %v3505 = vadd.f32 %v3196, %v3459
          %v3506 = vadd.f32 %v3199, %v3462
          %v3507 = vadd.f32 %v3204, %v3467
          %v3508 = vadd.f32 %v3207, %v3470
          %v3509 = vadd.f32 %v3212, %v3475
          %v3510 = vadd.f32 %v3215, %v3478
          %v3511 = vadd.f32 %v3220, %v3483
          %v3512 = vadd.f32 %v3223, %v3486
          %v3513 = vmax.f32 %v3489, 0.0
          %v3514 = vmax.f32 %v3490, 0.0
          %v3515 = vmax.f32 %v3491, 0.0
          %v3516 = vmax.f32 %v3492, 0.0
          %v3517 = vmax.f32 %v3493, 0.0
          %v3518 = vmax.f32 %v3494, 0.0
          %v3519 = vmax.f32 %v3495, 0.0
          %v3520 = vmax.f32 %v3496, 0.0
          %v3521 = vmax.f32 %v3497, 0.0
          %v3522 = vmax.f32 %v3498, 0.0
          %v3523 = vmax.f32 %v3499, 0.0
          %v3524 = vmax.f32 %v3500, 0.0
          %v3525 = vmax.f32 %v3501, 0.0
          %v3526 = vmax.f32 %v3502, 0.0
          %v3527 = vmax.f32 %v3503, 0.0
          %v3528 = vmax.f32 %v3504, 0.0
          %v3529 = vmax.f32 %v3505, 0.0
          %v3530 = vmax.f32 %v3506, 0.0
          %v3531 = vmax.f32 %v3507, 0.0
          %v3532 = vmax.f32 %v3508, 0.0
          %v3533 = vmax.f32 %v3509, 0.0
          %v3534 = vmax.f32 %v3510, 0.0
          %v3535 = vmax.f32 %v3511, 0.0
          %v3536 = vmax.f32 %v3512, 0.0
          %v3537 = vpack.c.bf16 %v3514, %v3513
          %v3538 = vpack.c.bf16 %v3516, %v3515
          %v3539 = vpack.c.bf16 %v3518, %v3517
          %v3540 = vpack.c.bf16 %v3520, %v3519
          %v3541 = vpack.c.bf16 %v3522, %v3521
          %v3542 = vpack.c.bf16 %v3524, %v3523
          %v3543 = vpack.c.bf16 %v3526, %v3525
          %v3544 = vpack.c.bf16 %v3528, %v3527
          %v3545 = vpack.c.bf16 %v3530, %v3529
          %v3546 = vpack.c.bf16 %v3532, %v3531
          %v3547 = vpack.c.bf16 %v3534, %v3533
          %v3548 = vpack.c.bf16 %v3536, %v3535
          %v3561 = vunpack.c.l.b16 %v3537
          %v3562 = vunpack.c.h.b16 %v3537
          %v3563 = vunpack.c.l.b16 %v3538
          %v3564 = vunpack.c.h.b16 %v3538
          %v3565 = vunpack.c.l.b16 %v3539
          %v3566 = vunpack.c.h.b16 %v3539
          %v3567 = vunpack.c.l.b16 %v3540
          %v3568 = vunpack.c.h.b16 %v3540
          %v3569 = vunpack.c.l.b16 %v3541
          %v3570 = vunpack.c.h.b16 %v3541
          %v3571 = vunpack.c.l.b16 %v3542
          %v3572 = vunpack.c.h.b16 %v3542
          %v3573 = vunpack.c.l.b16 %v3543
          %v3574 = vunpack.c.h.b16 %v3543
          %v3575 = vunpack.c.l.b16 %v3544
          %v3576 = vunpack.c.h.b16 %v3544
          %v3577 = vunpack.c.l.b16 %v3545
          %v3578 = vunpack.c.h.b16 %v3545
          %v3579 = vunpack.c.l.b16 %v3546
          %v3580 = vunpack.c.h.b16 %v3546
          %v3581 = vunpack.c.l.b16 %v3547
          %v3582 = vunpack.c.h.b16 %v3547
          %v3583 = vunpack.c.l.b16 %v3548
          %v3584 = vunpack.c.h.b16 %v3548
          %v3585 = vpack.c.b16 %v3561, %v3561
          %v3586 = vpack.c.b16 %v3562, %v3562
          %v3587 = vpack.c.b16 %v3563, %v3563
          %v3588 = vpack.c.b16 %v3564, %v3564
          %v3589 = vpack.c.b16 %v3565, %v3565
          %v3590 = vpack.c.b16 %v3566, %v3566
          %v3591 = vpack.c.b16 %v3567, %v3567
          %v3592 = vpack.c.b16 %v3568, %v3568
          %v3593 = vpack.c.b16 %v3569, %v3569
          %v3594 = vpack.c.b16 %v3570, %v3570
          %v3595 = vpack.c.b16 %v3571, %v3571
          %v3596 = vpack.c.b16 %v3572, %v3572
          %v3597 = vpack.c.b16 %v3573, %v3573
          %v3598 = vpack.c.b16 %v3574, %v3574
          %v3599 = vpack.c.b16 %v3575, %v3575
          %v3600 = vpack.c.b16 %v3576, %v3576
          %v3601 = vpack.c.b16 %v3577, %v3577
          %v3602 = vpack.c.b16 %v3578, %v3578
          %v3603 = vpack.c.b16 %v3579, %v3579
          %v3604 = vpack.c.b16 %v3580, %v3580
          %v3605 = vpack.c.b16 %v3581, %v3581
          %v3606 = vpack.c.b16 %v3582, %v3582
          %v3607 = vpack.c.b16 %v3583, %v3583
          %v3608 = vpack.c.b16 %v3584, %v3584
          %s3633 = smul.addr %s3226, 4
          %s3634 = scalar_lea.vmem %s452, %s3633 [#allocation18]
          %vm3635 = vcmask 125952
          %3636 = vst.msk [vmem:[%s3634] sm:$0xf] %vm3635, %v3585
          %3637 = vst.msk [vmem:[%s3634 + $0x4] sm:$0xf] %vm3635, %v3586
          %3638 = vst.msk [vmem:[%s3634 + $0x8] sm:$0xf] %vm3635, %v3587
          %3639 = vst.msk [vmem:[%s3634 + $0xc] sm:$0xf] %vm3635, %v3588
          %3640 = vst.msk [vmem:[%s3634 + $0x10] sm:$0xf] %vm3635, %v3589
          %3641 = vst.msk [vmem:[%s3634 + $0x14] sm:$0xf] %vm3635, %v3590
          %3642 = vst.msk [vmem:[%s3634 + $0x18] sm:$0xf] %vm3635, %v3591
          %3643 = vst.msk [vmem:[%s3634 + $0x1c] sm:$0xf] %vm3635, %v3592
          %3644 = vst.msk [vmem:[%s3634 + $0x20] sm:$0xf] %vm3635, %v3593
          %3645 = vst.msk [vmem:[%s3634 + $0x24] sm:$0xf] %vm3635, %v3594
          %3646 = vst.msk [vmem:[%s3634 + $0x28] sm:$0xf] %vm3635, %v3595
          %3647 = vst.msk [vmem:[%s3634 + $0x2c] sm:$0xf] %vm3635, %v3596
          %3648 = vst.msk [vmem:[%s3634 + $0x30] sm:$0xf] %vm3635, %v3597
          %3649 = vst.msk [vmem:[%s3634 + $0x34] sm:$0xf] %vm3635, %v3598
          %3650 = vst.msk [vmem:[%s3634 + $0x38] sm:$0xf] %vm3635, %v3599
          %3651 = vst.msk [vmem:[%s3634 + $0x3c] sm:$0xf] %vm3635, %v3600
          %3652 = vst.msk [vmem:[%s3634 + $0x40] sm:$0xf] %vm3635, %v3601
          %3653 = vst.msk [vmem:[%s3634 + $0x44] sm:$0xf] %vm3635, %v3602
          %3654 = vst.msk [vmem:[%s3634 + $0x48] sm:$0xf] %vm3635, %v3603
          %3655 = vst.msk [vmem:[%s3634 + $0x4c] sm:$0xf] %vm3635, %v3604
          %3656 = vst.msk [vmem:[%s3634 + $0x50] sm:$0xf] %vm3635, %v3605
          %3657 = vst.msk [vmem:[%s3634 + $0x54] sm:$0xf] %vm3635, %v3606
          %3658 = vst.msk [vmem:[%s3634 + $0x58] sm:$0xf] %vm3635, %v3607
          %3659 = vst.msk [vmem:[%s3634 + $0x5c] sm:$0xf] %vm3635, %v3608
        $region104: #{_forward_impl.1} parent=55 // loop_footer
          %s1226 = sadd.s32 1, %s1222
        $region105: #{_forward_impl.1} parent=55 // loop_footer_branch
          %1221 = sbr.rel target = $region101
        $region106: #{_forward_impl.1} parent=55 // loop_exit
          _
        %s3660 = sand.u32 %s232, 1
        %s3661 = scalar_lea.sflag [#allocation5], %s3660
        %s3662 = sand.u32 %s232, 1
        %s3663 = smul.addr %s3662, 192
        %s3664 = scalar_lea.vmem [#allocation18], %s3663
        // Predicated region
        $region107: #{_forward_impl.1} parent=55 // pred_check
          %p3665 = pneg %p242
        $region108: #{_forward_impl.1} parent=55 // pred_check_branch
          %3667 = sbr.rel (%p3665) target = $region110
        $region109: #{_forward_impl.1} parent=55 // pred_region
          %s3669 = ssub.s32 3072, 3072
          %3670 = vsyncadd %s3661, %s3669
          %s3671 = smul.addr %s30, 48
          %s3672 = smul.addr %s3671, 64
          %s3673 = scalar_lea.hbm %s9, %s3672
          %s3674 = sshll.u32 %s3664, 4
          %s3675 = int_to_ptr.vmem [resolvable:$true] %s3674
          %3680 = dma.vmem_to_hbm [thread:$0]  %s3675, 3072, %s3673, %s3661, 64, 64, 4
        $region110: #{_forward_impl.1} parent=55 // pred_fallthru
          _
      $region56: #{_forward_impl.1} parent=5 // pred_fallthru
        _
      %p3681 = scmp.le.s32.totalorder 2, %s25
      // Predicated region
      $region111: #{_forward_impl.1} parent=5 // pred_check
        %p3682 = pneg %p3681
      $region112: #{_forward_impl.1} parent=5 // pred_check_branch
        %3684 = sbr.rel (%p3682) target = $region114
      $region113: #{_forward_impl.1} parent=5 // pred_region
        %s3685 = ssub.s32 %s25, 2
        // Predicated region
        $region115: #{_forward_impl.1} parent=113 // pred_check
          %p3686 = pneg %p248
        $region116: #{_forward_impl.1} parent=113 // pred_check_branch
          %3688 = sbr.rel (%p3686) target = $region118
        $region117: #{_forward_impl.1} parent=113 // pred_region
          %s3689 = sand.u32 %s233, 1
          %s3690 = scalar_lea.sflag [#allocation5], %s3689
          %s3691 = sand.u32 %s233, 1
          %s3692 = smul.addr %s3691, 192
          %s3693 = scalar_lea.vmem [#allocation18], %s3692
          %3694 = dma.done %s3690, 3072
        $region118: #{_forward_impl.1} parent=113 // pred_fallthru
          _
      $region114: #{_forward_impl.1} parent=5 // pred_fallthru
        _
    $region6: #{_forward_impl.1} parent=1 // loop_footer
      %s29 = sadd.s32 1, %s25
    $region7: #{_forward_impl.1} parent=1 // loop_footer_branch
      %24 = sbr.rel target = $region3
    $region8: #{_forward_impl.1} parent=1 // loop_exit
      _
    %3695 = vsyncpa [#allocation4], 1
    %s3696 = scalar_lea.sflag [#allocation4], 1
    %3697 = vsyncpa %s3696, 1
    %3698 = vsyncpa [#allocation7], 1
    %3699 = vsyncpa [#allocation10], 1
    %3700 = vsyncpa [#allocation13], 1
    %3701 = vsyncpa [#allocation16], 1
    %3702 = vsyncpa [#allocation5], 1
    %s3703 = scalar_lea.sflag [#allocation5], 1
    %3704 = vsyncpa %s3703, 1

</llo_original>
